<compile_context>
chip_gen: v5e
topology: v5e:2x2
jax: 0.10.0
libtpu: 0.0.40
codegen_flags: <defaults>
</compile_context>

<pallas_src>
import functools

import jax
import jax.numpy as jnp
import numpy as np
from jax.experimental import pallas as pl
from jax.experimental.pallas import tpu as pltpu


_VMEM_LIMIT_BYTES = 48 * 1024 * 1024  # leaves headroom on v7x's 64 MiB VMEM


# ------------------------------ kernels ------------------------------------ #
def gcn0_kernel(adj_ref, x_ref, w0_ref, b0_ref, wa_ref, ba_ref,
                h_ref, logit_ref, acc_ref):
    """h = relu((Â @ X) @ W0 + b0); logits = h @ wa + ba.  Grid: (rows, K)."""
    k = pl.program_id(1)

    @pl.when(k == 0)
    def _init():
        acc_ref[...] = jnp.zeros_like(acc_ref)

    # Reassociated: contract Â against X first (N^2*C_in MACs, not N^2*H).
    acc_ref[...] += jnp.dot(adj_ref[...], x_ref[...],
                            preferred_element_type=jnp.float32)

    @pl.when(k == pl.num_programs(1) - 1)
    def _epilogue():
        h = jnp.dot(acc_ref[...], w0_ref[...],
                    preferred_element_type=jnp.float32) + b0_ref[...]
        h = jnp.maximum(h, 0.0)
        h_ref[...] = h
        # attention logits as an MXU matmul (not mul + lane-reduce on the XLU)
        logit_ref[...] = jnp.dot(h, wa_ref[...],
                                 preferred_element_type=jnp.float32) + ba_ref[...]


def attn_stats_kernel(logit_ref, m_ref, s_ref):
    """Global softmax stats over the node axis (cross-tile reduction)."""
    l = logit_ref[...]                              # [N, 1]
    m = jnp.max(l, axis=0, keepdims=True)           # [1, 1]
    m_ref[...] = m
    s_ref[...] = jnp.sum(jnp.exp(l - m), axis=0, keepdims=True)


def attn_apply_kernel(h_ref, logit_ref, m_ref, s_ref, whe_ref, z_ref):
    """attn = softmax(logits, axis=0); z = (h * attn) @ hyperedge_weight."""
    s = s_ref[...]
    inv_s = pl.reciprocal(s, approx=True)           # EUP approximate reciprocal
    inv_s = inv_s * (2.0 - s * inv_s)               # one Newton step -> f32-level accuracy
    attn = jnp.exp(logit_ref[...] - m_ref[...]) * inv_s
    hz = h_ref[...] * attn
    z_ref[...] = jnp.dot(hz, whe_ref[...],
                         preferred_element_type=jnp.float32).astype(z_ref.dtype)


def gcn1_kernel(adj_ref, z_ref, w1_ref, b1_ref, w2_ref, g_ref, acc_ref):
    """h1 = relu((Â @ z) * w1 + b1) (rank-1 factoring); g = h1 @ W2."""
    k = pl.program_id(1)

    @pl.when(k == 0)
    def _init():
        acc_ref[...] = jnp.zeros_like(acc_ref)

    acc_ref[...] += jnp.dot(adj_ref[...], z_ref[...],        # [tn, 1] matvec
                            preferred_element_type=jnp.float32)

    @pl.when(k == pl.num_programs(1) - 1)
    def _epilogue():
        h1 = jnp.maximum(acc_ref[...] * w1_ref[...] + b1_ref[...], 0.0)  # [tn,1]*[1,H]
        g_ref[...] = jnp.dot(h1, w2_ref[...],
                             preferred_element_type=jnp.float32).astype(g_ref.dtype)


def gcn2_kernel(adj_ref, g_ref, b2_ref, h2_ref, acc_ref):
    """h2 = relu(Â @ g + b2)."""
    k = pl.program_id(1)

    @pl.when(k == 0)
    def _init():
        acc_ref[...] = jnp.zeros_like(acc_ref)

    acc_ref[...] += jnp.dot(adj_ref[...], g_ref[...],
                            preferred_element_type=jnp.float32)

    @pl.when(k == pl.num_programs(1) - 1)
    def _epilogue():
        h2_ref[...] = jnp.maximum(acc_ref[...] + b2_ref[...], 0.0)


def pool_out_kernel(pool_ref, h2_ref, wo_ref, bo_ref, out_ref):
    """global_mean_pool (as matmul) + out linear + log_softmax(dim=1)."""
    pooled = jnp.dot(pool_ref[...], h2_ref[...],
                     preferred_element_type=jnp.float32)                 # [G, H]
    logit = jnp.dot(pooled, wo_ref[...],
                    preferred_element_type=jnp.float32) + bo_ref[...]    # [G, C_out]
    m = jnp.max(logit, axis=1, keepdims=True)
    lse = jnp.log(jnp.sum(jnp.exp(logit - m), axis=1, keepdims=True)) + m
    out_ref[...] = logit - lse


# ------------------------------ wrapper ------------------------------------ #
def _pick_row_tile(n):
    for cand in (256, 128, 64, 32, 16, 8):
        if n % cand == 0:
            return cand
    return n  # full extent (legal even if not a multiple of 8)


def _pick_k_tile(n):
    for cand in (512, 256, 128):
        if n % cand == 0:
            return cand
    return n  # lane dim must be a multiple of 128 or the full extent


@functools.partial(jax.jit, static_argnames=("compute_dtype", "tile_n", "tile_k"))
def shglnn_forward(x, adj, pool, params, *, compute_dtype=jnp.float32,
                   tile_n=None, tile_k=None):
    N, C_in = x.shape
    H = params["w0"].shape[1]
    C_out = params["wo"].shape[1]
    G = pool.shape[0]
    f32 = jnp.float32
    cdt = compute_dtype
    csz = jnp.dtype(cdt).itemsize

    if tile_n is None:
        tile_n = _pick_row_tile(N)
    if tile_k is None:
        tile_k = _pick_k_tile(N)
    if N % tile_n or N % tile_k:
        raise ValueError("tile sizes must divide the node count")
    if tile_n != N and tile_n % 8:
        raise ValueError("row tile must be a multiple of 8 or the full extent")
    if tile_k != N and tile_k % 128:
        raise ValueError("k tile must be a multiple of 128 or the full extent")
    n_row, n_k = N // tile_n, N // tile_k

    # bf16 option for v6e/v7x: halves adjacency traffic, 2x MXU rate
    # (accumulation stays f32 via preferred_element_type).
    adj_c = adj.astype(cdt)
    x_c = x.astype(cdt)

    vmem = pl.BlockSpec(memory_space=pltpu.MemorySpace.VMEM)
    cp2 = pltpu.CompilerParams(dimension_semantics=("parallel", "arbitrary"),
                               vmem_limit_bytes=_VMEM_LIMIT_BYTES)
    cp1 = pltpu.CompilerParams(dimension_semantics=("parallel",),
                               vmem_limit_bytes=_VMEM_LIMIT_BYTES)

    # ---- Stage 1: initial_gcn (+relu) and attention logits ---------------- #
    h, logits = pl.pallas_call(
        gcn0_kernel,
        out_shape=(jax.ShapeDtypeStruct((N, H), f32),
                   jax.ShapeDtypeStruct((N, 1), f32)),
        grid=(n_row, n_k),
        in_specs=[
            pl.BlockSpec((tile_n, tile_k), lambda i, k: (i, k)),   # adj
            pl.BlockSpec((tile_k, C_in), lambda i, k: (k, 0)),     # x
            pl.BlockSpec((C_in, H), lambda i, k: (0, 0)),          # w0
            pl.BlockSpec((1, H), lambda i, k: (0, 0)),             # b0
            pl.BlockSpec((H, 1), lambda i, k: (0, 0)),             # wa
            pl.BlockSpec((1, 1), lambda i, k: (0, 0)),             # ba
        ],
        out_specs=(pl.BlockSpec((tile_n, H), lambda i, k: (i, 0)),
                   pl.BlockSpec((tile_n, 1), lambda i, k: (i, 0))),
        scratch_shapes=[pltpu.VMEM((tile_n, C_in), f32)],
        compiler_params=cp2,
        cost_estimate=pl.CostEstimate(
            flops=int(2 * N * N * C_in + 2 * N * C_in * H + 2 * N * H),
            transcendentals=0,
            bytes_accessed=int((N * N + N * C_in) * csz
                               + (N * H + N + C_in * H + 2 * H + 2) * 4)),
    )(adj_c, x_c, params["w0"], params["b0"], params["wa"], params["ba"])

    # ---- Stage 2a: global softmax stats over the node axis ---------------- #
    m, s = pl.pallas_call(
        attn_stats_kernel,
        out_shape=(jax.ShapeDtypeStruct((1, 1), f32),
                   jax.ShapeDtypeStruct((1, 1), f32)),
        in_specs=[vmem],
        out_specs=(vmem, vmem),
    )(logits)

    # ---- Stage 2b: apply attention + hyperedge projection ----------------- #
    z = pl.pallas_call(
        attn_apply_kernel,
        out_shape=jax.ShapeDtypeStruct((N, 1), cdt),
        grid=(n_row,),
        in_specs=[
            pl.BlockSpec((tile_n, H), lambda i: (i, 0)),           # h
            pl.BlockSpec((tile_n, 1), lambda i: (i, 0)),           # logits
            pl.BlockSpec((1, 1), lambda i: (0, 0)),                # m
            pl.BlockSpec((1, 1), lambda i: (0, 0)),                # s
            pl.BlockSpec((H, 1), lambda i: (0, 0)),                # hyperedge_weight
        ],
        out_specs=pl.BlockSpec((tile_n, 1), lambda i: (i, 0)),
        compiler_params=cp1,
    )(h, logits, m, s, params["whe"])

    # ---- Stage 3: hidden_gcn1 (rank-1) fused with h1 @ W2 ------------------ #
    g = pl.pallas_call(
        gcn1_kernel,
        out_shape=jax.ShapeDtypeStruct((N, H), cdt),
        grid=(n_row, n_k),
        in_specs=[
            pl.BlockSpec((tile_n, tile_k), lambda i, k: (i, k)),   # adj
            pl.BlockSpec((tile_k, 1), lambda i, k: (k, 0)),        # z
            pl.BlockSpec((1, H), lambda i, k: (0, 0)),             # w1
            pl.BlockSpec((1, H), lambda i, k: (0, 0)),             # b1
            pl.BlockSpec((H, H), lambda i, k: (0, 0)),             # w2
        ],
        out_specs=pl.BlockSpec((tile_n, H), lambda i, k: (i, 0)),
        scratch_shapes=[pltpu.VMEM((tile_n, 1), f32)],
        compiler_params=cp2,
        cost_estimate=pl.CostEstimate(
            flops=int(2 * N * N + N * H + 2 * N * H * H),
            transcendentals=0,
            bytes_accessed=int((N * N + N + N * H) * csz + (2 * H + H * H) * 4)),
    )(adj_c, z, params["w1"], params["b1"], params["w2"])

    # ---- Stage 4: hidden_gcn2 aggregation (+relu) -------------------------- #
    h2 = pl.pallas_call(
        gcn2_kernel,
        out_shape=jax.ShapeDtypeStruct((N, H), f32),
        grid=(n_row, n_k),
        in_specs=[
            pl.BlockSpec((tile_n, tile_k), lambda i, k: (i, k)),   # adj
            pl.BlockSpec((tile_k, H), lambda i, k: (k, 0)),        # g
            pl.BlockSpec((1, H), lambda i, k: (0, 0)),             # b2
        ],
        out_specs=pl.BlockSpec((tile_n, H), lambda i, k: (i, 0)),
        scratch_shapes=[pltpu.VMEM((tile_n, H), f32)],
        compiler_params=cp2,
        cost_estimate=pl.CostEstimate(
            flops=int(2 * N * N * H),
            transcendentals=0,
            bytes_accessed=int((N * N + N * H) * csz + (N * H + H) * 4)),
    )(adj_c, g, params["b2"])

    # ---- Stage 5: pooling + out linear + log_softmax ----------------------- #
    out = pl.pallas_call(
        pool_out_kernel,
        out_shape=jax.ShapeDtypeStruct((G, C_out), f32),
        in_specs=[vmem] * 4,
        out_specs=vmem,
    )(pool, h2, params["wo"], params["bo"])

    return out


# ------------------------------ JAX glue ----------------------------------- #
# TODO(synk): for graphs too large for a dense [N,N] adjacency, a sparse CSR
# gather formulation (scalar-prefetch neighbour lists) would replace adj.
def build_norm_adj(edge_index, num_nodes):
    """Dense GCN-normalized adjacency: D^-1/2 (A + I) D^-1/2."""
    src, dst = edge_index
    a = jnp.zeros((num_nodes, num_nodes), jnp.float32)
    a = a.at[dst, src].set(1.0)                                      # src -> dst
    a = a.at[jnp.arange(num_nodes), jnp.arange(num_nodes)].set(1.0)  # self loops
    deg = jnp.sum(a, axis=1)
    dinv = jnp.where(deg > 0, 1.0 / jnp.sqrt(deg), 0.0)
    return dinv[:, None] * a * dinv[None, :]


def build_pool_matrix(batch, num_graphs, num_nodes):
    onehot = (batch[None, :] == jnp.arange(num_graphs)[:, None]).astype(jnp.float32)
    counts = jnp.sum(onehot, axis=1, keepdims=True)
    return onehot / jnp.maximum(counts, 1.0)


def reference_forward(x, adj, pool, p):
    """Pure-JAX reference mirroring the PyTorch forward (for validation)."""
    h = jnp.maximum(adj @ (x @ p["w0"]) + p["b0"], 0.0)
    logits = h @ p["wa"] + p["ba"]                       # [N, 1]
    attn = jax.nn.softmax(logits, axis=0)
    h = h * attn
    z = h @ p["whe"]                                     # [N, 1]
    h1 = jnp.maximum(adj @ (z * p["w1"]) + p["b1"], 0.0)
    h2 = jnp.maximum(adj @ (h1 @ p["w2"]) + p["b2"], 0.0)
    pooled = pool @ h2
    logit = pooled @ p["wo"] + p["bo"]
    return jax.nn.log_softmax(logit, axis=1)


def init_params(key, in_channels, hidden, out_channels):
    ks = jax.random.split(key, 6)
    scale = 0.5
    return {
        "w0": scale * jax.random.normal(ks[0], (in_channels, hidden), jnp.float32),
        "b0": jnp.zeros((1, hidden), jnp.float32),
        "wa": scale * jax.random.normal(ks[1], (hidden, 1), jnp.float32),   # attention_layer (H -> 1)
        "ba": jnp.zeros((1, 1), jnp.float32),
        "whe": jnp.ones((hidden, 1), jnp.float32),                          # hyperedge_weight = ones(H, 1)
        "w1": scale * jax.random.normal(ks[2], (1, hidden), jnp.float32),   # hidden_gcn1: input dim 1
        "b1": jnp.zeros((1, hidden), jnp.float32),
        "w2": scale * jax.random.normal(ks[3], (hidden, hidden), jnp.float32),
        "b2": jnp.zeros((1, hidden), jnp.float32),
        "wo": scale * jax.random.normal(ks[4], (hidden, out_channels), jnp.float32),
        "bo": scale * jax.random.normal(ks[5], (1, out_channels), jnp.float32),
    }


if __name__ == "__main__":
    # Keep the reference matmuls at full f32 accuracy for the comparison.
    jax.config.update("jax_default_matmul_precision", "highest")

    in_channels, hidden_channels, out_channels = 4, 32, 4
    nodes_per_graph, num_graphs = 128, 2
    num_nodes = nodes_per_graph * num_graphs          # 256 -> exercises a (4, 2) tile grid

    key = jax.random.PRNGKey(0)
    kx, kp = jax.random.split(key)
    x = jax.random.normal(kx, (num_nodes, in_channels), jnp.float32)

    # Two chain graphs (bidirectional edges).
    srcs, dsts = [], []
    for gidx in range(num_graphs):
        base = gidx * nodes_per_graph
        s = np.arange(base, base + nodes_per_graph - 1)
        d = s + 1
        srcs.append(np.concatenate([s, d]))
        dsts.append(np.concatenate([d, s]))
    edge_index = jnp.asarray(np.stack([np.concatenate(srcs), np.concatenate(dsts)]),
                             jnp.int32)
    batch = jnp.asarray(np.repeat(np.arange(num_graphs), nodes_per_graph), jnp.int32)

    adj = build_norm_adj(edge_index, num_nodes)
    pool = build_pool_matrix(batch, num_graphs, num_nodes)
    params = init_params(kp, in_channels, hidden_channels, out_channels)

    # Explicit small tiles so the test exercises multi-tile row blocks and the
    # k-accumulation path; omit them (or pass bigger ones) in production.
    out = shglnn_forward(x, adj, pool, params, tile_n=64, tile_k=128)
    out = jax.block_until_ready(out)

    ref = reference_forward(x, adj, pool, params)
    np.testing.assert_allclose(np.asarray(out), np.asarray(ref), atol=1e-3, rtol=1e-3)

    print("KERNEL_OK")
</pallas_src>

<mosaic_0001>
module attributes {stable_mosaic.version = 11 : i64} {
  func.func @gcn0_kernel(%arg0: i32, %arg1: i32, %arg2: memref<64x128xf32, #tpu.memory_space<vmem>>, %arg3: memref<128x4xf32, #tpu.memory_space<vmem>>, %arg4: memref<4x32xf32, #tpu.memory_space<vmem>>, %arg5: memref<1x32xf32, #tpu.memory_space<vmem>>, %arg6: memref<32x1xf32, #tpu.memory_space<vmem>>, %arg7: memref<1x1xf32, #tpu.memory_space<vmem>>, %arg8: memref<64x32xf32, #tpu.memory_space<vmem>>, %arg9: memref<64x1xf32, #tpu.memory_space<vmem>>, %arg10: memref<64x4xf32, #tpu.memory_space<vmem>>) attributes {dimension_semantics = [#tpu.dimension_semantics<parallel>, #tpu.dimension_semantics<arbitrary>], iteration_bounds = array<i64: 4, 2>, scalar_prefetch = 0 : i64, scratch_operands = 1 : i64, tpu.core_type = #tpu.core_type<tc>, window_params = [{transform_indices = @transform_0, window_bounds = array<i64: 64, 128>}, {transform_indices = @transform_1, window_bounds = array<i64: 128, 4>}, {pipeline_mode = #tpu.pipeline_mode<synchronous>, transform_indices = @transform_2, window_bounds = array<i64: 4, 32>}, {pipeline_mode = #tpu.pipeline_mode<synchronous>, transform_indices = @transform_3, window_bounds = array<i64: 1, 32>}, {pipeline_mode = #tpu.pipeline_mode<synchronous>, transform_indices = @transform_4, window_bounds = array<i64: 32, 1>}, {pipeline_mode = #tpu.pipeline_mode<synchronous>, transform_indices = @transform_5, window_bounds = array<i64: 1, 1>}, {transform_indices = @transform_6, window_bounds = array<i64: 64, 32>}, {transform_indices = @transform_7, window_bounds = array<i64: 64, 1>}]} {
    %c0_i32 = arith.constant 0 : i32
    %0 = arith.cmpi eq, %arg1, %c0_i32 : i32
    %1 = arith.extui %0 : i1 to i32
    %c0_i32_0 = arith.constant 0 : i32
    %2 = arith.cmpi ne, %1, %c0_i32_0 : i32
    scf.if %2 {
      %cst_9 = arith.constant 0.000000e+00 : f32
      %12 = vector.broadcast %cst_9 : f32 to vector<64x4xf32>
      %c0_10 = arith.constant 0 : index
      %c0_11 = arith.constant 0 : index
      %13 = vector.load %arg10[%c0_10, %c0_11] : memref<64x4xf32, #tpu.memory_space<vmem>>, vector<64x4xf32>
      tpu.vector_store %arg10[%c0_10, %c0_11], %12 {strides = array<i32>} : memref<64x4xf32, #tpu.memory_space<vmem>>, vector<64x4xf32>,
    } else {
    }
    %c0 = arith.constant 0 : index
    %c0_1 = arith.constant 0 : index
    %3 = vector.load %arg10[%c0, %c0_1] : memref<64x4xf32, #tpu.memory_space<vmem>>, vector<64x4xf32>
    %c0_2 = arith.constant 0 : index
    %c0_3 = arith.constant 0 : index
    %4 = vector.load %arg2[%c0_2, %c0_3] : memref<64x128xf32, #tpu.memory_space<vmem>>, vector<64x128xf32>
    %c0_4 = arith.constant 0 : index
    %c0_5 = arith.constant 0 : index
    %5 = vector.load %arg3[%c0_4, %c0_5] : memref<128x4xf32, #tpu.memory_space<vmem>>, vector<128x4xf32>
    %cst = arith.constant dense<0.000000e+00> : vector<64x4xf32>
    %6 = tpu.matmul %4, %5, %cst {dimension_numbers = #tpu.dot_dimension_numbers<[1], [0], [0], [1], [0, 0, 1, 1], [], []>, precision = #tpu.contract_precision<fp32>} : vector<64x128xf32>, vector<128x4xf32>, vector<64x4xf32> -> vector<64x4xf32>
    %7 = arith.addf %3, %6 : vector<64x4xf32>
    %c0_6 = arith.constant 0 : index
    %c0_7 = arith.constant 0 : index
    %8 = vector.load %arg10[%c0_6, %c0_7] : memref<64x4xf32, #tpu.memory_space<vmem>>, vector<64x4xf32>
    tpu.vector_store %arg10[%c0_6, %c0_7], %7 {strides = array<i32>} : memref<64x4xf32, #tpu.memory_space<vmem>>, vector<64x4xf32>,
    %c1_i32 = arith.constant 1 : i32
    %9 = arith.cmpi eq, %arg1, %c1_i32 : i32
    %10 = arith.extui %9 : i1 to i32
    %c0_i32_8 = arith.constant 0 : i32
    %11 = arith.cmpi ne, %10, %c0_i32_8 : i32
    scf.if %11 {
      %c0_9 = arith.constant 0 : index
      %c0_10 = arith.constant 0 : index
      %12 = vector.load %arg10[%c0_9, %c0_10] : memref<64x4xf32, #tpu.memory_space<vmem>>, vector<64x4xf32>
      %c0_11 = arith.constant 0 : index
      %c0_12 = arith.constant 0 : index
      %13 = vector.load %arg4[%c0_11, %c0_12] : memref<4x32xf32, #tpu.memory_space<vmem>>, vector<4x32xf32>
      %cst_13 = arith.constant dense<0.000000e+00> : vector<64x32xf32>
      %14 = tpu.matmul %12, %13, %cst_13 {dimension_numbers = #tpu.dot_dimension_numbers<[1], [0], [0], [1], [0, 0, 1, 1], [], []>, precision = #tpu.contract_precision<fp32>} : vector<64x4xf32>, vector<4x32xf32>, vector<64x32xf32> -> vector<64x32xf32>
      %c0_14 = arith.constant 0 : index
      %c0_15 = arith.constant 0 : index
      %15 = vector.load %arg5[%c0_14, %c0_15] : memref<1x32xf32, #tpu.memory_space<vmem>>, vector<1x32xf32>
      %16 = vector.broadcast %15 : vector<1x32xf32> to vector<64x32xf32>
      %17 = arith.addf %14, %16 : vector<64x32xf32>
      %cst_16 = arith.constant 0.000000e+00 : f32
      %18 = vector.broadcast %cst_16 : f32 to vector<64x32xf32>
      %19 = arith.maximumf %17, %18 : vector<64x32xf32>
      %c0_17 = arith.constant 0 : index
      %c0_18 = arith.constant 0 : index
      %20 = vector.load %arg8[%c0_17, %c0_18] : memref<64x32xf32, #tpu.memory_space<vmem>>, vector<64x32xf32>
      tpu.vector_store %arg8[%c0_17, %c0_18], %19 {strides = array<i32>} : memref<64x32xf32, #tpu.memory_space<vmem>>, vector<64x32xf32>,
      %c0_19 = arith.constant 0 : index
      %c0_20 = arith.constant 0 : index
      %21 = vector.load %arg6[%c0_19, %c0_20] : memref<32x1xf32, #tpu.memory_space<vmem>>, vector<32x1xf32>
      %cst_21 = arith.constant dense<0.000000e+00> : vector<64x1xf32>
      %22 = tpu.matmul %19, %21, %cst_21 {dimension_numbers = #tpu.dot_dimension_numbers<[1], [0], [0], [1], [0, 0, 1, 1], [], []>, precision = #tpu.contract_precision<fp32>} : vector<64x32xf32>, vector<32x1xf32>, vector<64x1xf32> -> vector<64x1xf32>
      %c0_22 = arith.constant 0 : index
      %c0_23 = arith.constant 0 : index
      %23 = vector.load %arg7[%c0_22, %c0_23] : memref<1x1xf32, #tpu.memory_space<vmem>>, vector<1x1xf32>
      %24 = vector.broadcast %23 : vector<1x1xf32> to vector<64x1xf32>
      %25 = arith.addf %22, %24 : vector<64x1xf32>
      %c0_24 = arith.constant 0 : index
      %c0_25 = arith.constant 0 : index
      %26 = vector.load %arg9[%c0_24, %c0_25] : memref<64x1xf32, #tpu.memory_space<vmem>>, vector<64x1xf32>
      tpu.vector_store %arg9[%c0_24, %c0_25], %25 {strides = array<i32>} : memref<64x1xf32, #tpu.memory_space<vmem>>, vector<64x1xf32>,
    } else {
    }
    return
  }
  func.func @transform_0(%arg0: i32, %arg1: i32) -> (i32, i32) {
    %c0_i32 = arith.constant 0 : i32
    return %arg0, %arg1 : i32, i32
  }
  func.func @transform_1(%arg0: i32, %arg1: i32) -> (i32, i32) {
    %c0_i32 = arith.constant 0 : i32
    %c0_i32_0 = arith.constant 0 : i32
    return %arg1, %c0_i32 : i32, i32
  }
  func.func @transform_2(%arg0: i32, %arg1: i32) -> (i32, i32) {
    %c0_i32 = arith.constant 0 : i32
    %c0_i32_0 = arith.constant 0 : i32
    %c0_i32_1 = arith.constant 0 : i32
    return %c0_i32, %c0_i32_0 : i32, i32
  }
  func.func @transform_3(%arg0: i32, %arg1: i32) -> (i32, i32) {
    %c0_i32 = arith.constant 0 : i32
    %c0_i32_0 = arith.constant 0 : i32
    %c0_i32_1 = arith.constant 0 : i32
    return %c0_i32, %c0_i32_0 : i32, i32
  }
  func.func @transform_4(%arg0: i32, %arg1: i32) -> (i32, i32) {
    %c0_i32 = arith.constant 0 : i32
    %c0_i32_0 = arith.constant 0 : i32
    %c0_i32_1 = arith.constant 0 : i32
    return %c0_i32, %c0_i32_0 : i32, i32
  }
  func.func @transform_5(%arg0: i32, %arg1: i32) -> (i32, i32) {
    %c0_i32 = arith.constant 0 : i32
    %c0_i32_0 = arith.constant 0 : i32
    %c0_i32_1 = arith.constant 0 : i32
    return %c0_i32, %c0_i32_0 : i32, i32
  }
  func.func @transform_6(%arg0: i32, %arg1: i32) -> (i32, i32) {
    %c0_i32 = arith.constant 0 : i32
    %c0_i32_0 = arith.constant 0 : i32
    return %arg0, %c0_i32 : i32, i32
  }
  func.func @transform_7(%arg0: i32, %arg1: i32) -> (i32, i32) {
    %c0_i32 = arith.constant 0 : i32
    %c0_i32_0 = arith.constant 0 : i32
    return %arg0, %c0_i32 : i32, i32
  }
}

module attributes {stable_mosaic.version = 11 : i64} {
  func.func @attn_stats_kernel(%arg0: memref<256x1xf32, #tpu.memory_space<vmem>>, %arg1: memref<1x1xf32, #tpu.memory_space<vmem>>, %arg2: memref<1x1xf32, #tpu.memory_space<vmem>>) attributes {dimension_semantics = [], scalar_prefetch = 0 : i64, scratch_operands = 0 : i64, tpu.core_type = #tpu.core_type<tc>} {
    %c0 = arith.constant 0 : index
    %c0_0 = arith.constant 0 : index
    %0 = vector.load %arg0[%c0, %c0_0] : memref<256x1xf32, #tpu.memory_space<vmem>>, vector<256x1xf32>
    %cst = arith.constant dense<0xFF800000> : vector<1xf32>
    %1 = vector.multi_reduction <maximumf>, %0, %cst [0] : vector<256x1xf32> to vector<1xf32>
    %2 = vector.shape_cast %1 : vector<1xf32> to vector<1x1xf32>
    %c0_1 = arith.constant 0 : index
    %c0_2 = arith.constant 0 : index
    %3 = vector.load %arg1[%c0_1, %c0_2] : memref<1x1xf32, #tpu.memory_space<vmem>>, vector<1x1xf32>
    tpu.vector_store %arg1[%c0_1, %c0_2], %2 {strides = array<i32>} : memref<1x1xf32, #tpu.memory_space<vmem>>, vector<1x1xf32>,
    %4 = vector.broadcast %2 : vector<1x1xf32> to vector<256x1xf32>
    %5 = arith.subf %0, %4 : vector<256x1xf32>
    %6 = math.exp %5 : vector<256x1xf32>
    %cst_3 = arith.constant dense<0.000000e+00> : vector<1xf32>
    %7 = vector.multi_reduction <add>, %6, %cst_3 [0] : vector<256x1xf32> to vector<1xf32>
    %8 = vector.shape_cast %7 : vector<1xf32> to vector<1x1xf32>
    %c0_4 = arith.constant 0 : index
    %c0_5 = arith.constant 0 : index
    %9 = vector.load %arg2[%c0_4, %c0_5] : memref<1x1xf32, #tpu.memory_space<vmem>>, vector<1x1xf32>
    tpu.vector_store %arg2[%c0_4, %c0_5], %8 {strides = array<i32>} : memref<1x1xf32, #tpu.memory_space<vmem>>, vector<1x1xf32>,
    return
  }
}

module attributes {stable_mosaic.version = 11 : i64} {
  func.func @gcn1_kernel(%arg0: i32, %arg1: i32, %arg2: memref<64x128xf32, #tpu.memory_space<vmem>>, %arg3: memref<128x1xf32, #tpu.memory_space<vmem>>, %arg4: memref<1x32xf32, #tpu.memory_space<vmem>>, %arg5: memref<1x32xf32, #tpu.memory_space<vmem>>, %arg6: memref<32x32xf32, #tpu.memory_space<vmem>>, %arg7: memref<64x32xf32, #tpu.memory_space<vmem>>, %arg8: memref<64x1xf32, #tpu.memory_space<vmem>>) attributes {dimension_semantics = [#tpu.dimension_semantics<parallel>, #tpu.dimension_semantics<arbitrary>], iteration_bounds = array<i64: 4, 2>, scalar_prefetch = 0 : i64, scratch_operands = 1 : i64, tpu.core_type = #tpu.core_type<tc>, window_params = [{transform_indices = @transform_0, window_bounds = array<i64: 64, 128>}, {transform_indices = @transform_1, window_bounds = array<i64: 128, 1>}, {pipeline_mode = #tpu.pipeline_mode<synchronous>, transform_indices = @transform_2, window_bounds = array<i64: 1, 32>}, {pipeline_mode = #tpu.pipeline_mode<synchronous>, transform_indices = @transform_3, window_bounds = array<i64: 1, 32>}, {pipeline_mode = #tpu.pipeline_mode<synchronous>, transform_indices = @transform_4, window_bounds = array<i64: 32, 32>}, {transform_indices = @transform_5, window_bounds = array<i64: 64, 32>}]} {
    %c0_i32 = arith.constant 0 : i32
    %0 = arith.cmpi eq, %arg1, %c0_i32 : i32
    %1 = arith.extui %0 : i1 to i32
    %c0_i32_0 = arith.constant 0 : i32
    %2 = arith.cmpi ne, %1, %c0_i32_0 : i32
    scf.if %2 {
      %cst_9 = arith.constant 0.000000e+00 : f32
      %12 = vector.broadcast %cst_9 : f32 to vector<64x1xf32>
      %c0_10 = arith.constant 0 : index
      %c0_11 = arith.constant 0 : index
      %13 = vector.load %arg8[%c0_10, %c0_11] : memref<64x1xf32, #tpu.memory_space<vmem>>, vector<64x1xf32>
      tpu.vector_store %arg8[%c0_10, %c0_11], %12 {strides = array<i32>} : memref<64x1xf32, #tpu.memory_space<vmem>>, vector<64x1xf32>,
    } else {
    }
    %c0 = arith.constant 0 : index
    %c0_1 = arith.constant 0 : index
    %3 = vector.load %arg8[%c0, %c0_1] : memref<64x1xf32, #tpu.memory_space<vmem>>, vector<64x1xf32>
    %c0_2 = arith.constant 0 : index
    %c0_3 = arith.constant 0 : index
    %4 = vector.load %arg2[%c0_2, %c0_3] : memref<64x128xf32, #tpu.memory_space<vmem>>, vector<64x128xf32>
    %c0_4 = arith.constant 0 : index
    %c0_5 = arith.constant 0 : index
    %5 = vector.load %arg3[%c0_4, %c0_5] : memref<128x1xf32, #tpu.memory_space<vmem>>, vector<128x1xf32>
    %cst = arith.constant dense<0.000000e+00> : vector<64x1xf32>
    %6 = tpu.matmul %4, %5, %cst {dimension_numbers = #tpu.dot_dimension_numbers<[1], [0], [0], [1], [0, 0, 1, 1], [], []>, precision = #tpu.contract_precision<fp32>} : vector<64x128xf32>, vector<128x1xf32>, vector<64x1xf32> -> vector<64x1xf32>
    %7 = arith.addf %3, %6 : vector<64x1xf32>
    %c0_6 = arith.constant 0 : index
    %c0_7 = arith.constant 0 : index
    %8 = vector.load %arg8[%c0_6, %c0_7] : memref<64x1xf32, #tpu.memory_space<vmem>>, vector<64x1xf32>
    tpu.vector_store %arg8[%c0_6, %c0_7], %7 {strides = array<i32>} : memref<64x1xf32, #tpu.memory_space<vmem>>, vector<64x1xf32>,
    %c1_i32 = arith.constant 1 : i32
    %9 = arith.cmpi eq, %arg1, %c1_i32 : i32
    %10 = arith.extui %9 : i1 to i32
    %c0_i32_8 = arith.constant 0 : i32
    %11 = arith.cmpi ne, %10, %c0_i32_8 : i32
    scf.if %11 {
      %c0_9 = arith.constant 0 : index
      %c0_10 = arith.constant 0 : index
      %12 = vector.load %arg8[%c0_9, %c0_10] : memref<64x1xf32, #tpu.memory_space<vmem>>, vector<64x1xf32>
      %c0_11 = arith.constant 0 : index
      %c0_12 = arith.constant 0 : index
      %13 = vector.load %arg4[%c0_11, %c0_12] : memref<1x32xf32, #tpu.memory_space<vmem>>, vector<1x32xf32>
      %14 = vector.broadcast %12 : vector<64x1xf32> to vector<64x32xf32>
      %15 = vector.broadcast %13 : vector<1x32xf32> to vector<64x32xf32>
      %16 = arith.mulf %14, %15 : vector<64x32xf32>
      %c0_13 = arith.constant 0 : index
      %c0_14 = arith.constant 0 : index
      %17 = vector.load %arg5[%c0_13, %c0_14] : memref<1x32xf32, #tpu.memory_space<vmem>>, vector<1x32xf32>
      %18 = vector.broadcast %17 : vector<1x32xf32> to vector<64x32xf32>
      %19 = arith.addf %16, %18 : vector<64x32xf32>
      %cst_15 = arith.constant 0.000000e+00 : f32
      %20 = vector.broadcast %cst_15 : f32 to vector<64x32xf32>
      %21 = arith.maximumf %19, %20 : vector<64x32xf32>
      %c0_16 = arith.constant 0 : index
      %c0_17 = arith.constant 0 : index
      %22 = vector.load %arg6[%c0_16, %c0_17] : memref<32x32xf32, #tpu.memory_space<vmem>>, vector<32x32xf32>
      %cst_18 = arith.constant dense<0.000000e+00> : vector<64x32xf32>
      %23 = tpu.matmul %21, %22, %cst_18 {dimension_numbers = #tpu.dot_dimension_numbers<[1], [0], [0], [1], [0, 0, 1, 1], [], []>, precision = #tpu.contract_precision<fp32>} : vector<64x32xf32>, vector<32x32xf32>, vector<64x32xf32> -> vector<64x32xf32>
      %c0_19 = arith.constant 0 : index
      %c0_20 = arith.constant 0 : index
      %24 = vector.load %arg7[%c0_19, %c0_20] : memref<64x32xf32, #tpu.memory_space<vmem>>, vector<64x32xf32>
      tpu.vector_store %arg7[%c0_19, %c0_20], %23 {strides = array<i32>} : memref<64x32xf32, #tpu.memory_space<vmem>>, vector<64x32xf32>,
    } else {
    }
    return
  }
  func.func @transform_0(%arg0: i32, %arg1: i32) -> (i32, i32) {
    %c0_i32 = arith.constant 0 : i32
    return %arg0, %arg1 : i32, i32
  }
  func.func @transform_1(%arg0: i32, %arg1: i32) -> (i32, i32) {
    %c0_i32 = arith.constant 0 : i32
    %c0_i32_0 = arith.constant 0 : i32
    return %arg1, %c0_i32 : i32, i32
  }
  func.func @transform_2(%arg0: i32, %arg1: i32) -> (i32, i32) {
    %c0_i32 = arith.constant 0 : i32
    %c0_i32_0 = arith.constant 0 : i32
    %c0_i32_1 = arith.constant 0 : i32
    return %c0_i32, %c0_i32_0 : i32, i32
  }
  func.func @transform_3(%arg0: i32, %arg1: i32) -> (i32, i32) {
    %c0_i32 = arith.constant 0 : i32
    %c0_i32_0 = arith.constant 0 : i32
    %c0_i32_1 = arith.constant 0 : i32
    return %c0_i32, %c0_i32_0 : i32, i32
  }
  func.func @transform_4(%arg0: i32, %arg1: i32) -> (i32, i32) {
    %c0_i32 = arith.constant 0 : i32
    %c0_i32_0 = arith.constant 0 : i32
    %c0_i32_1 = arith.constant 0 : i32
    return %c0_i32, %c0_i32_0 : i32, i32
  }
  func.func @transform_5(%arg0: i32, %arg1: i32) -> (i32, i32) {
    %c0_i32 = arith.constant 0 : i32
    %c0_i32_0 = arith.constant 0 : i32
    return %arg0, %c0_i32 : i32, i32
  }
}

module attributes {stable_mosaic.version = 11 : i64} {
  func.func @attn_apply_kernel(%arg0: i32, %arg1: memref<64x32xf32, #tpu.memory_space<vmem>>, %arg2: memref<64x1xf32, #tpu.memory_space<vmem>>, %arg3: memref<1x1xf32, #tpu.memory_space<vmem>>, %arg4: memref<1x1xf32, #tpu.memory_space<vmem>>, %arg5: memref<32x1xf32, #tpu.memory_space<vmem>>, %arg6: memref<64x1xf32, #tpu.memory_space<vmem>>) attributes {dimension_semantics = [#tpu.dimension_semantics<parallel>], iteration_bounds = array<i64: 4>, scalar_prefetch = 0 : i64, scratch_operands = 0 : i64, tpu.core_type = #tpu.core_type<tc>, window_params = [{transform_indices = @transform_0, window_bounds = array<i64: 64, 32>}, {transform_indices = @transform_1, window_bounds = array<i64: 64, 1>}, {pipeline_mode = #tpu.pipeline_mode<synchronous>, transform_indices = @transform_2, window_bounds = array<i64: 1, 1>}, {pipeline_mode = #tpu.pipeline_mode<synchronous>, transform_indices = @transform_3, window_bounds = array<i64: 1, 1>}, {pipeline_mode = #tpu.pipeline_mode<synchronous>, transform_indices = @transform_4, window_bounds = array<i64: 32, 1>}, {transform_indices = @transform_5, window_bounds = array<i64: 64, 1>}]} {
    %c0 = arith.constant 0 : index
    %c0_0 = arith.constant 0 : index
    %0 = vector.load %arg4[%c0, %c0_0] : memref<1x1xf32, #tpu.memory_space<vmem>>, vector<1x1xf32>
    %1 = tpu.reciprocal %0 {approx = true} : vector<1x1xf32> -> vector<1x1xf32>
    %2 = arith.mulf %0, %1 : vector<1x1xf32>
    %cst = arith.constant 2.000000e+00 : f32
    %3 = vector.broadcast %cst : f32 to vector<1x1xf32>
    %4 = arith.subf %3, %2 : vector<1x1xf32>
    %5 = arith.mulf %1, %4 : vector<1x1xf32>
    %c0_1 = arith.constant 0 : index
    %c0_2 = arith.constant 0 : index
    %6 = vector.load %arg2[%c0_1, %c0_2] : memref<64x1xf32, #tpu.memory_space<vmem>>, vector<64x1xf32>
    %c0_3 = arith.constant 0 : index
    %c0_4 = arith.constant 0 : index
    %7 = vector.load %arg3[%c0_3, %c0_4] : memref<1x1xf32, #tpu.memory_space<vmem>>, vector<1x1xf32>
    %8 = vector.broadcast %7 : vector<1x1xf32> to vector<64x1xf32>
    %9 = arith.subf %6, %8 : vector<64x1xf32>
    %10 = math.exp %9 : vector<64x1xf32>
    %11 = vector.broadcast %5 : vector<1x1xf32> to vector<64x1xf32>
    %12 = arith.mulf %10, %11 : vector<64x1xf32>
    %c0_5 = arith.constant 0 : index
    %c0_6 = arith.constant 0 : index
    %13 = vector.load %arg1[%c0_5, %c0_6] : memref<64x32xf32, #tpu.memory_space<vmem>>, vector<64x32xf32>
    %14 = vector.broadcast %12 : vector<64x1xf32> to vector<64x32xf32>
    %15 = arith.mulf %13, %14 : vector<64x32xf32>
    %c0_7 = arith.constant 0 : index
    %c0_8 = arith.constant 0 : index
    %16 = vector.load %arg5[%c0_7, %c0_8] : memref<32x1xf32, #tpu.memory_space<vmem>>, vector<32x1xf32>
    %cst_9 = arith.constant dense<0.000000e+00> : vector<64x1xf32>
    %17 = tpu.matmul %15, %16, %cst_9 {dimension_numbers = #tpu.dot_dimension_numbers<[1], [0], [0], [1], [0, 0, 1, 1], [], []>, precision = #tpu.contract_precision<fp32>} : vector<64x32xf32>, vector<32x1xf32>, vector<64x1xf32> -> vector<64x1xf32>
    %c0_10 = arith.constant 0 : index
    %c0_11 = arith.constant 0 : index
    %18 = vector.load %arg6[%c0_10, %c0_11] : memref<64x1xf32, #tpu.memory_space<vmem>>, vector<64x1xf32>
    tpu.vector_store %arg6[%c0_10, %c0_11], %17 {strides = array<i32>} : memref<64x1xf32, #tpu.memory_space<vmem>>, vector<64x1xf32>,
    return
  }
  func.func @transform_0(%arg0: i32) -> (i32, i32) {
    %c0_i32 = arith.constant 0 : i32
    %c0_i32_0 = arith.constant 0 : i32
    return %arg0, %c0_i32 : i32, i32
  }
  func.func @transform_1(%arg0: i32) -> (i32, i32) {
    %c0_i32 = arith.constant 0 : i32
    %c0_i32_0 = arith.constant 0 : i32
    return %arg0, %c0_i32 : i32, i32
  }
  func.func @transform_2(%arg0: i32) -> (i32, i32) {
    %c0_i32 = arith.constant 0 : i32
    %c0_i32_0 = arith.constant 0 : i32
    %c0_i32_1 = arith.constant 0 : i32
    return %c0_i32, %c0_i32_0 : i32, i32
  }
  func.func @transform_3(%arg0: i32) -> (i32, i32) {
    %c0_i32 = arith.constant 0 : i32
    %c0_i32_0 = arith.constant 0 : i32
    %c0_i32_1 = arith.constant 0 : i32
    return %c0_i32, %c0_i32_0 : i32, i32
  }
  func.func @transform_4(%arg0: i32) -> (i32, i32) {
    %c0_i32 = arith.constant 0 : i32
    %c0_i32_0 = arith.constant 0 : i32
    %c0_i32_1 = arith.constant 0 : i32
    return %c0_i32, %c0_i32_0 : i32, i32
  }
  func.func @transform_5(%arg0: i32) -> (i32, i32) {
    %c0_i32 = arith.constant 0 : i32
    %c0_i32_0 = arith.constant 0 : i32
    return %arg0, %c0_i32 : i32, i32
  }
}

module attributes {stable_mosaic.version = 11 : i64} {
  func.func @gcn2_kernel(%arg0: i32, %arg1: i32, %arg2: memref<64x128xf32, #tpu.memory_space<vmem>>, %arg3: memref<128x32xf32, #tpu.memory_space<vmem>>, %arg4: memref<1x32xf32, #tpu.memory_space<vmem>>, %arg5: memref<64x32xf32, #tpu.memory_space<vmem>>, %arg6: memref<64x32xf32, #tpu.memory_space<vmem>>) attributes {dimension_semantics = [#tpu.dimension_semantics<parallel>, #tpu.dimension_semantics<arbitrary>], iteration_bounds = array<i64: 4, 2>, scalar_prefetch = 0 : i64, scratch_operands = 1 : i64, tpu.core_type = #tpu.core_type<tc>, window_params = [{transform_indices = @transform_0, window_bounds = array<i64: 64, 128>}, {transform_indices = @transform_1, window_bounds = array<i64: 128, 32>}, {pipeline_mode = #tpu.pipeline_mode<synchronous>, transform_indices = @transform_2, window_bounds = array<i64: 1, 32>}, {transform_indices = @transform_3, window_bounds = array<i64: 64, 32>}]} {
    %c0_i32 = arith.constant 0 : i32
    %0 = arith.cmpi eq, %arg1, %c0_i32 : i32
    %1 = arith.extui %0 : i1 to i32
    %c0_i32_0 = arith.constant 0 : i32
    %2 = arith.cmpi ne, %1, %c0_i32_0 : i32
    scf.if %2 {
      %cst_9 = arith.constant 0.000000e+00 : f32
      %12 = vector.broadcast %cst_9 : f32 to vector<64x32xf32>
      %c0_10 = arith.constant 0 : index
      %c0_11 = arith.constant 0 : index
      %13 = vector.load %arg6[%c0_10, %c0_11] : memref<64x32xf32, #tpu.memory_space<vmem>>, vector<64x32xf32>
      tpu.vector_store %arg6[%c0_10, %c0_11], %12 {strides = array<i32>} : memref<64x32xf32, #tpu.memory_space<vmem>>, vector<64x32xf32>,
    } else {
    }
    %c0 = arith.constant 0 : index
    %c0_1 = arith.constant 0 : index
    %3 = vector.load %arg6[%c0, %c0_1] : memref<64x32xf32, #tpu.memory_space<vmem>>, vector<64x32xf32>
    %c0_2 = arith.constant 0 : index
    %c0_3 = arith.constant 0 : index
    %4 = vector.load %arg2[%c0_2, %c0_3] : memref<64x128xf32, #tpu.memory_space<vmem>>, vector<64x128xf32>
    %c0_4 = arith.constant 0 : index
    %c0_5 = arith.constant 0 : index
    %5 = vector.load %arg3[%c0_4, %c0_5] : memref<128x32xf32, #tpu.memory_space<vmem>>, vector<128x32xf32>
    %cst = arith.constant dense<0.000000e+00> : vector<64x32xf32>
    %6 = tpu.matmul %4, %5, %cst {dimension_numbers = #tpu.dot_dimension_numbers<[1], [0], [0], [1], [0, 0, 1, 1], [], []>, precision = #tpu.contract_precision<fp32>} : vector<64x128xf32>, vector<128x32xf32>, vector<64x32xf32> -> vector<64x32xf32>
    %7 = arith.addf %3, %6 : vector<64x32xf32>
    %c0_6 = arith.constant 0 : index
    %c0_7 = arith.constant 0 : index
    %8 = vector.load %arg6[%c0_6, %c0_7] : memref<64x32xf32, #tpu.memory_space<vmem>>, vector<64x32xf32>
    tpu.vector_store %arg6[%c0_6, %c0_7], %7 {strides = array<i32>} : memref<64x32xf32, #tpu.memory_space<vmem>>, vector<64x32xf32>,
    %c1_i32 = arith.constant 1 : i32
    %9 = arith.cmpi eq, %arg1, %c1_i32 : i32
    %10 = arith.extui %9 : i1 to i32
    %c0_i32_8 = arith.constant 0 : i32
    %11 = arith.cmpi ne, %10, %c0_i32_8 : i32
    scf.if %11 {
      %c0_9 = arith.constant 0 : index
      %c0_10 = arith.constant 0 : index
      %12 = vector.load %arg6[%c0_9, %c0_10] : memref<64x32xf32, #tpu.memory_space<vmem>>, vector<64x32xf32>
      %c0_11 = arith.constant 0 : index
      %c0_12 = arith.constant 0 : index
      %13 = vector.load %arg4[%c0_11, %c0_12] : memref<1x32xf32, #tpu.memory_space<vmem>>, vector<1x32xf32>
      %14 = vector.broadcast %13 : vector<1x32xf32> to vector<64x32xf32>
      %15 = arith.addf %12, %14 : vector<64x32xf32>
      %cst_13 = arith.constant 0.000000e+00 : f32
      %16 = vector.broadcast %cst_13 : f32 to vector<64x32xf32>
      %17 = arith.maximumf %15, %16 : vector<64x32xf32>
      %c0_14 = arith.constant 0 : index
      %c0_15 = arith.constant 0 : index
      %18 = vector.load %arg5[%c0_14, %c0_15] : memref<64x32xf32, #tpu.memory_space<vmem>>, vector<64x32xf32>
      tpu.vector_store %arg5[%c0_14, %c0_15], %17 {strides = array<i32>} : memref<64x32xf32, #tpu.memory_space<vmem>>, vector<64x32xf32>,
    } else {
    }
    return
  }
  func.func @transform_0(%arg0: i32, %arg1: i32) -> (i32, i32) {
    %c0_i32 = arith.constant 0 : i32
    return %arg0, %arg1 : i32, i32
  }
  func.func @transform_1(%arg0: i32, %arg1: i32) -> (i32, i32) {
    %c0_i32 = arith.constant 0 : i32
    %c0_i32_0 = arith.constant 0 : i32
    return %arg1, %c0_i32 : i32, i32
  }
  func.func @transform_2(%arg0: i32, %arg1: i32) -> (i32, i32) {
    %c0_i32 = arith.constant 0 : i32
    %c0_i32_0 = arith.constant 0 : i32
    %c0_i32_1 = arith.constant 0 : i32
    return %c0_i32, %c0_i32_0 : i32, i32
  }
  func.func @transform_3(%arg0: i32, %arg1: i32) -> (i32, i32) {
    %c0_i32 = arith.constant 0 : i32
    %c0_i32_0 = arith.constant 0 : i32
    return %arg0, %c0_i32 : i32, i32
  }
}

module attributes {stable_mosaic.version = 11 : i64} {
  func.func @pool_out_kernel(%arg0: memref<2x256xf32, #tpu.memory_space<vmem>>, %arg1: memref<256x32xf32, #tpu.memory_space<vmem>>, %arg2: memref<32x4xf32, #tpu.memory_space<vmem>>, %arg3: memref<1x4xf32, #tpu.memory_space<vmem>>, %arg4: memref<2x4xf32, #tpu.memory_space<vmem>>) attributes {dimension_semantics = [], scalar_prefetch = 0 : i64, scratch_operands = 0 : i64, tpu.core_type = #tpu.core_type<tc>} {
    %c0 = arith.constant 0 : index
    %c0_0 = arith.constant 0 : index
    %0 = vector.load %arg0[%c0, %c0_0] : memref<2x256xf32, #tpu.memory_space<vmem>>, vector<2x256xf32>
    %c0_1 = arith.constant 0 : index
    %c0_2 = arith.constant 0 : index
    %1 = vector.load %arg1[%c0_1, %c0_2] : memref<256x32xf32, #tpu.memory_space<vmem>>, vector<256x32xf32>
    %cst = arith.constant dense<0.000000e+00> : vector<2x32xf32>
    %2 = tpu.matmul %0, %1, %cst {dimension_numbers = #tpu.dot_dimension_numbers<[1], [0], [0], [1], [0, 0, 1, 1], [], []>, precision = #tpu.contract_precision<fp32>} : vector<2x256xf32>, vector<256x32xf32>, vector<2x32xf32> -> vector<2x32xf32>
    %c0_3 = arith.constant 0 : index
    %c0_4 = arith.constant 0 : index
    %3 = vector.load %arg2[%c0_3, %c0_4] : memref<32x4xf32, #tpu.memory_space<vmem>>, vector<32x4xf32>
    %cst_5 = arith.constant dense<0.000000e+00> : vector<2x4xf32>
    %4 = tpu.matmul %2, %3, %cst_5 {dimension_numbers = #tpu.dot_dimension_numbers<[1], [0], [0], [1], [0, 0, 1, 1], [], []>, precision = #tpu.contract_precision<fp32>} : vector<2x32xf32>, vector<32x4xf32>, vector<2x4xf32> -> vector<2x4xf32>
    %c0_6 = arith.constant 0 : index
    %c0_7 = arith.constant 0 : index
    %5 = vector.load %arg3[%c0_6, %c0_7] : memref<1x4xf32, #tpu.memory_space<vmem>>, vector<1x4xf32>
    %6 = vector.broadcast %5 : vector<1x4xf32> to vector<2x4xf32>
    %7 = arith.addf %4, %6 : vector<2x4xf32>
    %cst_8 = arith.constant dense<0xFF800000> : vector<2xf32>
    %8 = vector.multi_reduction <maximumf>, %7, %cst_8 [1] : vector<2x4xf32> to vector<2xf32>
    %9 = vector.shape_cast %8 : vector<2xf32> to vector<2x1xf32>
    %10 = vector.broadcast %9 : vector<2x1xf32> to vector<2x4xf32>
    %11 = arith.subf %7, %10 : vector<2x4xf32>
    %12 = math.exp %11 : vector<2x4xf32>
    %cst_9 = arith.constant dense<0.000000e+00> : vector<2xf32>
    %13 = vector.multi_reduction <add>, %12, %cst_9 [1] : vector<2x4xf32> to vector<2xf32>
    %14 = vector.shape_cast %13 : vector<2xf32> to vector<2x1xf32>
    %15 = math.log %14 : vector<2x1xf32>
    %16 = arith.addf %15, %9 : vector<2x1xf32>
    %17 = vector.broadcast %16 : vector<2x1xf32> to vector<2x4xf32>
    %18 = arith.subf %7, %17 : vector<2x4xf32>
    %c0_10 = arith.constant 0 : index
    %c0_11 = arith.constant 0 : index
    %19 = vector.load %arg4[%c0_10, %c0_11] : memref<2x4xf32, #tpu.memory_space<vmem>>, vector<2x4xf32>
    tpu.vector_store %arg4[%c0_10, %c0_11], %18 {strides = array<i32>} : memref<2x4xf32, #tpu.memory_space<vmem>>, vector<2x4xf32>,
    return
  }
}

</mosaic_0001>

<llo_original>
// kernel: shglnn_forward.7
$region0: #{shglnn_forward.7}
  #allocation0 [shape = 'u32[]', space=smem, size = 0x4, offset = 0x4, fixed_abs, tag = 'smem constant byte address 0x4 - core index']
  #allocation1 [shape = 'u32[72,128]{1,0:T(1,128)}', space=vmem, size = 0x9000, scoped, tag = 'internal scratch']
  %s0 = inlined_call_operand.vmem [shape: f32[256,1], index: 0, kind: input, shape index: {}]
  %s1 = inlined_call_operand.hbm [shape: f32[1,1], index: 1, kind: output, shape index: {0}]
  %s2 = inlined_call_operand.hbm [shape: f32[1,1], index: 2, kind: output, shape index: {1}]
  %3 = xla_tuple %s1, %s2
  %s4 = sld [smem:[#allocation0]]
  $region22: #{shglnn_forward.7} parent=0
    _
  %s6 = ssub.s32 1, %s4
  %s7 = scalar_select 0, %s6, %s4
  $region1: #{shglnn_forward.7} parent=0
    #allocation2 [shape = 'u8[512]{0}', space=vmem, size = 0x400, scoped, tag = 'output window, operand 0, single buffered']
    #allocation3 [shape = 's32[1]{0}', space=sflag, size = 0x4, scoped, tag = 'scoped memory for shglnn_forward.7']
    #allocation4 [shape = 'u8[512]{0}', space=vmem, size = 0x400, scoped, tag = 'output window, operand 1, single buffered']
    #allocation5 [shape = 's32[1]{0}', space=sflag, size = 0x4, scoped, tag = 'scoped memory for shglnn_forward.7']
    %8 = vsyncpa [#allocation3], 0
    %9 = vsyncpa [#allocation5], 0
    // Predicated region
    $region2: #{shglnn_forward.7} parent=1 // pred_check
      _
    $region3: #{shglnn_forward.7} parent=1 // pred_check_branch
      %11 = sbr.rel (0) target = $region5
    $region4: #{shglnn_forward.7} parent=1 // pred_region
      _
    $region5: #{shglnn_forward.7} parent=1 // pred_fallthru
      _
    %v12 = vld [vmem:[%s0] sm:$0xff]
    %v13 = vld [vmem:[%s0 + $0x8] sm:$0xff]
    %v14 = vld [vmem:[%s0 + $0x10] sm:$0xff]
    %v15 = vld [vmem:[%s0 + $0x18] sm:$0xff]
    %v16 = vld [vmem:[%s0 + $0x20] sm:$0xff]
    %v17 = vld [vmem:[%s0 + $0x28] sm:$0xff]
    %v18 = vld [vmem:[%s0 + $0x30] sm:$0xff]
    %v19 = vld [vmem:[%s0 + $0x38] sm:$0xff]
    %v20 = vld [vmem:[%s0 + $0x40] sm:$0xff]
    %v21 = vld [vmem:[%s0 + $0x48] sm:$0xff]
    %v22 = vld [vmem:[%s0 + $0x50] sm:$0xff]
    %v23 = vld [vmem:[%s0 + $0x58] sm:$0xff]
    %v24 = vld [vmem:[%s0 + $0x60] sm:$0xff]
    %v25 = vld [vmem:[%s0 + $0x68] sm:$0xff]
    %v26 = vld [vmem:[%s0 + $0x70] sm:$0xff]
    %v27 = vld [vmem:[%s0 + $0x78] sm:$0xff]
    %v28 = vld [vmem:[%s0 + $0x80] sm:$0xff]
    %v29 = vld [vmem:[%s0 + $0x88] sm:$0xff]
    %v30 = vld [vmem:[%s0 + $0x90] sm:$0xff]
    %v31 = vld [vmem:[%s0 + $0x98] sm:$0xff]
    %v32 = vld [vmem:[%s0 + $0xa0] sm:$0xff]
    %v33 = vld [vmem:[%s0 + $0xa8] sm:$0xff]
    %v34 = vld [vmem:[%s0 + $0xb0] sm:$0xff]
    %v35 = vld [vmem:[%s0 + $0xb8] sm:$0xff]
    %v36 = vld [vmem:[%s0 + $0xc0] sm:$0xff]
    %v37 = vld [vmem:[%s0 + $0xc8] sm:$0xff]
    %v38 = vld [vmem:[%s0 + $0xd0] sm:$0xff]
    %v39 = vld [vmem:[%s0 + $0xd8] sm:$0xff]
    %v40 = vld [vmem:[%s0 + $0xe0] sm:$0xff]
    %v41 = vld [vmem:[%s0 + $0xe8] sm:$0xff]
    %v42 = vld [vmem:[%s0 + $0xf0] sm:$0xff]
    %v43 = vld [vmem:[%s0 + $0xf8] sm:$0xff]
    %vm44 = vcmask 7168
    %v45 = vsel %vm44, %v12, -inf
    %v46 = vsel %vm44, %v13, -inf
    %v47 = vsel %vm44, %v14, -inf
    %v48 = vsel %vm44, %v15, -inf
    %v49 = vsel %vm44, %v16, -inf
    %v50 = vmax.f32 %v45, %v49
    %v51 = vsel %vm44, %v17, -inf
    %v52 = vmax.f32 %v46, %v51
    %v53 = vsel %vm44, %v18, -inf
    %v54 = vmax.f32 %v47, %v53
    %v55 = vsel %vm44, %v19, -inf
    %v56 = vmax.f32 %v48, %v55
    %v57 = vsel %vm44, %v20, -inf
    %v58 = vmax.f32 %v50, %v57
    %v59 = vsel %vm44, %v21, -inf
    %v60 = vmax.f32 %v52, %v59
    %v61 = vsel %vm44, %v22, -inf
    %v62 = vmax.f32 %v54, %v61
    %v63 = vsel %vm44, %v23, -inf
    %v64 = vmax.f32 %v56, %v63
    %v65 = vsel %vm44, %v24, -inf
    %v66 = vmax.f32 %v58, %v65
    %v67 = vsel %vm44, %v25, -inf
    %v68 = vmax.f32 %v60, %v67
    %v69 = vsel %vm44, %v26, -inf
    %v70 = vmax.f32 %v62, %v69
    %v71 = vsel %vm44, %v27, -inf
    %v72 = vmax.f32 %v64, %v71
    %v73 = vsel %vm44, %v28, -inf
    %v74 = vmax.f32 %v66, %v73
    %v75 = vsel %vm44, %v29, -inf
    %v76 = vmax.f32 %v68, %v75
    %v77 = vsel %vm44, %v30, -inf
    %v78 = vmax.f32 %v70, %v77
    %v79 = vsel %vm44, %v31, -inf
    %v80 = vmax.f32 %v72, %v79
    %v81 = vsel %vm44, %v32, -inf
    %v82 = vmax.f32 %v74, %v81
    %v83 = vsel %vm44, %v33, -inf
    %v84 = vmax.f32 %v76, %v83
    %v85 = vsel %vm44, %v34, -inf
    %v86 = vmax.f32 %v78, %v85
    %v87 = vsel %vm44, %v35, -inf
    %v88 = vmax.f32 %v80, %v87
    %v89 = vsel %vm44, %v36, -inf
    %v90 = vmax.f32 %v82, %v89
    %v91 = vsel %vm44, %v37, -inf
    %v92 = vmax.f32 %v84, %v91
    %v93 = vsel %vm44, %v38, -inf
    %v94 = vmax.f32 %v86, %v93
    %v95 = vsel %vm44, %v39, -inf
    %v96 = vmax.f32 %v88, %v95
    %v97 = vsel %vm44, %v40, -inf
    %v98 = vmax.f32 %v90, %v97
    %v99 = vsel %vm44, %v41, -inf
    %v100 = vmax.f32 %v92, %v99
    %v101 = vsel %vm44, %v42, -inf
    %v102 = vmax.f32 %v94, %v101
    %v103 = vsel %vm44, %v43, -inf
    %v104 = vmax.f32 %v96, %v103
    %v105 = vmax.f32 %v98, %v100
    %v106 = vmax.f32 %v102, %v104
    %v107 = vmax.f32 %v105, %v106
    %v108 = vrot.slane %v107, 4
    %v109 = vmax.f32 %v107, %v108
    %v110 = vrot.slane %v109, 2
    %v111 = vmax.f32 %v109, %v110
    %v112 = vrot.slane %v111, 1
    %v113 = vmax.f32 %v111, %v112
    %vm114 = vcmask 0
    %115 = vst.msk [vmem:[#allocation2] sm:$0x1] %vm114, %v113
    %v116 = vsub.f32 %v12, %v113
    %v117 = vsub.f32 %v13, %v113
    %v118 = vsub.f32 %v14, %v113
    %v119 = vsub.f32 %v15, %v113
    %v120 = vsub.f32 %v16, %v113
    %v121 = vsub.f32 %v17, %v113
    %v122 = vsub.f32 %v18, %v113
    %v123 = vsub.f32 %v19, %v113
    %v124 = vsub.f32 %v20, %v113
    %v125 = vsub.f32 %v21, %v113
    %v126 = vsub.f32 %v22, %v113
    %v127 = vsub.f32 %v23, %v113
    %v128 = vsub.f32 %v24, %v113
    %v129 = vsub.f32 %v25, %v113
    %v130 = vsub.f32 %v26, %v113
    %v131 = vsub.f32 %v27, %v113
    %v132 = vsub.f32 %v28, %v113
    %v133 = vsub.f32 %v29, %v113
    %v134 = vsub.f32 %v30, %v113
    %v135 = vsub.f32 %v31, %v113
    %v136 = vsub.f32 %v32, %v113
    %v137 = vsub.f32 %v33, %v113
    %v138 = vsub.f32 %v34, %v113
    %v139 = vsub.f32 %v35, %v113
    %v140 = vsub.f32 %v36, %v113
    %v141 = vsub.f32 %v37, %v113
    %v142 = vsub.f32 %v38, %v113
    %v143 = vsub.f32 %v39, %v113
    %v144 = vsub.f32 %v40, %v113
    %v145 = vsub.f32 %v41, %v113
    %v146 = vsub.f32 %v42, %v113
    %v147 = vsub.f32 %v43, %v113
    %v148 = vmul.f32 %v116, 1.442695
    %v149 = vpow.pop %v148
    %v150 = vmul.f32 %v117, 1.442695
    %v151 = vpow.pop %v150
    %v152 = vmul.f32 %v118, 1.442695
    %v153 = vpow.pop %v152
    %v154 = vmul.f32 %v119, 1.442695
    %v155 = vpow.pop %v154
    %v156 = vmul.f32 %v120, 1.442695
    %v157 = vpow.pop %v156
    %v158 = vmul.f32 %v121, 1.442695
    %v159 = vpow.pop %v158
    %v160 = vmul.f32 %v122, 1.442695
    %v161 = vpow.pop %v160
    %v162 = vmul.f32 %v123, 1.442695
    %v163 = vpow.pop %v162
    %v164 = vmul.f32 %v124, 1.442695
    %v165 = vpow.pop %v164
    %v166 = vmul.f32 %v125, 1.442695
    %v167 = vpow.pop %v166
    %v168 = vmul.f32 %v126, 1.442695
    %v169 = vpow.pop %v168
    %v170 = vmul.f32 %v127, 1.442695
    %v171 = vpow.pop %v170
    %v172 = vmul.f32 %v128, 1.442695
    %v173 = vpow.pop %v172
    %v174 = vmul.f32 %v129, 1.442695
    %v175 = vpow.pop %v174
    %v176 = vmul.f32 %v130, 1.442695
    %v177 = vpow.pop %v176
    %v178 = vmul.f32 %v131, 1.442695
    %v179 = vpow.pop %v178
    %v180 = vmul.f32 %v132, 1.442695
    %v181 = vpow.pop %v180
    %v182 = vmul.f32 %v133, 1.442695
    %v183 = vpow.pop %v182
    %v184 = vmul.f32 %v134, 1.442695
    %v185 = vpow.pop %v184
    %v186 = vmul.f32 %v135, 1.442695
    %v187 = vpow.pop %v186
    %v188 = vmul.f32 %v136, 1.442695
    %v189 = vpow.pop %v188
    %v190 = vmul.f32 %v137, 1.442695
    %v191 = vpow.pop %v190
    %v192 = vmul.f32 %v138, 1.442695
    %v193 = vpow.pop %v192
    %v194 = vmul.f32 %v139, 1.442695
    %v195 = vpow.pop %v194
    %v196 = vmul.f32 %v140, 1.442695
    %v197 = vpow.pop %v196
    %v198 = vmul.f32 %v141, 1.442695
    %v199 = vpow.pop %v198
    %v200 = vmul.f32 %v142, 1.442695
    %v201 = vpow.pop %v200
    %v202 = vmul.f32 %v143, 1.442695
    %v203 = vpow.pop %v202
    %v204 = vmul.f32 %v144, 1.442695
    %v205 = vpow.pop %v204
    %v206 = vmul.f32 %v145, 1.442695
    %v207 = vpow.pop %v206
    %v208 = vmul.f32 %v146, 1.442695
    %v209 = vpow.pop %v208
    %v210 = vmul.f32 %v147, 1.442695
    %v211 = vpow.pop %v210
    %v212 = vsel %vm44, %v149, 0.0
    %v213 = vsel %vm44, %v151, 0.0
    %v214 = vadd.f32 %v212, %v213
    %v215 = vsel %vm44, %v153, 0.0
    %v216 = vadd.f32 %v214, %v215
    %v217 = vsel %vm44, %v155, 0.0
    %v218 = vadd.f32 %v216, %v217
    %v219 = vsel %vm44, %v157, 0.0
    %v220 = vadd.f32 %v218, %v219
    %v221 = vsel %vm44, %v159, 0.0
    %v222 = vadd.f32 %v220, %v221
    %v223 = vsel %vm44, %v161, 0.0
    %v224 = vadd.f32 %v222, %v223
    %v225 = vsel %vm44, %v163, 0.0
    %v226 = vadd.f32 %v224, %v225
    %v227 = vsel %vm44, %v165, 0.0
    %v228 = vadd.f32 %v226, %v227
    %v229 = vsel %vm44, %v167, 0.0
    %v230 = vadd.f32 %v228, %v229
    %v231 = vsel %vm44, %v169, 0.0
    %v232 = vadd.f32 %v230, %v231
    %v233 = vsel %vm44, %v171, 0.0
    %v234 = vadd.f32 %v232, %v233
    %v235 = vsel %vm44, %v173, 0.0
    %v236 = vadd.f32 %v234, %v235
    %v237 = vsel %vm44, %v175, 0.0
    %v238 = vadd.f32 %v236, %v237
    %v239 = vsel %vm44, %v177, 0.0
    %v240 = vadd.f32 %v238, %v239
    %v241 = vsel %vm44, %v179, 0.0
    %v242 = vadd.f32 %v240, %v241
    %v243 = vsel %vm44, %v181, 0.0
    %v244 = vadd.f32 %v242, %v243
    %v245 = vsel %vm44, %v183, 0.0
    %v246 = vadd.f32 %v244, %v245
    %v247 = vsel %vm44, %v185, 0.0
    %v248 = vadd.f32 %v246, %v247
    %v249 = vsel %vm44, %v187, 0.0
    %v250 = vadd.f32 %v248, %v249
    %v251 = vsel %vm44, %v189, 0.0
    %v252 = vadd.f32 %v250, %v251
    %v253 = vsel %vm44, %v191, 0.0
    %v254 = vadd.f32 %v252, %v253
    %v255 = vsel %vm44, %v193, 0.0
    %v256 = vadd.f32 %v254, %v255
    %v257 = vsel %vm44, %v195, 0.0
    %v258 = vadd.f32 %v256, %v257
    %v259 = vsel %vm44, %v197, 0.0
    %v260 = vadd.f32 %v258, %v259
    %v261 = vsel %vm44, %v199, 0.0
    %v262 = vadd.f32 %v260, %v261
    %v263 = vsel %vm44, %v201, 0.0
    %v264 = vadd.f32 %v262, %v263
    %v265 = vsel %vm44, %v203, 0.0
    %v266 = vadd.f32 %v264, %v265
    %v267 = vsel %vm44, %v205, 0.0
    %v268 = vadd.f32 %v266, %v267
    %v269 = vsel %vm44, %v207, 0.0
    %v270 = vadd.f32 %v268, %v269
    %v271 = vsel %vm44, %v209, 0.0
    %v272 = vadd.f32 %v270, %v271
    %v273 = vsel %vm44, %v211, 0.0
    %v274 = vadd.f32 %v272, %v273
    %v275 = vrot.slane %v274, 4
    %v276 = vadd.f32 %v274, %v275
    %v277 = vrot.slane %v276, 2
    %v278 = vadd.f32 %v276, %v277
    %v279 = vrot.slane %v278, 1
    %v280 = vadd.f32 %v278, %v279
    %281 = vst.msk [vmem:[#allocation4] sm:$0x1] %vm114, %v280
    // Predicated region
    $region6: #{shglnn_forward.7} parent=1 // pred_check
      _
    $region7: #{shglnn_forward.7} parent=1 // pred_check_branch
      %283 = sbr.rel (0) target = $region9
    $region8: #{shglnn_forward.7} parent=1 // pred_region
      %285 = vsyncadd [#allocation3], 0
      %s287 = sshll.u32 [#allocation2], 4
      %s288 = int_to_ptr.vmem [resolvable:$true] %s287
      %s289 = sshll.u32 %s1, 4
      %s290 = int_to_ptr.hbm [resolvable:$true] %s289
      %292 = dma.vmem_to_hbm [thread:$0]  %s288, 16, %s290, [#allocation3]
    $region9: #{shglnn_forward.7} parent=1 // pred_fallthru
      _
    // Predicated region
    $region10: #{shglnn_forward.7} parent=1 // pred_check
      _
    $region11: #{shglnn_forward.7} parent=1 // pred_check_branch
      %294 = sbr.rel (0) target = $region13
    $region12: #{shglnn_forward.7} parent=1 // pred_region
      %296 = vsyncadd [#allocation5], 0
      %s298 = sshll.u32 [#allocation4], 4
      %s299 = int_to_ptr.vmem [resolvable:$true] %s298
      %s300 = sshll.u32 %s2, 4
      %s301 = int_to_ptr.hbm [resolvable:$true] %s300
      %303 = dma.vmem_to_hbm [thread:$0]  %s299, 16, %s301, [#allocation5]
    $region13: #{shglnn_forward.7} parent=1 // pred_fallthru
      _
    // Predicated region
    $region14: #{shglnn_forward.7} parent=1 // pred_check
      _
    $region15: #{shglnn_forward.7} parent=1 // pred_check_branch
      %305 = sbr.rel (0) target = $region17
    $region16: #{shglnn_forward.7} parent=1 // pred_region
      %307 = dma.done [#allocation3], 16
    $region17: #{shglnn_forward.7} parent=1 // pred_fallthru
      _
    // Predicated region
    $region18: #{shglnn_forward.7} parent=1 // pred_check
      _
    $region19: #{shglnn_forward.7} parent=1 // pred_check_branch
      %309 = sbr.rel (0) target = $region21
    $region20: #{shglnn_forward.7} parent=1 // pred_region
      %311 = dma.done [#allocation5], 16
    $region21: #{shglnn_forward.7} parent=1 // pred_fallthru
      _
    %312 = vsyncpa [#allocation3], 1
    %313 = vsyncpa [#allocation5], 1

// kernel: shglnn_forward.8
$region0: #{shglnn_forward.8}
  #allocation0 [shape = 'u32[]', space=smem, size = 0x4, offset = 0x4, fixed_abs, tag = 'smem constant byte address 0x4 - core index']
  #allocation1 [shape = 'u32[72,128]{1,0:T(1,128)}', space=vmem, size = 0x9000, scoped, tag = 'internal scratch']
  #allocation2 [shape = 'f32[1,1]{1,0:T(1,128)S(1)}', space=vmem, size = 0x200, scoped, tag = 'scoped memory for shglnn_forward.8']
  #allocation3 [shape = 'f32[1,1]{1,0:T(1,128)S(1)}', space=vmem, size = 0x200, scoped, tag = 'scoped memory for shglnn_forward.8']
  %s0 = inlined_call_operand.vmem [shape: f32[256,32], index: 0, kind: input, shape index: {}]
  %s1 = inlined_call_operand.vmem [shape: f32[256,1], index: 1, kind: input, shape index: {}]
  %s2 = inlined_call_operand.<no memory space> [shape: f32[1,1], index: 2, kind: input, shape index: {}]
  %s3 = inlined_call_operand.<no memory space> [shape: f32[1,1], index: 3, kind: input, shape index: {}]
  %s4 = inlined_call_operand.vmem [shape: f32[32,1], index: 4, kind: input, shape index: {}]
  %s5 = inlined_call_operand.vmem [shape: f32[256,1], index: 5, kind: output, shape index: {}]
  %s6 = sld [smem:[#allocation0]]
  $region53: #{shglnn_forward.8} parent=0
    _
  %s8 = ssub.s32 1, %s6
  %s9 = scalar_select 0, %s8, %s6
  %v10 = vstv %s2
  %11 = vst [vmem:[#allocation2] sm:$0x1] %v10
  %v12 = vstv %s3
  %13 = vst [vmem:[#allocation3] sm:$0x1] %v12
  loop: start=0, step=1, limit=6
  $region2: #{shglnn_forward.8} parent=0 // loop_pre_header
    _
  $region3: #{shglnn_forward.8} parent=0 // loop_header
    %s15 = sphi 0, %s19
    %p16 = scmp.ge.s32.totalorder %s15, 6
    %s25 = sphi 0, %s27
    %s28 = sphi 0, %s25
    %s29 = sphi 0, %s28
    %s45 = sphi 0, %s29
    %s51 = sphi 0, %s53
    %s54 = sphi 0, %s51
    %s55 = sphi 0, %s54
    %s71 = sphi 0, %s55
    %s75 = sphi 0, %s75
    %s77 = sphi 0, %s75
    %s78 = sphi 0, %s77
    %s92 = sphi 0, %s78
    %s96 = sphi 0, %s96
    %s98 = sphi 0, %s96
    %s99 = sphi 0, %s98
    %s113 = sphi 0, %s99
    %s117 = sphi 0, %s117
    %s119 = sphi 0, %s117
    %s120 = sphi 0, %s119
    %s134 = sphi 0, %s120
    %s140 = sphi 0, %s142
    %s143 = sphi 0, %s140
    %s144 = sphi 0, %s143
    %s160 = sphi 0, %s144
  $region4: #{shglnn_forward.8} parent=0 // loop_header_branch
    %18 = sbr.rel (%p16) target = $region8
  $region5: #{shglnn_forward.8} parent=0 // loop_body
    %s20 = ssub.s32 %s15, 1
    %s21 = ssub.s32 %s15, 2
    %s22 = sadd.s32 %s15, 1
    %s23 = ssub.s32 %s15, %s22
    %p24 = scmp.eq.s32.totalorder %s23, 0
    %s26 = sadd.s32 %s25, 1
    %s27 = scalar_select %p24, %s25, %s26
    %p30 = pneg %p24
    %p31 = scmp.eq.s32.totalorder %s15, 3
    %p32 = por %p30, %p31
    %p33 = scmp.ne.s32.totalorder %s25, %s28
    %p34 = scmp.eq.s32.totalorder %s15, 0
    %p35 = por %p33, %p34
    %p36 = scmp.ne.s32.totalorder %s25, %s28
    %p37 = scmp.eq.s32.totalorder %s20, 3
    %p38 = por %p36, %p37
    %p39 = scmp.ne.s32.totalorder %s28, %s29
    %p40 = scmp.eq.s32.totalorder %s20, 0
    %p41 = por %p39, %p40
    %p42 = scmp.ne.s32.totalorder %s28, %s29
    %p43 = scmp.eq.s32.totalorder %s21, 3
    %p44 = por %p42, %p43
    %p46 = scmp.ne.s32.totalorder %s29, %s45
    %p47 = scmp.eq.s32.totalorder %s21, 0
    %p48 = por %p46, %p47
    %s49 = ssub.s32 %s15, %s22
    %p50 = scmp.eq.s32.totalorder %s49, 0
    %s52 = sadd.s32 %s51, 1
    %s53 = scalar_select %p50, %s51, %s52
    %p56 = pneg %p50
    %p57 = scmp.eq.s32.totalorder %s15, 3
    %p58 = por %p56, %p57
    %p59 = scmp.ne.s32.totalorder %s51, %s54
    %p60 = scmp.eq.s32.totalorder %s15, 0
    %p61 = por %p59, %p60
    %p62 = scmp.ne.s32.totalorder %s51, %s54
    %p63 = scmp.eq.s32.totalorder %s20, 3
    %p64 = por %p62, %p63
    %p65 = scmp.ne.s32.totalorder %s54, %s55
    %p66 = scmp.eq.s32.totalorder %s20, 0
    %p67 = por %p65, %p66
    %p68 = scmp.ne.s32.totalorder %s54, %s55
    %p69 = scmp.eq.s32.totalorder %s21, 3
    %p70 = por %p68, %p69
    %p72 = scmp.ne.s32.totalorder %s55, %s71
    %p73 = scmp.eq.s32.totalorder %s21, 0
    %p74 = por %p72, %p73
    %s76 = sadd.s32 %s75, 1
    %p79 = scmp.eq.s32.totalorder %s15, 3
    %p80 = scmp.ne.s32.totalorder %s75, %s77
    %p81 = scmp.eq.s32.totalorder %s15, 0
    %p82 = por %p80, %p81
    %p83 = scmp.ne.s32.totalorder %s75, %s77
    %p84 = scmp.eq.s32.totalorder %s20, 3
    %p85 = por %p83, %p84
    %p86 = scmp.ne.s32.totalorder %s77, %s78
    %p87 = scmp.eq.s32.totalorder %s20, 0
    %p88 = por %p86, %p87
    %p89 = scmp.ne.s32.totalorder %s77, %s78
    %p90 = scmp.eq.s32.totalorder %s21, 3
    %p91 = por %p89, %p90
    %p93 = scmp.ne.s32.totalorder %s78, %s92
    %p94 = scmp.eq.s32.totalorder %s21, 0
    %p95 = por %p93, %p94
    %s97 = sadd.s32 %s96, 1
    %p100 = scmp.eq.s32.totalorder %s15, 3
    %p101 = scmp.ne.s32.totalorder %s96, %s98
    %p102 = scmp.eq.s32.totalorder %s15, 0
    %p103 = por %p101, %p102
    %p104 = scmp.ne.s32.totalorder %s96, %s98
    %p105 = scmp.eq.s32.totalorder %s20, 3
    %p106 = por %p104, %p105
    %p107 = scmp.ne.s32.totalorder %s98, %s99
    %p108 = scmp.eq.s32.totalorder %s20, 0
    %p109 = por %p107, %p108
    %p110 = scmp.ne.s32.totalorder %s98, %s99
    %p111 = scmp.eq.s32.totalorder %s21, 3
    %p112 = por %p110, %p111
    %p114 = scmp.ne.s32.totalorder %s99, %s113
    %p115 = scmp.eq.s32.totalorder %s21, 0
    %p116 = por %p114, %p115
    %s118 = sadd.s32 %s117, 1
    %p121 = scmp.eq.s32.totalorder %s15, 3
    %p122 = scmp.ne.s32.totalorder %s117, %s119
    %p123 = scmp.eq.s32.totalorder %s15, 0
    %p124 = por %p122, %p123
    %p125 = scmp.ne.s32.totalorder %s117, %s119
    %p126 = scmp.eq.s32.totalorder %s20, 3
    %p127 = por %p125, %p126
    %p128 = scmp.ne.s32.totalorder %s119, %s120
    %p129 = scmp.eq.s32.totalorder %s20, 0
    %p130 = por %p128, %p129
    %p131 = scmp.ne.s32.totalorder %s119, %s120
    %p132 = scmp.eq.s32.totalorder %s21, 3
    %p133 = por %p131, %p132
    %p135 = scmp.ne.s32.totalorder %s120, %s134
    %p136 = scmp.eq.s32.totalorder %s21, 0
    %p137 = por %p135, %p136
    %s138 = ssub.s32 %s15, %s22
    %p139 = scmp.eq.s32.totalorder %s138, 0
    %s141 = sadd.s32 %s140, 1
    %s142 = scalar_select %p139, %s140, %s141
    %p145 = pneg %p139
    %p146 = scmp.eq.s32.totalorder %s15, 3
    %p147 = por %p145, %p146
    %p148 = scmp.ne.s32.totalorder %s140, %s143
    %p149 = scmp.eq.s32.totalorder %s15, 0
    %p150 = por %p148, %p149
    %p151 = scmp.ne.s32.totalorder %s140, %s143
    %p152 = scmp.eq.s32.totalorder %s20, 3
    %p153 = por %p151, %p152
    %p154 = scmp.ne.s32.totalorder %s143, %s144
    %p155 = scmp.eq.s32.totalorder %s20, 0
    %p156 = por %p154, %p155
    %p157 = scmp.ne.s32.totalorder %s143, %s144
    %p158 = scmp.eq.s32.totalorder %s21, 3
    %p159 = por %p157, %p158
    %p161 = scmp.ne.s32.totalorder %s144, %s160
    %p162 = scmp.eq.s32.totalorder %s21, 0
    %p163 = por %p161, %p162
    %p164 = scmp.le.s32.totalorder 1, %s15
    %p165 = scmp.lt.s32.totalorder %s15, 5
    %p166 = pnand %p164, %p165
    %p167 = pneg %p166
    // Predicated region
    $region9: #{shglnn_forward.8} parent=5 // pred_check
      _
    $region10: #{shglnn_forward.8} parent=5 // pred_check_branch
      %169 = sbr.rel (%p166) target = $region12
    $region11: #{shglnn_forward.8} parent=5 // pred_region
      %s170 = ssub.s32 %s15, 1
      // Predicated region
      $region13: #{shglnn_forward.8} parent=11 // pred_check
        %p171 = pneg %p88
      $region14: #{shglnn_forward.8} parent=11 // pred_check_branch
        %173 = sbr.rel (%p171) target = $region16
      $region15: #{shglnn_forward.8} parent=11 // pred_region
        _
      $region16: #{shglnn_forward.8} parent=11 // pred_fallthru
        _
      // Predicated region
      $region17: #{shglnn_forward.8} parent=11 // pred_check
        %p174 = pneg %p109
      $region18: #{shglnn_forward.8} parent=11 // pred_check_branch
        %176 = sbr.rel (%p174) target = $region20
      $region19: #{shglnn_forward.8} parent=11 // pred_region
        _
      $region20: #{shglnn_forward.8} parent=11 // pred_fallthru
        _
      // Predicated region
      $region21: #{shglnn_forward.8} parent=11 // pred_check
        %p177 = pneg %p130
      $region22: #{shglnn_forward.8} parent=11 // pred_check_branch
        %179 = sbr.rel (%p177) target = $region24
      $region23: #{shglnn_forward.8} parent=11 // pred_region
        _
      $region24: #{shglnn_forward.8} parent=11 // pred_fallthru
        _
    $region12: #{shglnn_forward.8} parent=5 // pred_fallthru
      _
    %p180 = scmp.lt.s32.totalorder %s15, 4
    // Predicated region
    $region25: #{shglnn_forward.8} parent=5 // pred_check
      %p181 = pneg %p180
    $region26: #{shglnn_forward.8} parent=5 // pred_check_branch
      %183 = sbr.rel (%p181) target = $region28
    $region27: #{shglnn_forward.8} parent=5 // pred_region
      // Predicated region
      $region29: #{shglnn_forward.8} parent=27 // pred_check
        %p184 = pneg %p35
      $region30: #{shglnn_forward.8} parent=27 // pred_check_branch
        %186 = sbr.rel (%p184) target = $region32
      $region31: #{shglnn_forward.8} parent=27 // pred_region
        %s187 = smul.u32 8, %s15
        %p188 = scmp.lt.s32.totalorder %s187, 31
        %s189 = scalar_select %p188, %s187, 31
        %s190 = smul.addr %s189, 8
        %s191 = scalar_lea.vmem %s0, %s190
        %s192 = smul.u32 8, %s15
      $region32: #{shglnn_forward.8} parent=27 // pred_fallthru
        _
      // Predicated region
      $region33: #{shglnn_forward.8} parent=27 // pred_check
        %p193 = pneg %p61
      $region34: #{shglnn_forward.8} parent=27 // pred_check_branch
        %195 = sbr.rel (%p193) target = $region36
      $region35: #{shglnn_forward.8} parent=27 // pred_region
        %s196 = smul.u32 8, %s15
        %p197 = scmp.lt.s32.totalorder %s196, 31
        %s198 = scalar_select %p197, %s196, 31
        %s199 = smul.addr %s198, 8
        %s200 = scalar_lea.vmem %s1, %s199
        %s201 = smul.u32 8, %s15
      $region36: #{shglnn_forward.8} parent=27 // pred_fallthru
        _
    $region28: #{shglnn_forward.8} parent=5 // pred_fallthru
      _
    %p202 = scmp.le.s32.totalorder 1, %s15
    %p203 = scmp.lt.s32.totalorder %s15, 5
    %p204 = pnand %p202, %p203
    %p205 = pneg %p204
    // Predicated region
    $region37: #{shglnn_forward.8} parent=5 // pred_check
      _
    $region38: #{shglnn_forward.8} parent=5 // pred_check_branch
      %207 = sbr.rel (%p204) target = $region40
    $region39: #{shglnn_forward.8} parent=5 // pred_region
      %s208 = ssub.s32 %s15, 1
      %s209 = smul.u32 8, %s20
      %p210 = scmp.lt.s32.totalorder %s209, 31
      %s211 = scalar_select %p210, %s209, 31
      %s212 = smul.addr %s211, 8
      %s213 = scalar_lea.vmem %s0, %s212
      %p214 = pneg %p41
      %p215 = pneg %p38
      %s216 = smul.u32 8, %s20
      %p217 = scmp.lt.s32.totalorder %s216, 31
      %s218 = scalar_select %p217, %s216, 31
      %s219 = smul.addr %s218, 8
      %s220 = scalar_lea.vmem %s1, %s219
      %p221 = pneg %p67
      %p222 = pneg %p64
      %p223 = pneg %p88
      %p224 = pneg %p85
      %p225 = pneg %p109
      %p226 = pneg %p106
      %p227 = pneg %p130
      %p228 = pneg %p127
      %p229 = pneg %p156
      %p230 = pneg %p153
      %s231 = smul.u32 8, %s20
      %p232 = scmp.lt.s32.totalorder %s231, 31
      %s233 = scalar_select %p232, %s231, 31
      %s234 = smul.addr %s233, 8
      %s235 = scalar_lea.vmem %s5, %s234
      %s236 = smul.u32 8, %s20
      %p237 = scmp.lt.s32.totalorder %s236, 31
      %s238 = scalar_select %p237, %s236, 31
      %s239 = smul.addr %s238, 8
      %s240 = scalar_lea.vmem %s0, %s239
      %s241 = smul.u32 8, %s20
      %s242 = smul.u32 8, %s20
      %p243 = scmp.lt.s32.totalorder %s242, 31
      %s244 = scalar_select %p243, %s242, 31
      %s245 = smul.addr %s244, 8
      %s246 = scalar_lea.vmem %s1, %s245
      %s247 = smul.u32 8, %s20
      %s248 = smul.u32 8, %s20
      %p249 = scmp.lt.s32.totalorder %s248, 31
      %s250 = scalar_select %p249, %s248, 31
      %s251 = smul.addr %s250, 8
      %s252 = scalar_lea.vmem %s5, %s251
      %s253 = smul.u32 8, %s20
      %v254 = vld [vmem:[#allocation3] sm:$0x1]
      %v255 = vrcp.pop %v254
      %v256 = vmul.f32 %v254, %v255
      %v257 = vsub.f32 2.0, %v256
      %v258 = vmul.f32 %v255, %v257
      %v259 = vld [vmem:[%s246] sm:$0xff]
      %v260 = vld [vmem:[%s246 + $0x8] sm:$0xff]
      %v261 = vld [vmem:[%s246 + $0x10] sm:$0xff]
      %v262 = vld [vmem:[%s246 + $0x18] sm:$0xff]
      %v263 = vld [vmem:[%s246 + $0x20] sm:$0xff]
      %v264 = vld [vmem:[%s246 + $0x28] sm:$0xff]
      %v265 = vld [vmem:[%s246 + $0x30] sm:$0xff]
      %v266 = vld [vmem:[%s246 + $0x38] sm:$0xff]
      %v267 = vld [vmem:[#allocation2] sm:$0x1]
      %v269 = vperm.slane %v267, 0
      %v271 = vsub.f32 %v259, %v269
      %v272 = vsub.f32 %v260, %v269
      %v273 = vsub.f32 %v261, %v269
      %v274 = vsub.f32 %v262, %v269
      %v275 = vsub.f32 %v263, %v269
      %v276 = vsub.f32 %v264, %v269
      %v277 = vsub.f32 %v265, %v269
      %v278 = vsub.f32 %v266, %v269
      %v279 = vmul.f32 %v271, 1.442695
      %v280 = vpow.pop %v279
      %v281 = vmul.f32 %v272, 1.442695
      %v282 = vpow.pop %v281
      %v283 = vmul.f32 %v273, 1.442695
      %v284 = vpow.pop %v283
      %v285 = vmul.f32 %v274, 1.442695
      %v286 = vpow.pop %v285
      %v287 = vmul.f32 %v275, 1.442695
      %v288 = vpow.pop %v287
      %v289 = vmul.f32 %v276, 1.442695
      %v290 = vpow.pop %v289
      %v291 = vmul.f32 %v277, 1.442695
      %v292 = vpow.pop %v291
      %v293 = vmul.f32 %v278, 1.442695
      %v294 = vpow.pop %v293
      %v296 = vperm.slane %v258, 0
      %v298 = vmul.f32 %v280, %v296
      %v299 = vmul.f32 %v282, %v296
      %v300 = vmul.f32 %v284, %v296
      %v301 = vmul.f32 %v286, %v296
      %v302 = vmul.f32 %v288, %v296
      %v303 = vmul.f32 %v290, %v296
      %v304 = vmul.f32 %v292, %v296
      %v305 = vmul.f32 %v294, %v296
      %v306 = vld [vmem:[%s240] sm:$0xff]
      %v307 = vld [vmem:[%s240 + $0x8] sm:$0xff]
      %v308 = vld [vmem:[%s240 + $0x10] sm:$0xff]
      %v309 = vld [vmem:[%s240 + $0x18] sm:$0xff]
      %v310 = vld [vmem:[%s240 + $0x20] sm:$0xff]
      %v311 = vld [vmem:[%s240 + $0x28] sm:$0xff]
      %v312 = vld [vmem:[%s240 + $0x30] sm:$0xff]
      %v313 = vld [vmem:[%s240 + $0x38] sm:$0xff]
      %315 = vset.pattern.permute.xlu0 0
      %316 = vperm.xlu0 %315, %v298
      %v317 = vpop.permute.xlu0 %316
      %320 = vset.pattern.permute.xlu0 0
      %321 = vperm.xlu0 %320, %v299
      %v322 = vpop.permute.xlu0 %321
      %325 = vset.pattern.permute.xlu0 0
      %326 = vperm.xlu0 %325, %v300
      %v327 = vpop.permute.xlu0 %326
      %330 = vset.pattern.permute.xlu0 0
      %331 = vperm.xlu0 %330, %v301
      %v332 = vpop.permute.xlu0 %331
      %335 = vset.pattern.permute.xlu0 0
      %336 = vperm.xlu0 %335, %v302
      %v337 = vpop.permute.xlu0 %336
      %340 = vset.pattern.permute.xlu0 0
      %341 = vperm.xlu0 %340, %v303
      %v342 = vpop.permute.xlu0 %341
      %345 = vset.pattern.permute.xlu0 0
      %346 = vperm.xlu0 %345, %v304
      %v347 = vpop.permute.xlu0 %346
      %350 = vset.pattern.permute.xlu0 0
      %351 = vperm.xlu0 %350, %v305
      %v352 = vpop.permute.xlu0 %351
      %v354 = vmul.f32 %v306, %v317
      %v355 = vmul.f32 %v307, %v322
      %v356 = vmul.f32 %v308, %v327
      %v357 = vmul.f32 %v309, %v332
      %v358 = vmul.f32 %v310, %v337
      %v359 = vmul.f32 %v311, %v342
      %v360 = vmul.f32 %v312, %v347
      %v361 = vmul.f32 %v313, %v352
      %v362 = vld [vmem:[%s4] sm:$0xff]
      %v363 = vld [vmem:[%s4 + $0x8] sm:$0xff]
      %v364 = vld [vmem:[%s4 + $0x10] sm:$0xff]
      %v365 = vld [vmem:[%s4 + $0x18] sm:$0xff]
      %vm366 = vcmask 261120
      %v368 = vsel %vm366, %v354, 0
      %v371 = vsel %vm366, %v355, 0
      %v374 = vsel %vm366, %v356, 0
      %v377 = vsel %vm366, %v357, 0
      %v380 = vsel %vm366, %v358, 0
      %v383 = vsel %vm366, %v359, 0
      %v386 = vsel %vm366, %v360, 0
      %v389 = vsel %vm366, %v361, 0
      %391 = vmatpush.msra.mxu0 0.0
      %392 = vmatpush.msra.mxu0 0.0
      %393 = vmatpush.msra.mxu0 0.0
      %394 = vmatpush.msra.mxu0 0.0
      %395 = vmatpush.msra.mxu0 0.0
      %396 = vmatpush.msra.mxu0 0.0
      %397 = vmatpush.msra.mxu0 0.0
      %398 = vmatpush.msra.mxu0 0.0
      %399 = vmatpush.msra.mxu0 0.0
      %400 = vmatpush.msra.mxu0 0.0
      %401 = vmatpush.msra.mxu0 0.0
      %402 = vmatpush.msra.mxu0 0.0
      %v403 = vand.u32 %v365, 4294901760
      %404 = vmatpush.msra.mxu0 %v403
      %v405 = vand.u32 %v364, 4294901760
      %406 = vmatpush.msra.mxu0 %v405
      %v407 = vand.u32 %v363, 4294901760
      %408 = vmatpush.msra.mxu0 %v407
      %v409 = vand.u32 %v362, 4294901760
      %410 = vmatpush.msra.mxu0 %v409
      %v411 = vand.u32 %v368, 4294901760
      %v412 = vsub.f32 %v368, %v411
      %v413 = vand.u32 %v412, 4294901760
      %v414 = vsub.f32 %v412, %v413
      %v415 = vand.u32 %v414, 4294901760
      %416 = vmatmul.f32.gmra.mxu0 %v415
      %v417 = vpop.f32.mrf.mxu0
      %v418 = vadd.f32 0.0, %v417
      %v419 = vand.u32 %v371, 4294901760
      %v420 = vsub.f32 %v371, %v419
      %v421 = vand.u32 %v420, 4294901760
      %v422 = vsub.f32 %v420, %v421
      %v423 = vand.u32 %v422, 4294901760
      %424 = vmatmul.f32.gmra.mxu0 %v423
      %v425 = vpop.f32.mrf.mxu0
      %v426 = vadd.f32 0.0, %v425
      %v427 = vand.u32 %v374, 4294901760
      %v428 = vsub.f32 %v374, %v427
      %v429 = vand.u32 %v428, 4294901760
      %v430 = vsub.f32 %v428, %v429
      %v431 = vand.u32 %v430, 4294901760
      %432 = vmatmul.f32.gmra.mxu0 %v431
      %v433 = vpop.f32.mrf.mxu0
      %v434 = vadd.f32 0.0, %v433
      %v435 = vand.u32 %v377, 4294901760
      %v436 = vsub.f32 %v377, %v435
      %v437 = vand.u32 %v436, 4294901760
      %v438 = vsub.f32 %v436, %v437
      %v439 = vand.u32 %v438, 4294901760
      %440 = vmatmul.f32.gmra.mxu0 %v439
      %v441 = vpop.f32.mrf.mxu0
      %v442 = vadd.f32 0.0, %v441
      %v443 = vand.u32 %v380, 4294901760
      %v444 = vsub.f32 %v380, %v443
      %v445 = vand.u32 %v444, 4294901760
      %v446 = vsub.f32 %v444, %v445
      %v447 = vand.u32 %v446, 4294901760
      %448 = vmatmul.f32.gmra.mxu0 %v447
      %v449 = vpop.f32.mrf.mxu0
      %v450 = vadd.f32 0.0, %v449
      %v451 = vand.u32 %v383, 4294901760
      %v452 = vsub.f32 %v383, %v451
      %v453 = vand.u32 %v452, 4294901760
      %v454 = vsub.f32 %v452, %v453
      %v455 = vand.u32 %v454, 4294901760
      %456 = vmatmul.f32.gmra.mxu0 %v455
      %v457 = vpop.f32.mrf.mxu0
      %v458 = vadd.f32 0.0, %v457
      %v459 = vand.u32 %v386, 4294901760
      %v460 = vsub.f32 %v386, %v459
      %v461 = vand.u32 %v460, 4294901760
      %v462 = vsub.f32 %v460, %v461
      %v463 = vand.u32 %v462, 4294901760
      %464 = vmatmul.f32.gmra.mxu0 %v463
      %v465 = vpop.f32.mrf.mxu0
      %v466 = vadd.f32 0.0, %v465
      %v467 = vand.u32 %v389, 4294901760
      %v468 = vsub.f32 %v389, %v467
      %v469 = vand.u32 %v468, 4294901760
      %v470 = vsub.f32 %v468, %v469
      %v471 = vand.u32 %v470, 4294901760
      %472 = vmatmul.f32.gmra.mxu0 %v471
      %v473 = vpop.f32.mrf.mxu0
      %v474 = vadd.f32 0.0, %v473
      %475 = vdwg.mxu0
      %476 = vmatpush.msra.mxu0 0.0
      %477 = vmatpush.msra.mxu0 0.0
      %478 = vmatpush.msra.mxu0 0.0
      %479 = vmatpush.msra.mxu0 0.0
      %480 = vmatpush.msra.mxu0 0.0
      %481 = vmatpush.msra.mxu0 0.0
      %482 = vmatpush.msra.mxu0 0.0
      %483 = vmatpush.msra.mxu0 0.0
      %484 = vmatpush.msra.mxu0 0.0
      %485 = vmatpush.msra.mxu0 0.0
      %486 = vmatpush.msra.mxu0 0.0
      %487 = vmatpush.msra.mxu0 0.0
      %v488 = vand.u32 %v365, 4294901760
      %v489 = vsub.f32 %v365, %v488
      %v490 = vand.u32 %v489, 4294901760
      %v491 = vsub.f32 %v489, %v490
      %v492 = vand.u32 %v491, 4294901760
      %493 = vmatpush.msra.mxu0 %v492
      %v494 = vand.u32 %v364, 4294901760
      %v495 = vsub.f32 %v364, %v494
      %v496 = vand.u32 %v495, 4294901760
      %v497 = vsub.f32 %v495, %v496
      %v498 = vand.u32 %v497, 4294901760
      %499 = vmatpush.msra.mxu0 %v498
      %v500 = vand.u32 %v363, 4294901760
      %v501 = vsub.f32 %v363, %v500
      %v502 = vand.u32 %v501, 4294901760
      %v503 = vsub.f32 %v501, %v502
      %v504 = vand.u32 %v503, 4294901760
      %505 = vmatpush.msra.mxu0 %v504
      %v506 = vand.u32 %v362, 4294901760
      %v507 = vsub.f32 %v362, %v506
      %v508 = vand.u32 %v507, 4294901760
      %v509 = vsub.f32 %v507, %v508
      %v510 = vand.u32 %v509, 4294901760
      %511 = vmatpush.msra.mxu0 %v510
      %v512 = vand.u32 %v368, 4294901760
      %513 = vmatmul.f32.gmra.mxu0 %v512
      %v514 = vpop.f32.mrf.mxu0
      %v515 = vadd.f32 %v418, %v514
      %v516 = vand.u32 %v371, 4294901760
      %517 = vmatmul.f32.gmra.mxu0 %v516
      %v518 = vpop.f32.mrf.mxu0
      %v519 = vadd.f32 %v426, %v518
      %v520 = vand.u32 %v374, 4294901760
      %521 = vmatmul.f32.gmra.mxu0 %v520
      %v522 = vpop.f32.mrf.mxu0
      %v523 = vadd.f32 %v434, %v522
      %v524 = vand.u32 %v377, 4294901760
      %525 = vmatmul.f32.gmra.mxu0 %v524
      %v526 = vpop.f32.mrf.mxu0
      %v527 = vadd.f32 %v442, %v526
      %v528 = vand.u32 %v380, 4294901760
      %529 = vmatmul.f32.gmra.mxu0 %v528
      %v530 = vpop.f32.mrf.mxu0
      %v531 = vadd.f32 %v450, %v530
      %v532 = vand.u32 %v383, 4294901760
      %533 = vmatmul.f32.gmra.mxu0 %v532
      %v534 = vpop.f32.mrf.mxu0
      %v535 = vadd.f32 %v458, %v534
      %v536 = vand.u32 %v386, 4294901760
      %537 = vmatmul.f32.gmra.mxu0 %v536
      %v538 = vpop.f32.mrf.mxu0
      %v539 = vadd.f32 %v466, %v538
      %v540 = vand.u32 %v389, 4294901760
      %541 = vmatmul.f32.gmra.mxu0 %v540
      %v542 = vpop.f32.mrf.mxu0
      %v543 = vadd.f32 %v474, %v542
      %544 = vdwg.mxu0
      %545 = vmatpush.msra.mxu0 0.0
      %546 = vmatpush.msra.mxu0 0.0
      %547 = vmatpush.msra.mxu0 0.0
      %548 = vmatpush.msra.mxu0 0.0
      %549 = vmatpush.msra.mxu0 0.0
      %550 = vmatpush.msra.mxu0 0.0
      %551 = vmatpush.msra.mxu0 0.0
      %552 = vmatpush.msra.mxu0 0.0
      %553 = vmatpush.msra.mxu0 0.0
      %554 = vmatpush.msra.mxu0 0.0
      %555 = vmatpush.msra.mxu0 0.0
      %556 = vmatpush.msra.mxu0 0.0
      %v557 = vand.u32 %v365, 4294901760
      %v558 = vsub.f32 %v365, %v557
      %559 = vmatpush.msra.mxu0 %v558
      %v560 = vand.u32 %v364, 4294901760
      %v561 = vsub.f32 %v364, %v560
      %562 = vmatpush.msra.mxu0 %v561
      %v563 = vand.u32 %v363, 4294901760
      %v564 = vsub.f32 %v363, %v563
      %565 = vmatpush.msra.mxu0 %v564
      %v566 = vand.u32 %v362, 4294901760
      %v567 = vsub.f32 %v362, %v566
      %568 = vmatpush.msra.mxu0 %v567
      %v569 = vand.u32 %v368, 4294901760
      %v570 = vsub.f32 %v368, %v569
      %571 = vmatmul.f32.gmra.mxu0 %v570
      %v572 = vpop.f32.mrf.mxu0
      %v573 = vadd.f32 %v515, %v572
      %v574 = vand.u32 %v371, 4294901760
      %v575 = vsub.f32 %v371, %v574
      %576 = vmatmul.f32.gmra.mxu0 %v575
      %v577 = vpop.f32.mrf.mxu0
      %v578 = vadd.f32 %v519, %v577
      %v579 = vand.u32 %v374, 4294901760
      %v580 = vsub.f32 %v374, %v579
      %581 = vmatmul.f32.gmra.mxu0 %v580
      %v582 = vpop.f32.mrf.mxu0
      %v583 = vadd.f32 %v523, %v582
      %v584 = vand.u32 %v377, 4294901760
      %v585 = vsub.f32 %v377, %v584
      %586 = vmatmul.f32.gmra.mxu0 %v585
      %v587 = vpop.f32.mrf.mxu0
      %v588 = vadd.f32 %v527, %v587
      %v589 = vand.u32 %v380, 4294901760
      %v590 = vsub.f32 %v380, %v589
      %591 = vmatmul.f32.gmra.mxu0 %v590
      %v592 = vpop.f32.mrf.mxu0
      %v593 = vadd.f32 %v531, %v592
      %v594 = vand.u32 %v383, 4294901760
      %v595 = vsub.f32 %v383, %v594
      %596 = vmatmul.f32.gmra.mxu0 %v595
      %v597 = vpop.f32.mrf.mxu0
      %v598 = vadd.f32 %v535, %v597
      %v599 = vand.u32 %v386, 4294901760
      %v600 = vsub.f32 %v386, %v599
      %601 = vmatmul.f32.gmra.mxu0 %v600
      %v602 = vpop.f32.mrf.mxu0
      %v603 = vadd.f32 %v539, %v602
      %v604 = vand.u32 %v389, 4294901760
      %v605 = vsub.f32 %v389, %v604
      %606 = vmatmul.f32.gmra.mxu0 %v605
      %v607 = vpop.f32.mrf.mxu0
      %v608 = vadd.f32 %v543, %v607
      %609 = vdwg.mxu0
      %610 = vmatpush.msra.mxu0 0.0
      %611 = vmatpush.msra.mxu0 0.0
      %612 = vmatpush.msra.mxu0 0.0
      %613 = vmatpush.msra.mxu0 0.0
      %614 = vmatpush.msra.mxu0 0.0
      %615 = vmatpush.msra.mxu0 0.0
      %616 = vmatpush.msra.mxu0 0.0
      %617 = vmatpush.msra.mxu0 0.0
      %618 = vmatpush.msra.mxu0 0.0
      %619 = vmatpush.msra.mxu0 0.0
      %620 = vmatpush.msra.mxu0 0.0
      %621 = vmatpush.msra.mxu0 0.0
      %v622 = vand.u32 %v365, 4294901760
      %623 = vmatpush.msra.mxu0 %v622
      %v624 = vand.u32 %v364, 4294901760
      %625 = vmatpush.msra.mxu0 %v624
      %v626 = vand.u32 %v363, 4294901760
      %627 = vmatpush.msra.mxu0 %v626
      %v628 = vand.u32 %v362, 4294901760
      %629 = vmatpush.msra.mxu0 %v628
      %v630 = vand.u32 %v368, 4294901760
      %v631 = vsub.f32 %v368, %v630
      %v632 = vand.u32 %v631, 4294901760
      %633 = vmatmul.f32.gmra.mxu0 %v632
      %v634 = vpop.f32.mrf.mxu0
      %v635 = vadd.f32 %v573, %v634
      %v636 = vand.u32 %v371, 4294901760
      %v637 = vsub.f32 %v371, %v636
      %v638 = vand.u32 %v637, 4294901760
      %639 = vmatmul.f32.gmra.mxu0 %v638
      %v640 = vpop.f32.mrf.mxu0
      %v641 = vadd.f32 %v578, %v640
      %v642 = vand.u32 %v374, 4294901760
      %v643 = vsub.f32 %v374, %v642
      %v644 = vand.u32 %v643, 4294901760
      %645 = vmatmul.f32.gmra.mxu0 %v644
      %v646 = vpop.f32.mrf.mxu0
      %v647 = vadd.f32 %v583, %v646
      %v648 = vand.u32 %v377, 4294901760
      %v649 = vsub.f32 %v377, %v648
      %v650 = vand.u32 %v649, 4294901760
      %651 = vmatmul.f32.gmra.mxu0 %v650
      %v652 = vpop.f32.mrf.mxu0
      %v653 = vadd.f32 %v588, %v652
      %v654 = vand.u32 %v380, 4294901760
      %v655 = vsub.f32 %v380, %v654
      %v656 = vand.u32 %v655, 4294901760
      %657 = vmatmul.f32.gmra.mxu0 %v656
      %v658 = vpop.f32.mrf.mxu0
      %v659 = vadd.f32 %v593, %v658
      %v660 = vand.u32 %v383, 4294901760
      %v661 = vsub.f32 %v383, %v660
      %v662 = vand.u32 %v661, 4294901760
      %663 = vmatmul.f32.gmra.mxu0 %v662
      %v664 = vpop.f32.mrf.mxu0
      %v665 = vadd.f32 %v598, %v664
      %v666 = vand.u32 %v386, 4294901760
      %v667 = vsub.f32 %v386, %v666
      %v668 = vand.u32 %v667, 4294901760
      %669 = vmatmul.f32.gmra.mxu0 %v668
      %v670 = vpop.f32.mrf.mxu0
      %v671 = vadd.f32 %v603, %v670
      %v672 = vand.u32 %v389, 4294901760
      %v673 = vsub.f32 %v389, %v672
      %v674 = vand.u32 %v673, 4294901760
      %675 = vmatmul.f32.gmra.mxu0 %v674
      %v676 = vpop.f32.mrf.mxu0
      %v677 = vadd.f32 %v608, %v676
      %678 = vdwg.mxu0
      %679 = vmatpush.msra.mxu0 0.0
      %680 = vmatpush.msra.mxu0 0.0
      %681 = vmatpush.msra.mxu0 0.0
      %682 = vmatpush.msra.mxu0 0.0
      %683 = vmatpush.msra.mxu0 0.0
      %684 = vmatpush.msra.mxu0 0.0
      %685 = vmatpush.msra.mxu0 0.0
      %686 = vmatpush.msra.mxu0 0.0
      %687 = vmatpush.msra.mxu0 0.0
      %688 = vmatpush.msra.mxu0 0.0
      %689 = vmatpush.msra.mxu0 0.0
      %690 = vmatpush.msra.mxu0 0.0
      %v691 = vand.u32 %v365, 4294901760
      %v692 = vsub.f32 %v365, %v691
      %v693 = vand.u32 %v692, 4294901760
      %694 = vmatpush.msra.mxu0 %v693
      %v695 = vand.u32 %v364, 4294901760
      %v696 = vsub.f32 %v364, %v695
      %v697 = vand.u32 %v696, 4294901760
      %698 = vmatpush.msra.mxu0 %v697
      %v699 = vand.u32 %v363, 4294901760
      %v700 = vsub.f32 %v363, %v699
      %v701 = vand.u32 %v700, 4294901760
      %702 = vmatpush.msra.mxu0 %v701
      %v703 = vand.u32 %v362, 4294901760
      %v704 = vsub.f32 %v362, %v703
      %v705 = vand.u32 %v704, 4294901760
      %706 = vmatpush.msra.mxu0 %v705
      %v707 = vand.u32 %v368, 4294901760
      %708 = vmatmul.f32.gmra.mxu0 %v707
      %v709 = vpop.f32.mrf.mxu0
      %v710 = vadd.f32 %v635, %v709
      %v711 = vand.u32 %v371, 4294901760
      %712 = vmatmul.f32.gmra.mxu0 %v711
      %v713 = vpop.f32.mrf.mxu0
      %v714 = vadd.f32 %v641, %v713
      %v715 = vand.u32 %v374, 4294901760
      %716 = vmatmul.f32.gmra.mxu0 %v715
      %v717 = vpop.f32.mrf.mxu0
      %v718 = vadd.f32 %v647, %v717
      %v719 = vand.u32 %v377, 4294901760
      %720 = vmatmul.f32.gmra.mxu0 %v719
      %v721 = vpop.f32.mrf.mxu0
      %v722 = vadd.f32 %v653, %v721
      %v723 = vand.u32 %v380, 4294901760
      %724 = vmatmul.f32.gmra.mxu0 %v723
      %v725 = vpop.f32.mrf.mxu0
      %v726 = vadd.f32 %v659, %v725
      %v727 = vand.u32 %v383, 4294901760
      %728 = vmatmul.f32.gmra.mxu0 %v727
      %v729 = vpop.f32.mrf.mxu0
      %v730 = vadd.f32 %v665, %v729
      %v731 = vand.u32 %v386, 4294901760
      %732 = vmatmul.f32.gmra.mxu0 %v731
      %v733 = vpop.f32.mrf.mxu0
      %v734 = vadd.f32 %v671, %v733
      %v735 = vand.u32 %v389, 4294901760
      %736 = vmatmul.f32.gmra.mxu0 %v735
      %v737 = vpop.f32.mrf.mxu0
      %v738 = vadd.f32 %v677, %v737
      %739 = vdwg.mxu0
      %740 = vmatpush.msra.mxu0 0.0
      %741 = vmatpush.msra.mxu0 0.0
      %742 = vmatpush.msra.mxu0 0.0
      %743 = vmatpush.msra.mxu0 0.0
      %744 = vmatpush.msra.mxu0 0.0
      %745 = vmatpush.msra.mxu0 0.0
      %746 = vmatpush.msra.mxu0 0.0
      %747 = vmatpush.msra.mxu0 0.0
      %748 = vmatpush.msra.mxu0 0.0
      %749 = vmatpush.msra.mxu0 0.0
      %750 = vmatpush.msra.mxu0 0.0
      %751 = vmatpush.msra.mxu0 0.0
      %v752 = vand.u32 %v365, 4294901760
      %753 = vmatpush.msra.mxu0 %v752
      %v754 = vand.u32 %v364, 4294901760
      %755 = vmatpush.msra.mxu0 %v754
      %v756 = vand.u32 %v363, 4294901760
      %757 = vmatpush.msra.mxu0 %v756
      %v758 = vand.u32 %v362, 4294901760
      %759 = vmatpush.msra.mxu0 %v758
      %v760 = vand.u32 %v368, 4294901760
      %761 = vmatmul.f32.gmra.mxu0 %v760
      %v762 = vpop.f32.mrf.mxu0
      %v763 = vadd.f32 %v710, %v762
      %v764 = vand.u32 %v371, 4294901760
      %765 = vmatmul.f32.gmra.mxu0 %v764
      %v766 = vpop.f32.mrf.mxu0
      %v767 = vadd.f32 %v714, %v766
      %v768 = vand.u32 %v374, 4294901760
      %769 = vmatmul.f32.gmra.mxu0 %v768
      %v770 = vpop.f32.mrf.mxu0
      %v771 = vadd.f32 %v718, %v770
      %v772 = vand.u32 %v377, 4294901760
      %773 = vmatmul.f32.gmra.mxu0 %v772
      %v774 = vpop.f32.mrf.mxu0
      %v775 = vadd.f32 %v722, %v774
      %v776 = vand.u32 %v380, 4294901760
      %777 = vmatmul.f32.gmra.mxu0 %v776
      %v778 = vpop.f32.mrf.mxu0
      %v779 = vadd.f32 %v726, %v778
      %v780 = vand.u32 %v383, 4294901760
      %781 = vmatmul.f32.gmra.mxu0 %v780
      %v782 = vpop.f32.mrf.mxu0
      %v783 = vadd.f32 %v730, %v782
      %v784 = vand.u32 %v386, 4294901760
      %785 = vmatmul.f32.gmra.mxu0 %v784
      %v786 = vpop.f32.mrf.mxu0
      %v787 = vadd.f32 %v734, %v786
      %v788 = vand.u32 %v389, 4294901760
      %789 = vmatmul.f32.gmra.mxu0 %v788
      %v790 = vpop.f32.mrf.mxu0
      %v791 = vadd.f32 %v738, %v790
      %792 = vdwg.mxu0
      %vm793 = vcmask 7168
      %794 = vst.msk [vmem:[%s252] sm:$0xff] %vm793, %v763
      %795 = vst.msk [vmem:[%s252 + $0x8] sm:$0xff] %vm793, %v767
      %796 = vst.msk [vmem:[%s252 + $0x10] sm:$0xff] %vm793, %v771
      %797 = vst.msk [vmem:[%s252 + $0x18] sm:$0xff] %vm793, %v775
      %798 = vst.msk [vmem:[%s252 + $0x20] sm:$0xff] %vm793, %v779
      %799 = vst.msk [vmem:[%s252 + $0x28] sm:$0xff] %vm793, %v783
      %800 = vst.msk [vmem:[%s252 + $0x30] sm:$0xff] %vm793, %v787
      %801 = vst.msk [vmem:[%s252 + $0x38] sm:$0xff] %vm793, %v791
      %s802 = smul.u32 8, %s20
      %p803 = scmp.lt.s32.totalorder %s802, 31
      %s804 = scalar_select %p803, %s802, 31
      %s805 = smul.addr %s804, 8
      %s806 = scalar_lea.vmem %s5, %s805
      // Predicated region
      $region41: #{shglnn_forward.8} parent=39 // pred_check
        %p807 = pneg %p153
      $region42: #{shglnn_forward.8} parent=39 // pred_check_branch
        %809 = sbr.rel (%p807) target = $region44
      $region43: #{shglnn_forward.8} parent=39 // pred_region
        %s810 = smul.u32 8, %s20
      $region44: #{shglnn_forward.8} parent=39 // pred_fallthru
        _
    $region40: #{shglnn_forward.8} parent=5 // pred_fallthru
      _
    %p811 = scmp.le.s32.totalorder 2, %s15
    // Predicated region
    $region45: #{shglnn_forward.8} parent=5 // pred_check
      %p812 = pneg %p811
    $region46: #{shglnn_forward.8} parent=5 // pred_check_branch
      %814 = sbr.rel (%p812) target = $region48
    $region47: #{shglnn_forward.8} parent=5 // pred_region
      %s815 = ssub.s32 %s15, 2
      // Predicated region
      $region49: #{shglnn_forward.8} parent=47 // pred_check
        %p816 = pneg %p159
      $region50: #{shglnn_forward.8} parent=47 // pred_check_branch
        %818 = sbr.rel (%p816) target = $region52
      $region51: #{shglnn_forward.8} parent=47 // pred_region
        %s819 = smul.u32 8, %s21
        %p820 = scmp.lt.s32.totalorder %s819, 31
        %s821 = scalar_select %p820, %s819, 31
        %s822 = smul.addr %s821, 8
        %s823 = scalar_lea.vmem %s5, %s822
      $region52: #{shglnn_forward.8} parent=47 // pred_fallthru
        _
    $region48: #{shglnn_forward.8} parent=5 // pred_fallthru
      _
  $region6: #{shglnn_forward.8} parent=0 // loop_footer
    %s19 = sadd.s32 1, %s15
  $region7: #{shglnn_forward.8} parent=0 // loop_footer_branch
    %14 = sbr.rel target = $region3
  $region8: #{shglnn_forward.8} parent=0 // loop_exit
    _

// kernel: shglnn_forward.9
$region0: #{shglnn_forward.9}
  #allocation0 [shape = 'u32[]', space=smem, size = 0x4, offset = 0x4, fixed_abs, tag = 'smem constant byte address 0x4 - core index']
  #allocation1 [shape = 'u32[72,128]{1,0:T(1,128)}', space=vmem, size = 0x9000, scoped, tag = 'internal scratch']
  #allocation2 [shape = 'f32[64,1]{1,0:T(8,128)}', space=vmem, size = 0x8000, scoped, tag = 'scratch operand']
  %s0 = inlined_call_operand.vmem [shape: f32[256,256], index: 0, kind: input, shape index: {}]
  %s1 = inlined_call_operand.vmem [shape: f32[256,1], index: 1, kind: input, shape index: {}]
  %s2 = inlined_call_operand.vmem [shape: f32[1,32], index: 2, kind: input, shape index: {}]
  %s3 = inlined_call_operand.vmem [shape: f32[1,32], index: 3, kind: input, shape index: {}]
  %s4 = inlined_call_operand.vmem [shape: f32[32,32], index: 4, kind: input, shape index: {}]
  %s5 = inlined_call_operand.vmem [shape: f32[256,32], index: 5, kind: output, shape index: {}]
  %s6 = sld [smem:[#allocation0]]
  $region99: #{shglnn_forward.9} parent=0
    _
  %s8 = ssub.s32 1, %s6
  %s9 = scalar_select 0, %s8, %s6
  $region1: #{shglnn_forward.9} parent=0
    #allocation3 [shape = 'u8[65536]{0}', space=vmem, size = 0x10000, scoped, tag = 'input window, operand 0']
    loop: start=0, step=1, limit=10
    $region2: #{shglnn_forward.9} parent=1 // loop_pre_header
      _
    $region3: #{shglnn_forward.9} parent=1 // loop_header
      %s11 = sphi 0, %s15
      %p12 = scmp.ge.s32.totalorder %s11, 10
      %s18 = sphi 0, %s30
      %s19 = sphi 0, %s26
      %s20 = sphi 0, %s18
      %s21 = sphi 0, %s19
      %s22 = sphi 0, %s20
      %s23 = sphi 0, %s21
      %s35 = sphi 0, %s37
      %s38 = sphi 0, %s35
      %s39 = sphi 0, %s38
      %s55 = sphi 0, %s39
      %s61 = sphi 0, %s63
      %s64 = sphi 0, %s61
      %s65 = sphi 0, %s64
      %s81 = sphi 0, %s65
      %s85 = sphi 0, %s85
      %s87 = sphi 0, %s85
      %s88 = sphi 0, %s87
      %s102 = sphi 0, %s88
      %s106 = sphi 0, %s106
      %s108 = sphi 0, %s106
      %s109 = sphi 0, %s108
      %s123 = sphi 0, %s109
      %s127 = sphi 0, %s127
      %s129 = sphi 0, %s127
      %s130 = sphi 0, %s129
      %s144 = sphi 0, %s130
      %s150 = sphi 0, %s152
      %s153 = sphi 0, %s150
      %s154 = sphi 0, %s153
      %s170 = sphi 0, %s154
    $region4: #{shglnn_forward.9} parent=1 // loop_header_branch
      %14 = sbr.rel (%p12) target = $region8
    $region5: #{shglnn_forward.9} parent=1 // loop_body
      %s16 = ssub.s32 %s11, 1
      %s17 = ssub.s32 %s11, 2
      %s24 = sadd.s32 1, %s19
      %p25 = scmp.ge.s32.totalorder %s24, 2
      %s26 = scalar_select %p25, 0, %s24
      %s27 = sadd.s32 1, %s18
      %s28 = scalar_select %p25, %s27, %s18
      %p29 = scmp.ge.s32.totalorder %s28, 4
      %s30 = scalar_select %p29, 0, %s28
      %s31 = ssub.s32 %s18, %s30
      %s32 = ssub.s32 %s19, %s26
      %s33 = sor.u32 %s31, %s32
      %p34 = scmp.eq.s32.totalorder %s33, 0
      %s36 = sadd.s32 %s35, 1
      %s37 = scalar_select %p34, %s35, %s36
      %p40 = pneg %p34
      %p41 = scmp.eq.s32.totalorder %s11, 7
      %p42 = por %p40, %p41
      %p43 = scmp.ne.s32.totalorder %s35, %s38
      %p44 = scmp.eq.s32.totalorder %s11, 0
      %p45 = por %p43, %p44
      %p46 = scmp.ne.s32.totalorder %s35, %s38
      %p47 = scmp.eq.s32.totalorder %s16, 7
      %p48 = por %p46, %p47
      %p49 = scmp.ne.s32.totalorder %s38, %s39
      %p50 = scmp.eq.s32.totalorder %s16, 0
      %p51 = por %p49, %p50
      %p52 = scmp.ne.s32.totalorder %s38, %s39
      %p53 = scmp.eq.s32.totalorder %s17, 7
      %p54 = por %p52, %p53
      %p56 = scmp.ne.s32.totalorder %s39, %s55
      %p57 = scmp.eq.s32.totalorder %s17, 0
      %p58 = por %p56, %p57
      %s59 = ssub.s32 %s19, %s26
      %p60 = scmp.eq.s32.totalorder %s59, 0
      %s62 = sadd.s32 %s61, 1
      %s63 = scalar_select %p60, %s61, %s62
      %p66 = pneg %p60
      %p67 = scmp.eq.s32.totalorder %s11, 7
      %p68 = por %p66, %p67
      %p69 = scmp.ne.s32.totalorder %s61, %s64
      %p70 = scmp.eq.s32.totalorder %s11, 0
      %p71 = por %p69, %p70
      %p72 = scmp.ne.s32.totalorder %s61, %s64
      %p73 = scmp.eq.s32.totalorder %s16, 7
      %p74 = por %p72, %p73
      %p75 = scmp.ne.s32.totalorder %s64, %s65
      %p76 = scmp.eq.s32.totalorder %s16, 0
      %p77 = por %p75, %p76
      %p78 = scmp.ne.s32.totalorder %s64, %s65
      %p79 = scmp.eq.s32.totalorder %s17, 7
      %p80 = por %p78, %p79
      %p82 = scmp.ne.s32.totalorder %s65, %s81
      %p83 = scmp.eq.s32.totalorder %s17, 0
      %p84 = por %p82, %p83
      %s86 = sadd.s32 %s85, 1
      %p89 = scmp.eq.s32.totalorder %s11, 7
      %p90 = scmp.ne.s32.totalorder %s85, %s87
      %p91 = scmp.eq.s32.totalorder %s11, 0
      %p92 = por %p90, %p91
      %p93 = scmp.ne.s32.totalorder %s85, %s87
      %p94 = scmp.eq.s32.totalorder %s16, 7
      %p95 = por %p93, %p94
      %p96 = scmp.ne.s32.totalorder %s87, %s88
      %p97 = scmp.eq.s32.totalorder %s16, 0
      %p98 = por %p96, %p97
      %p99 = scmp.ne.s32.totalorder %s87, %s88
      %p100 = scmp.eq.s32.totalorder %s17, 7
      %p101 = por %p99, %p100
      %p103 = scmp.ne.s32.totalorder %s88, %s102
      %p104 = scmp.eq.s32.totalorder %s17, 0
      %p105 = por %p103, %p104
      %s107 = sadd.s32 %s106, 1
      %p110 = scmp.eq.s32.totalorder %s11, 7
      %p111 = scmp.ne.s32.totalorder %s106, %s108
      %p112 = scmp.eq.s32.totalorder %s11, 0
      %p113 = por %p111, %p112
      %p114 = scmp.ne.s32.totalorder %s106, %s108
      %p115 = scmp.eq.s32.totalorder %s16, 7
      %p116 = por %p114, %p115
      %p117 = scmp.ne.s32.totalorder %s108, %s109
      %p118 = scmp.eq.s32.totalorder %s16, 0
      %p119 = por %p117, %p118
      %p120 = scmp.ne.s32.totalorder %s108, %s109
      %p121 = scmp.eq.s32.totalorder %s17, 7
      %p122 = por %p120, %p121
      %p124 = scmp.ne.s32.totalorder %s109, %s123
      %p125 = scmp.eq.s32.totalorder %s17, 0
      %p126 = por %p124, %p125
      %s128 = sadd.s32 %s127, 1
      %p131 = scmp.eq.s32.totalorder %s11, 7
      %p132 = scmp.ne.s32.totalorder %s127, %s129
      %p133 = scmp.eq.s32.totalorder %s11, 0
      %p134 = por %p132, %p133
      %p135 = scmp.ne.s32.totalorder %s127, %s129
      %p136 = scmp.eq.s32.totalorder %s16, 7
      %p137 = por %p135, %p136
      %p138 = scmp.ne.s32.totalorder %s129, %s130
      %p139 = scmp.eq.s32.totalorder %s16, 0
      %p140 = por %p138, %p139
      %p141 = scmp.ne.s32.totalorder %s129, %s130
      %p142 = scmp.eq.s32.totalorder %s17, 7
      %p143 = por %p141, %p142
      %p145 = scmp.ne.s32.totalorder %s130, %s144
      %p146 = scmp.eq.s32.totalorder %s17, 0
      %p147 = por %p145, %p146
      %s148 = ssub.s32 %s18, %s30
      %p149 = scmp.eq.s32.totalorder %s148, 0
      %s151 = sadd.s32 %s150, 1
      %s152 = scalar_select %p149, %s150, %s151
      %p155 = pneg %p149
      %p156 = scmp.eq.s32.totalorder %s11, 7
      %p157 = por %p155, %p156
      %p158 = scmp.ne.s32.totalorder %s150, %s153
      %p159 = scmp.eq.s32.totalorder %s11, 0
      %p160 = por %p158, %p159
      %p161 = scmp.ne.s32.totalorder %s150, %s153
      %p162 = scmp.eq.s32.totalorder %s16, 7
      %p163 = por %p161, %p162
      %p164 = scmp.ne.s32.totalorder %s153, %s154
      %p165 = scmp.eq.s32.totalorder %s16, 0
      %p166 = por %p164, %p165
      %p167 = scmp.ne.s32.totalorder %s153, %s154
      %p168 = scmp.eq.s32.totalorder %s17, 7
      %p169 = por %p167, %p168
      %p171 = scmp.ne.s32.totalorder %s154, %s170
      %p172 = scmp.eq.s32.totalorder %s17, 0
      %p173 = por %p171, %p172
      %p174 = scmp.le.s32.totalorder 1, %s11
      %p175 = scmp.lt.s32.totalorder %s11, 9
      %p176 = pnand %p174, %p175
      %p177 = pneg %p176
      // Predicated region
      $region9: #{shglnn_forward.9} parent=5 // pred_check
        _
      $region10: #{shglnn_forward.9} parent=5 // pred_check_branch
        %179 = sbr.rel (%p176) target = $region12
      $region11: #{shglnn_forward.9} parent=5 // pred_region
        %s180 = ssub.s32 %s11, 1
        // Predicated region
        $region13: #{shglnn_forward.9} parent=11 // pred_check
          %p181 = pneg %p98
        $region14: #{shglnn_forward.9} parent=11 // pred_check_branch
          %183 = sbr.rel (%p181) target = $region16
        $region15: #{shglnn_forward.9} parent=11 // pred_region
          _
        $region16: #{shglnn_forward.9} parent=11 // pred_fallthru
          _
        // Predicated region
        $region17: #{shglnn_forward.9} parent=11 // pred_check
          %p184 = pneg %p119
        $region18: #{shglnn_forward.9} parent=11 // pred_check_branch
          %186 = sbr.rel (%p184) target = $region20
        $region19: #{shglnn_forward.9} parent=11 // pred_region
          _
        $region20: #{shglnn_forward.9} parent=11 // pred_fallthru
          _
        // Predicated region
        $region21: #{shglnn_forward.9} parent=11 // pred_check
          %p187 = pneg %p140
        $region22: #{shglnn_forward.9} parent=11 // pred_check_branch
          %189 = sbr.rel (%p187) target = $region24
        $region23: #{shglnn_forward.9} parent=11 // pred_region
          _
        $region24: #{shglnn_forward.9} parent=11 // pred_fallthru
          _
      $region12: #{shglnn_forward.9} parent=5 // pred_fallthru
        _
      %p190 = scmp.lt.s32.totalorder %s11, 8
      // Predicated region
      $region25: #{shglnn_forward.9} parent=5 // pred_check
        %p191 = pneg %p190
      $region26: #{shglnn_forward.9} parent=5 // pred_check_branch
        %193 = sbr.rel (%p191) target = $region28
      $region27: #{shglnn_forward.9} parent=5 // pred_region
        // Predicated region
        $region29: #{shglnn_forward.9} parent=27 // pred_check
          %p194 = pneg %p45
        $region30: #{shglnn_forward.9} parent=27 // pred_check_branch
          %196 = sbr.rel (%p194) target = $region32
        $region31: #{shglnn_forward.9} parent=27 // pred_region
          %s197 = sand.u32 %s35, 1
          %s198 = sand.u32 %s35, 1
          %s199 = smul.addr %s198, 64
          %s200 = scalar_lea.vmem [#allocation3], %s199
          %s201 = smul.u32 8, %s18
          %s202 = smul.addr %s201, 2
          %s203 = sadd.s32 %s19, %s202
          %s204 = smul.addr %s203, 8
          %s205 = scalar_lea.vmem %s0, %s204
          // Predicated region
          $region33: #{shglnn_forward.9} parent=31 // pred_check
            _
          $region34: #{shglnn_forward.9} parent=31 // pred_check_branch
            %207 = sbr.rel (0) target = $region36
          $region35: #{shglnn_forward.9} parent=31 // pred_region
            // Predicated region
            $region37: #{shglnn_forward.9} parent=35 // pred_check
              _
            $region38: #{shglnn_forward.9} parent=35 // pred_check_branch
              %209 = sbr.rel (0) target = $region40
            $region39: #{shglnn_forward.9} parent=35 // pred_region
              // Predicated region
              $region52: #{shglnn_forward.9} parent=39 // pred_check
                _
              $region53: #{shglnn_forward.9} parent=39 // pred_check_branch
                %239 = sbr.rel (0) target = $region55
              $region54: #{shglnn_forward.9} parent=39 // pred_region
                loop: start=0, step=1, limit=1
                $region56: #{shglnn_forward.9} parent=54 // loop_pre_header
                  _
                $region57: #{shglnn_forward.9} parent=54 // loop_header
                  %s241 = sphi 0, %s245
                  %p242 = scmp.ge.s32.totalorder %s241, 1
                  %s246 = sphi %s205, %s205
                  %s247 = sphi %s200, %s200
                $region58: #{shglnn_forward.9} parent=54 // loop_header_branch
                  %244 = sbr.rel (%p242) target = $region62
                $region59: #{shglnn_forward.9} parent=54 // loop_body
                  %v248 = vld [vmem:[%s246] sm:$0xff]
                  %249 = vst [vmem:[%s247] sm:$0xff] %v248
                  %v250 = vld [vmem:[%s246 + $0x10] sm:$0xff]
                  %251 = vst [vmem:[%s247 + $0x8] sm:$0xff] %v250
                  %v252 = vld [vmem:[%s246 + $0x20] sm:$0xff]
                  %253 = vst [vmem:[%s247 + $0x10] sm:$0xff] %v252
                  %v254 = vld [vmem:[%s246 + $0x30] sm:$0xff]
                  %255 = vst [vmem:[%s247 + $0x18] sm:$0xff] %v254
                  %v256 = vld [vmem:[%s246 + $0x40] sm:$0xff]
                  %257 = vst [vmem:[%s247 + $0x20] sm:$0xff] %v256
                  %v258 = vld [vmem:[%s246 + $0x50] sm:$0xff]
                  %259 = vst [vmem:[%s247 + $0x28] sm:$0xff] %v258
                  %v260 = vld [vmem:[%s246 + $0x60] sm:$0xff]
                  %261 = vst [vmem:[%s247 + $0x30] sm:$0xff] %v260
                  %v262 = vld [vmem:[%s246 + $0x70] sm:$0xff]
                  %263 = vst [vmem:[%s247 + $0x38] sm:$0xff] %v262
                $region60: #{shglnn_forward.9} parent=54 // loop_footer
                  %s245 = sadd.s32 1, %s241
                $region61: #{shglnn_forward.9} parent=54 // loop_footer_branch
                  %240 = sbr.rel target = $region57
                $region62: #{shglnn_forward.9} parent=54 // loop_exit
                  _
              $region55: #{shglnn_forward.9} parent=39 // pred_fallthru
                _
              // Predicated region
              $region63: #{shglnn_forward.9} parent=39 // pred_check
                _
              $region64: #{shglnn_forward.9} parent=39 // pred_check_branch
                %265 = sbr.rel target = $region66
              $region65: #{shglnn_forward.9} parent=39 // pred_region
                _
              $region66: #{shglnn_forward.9} parent=39 // pred_fallthru
                _
            $region40: #{shglnn_forward.9} parent=35 // pred_fallthru
              _
            // Predicated region
            $region41: #{shglnn_forward.9} parent=35 // pred_check
              _
            $region42: #{shglnn_forward.9} parent=35 // pred_check_branch
              %211 = sbr.rel target = $region44
            $region43: #{shglnn_forward.9} parent=35 // pred_region
              %s213 = ssub.s32 256, 1
              loop: start=0, step=1, limit=1
              $region45: #{shglnn_forward.9} parent=43 // loop_pre_header
                _
              $region46: #{shglnn_forward.9} parent=43 // loop_header
                %s215 = sphi 0, %s219
                %p216 = scmp.ge.s32.totalorder %s215, 1
                %s220 = sphi %s205, %s205
                %s221 = sphi %s200, %s200
              $region47: #{shglnn_forward.9} parent=43 // loop_header_branch
                %218 = sbr.rel (%p216) target = $region51
              $region48: #{shglnn_forward.9} parent=43 // loop_body
                %v222 = vld [vmem:[%s220] sm:%s213]
                %223 = vst [vmem:[%s221] sm:%s213] %v222
                %v224 = vld [vmem:[%s220 + $0x10] sm:%s213]
                %225 = vst [vmem:[%s221 + $0x8] sm:%s213] %v224
                %v226 = vld [vmem:[%s220 + $0x20] sm:%s213]
                %227 = vst [vmem:[%s221 + $0x10] sm:%s213] %v226
                %v228 = vld [vmem:[%s220 + $0x30] sm:%s213]
                %229 = vst [vmem:[%s221 + $0x18] sm:%s213] %v228
                %v230 = vld [vmem:[%s220 + $0x40] sm:%s213]
                %231 = vst [vmem:[%s221 + $0x20] sm:%s213] %v230
                %v232 = vld [vmem:[%s220 + $0x50] sm:%s213]
                %233 = vst [vmem:[%s221 + $0x28] sm:%s213] %v232
                %v234 = vld [vmem:[%s220 + $0x60] sm:%s213]
                %235 = vst [vmem:[%s221 + $0x30] sm:%s213] %v234
                %v236 = vld [vmem:[%s220 + $0x70] sm:%s213]
                %237 = vst [vmem:[%s221 + $0x38] sm:%s213] %v236
              $region49: #{shglnn_forward.9} parent=43 // loop_footer
                %s219 = sadd.s32 1, %s215
              $region50: #{shglnn_forward.9} parent=43 // loop_footer_branch
                %214 = sbr.rel target = $region46
              $region51: #{shglnn_forward.9} parent=43 // loop_exit
                _
            $region44: #{shglnn_forward.9} parent=35 // pred_fallthru
              _
          $region36: #{shglnn_forward.9} parent=31 // pred_fallthru
            _
          %266 = vnop
        $region32: #{shglnn_forward.9} parent=27 // pred_fallthru
          _
        // Predicated region
        $region67: #{shglnn_forward.9} parent=27 // pred_check
          %p267 = pneg %p71
        $region68: #{shglnn_forward.9} parent=27 // pred_check_branch
          %269 = sbr.rel (%p267) target = $region70
        $region69: #{shglnn_forward.9} parent=27 // pred_region
          %s270 = smul.u32 16, %s19
          %p271 = scmp.lt.s32.totalorder %s270, 31
          %s272 = scalar_select %p271, %s270, 31
          %s273 = smul.addr %s272, 8
          %s274 = scalar_lea.vmem %s1, %s273
          %s275 = smul.u32 16, %s19
        $region70: #{shglnn_forward.9} parent=27 // pred_fallthru
          _
      $region28: #{shglnn_forward.9} parent=5 // pred_fallthru
        _
      %p276 = scmp.le.s32.totalorder 1, %s11
      %p277 = scmp.lt.s32.totalorder %s11, 9
      %p278 = pnand %p276, %p277
      %p279 = pneg %p278
      // Predicated region
      $region71: #{shglnn_forward.9} parent=5 // pred_check
        _
      $region72: #{shglnn_forward.9} parent=5 // pred_check_branch
        %281 = sbr.rel (%p278) target = $region74
      $region73: #{shglnn_forward.9} parent=5 // pred_region
        %s282 = ssub.s32 %s11, 1
        %s283 = sand.u32 %s38, 1
        %s284 = sand.u32 %s38, 1
        %s285 = smul.addr %s284, 64
        %s286 = scalar_lea.vmem [#allocation3], %s285
        // Predicated region
        $region75: #{shglnn_forward.9} parent=73 // pred_check
          %p287 = pneg %p51
        $region76: #{shglnn_forward.9} parent=73 // pred_check_branch
          %289 = sbr.rel (%p287) target = $region78
        $region77: #{shglnn_forward.9} parent=73 // pred_region
          _
        $region78: #{shglnn_forward.9} parent=73 // pred_fallthru
          _
        %s290 = sand.u32 %s38, 1
        %s291 = sand.u32 %s38, 1
        %s292 = smul.addr %s291, 64
        %s293 = scalar_lea.vmem [#allocation3], %s292
        %p294 = pneg %p51
        %p295 = pneg %p48
        %s296 = smul.u32 16, %s21
        %p297 = scmp.lt.s32.totalorder %s296, 31
        %s298 = scalar_select %p297, %s296, 31
        %s299 = smul.addr %s298, 8
        %s300 = scalar_lea.vmem %s1, %s299
        %p301 = pneg %p77
        %p302 = pneg %p74
        %p303 = pneg %p98
        %p304 = pneg %p95
        %p305 = pneg %p119
        %p306 = pneg %p116
        %p307 = pneg %p140
        %p308 = pneg %p137
        %p309 = pneg %p166
        %p310 = pneg %p163
        %s311 = smul.u32 8, %s20
        %p312 = scmp.lt.s32.totalorder %s311, 31
        %s313 = scalar_select %p312, %s311, 31
        %s314 = smul.addr %s313, 8
        %s315 = scalar_lea.vmem %s5, %s314
        %s316 = smul.u32 8, %s20
        %s317 = smul.u32 16, %s21
        %p318 = scmp.lt.s32.totalorder %s317, 31
        %s319 = scalar_select %p318, %s317, 31
        %s320 = smul.addr %s319, 8
        %s321 = scalar_lea.vmem %s1, %s320
        %s322 = smul.u32 16, %s21
        %s323 = smul.u32 8, %s20
        %p324 = scmp.lt.s32.totalorder %s323, 31
        %s325 = scalar_select %p324, %s323, 31
        %s326 = smul.addr %s325, 8
        %s327 = scalar_lea.vmem %s5, %s326
        %s328 = smul.u32 8, %s20
        %p329 = scmp.eq.s32.totalorder %s21, 0
        // Predicated region
        $region79: #{shglnn_forward.9} parent=73 // pred_check
          %p330 = pneg %p329
        $region80: #{shglnn_forward.9} parent=73 // pred_check_branch
          %332 = sbr.rel (%p330) target = $region82
        $region81: #{shglnn_forward.9} parent=73 // pred_region
          %vm333 = vcmask 7168
          %334 = vst.msk [vmem:[#allocation2] sm:$0xff] %vm333, 0.0
          %335 = vst.msk [vmem:[#allocation2 + $0x8] sm:$0xff] %vm333, 0.0
          %336 = vst.msk [vmem:[#allocation2 + $0x10] sm:$0xff] %vm333, 0.0
          %337 = vst.msk [vmem:[#allocation2 + $0x18] sm:$0xff] %vm333, 0.0
          %338 = vst.msk [vmem:[#allocation2 + $0x20] sm:$0xff] %vm333, 0.0
          %339 = vst.msk [vmem:[#allocation2 + $0x28] sm:$0xff] %vm333, 0.0
          %340 = vst.msk [vmem:[#allocation2 + $0x30] sm:$0xff] %vm333, 0.0
          %341 = vst.msk [vmem:[#allocation2 + $0x38] sm:$0xff] %vm333, 0.0
        $region82: #{shglnn_forward.9} parent=73 // pred_fallthru
          _
        %v342 = vld [vmem:[#allocation2] sm:$0xff]
        %v343 = vld [vmem:[#allocation2 + $0x8] sm:$0xff]
        %v344 = vld [vmem:[#allocation2 + $0x10] sm:$0xff]
        %v345 = vld [vmem:[#allocation2 + $0x18] sm:$0xff]
        %v346 = vld [vmem:[#allocation2 + $0x20] sm:$0xff]
        %v347 = vld [vmem:[#allocation2 + $0x28] sm:$0xff]
        %v348 = vld [vmem:[#allocation2 + $0x30] sm:$0xff]
        %v349 = vld [vmem:[#allocation2 + $0x38] sm:$0xff]
        %v350 = vld [vmem:[%s286] sm:$0xff]
        %v351 = vld [vmem:[%s286 + $0x8] sm:$0xff]
        %v352 = vld [vmem:[%s286 + $0x10] sm:$0xff]
        %v353 = vld [vmem:[%s286 + $0x18] sm:$0xff]
        %v354 = vld [vmem:[%s286 + $0x20] sm:$0xff]
        %v355 = vld [vmem:[%s286 + $0x28] sm:$0xff]
        %v356 = vld [vmem:[%s286 + $0x30] sm:$0xff]
        %v357 = vld [vmem:[%s286 + $0x38] sm:$0xff]
        %v358 = vld [vmem:[%s321] sm:$0xff]
        %v359 = vld [vmem:[%s321 + $0x8] sm:$0xff]
        %v360 = vld [vmem:[%s321 + $0x10] sm:$0xff]
        %v361 = vld [vmem:[%s321 + $0x18] sm:$0xff]
        %v362 = vld [vmem:[%s321 + $0x20] sm:$0xff]
        %v363 = vld [vmem:[%s321 + $0x28] sm:$0xff]
        %v364 = vld [vmem:[%s321 + $0x30] sm:$0xff]
        %v365 = vld [vmem:[%s321 + $0x38] sm:$0xff]
        %v366 = vld [vmem:[%s321 + $0x40] sm:$0xff]
        %v367 = vld [vmem:[%s321 + $0x48] sm:$0xff]
        %v368 = vld [vmem:[%s321 + $0x50] sm:$0xff]
        %v369 = vld [vmem:[%s321 + $0x58] sm:$0xff]
        %v370 = vld [vmem:[%s321 + $0x60] sm:$0xff]
        %v371 = vld [vmem:[%s321 + $0x68] sm:$0xff]
        %v372 = vld [vmem:[%s321 + $0x70] sm:$0xff]
        %v373 = vld [vmem:[%s321 + $0x78] sm:$0xff]
        %v374 = vand.u32 %v373, 4294901760
        %375 = vmatpush.msra.mxu0 %v374
        %v376 = vand.u32 %v372, 4294901760
        %377 = vmatpush.msra.mxu0 %v376
        %v378 = vand.u32 %v371, 4294901760
        %379 = vmatpush.msra.mxu0 %v378
        %v380 = vand.u32 %v370, 4294901760
        %381 = vmatpush.msra.mxu0 %v380
        %v382 = vand.u32 %v369, 4294901760
        %383 = vmatpush.msra.mxu0 %v382
        %v384 = vand.u32 %v368, 4294901760
        %385 = vmatpush.msra.mxu0 %v384
        %v386 = vand.u32 %v367, 4294901760
        %387 = vmatpush.msra.mxu0 %v386
        %v388 = vand.u32 %v366, 4294901760
        %389 = vmatpush.msra.mxu0 %v388
        %v390 = vand.u32 %v365, 4294901760
        %391 = vmatpush.msra.mxu0 %v390
        %v392 = vand.u32 %v364, 4294901760
        %393 = vmatpush.msra.mxu0 %v392
        %v394 = vand.u32 %v363, 4294901760
        %395 = vmatpush.msra.mxu0 %v394
        %v396 = vand.u32 %v362, 4294901760
        %397 = vmatpush.msra.mxu0 %v396
        %v398 = vand.u32 %v361, 4294901760
        %399 = vmatpush.msra.mxu0 %v398
        %v400 = vand.u32 %v360, 4294901760
        %401 = vmatpush.msra.mxu0 %v400
        %v402 = vand.u32 %v359, 4294901760
        %403 = vmatpush.msra.mxu0 %v402
        %v404 = vand.u32 %v358, 4294901760
        %405 = vmatpush.msra.mxu0 %v404
        %v406 = vand.u32 %v350, 4294901760
        %v407 = vsub.f32 %v350, %v406
        %v408 = vand.u32 %v407, 4294901760
        %v409 = vsub.f32 %v407, %v408
        %v410 = vand.u32 %v409, 4294901760
        %411 = vmatmul.f32.gmra.mxu0 %v410
        %v412 = vpop.f32.mrf.mxu0
        %v413 = vadd.f32 0.0, %v412
        %v414 = vand.u32 %v351, 4294901760
        %v415 = vsub.f32 %v351, %v414
        %v416 = vand.u32 %v415, 4294901760
        %v417 = vsub.f32 %v415, %v416
        %v418 = vand.u32 %v417, 4294901760
        %419 = vmatmul.f32.gmra.mxu0 %v418
        %v420 = vpop.f32.mrf.mxu0
        %v421 = vadd.f32 0.0, %v420
        %v422 = vand.u32 %v352, 4294901760
        %v423 = vsub.f32 %v352, %v422
        %v424 = vand.u32 %v423, 4294901760
        %v425 = vsub.f32 %v423, %v424
        %v426 = vand.u32 %v425, 4294901760
        %427 = vmatmul.f32.gmra.mxu0 %v426
        %v428 = vpop.f32.mrf.mxu0
        %v429 = vadd.f32 0.0, %v428
        %v430 = vand.u32 %v353, 4294901760
        %v431 = vsub.f32 %v353, %v430
        %v432 = vand.u32 %v431, 4294901760
        %v433 = vsub.f32 %v431, %v432
        %v434 = vand.u32 %v433, 4294901760
        %435 = vmatmul.f32.gmra.mxu0 %v434
        %v436 = vpop.f32.mrf.mxu0
        %v437 = vadd.f32 0.0, %v436
        %v438 = vand.u32 %v354, 4294901760
        %v439 = vsub.f32 %v354, %v438
        %v440 = vand.u32 %v439, 4294901760
        %v441 = vsub.f32 %v439, %v440
        %v442 = vand.u32 %v441, 4294901760
        %443 = vmatmul.f32.gmra.mxu0 %v442
        %v444 = vpop.f32.mrf.mxu0
        %v445 = vadd.f32 0.0, %v444
        %v446 = vand.u32 %v355, 4294901760
        %v447 = vsub.f32 %v355, %v446
        %v448 = vand.u32 %v447, 4294901760
        %v449 = vsub.f32 %v447, %v448
        %v450 = vand.u32 %v449, 4294901760
        %451 = vmatmul.f32.gmra.mxu0 %v450
        %v452 = vpop.f32.mrf.mxu0
        %v453 = vadd.f32 0.0, %v452
        %v454 = vand.u32 %v356, 4294901760
        %v455 = vsub.f32 %v356, %v454
        %v456 = vand.u32 %v455, 4294901760
        %v457 = vsub.f32 %v455, %v456
        %v458 = vand.u32 %v457, 4294901760
        %459 = vmatmul.f32.gmra.mxu0 %v458
        %v460 = vpop.f32.mrf.mxu0
        %v461 = vadd.f32 0.0, %v460
        %v462 = vand.u32 %v357, 4294901760
        %v463 = vsub.f32 %v357, %v462
        %v464 = vand.u32 %v463, 4294901760
        %v465 = vsub.f32 %v463, %v464
        %v466 = vand.u32 %v465, 4294901760
        %467 = vmatmul.f32.gmra.mxu0 %v466
        %v468 = vpop.f32.mrf.mxu0
        %v469 = vadd.f32 0.0, %v468
        %470 = vdwg.mxu0
        %v471 = vand.u32 %v373, 4294901760
        %v472 = vsub.f32 %v373, %v471
        %v473 = vand.u32 %v472, 4294901760
        %v474 = vsub.f32 %v472, %v473
        %v475 = vand.u32 %v474, 4294901760
        %476 = vmatpush.msra.mxu0 %v475
        %v477 = vand.u32 %v372, 4294901760
        %v478 = vsub.f32 %v372, %v477
        %v479 = vand.u32 %v478, 4294901760
        %v480 = vsub.f32 %v478, %v479
        %v481 = vand.u32 %v480, 4294901760
        %482 = vmatpush.msra.mxu0 %v481
        %v483 = vand.u32 %v371, 4294901760
        %v484 = vsub.f32 %v371, %v483
        %v485 = vand.u32 %v484, 4294901760
        %v486 = vsub.f32 %v484, %v485
        %v487 = vand.u32 %v486, 4294901760
        %488 = vmatpush.msra.mxu0 %v487
        %v489 = vand.u32 %v370, 4294901760
        %v490 = vsub.f32 %v370, %v489
        %v491 = vand.u32 %v490, 4294901760
        %v492 = vsub.f32 %v490, %v491
        %v493 = vand.u32 %v492, 4294901760
        %494 = vmatpush.msra.mxu0 %v493
        %v495 = vand.u32 %v369, 4294901760
        %v496 = vsub.f32 %v369, %v495
        %v497 = vand.u32 %v496, 4294901760
        %v498 = vsub.f32 %v496, %v497
        %v499 = vand.u32 %v498, 4294901760
        %500 = vmatpush.msra.mxu0 %v499
        %v501 = vand.u32 %v368, 4294901760
        %v502 = vsub.f32 %v368, %v501
        %v503 = vand.u32 %v502, 4294901760
        %v504 = vsub.f32 %v502, %v503
        %v505 = vand.u32 %v504, 4294901760
        %506 = vmatpush.msra.mxu0 %v505
        %v507 = vand.u32 %v367, 4294901760
        %v508 = vsub.f32 %v367, %v507
        %v509 = vand.u32 %v508, 4294901760
        %v510 = vsub.f32 %v508, %v509
        %v511 = vand.u32 %v510, 4294901760
        %512 = vmatpush.msra.mxu0 %v511
        %v513 = vand.u32 %v366, 4294901760
        %v514 = vsub.f32 %v366, %v513
        %v515 = vand.u32 %v514, 4294901760
        %v516 = vsub.f32 %v514, %v515
        %v517 = vand.u32 %v516, 4294901760
        %518 = vmatpush.msra.mxu0 %v517
        %v519 = vand.u32 %v365, 4294901760
        %v520 = vsub.f32 %v365, %v519
        %v521 = vand.u32 %v520, 4294901760
        %v522 = vsub.f32 %v520, %v521
        %v523 = vand.u32 %v522, 4294901760
        %524 = vmatpush.msra.mxu0 %v523
        %v525 = vand.u32 %v364, 4294901760
        %v526 = vsub.f32 %v364, %v525
        %v527 = vand.u32 %v526, 4294901760
        %v528 = vsub.f32 %v526, %v527
        %v529 = vand.u32 %v528, 4294901760
        %530 = vmatpush.msra.mxu0 %v529
        %v531 = vand.u32 %v363, 4294901760
        %v532 = vsub.f32 %v363, %v531
        %v533 = vand.u32 %v532, 4294901760
        %v534 = vsub.f32 %v532, %v533
        %v535 = vand.u32 %v534, 4294901760
        %536 = vmatpush.msra.mxu0 %v535
        %v537 = vand.u32 %v362, 4294901760
        %v538 = vsub.f32 %v362, %v537
        %v539 = vand.u32 %v538, 4294901760
        %v540 = vsub.f32 %v538, %v539
        %v541 = vand.u32 %v540, 4294901760
        %542 = vmatpush.msra.mxu0 %v541
        %v543 = vand.u32 %v361, 4294901760
        %v544 = vsub.f32 %v361, %v543
        %v545 = vand.u32 %v544, 4294901760
        %v546 = vsub.f32 %v544, %v545
        %v547 = vand.u32 %v546, 4294901760
        %548 = vmatpush.msra.mxu0 %v547
        %v549 = vand.u32 %v360, 4294901760
        %v550 = vsub.f32 %v360, %v549
        %v551 = vand.u32 %v550, 4294901760
        %v552 = vsub.f32 %v550, %v551
        %v553 = vand.u32 %v552, 4294901760
        %554 = vmatpush.msra.mxu0 %v553
        %v555 = vand.u32 %v359, 4294901760
        %v556 = vsub.f32 %v359, %v555
        %v557 = vand.u32 %v556, 4294901760
        %v558 = vsub.f32 %v556, %v557
        %v559 = vand.u32 %v558, 4294901760
        %560 = vmatpush.msra.mxu0 %v559
        %v561 = vand.u32 %v358, 4294901760
        %v562 = vsub.f32 %v358, %v561
        %v563 = vand.u32 %v562, 4294901760
        %v564 = vsub.f32 %v562, %v563
        %v565 = vand.u32 %v564, 4294901760
        %566 = vmatpush.msra.mxu0 %v565
        %v567 = vand.u32 %v350, 4294901760
        %568 = vmatmul.f32.gmra.mxu0 %v567
        %v569 = vpop.f32.mrf.mxu0
        %v570 = vadd.f32 %v413, %v569
        %v571 = vand.u32 %v351, 4294901760
        %572 = vmatmul.f32.gmra.mxu0 %v571
        %v573 = vpop.f32.mrf.mxu0
        %v574 = vadd.f32 %v421, %v573
        %v575 = vand.u32 %v352, 4294901760
        %576 = vmatmul.f32.gmra.mxu0 %v575
        %v577 = vpop.f32.mrf.mxu0
        %v578 = vadd.f32 %v429, %v577
        %v579 = vand.u32 %v353, 4294901760
        %580 = vmatmul.f32.gmra.mxu0 %v579
        %v581 = vpop.f32.mrf.mxu0
        %v582 = vadd.f32 %v437, %v581
        %v583 = vand.u32 %v354, 4294901760
        %584 = vmatmul.f32.gmra.mxu0 %v583
        %v585 = vpop.f32.mrf.mxu0
        %v586 = vadd.f32 %v445, %v585
        %v587 = vand.u32 %v355, 4294901760
        %588 = vmatmul.f32.gmra.mxu0 %v587
        %v589 = vpop.f32.mrf.mxu0
        %v590 = vadd.f32 %v453, %v589
        %v591 = vand.u32 %v356, 4294901760
        %592 = vmatmul.f32.gmra.mxu0 %v591
        %v593 = vpop.f32.mrf.mxu0
        %v594 = vadd.f32 %v461, %v593
        %v595 = vand.u32 %v357, 4294901760
        %596 = vmatmul.f32.gmra.mxu0 %v595
        %v597 = vpop.f32.mrf.mxu0
        %v598 = vadd.f32 %v469, %v597
        %599 = vdwg.mxu0
        %v600 = vand.u32 %v373, 4294901760
        %v601 = vsub.f32 %v373, %v600
        %602 = vmatpush.msra.mxu0 %v601
        %v603 = vand.u32 %v372, 4294901760
        %v604 = vsub.f32 %v372, %v603
        %605 = vmatpush.msra.mxu0 %v604
        %v606 = vand.u32 %v371, 4294901760
        %v607 = vsub.f32 %v371, %v606
        %608 = vmatpush.msra.mxu0 %v607
        %v609 = vand.u32 %v370, 4294901760
        %v610 = vsub.f32 %v370, %v609
        %611 = vmatpush.msra.mxu0 %v610
        %v612 = vand.u32 %v369, 4294901760
        %v613 = vsub.f32 %v369, %v612
        %614 = vmatpush.msra.mxu0 %v613
        %v615 = vand.u32 %v368, 4294901760
        %v616 = vsub.f32 %v368, %v615
        %617 = vmatpush.msra.mxu0 %v616
        %v618 = vand.u32 %v367, 4294901760
        %v619 = vsub.f32 %v367, %v618
        %620 = vmatpush.msra.mxu0 %v619
        %v621 = vand.u32 %v366, 4294901760
        %v622 = vsub.f32 %v366, %v621
        %623 = vmatpush.msra.mxu0 %v622
        %v624 = vand.u32 %v365, 4294901760
        %v625 = vsub.f32 %v365, %v624
        %626 = vmatpush.msra.mxu0 %v625
        %v627 = vand.u32 %v364, 4294901760
        %v628 = vsub.f32 %v364, %v627
        %629 = vmatpush.msra.mxu0 %v628
        %v630 = vand.u32 %v363, 4294901760
        %v631 = vsub.f32 %v363, %v630
        %632 = vmatpush.msra.mxu0 %v631
        %v633 = vand.u32 %v362, 4294901760
        %v634 = vsub.f32 %v362, %v633
        %635 = vmatpush.msra.mxu0 %v634
        %v636 = vand.u32 %v361, 4294901760
        %v637 = vsub.f32 %v361, %v636
        %638 = vmatpush.msra.mxu0 %v637
        %v639 = vand.u32 %v360, 4294901760
        %v640 = vsub.f32 %v360, %v639
        %641 = vmatpush.msra.mxu0 %v640
        %v642 = vand.u32 %v359, 4294901760
        %v643 = vsub.f32 %v359, %v642
        %644 = vmatpush.msra.mxu0 %v643
        %v645 = vand.u32 %v358, 4294901760
        %v646 = vsub.f32 %v358, %v645
        %647 = vmatpush.msra.mxu0 %v646
        %v648 = vand.u32 %v350, 4294901760
        %v649 = vsub.f32 %v350, %v648
        %650 = vmatmul.f32.gmra.mxu0 %v649
        %v651 = vpop.f32.mrf.mxu0
        %v652 = vadd.f32 %v570, %v651
        %v653 = vand.u32 %v351, 4294901760
        %v654 = vsub.f32 %v351, %v653
        %655 = vmatmul.f32.gmra.mxu0 %v654
        %v656 = vpop.f32.mrf.mxu0
        %v657 = vadd.f32 %v574, %v656
        %v658 = vand.u32 %v352, 4294901760
        %v659 = vsub.f32 %v352, %v658
        %660 = vmatmul.f32.gmra.mxu0 %v659
        %v661 = vpop.f32.mrf.mxu0
        %v662 = vadd.f32 %v578, %v661
        %v663 = vand.u32 %v353, 4294901760
        %v664 = vsub.f32 %v353, %v663
        %665 = vmatmul.f32.gmra.mxu0 %v664
        %v666 = vpop.f32.mrf.mxu0
        %v667 = vadd.f32 %v582, %v666
        %v668 = vand.u32 %v354, 4294901760
        %v669 = vsub.f32 %v354, %v668
        %670 = vmatmul.f32.gmra.mxu0 %v669
        %v671 = vpop.f32.mrf.mxu0
        %v672 = vadd.f32 %v586, %v671
        %v673 = vand.u32 %v355, 4294901760
        %v674 = vsub.f32 %v355, %v673
        %675 = vmatmul.f32.gmra.mxu0 %v674
        %v676 = vpop.f32.mrf.mxu0
        %v677 = vadd.f32 %v590, %v676
        %v678 = vand.u32 %v356, 4294901760
        %v679 = vsub.f32 %v356, %v678
        %680 = vmatmul.f32.gmra.mxu0 %v679
        %v681 = vpop.f32.mrf.mxu0
        %v682 = vadd.f32 %v594, %v681
        %v683 = vand.u32 %v357, 4294901760
        %v684 = vsub.f32 %v357, %v683
        %685 = vmatmul.f32.gmra.mxu0 %v684
        %v686 = vpop.f32.mrf.mxu0
        %v687 = vadd.f32 %v598, %v686
        %688 = vdwg.mxu0
        %v689 = vand.u32 %v373, 4294901760
        %690 = vmatpush.msra.mxu0 %v689
        %v691 = vand.u32 %v372, 4294901760
        %692 = vmatpush.msra.mxu0 %v691
        %v693 = vand.u32 %v371, 4294901760
        %694 = vmatpush.msra.mxu0 %v693
        %v695 = vand.u32 %v370, 4294901760
        %696 = vmatpush.msra.mxu0 %v695
        %v697 = vand.u32 %v369, 4294901760
        %698 = vmatpush.msra.mxu0 %v697
        %v699 = vand.u32 %v368, 4294901760
        %700 = vmatpush.msra.mxu0 %v699
        %v701 = vand.u32 %v367, 4294901760
        %702 = vmatpush.msra.mxu0 %v701
        %v703 = vand.u32 %v366, 4294901760
        %704 = vmatpush.msra.mxu0 %v703
        %v705 = vand.u32 %v365, 4294901760
        %706 = vmatpush.msra.mxu0 %v705
        %v707 = vand.u32 %v364, 4294901760
        %708 = vmatpush.msra.mxu0 %v707
        %v709 = vand.u32 %v363, 4294901760
        %710 = vmatpush.msra.mxu0 %v709
        %v711 = vand.u32 %v362, 4294901760
        %712 = vmatpush.msra.mxu0 %v711
        %v713 = vand.u32 %v361, 4294901760
        %714 = vmatpush.msra.mxu0 %v713
        %v715 = vand.u32 %v360, 4294901760
        %716 = vmatpush.msra.mxu0 %v715
        %v717 = vand.u32 %v359, 4294901760
        %718 = vmatpush.msra.mxu0 %v717
        %v719 = vand.u32 %v358, 4294901760
        %720 = vmatpush.msra.mxu0 %v719
        %v721 = vand.u32 %v350, 4294901760
        %v722 = vsub.f32 %v350, %v721
        %v723 = vand.u32 %v722, 4294901760
        %724 = vmatmul.f32.gmra.mxu0 %v723
        %v725 = vpop.f32.mrf.mxu0
        %v726 = vadd.f32 %v652, %v725
        %v727 = vand.u32 %v351, 4294901760
        %v728 = vsub.f32 %v351, %v727
        %v729 = vand.u32 %v728, 4294901760
        %730 = vmatmul.f32.gmra.mxu0 %v729
        %v731 = vpop.f32.mrf.mxu0
        %v732 = vadd.f32 %v657, %v731
        %v733 = vand.u32 %v352, 4294901760
        %v734 = vsub.f32 %v352, %v733
        %v735 = vand.u32 %v734, 4294901760
        %736 = vmatmul.f32.gmra.mxu0 %v735
        %v737 = vpop.f32.mrf.mxu0
        %v738 = vadd.f32 %v662, %v737
        %v739 = vand.u32 %v353, 4294901760
        %v740 = vsub.f32 %v353, %v739
        %v741 = vand.u32 %v740, 4294901760
        %742 = vmatmul.f32.gmra.mxu0 %v741
        %v743 = vpop.f32.mrf.mxu0
        %v744 = vadd.f32 %v667, %v743
        %v745 = vand.u32 %v354, 4294901760
        %v746 = vsub.f32 %v354, %v745
        %v747 = vand.u32 %v746, 4294901760
        %748 = vmatmul.f32.gmra.mxu0 %v747
        %v749 = vpop.f32.mrf.mxu0
        %v750 = vadd.f32 %v672, %v749
        %v751 = vand.u32 %v355, 4294901760
        %v752 = vsub.f32 %v355, %v751
        %v753 = vand.u32 %v752, 4294901760
        %754 = vmatmul.f32.gmra.mxu0 %v753
        %v755 = vpop.f32.mrf.mxu0
        %v756 = vadd.f32 %v677, %v755
        %v757 = vand.u32 %v356, 4294901760
        %v758 = vsub.f32 %v356, %v757
        %v759 = vand.u32 %v758, 4294901760
        %760 = vmatmul.f32.gmra.mxu0 %v759
        %v761 = vpop.f32.mrf.mxu0
        %v762 = vadd.f32 %v682, %v761
        %v763 = vand.u32 %v357, 4294901760
        %v764 = vsub.f32 %v357, %v763
        %v765 = vand.u32 %v764, 4294901760
        %766 = vmatmul.f32.gmra.mxu0 %v765
        %v767 = vpop.f32.mrf.mxu0
        %v768 = vadd.f32 %v687, %v767
        %769 = vdwg.mxu0
        %v770 = vand.u32 %v373, 4294901760
        %v771 = vsub.f32 %v373, %v770
        %v772 = vand.u32 %v771, 4294901760
        %773 = vmatpush.msra.mxu0 %v772
        %v774 = vand.u32 %v372, 4294901760
        %v775 = vsub.f32 %v372, %v774
        %v776 = vand.u32 %v775, 4294901760
        %777 = vmatpush.msra.mxu0 %v776
        %v778 = vand.u32 %v371, 4294901760
        %v779 = vsub.f32 %v371, %v778
        %v780 = vand.u32 %v779, 4294901760
        %781 = vmatpush.msra.mxu0 %v780
        %v782 = vand.u32 %v370, 4294901760
        %v783 = vsub.f32 %v370, %v782
        %v784 = vand.u32 %v783, 4294901760
        %785 = vmatpush.msra.mxu0 %v784
        %v786 = vand.u32 %v369, 4294901760
        %v787 = vsub.f32 %v369, %v786
        %v788 = vand.u32 %v787, 4294901760
        %789 = vmatpush.msra.mxu0 %v788
        %v790 = vand.u32 %v368, 4294901760
        %v791 = vsub.f32 %v368, %v790
        %v792 = vand.u32 %v791, 4294901760
        %793 = vmatpush.msra.mxu0 %v792
        %v794 = vand.u32 %v367, 4294901760
        %v795 = vsub.f32 %v367, %v794
        %v796 = vand.u32 %v795, 4294901760
        %797 = vmatpush.msra.mxu0 %v796
        %v798 = vand.u32 %v366, 4294901760
        %v799 = vsub.f32 %v366, %v798
        %v800 = vand.u32 %v799, 4294901760
        %801 = vmatpush.msra.mxu0 %v800
        %v802 = vand.u32 %v365, 4294901760
        %v803 = vsub.f32 %v365, %v802
        %v804 = vand.u32 %v803, 4294901760
        %805 = vmatpush.msra.mxu0 %v804
        %v806 = vand.u32 %v364, 4294901760
        %v807 = vsub.f32 %v364, %v806
        %v808 = vand.u32 %v807, 4294901760
        %809 = vmatpush.msra.mxu0 %v808
        %v810 = vand.u32 %v363, 4294901760
        %v811 = vsub.f32 %v363, %v810
        %v812 = vand.u32 %v811, 4294901760
        %813 = vmatpush.msra.mxu0 %v812
        %v814 = vand.u32 %v362, 4294901760
        %v815 = vsub.f32 %v362, %v814
        %v816 = vand.u32 %v815, 4294901760
        %817 = vmatpush.msra.mxu0 %v816
        %v818 = vand.u32 %v361, 4294901760
        %v819 = vsub.f32 %v361, %v818
        %v820 = vand.u32 %v819, 4294901760
        %821 = vmatpush.msra.mxu0 %v820
        %v822 = vand.u32 %v360, 4294901760
        %v823 = vsub.f32 %v360, %v822
        %v824 = vand.u32 %v823, 4294901760
        %825 = vmatpush.msra.mxu0 %v824
        %v826 = vand.u32 %v359, 4294901760
        %v827 = vsub.f32 %v359, %v826
        %v828 = vand.u32 %v827, 4294901760
        %829 = vmatpush.msra.mxu0 %v828
        %v830 = vand.u32 %v358, 4294901760
        %v831 = vsub.f32 %v358, %v830
        %v832 = vand.u32 %v831, 4294901760
        %833 = vmatpush.msra.mxu0 %v832
        %v834 = vand.u32 %v350, 4294901760
        %835 = vmatmul.f32.gmra.mxu0 %v834
        %v836 = vpop.f32.mrf.mxu0
        %v837 = vadd.f32 %v726, %v836
        %v838 = vand.u32 %v351, 4294901760
        %839 = vmatmul.f32.gmra.mxu0 %v838
        %v840 = vpop.f32.mrf.mxu0
        %v841 = vadd.f32 %v732, %v840
        %v842 = vand.u32 %v352, 4294901760
        %843 = vmatmul.f32.gmra.mxu0 %v842
        %v844 = vpop.f32.mrf.mxu0
        %v845 = vadd.f32 %v738, %v844
        %v846 = vand.u32 %v353, 4294901760
        %847 = vmatmul.f32.gmra.mxu0 %v846
        %v848 = vpop.f32.mrf.mxu0
        %v849 = vadd.f32 %v744, %v848
        %v850 = vand.u32 %v354, 4294901760
        %851 = vmatmul.f32.gmra.mxu0 %v850
        %v852 = vpop.f32.mrf.mxu0
        %v853 = vadd.f32 %v750, %v852
        %v854 = vand.u32 %v355, 4294901760
        %855 = vmatmul.f32.gmra.mxu0 %v854
        %v856 = vpop.f32.mrf.mxu0
        %v857 = vadd.f32 %v756, %v856
        %v858 = vand.u32 %v356, 4294901760
        %859 = vmatmul.f32.gmra.mxu0 %v858
        %v860 = vpop.f32.mrf.mxu0
        %v861 = vadd.f32 %v762, %v860
        %v862 = vand.u32 %v357, 4294901760
        %863 = vmatmul.f32.gmra.mxu0 %v862
        %v864 = vpop.f32.mrf.mxu0
        %v865 = vadd.f32 %v768, %v864
        %866 = vdwg.mxu0
        %v867 = vand.u32 %v373, 4294901760
        %868 = vmatpush.msra.mxu0 %v867
        %v869 = vand.u32 %v372, 4294901760
        %870 = vmatpush.msra.mxu0 %v869
        %v871 = vand.u32 %v371, 4294901760
        %872 = vmatpush.msra.mxu0 %v871
        %v873 = vand.u32 %v370, 4294901760
        %874 = vmatpush.msra.mxu0 %v873
        %v875 = vand.u32 %v369, 4294901760
        %876 = vmatpush.msra.mxu0 %v875
        %v877 = vand.u32 %v368, 4294901760
        %878 = vmatpush.msra.mxu0 %v877
        %v879 = vand.u32 %v367, 4294901760
        %880 = vmatpush.msra.mxu0 %v879
        %v881 = vand.u32 %v366, 4294901760
        %882 = vmatpush.msra.mxu0 %v881
        %v883 = vand.u32 %v365, 4294901760
        %884 = vmatpush.msra.mxu0 %v883
        %v885 = vand.u32 %v364, 4294901760
        %886 = vmatpush.msra.mxu0 %v885
        %v887 = vand.u32 %v363, 4294901760
        %888 = vmatpush.msra.mxu0 %v887
        %v889 = vand.u32 %v362, 4294901760
        %890 = vmatpush.msra.mxu0 %v889
        %v891 = vand.u32 %v361, 4294901760
        %892 = vmatpush.msra.mxu0 %v891
        %v893 = vand.u32 %v360, 4294901760
        %894 = vmatpush.msra.mxu0 %v893
        %v895 = vand.u32 %v359, 4294901760
        %896 = vmatpush.msra.mxu0 %v895
        %v897 = vand.u32 %v358, 4294901760
        %898 = vmatpush.msra.mxu0 %v897
        %v899 = vand.u32 %v350, 4294901760
        %900 = vmatmul.f32.gmra.mxu0 %v899
        %v901 = vpop.f32.mrf.mxu0
        %v902 = vadd.f32 %v837, %v901
        %v903 = vand.u32 %v351, 4294901760
        %904 = vmatmul.f32.gmra.mxu0 %v903
        %v905 = vpop.f32.mrf.mxu0
        %v906 = vadd.f32 %v841, %v905
        %v907 = vand.u32 %v352, 4294901760
        %908 = vmatmul.f32.gmra.mxu0 %v907
        %v909 = vpop.f32.mrf.mxu0
        %v910 = vadd.f32 %v845, %v909
        %v911 = vand.u32 %v353, 4294901760
        %912 = vmatmul.f32.gmra.mxu0 %v911
        %v913 = vpop.f32.mrf.mxu0
        %v914 = vadd.f32 %v849, %v913
        %v915 = vand.u32 %v354, 4294901760
        %916 = vmatmul.f32.gmra.mxu0 %v915
        %v917 = vpop.f32.mrf.mxu0
        %v918 = vadd.f32 %v853, %v917
        %v919 = vand.u32 %v355, 4294901760
        %920 = vmatmul.f32.gmra.mxu0 %v919
        %v921 = vpop.f32.mrf.mxu0
        %v922 = vadd.f32 %v857, %v921
        %v923 = vand.u32 %v356, 4294901760
        %924 = vmatmul.f32.gmra.mxu0 %v923
        %v925 = vpop.f32.mrf.mxu0
        %v926 = vadd.f32 %v861, %v925
        %v927 = vand.u32 %v357, 4294901760
        %928 = vmatmul.f32.gmra.mxu0 %v927
        %v929 = vpop.f32.mrf.mxu0
        %v930 = vadd.f32 %v865, %v929
        %931 = vdwg.mxu0
        %v932 = vadd.f32 %v342, %v902
        %v933 = vadd.f32 %v343, %v906
        %v934 = vadd.f32 %v344, %v910
        %v935 = vadd.f32 %v345, %v914
        %v936 = vadd.f32 %v346, %v918
        %v937 = vadd.f32 %v347, %v922
        %v938 = vadd.f32 %v348, %v926
        %v939 = vadd.f32 %v349, %v930
        %vm940 = vcmask 7168
        %941 = vst.msk [vmem:[#allocation2] sm:$0xff] %vm940, %v932
        %942 = vst.msk [vmem:[#allocation2 + $0x8] sm:$0xff] %vm940, %v933
        %943 = vst.msk [vmem:[#allocation2 + $0x10] sm:$0xff] %vm940, %v934
        %944 = vst.msk [vmem:[#allocation2 + $0x18] sm:$0xff] %vm940, %v935
        %945 = vst.msk [vmem:[#allocation2 + $0x20] sm:$0xff] %vm940, %v936
        %946 = vst.msk [vmem:[#allocation2 + $0x28] sm:$0xff] %vm940, %v937
        %947 = vst.msk [vmem:[#allocation2 + $0x30] sm:$0xff] %vm940, %v938
        %948 = vst.msk [vmem:[#allocation2 + $0x38] sm:$0xff] %vm940, %v939
        %p949 = scmp.eq.s32.totalorder %s21, 1
        // Predicated region
        $region83: #{shglnn_forward.9} parent=73 // pred_check
          %p950 = pneg %p949
        $region84: #{shglnn_forward.9} parent=73 // pred_check_branch
          %952 = sbr.rel (%p950) target = $region86
        $region85: #{shglnn_forward.9} parent=73 // pred_region
          %v953 = vld [vmem:[#allocation2] sm:$0xff]
          %v954 = vld [vmem:[#allocation2 + $0x8] sm:$0xff]
          %v955 = vld [vmem:[#allocation2 + $0x10] sm:$0xff]
          %v956 = vld [vmem:[#allocation2 + $0x18] sm:$0xff]
          %v957 = vld [vmem:[#allocation2 + $0x20] sm:$0xff]
          %v958 = vld [vmem:[#allocation2 + $0x28] sm:$0xff]
          %v959 = vld [vmem:[#allocation2 + $0x30] sm:$0xff]
          %v960 = vld [vmem:[#allocation2 + $0x38] sm:$0xff]
          %v961 = vld [vmem:[%s2] sm:$0x1]
          %963 = vset.pattern.permute.xlu0 0
          %964 = vperm.xlu0 %963, %v953
          %v965 = vpop.permute.xlu0 %964
          %968 = vset.pattern.permute.xlu0 0
          %969 = vperm.xlu0 %968, %v954
          %v970 = vpop.permute.xlu0 %969
          %973 = vset.pattern.permute.xlu0 0
          %974 = vperm.xlu0 %973, %v955
          %v975 = vpop.permute.xlu0 %974
          %978 = vset.pattern.permute.xlu0 0
          %979 = vperm.xlu0 %978, %v956
          %v980 = vpop.permute.xlu0 %979
          %983 = vset.pattern.permute.xlu0 0
          %984 = vperm.xlu0 %983, %v957
          %v985 = vpop.permute.xlu0 %984
          %988 = vset.pattern.permute.xlu0 0
          %989 = vperm.xlu0 %988, %v958
          %v990 = vpop.permute.xlu0 %989
          %993 = vset.pattern.permute.xlu0 0
          %994 = vperm.xlu0 %993, %v959
          %v995 = vpop.permute.xlu0 %994
          %998 = vset.pattern.permute.xlu0 0
          %999 = vperm.xlu0 %998, %v960
          %v1000 = vpop.permute.xlu0 %999
          %v1003 = vperm.slane %v961, 0
          %v1005 = vmul.f32 %v965, %v1003
          %v1006 = vmul.f32 %v970, %v1003
          %v1007 = vmul.f32 %v975, %v1003
          %v1008 = vmul.f32 %v980, %v1003
          %v1009 = vmul.f32 %v985, %v1003
          %v1010 = vmul.f32 %v990, %v1003
          %v1011 = vmul.f32 %v995, %v1003
          %v1012 = vmul.f32 %v1000, %v1003
          %v1013 = vld [vmem:[%s3] sm:$0x1]
          %v1015 = vperm.slane %v1013, 0
          %v1017 = vadd.f32 %v1005, %v1015
          %v1018 = vadd.f32 %v1006, %v1015
          %v1019 = vadd.f32 %v1007, %v1015
          %v1020 = vadd.f32 %v1008, %v1015
          %v1021 = vadd.f32 %v1009, %v1015
          %v1022 = vadd.f32 %v1010, %v1015
          %v1023 = vadd.f32 %v1011, %v1015
          %v1024 = vadd.f32 %v1012, %v1015
          %v1025 = vmax.f32 %v1017, 0.0
          %v1026 = vmax.f32 %v1018, 0.0
          %v1027 = vmax.f32 %v1019, 0.0
          %v1028 = vmax.f32 %v1020, 0.0
          %v1029 = vmax.f32 %v1021, 0.0
          %v1030 = vmax.f32 %v1022, 0.0
          %v1031 = vmax.f32 %v1023, 0.0
          %v1032 = vmax.f32 %v1024, 0.0
          %v1033 = vld [vmem:[%s4] sm:$0xff]
          %v1034 = vld [vmem:[%s4 + $0x8] sm:$0xff]
          %v1035 = vld [vmem:[%s4 + $0x10] sm:$0xff]
          %v1036 = vld [vmem:[%s4 + $0x18] sm:$0xff]
          %vm1037 = vcmask 261120
          %v1039 = vsel %vm1037, %v1025, 0
          %v1042 = vsel %vm1037, %v1026, 0
          %v1045 = vsel %vm1037, %v1027, 0
          %v1048 = vsel %vm1037, %v1028, 0
          %v1051 = vsel %vm1037, %v1029, 0
          %v1054 = vsel %vm1037, %v1030, 0
          %v1057 = vsel %vm1037, %v1031, 0
          %v1060 = vsel %vm1037, %v1032, 0
          %1062 = vmatpush.msra.mxu0 0.0
          %1063 = vmatpush.msra.mxu0 0.0
          %1064 = vmatpush.msra.mxu0 0.0
          %1065 = vmatpush.msra.mxu0 0.0
          %1066 = vmatpush.msra.mxu0 0.0
          %1067 = vmatpush.msra.mxu0 0.0
          %1068 = vmatpush.msra.mxu0 0.0
          %1069 = vmatpush.msra.mxu0 0.0
          %1070 = vmatpush.msra.mxu0 0.0
          %1071 = vmatpush.msra.mxu0 0.0
          %1072 = vmatpush.msra.mxu0 0.0
          %1073 = vmatpush.msra.mxu0 0.0
          %v1074 = vand.u32 %v1036, 4294901760
          %1075 = vmatpush.msra.mxu0 %v1074
          %v1076 = vand.u32 %v1035, 4294901760
          %1077 = vmatpush.msra.mxu0 %v1076
          %v1078 = vand.u32 %v1034, 4294901760
          %1079 = vmatpush.msra.mxu0 %v1078
          %v1080 = vand.u32 %v1033, 4294901760
          %1081 = vmatpush.msra.mxu0 %v1080
          %v1082 = vand.u32 %v1039, 4294901760
          %v1083 = vsub.f32 %v1039, %v1082
          %v1084 = vand.u32 %v1083, 4294901760
          %v1085 = vsub.f32 %v1083, %v1084
          %v1086 = vand.u32 %v1085, 4294901760
          %1087 = vmatmul.f32.gmra.mxu0 %v1086
          %v1088 = vpop.f32.mrf.mxu0
          %v1089 = vadd.f32 0.0, %v1088
          %v1090 = vand.u32 %v1042, 4294901760
          %v1091 = vsub.f32 %v1042, %v1090
          %v1092 = vand.u32 %v1091, 4294901760
          %v1093 = vsub.f32 %v1091, %v1092
          %v1094 = vand.u32 %v1093, 4294901760
          %1095 = vmatmul.f32.gmra.mxu0 %v1094
          %v1096 = vpop.f32.mrf.mxu0
          %v1097 = vadd.f32 0.0, %v1096
          %v1098 = vand.u32 %v1045, 4294901760
          %v1099 = vsub.f32 %v1045, %v1098
          %v1100 = vand.u32 %v1099, 4294901760
          %v1101 = vsub.f32 %v1099, %v1100
          %v1102 = vand.u32 %v1101, 4294901760
          %1103 = vmatmul.f32.gmra.mxu0 %v1102
          %v1104 = vpop.f32.mrf.mxu0
          %v1105 = vadd.f32 0.0, %v1104
          %v1106 = vand.u32 %v1048, 4294901760
          %v1107 = vsub.f32 %v1048, %v1106
          %v1108 = vand.u32 %v1107, 4294901760
          %v1109 = vsub.f32 %v1107, %v1108
          %v1110 = vand.u32 %v1109, 4294901760
          %1111 = vmatmul.f32.gmra.mxu0 %v1110
          %v1112 = vpop.f32.mrf.mxu0
          %v1113 = vadd.f32 0.0, %v1112
          %v1114 = vand.u32 %v1051, 4294901760
          %v1115 = vsub.f32 %v1051, %v1114
          %v1116 = vand.u32 %v1115, 4294901760
          %v1117 = vsub.f32 %v1115, %v1116
          %v1118 = vand.u32 %v1117, 4294901760
          %1119 = vmatmul.f32.gmra.mxu0 %v1118
          %v1120 = vpop.f32.mrf.mxu0
          %v1121 = vadd.f32 0.0, %v1120
          %v1122 = vand.u32 %v1054, 4294901760
          %v1123 = vsub.f32 %v1054, %v1122
          %v1124 = vand.u32 %v1123, 4294901760
          %v1125 = vsub.f32 %v1123, %v1124
          %v1126 = vand.u32 %v1125, 4294901760
          %1127 = vmatmul.f32.gmra.mxu0 %v1126
          %v1128 = vpop.f32.mrf.mxu0
          %v1129 = vadd.f32 0.0, %v1128
          %v1130 = vand.u32 %v1057, 4294901760
          %v1131 = vsub.f32 %v1057, %v1130
          %v1132 = vand.u32 %v1131, 4294901760
          %v1133 = vsub.f32 %v1131, %v1132
          %v1134 = vand.u32 %v1133, 4294901760
          %1135 = vmatmul.f32.gmra.mxu0 %v1134
          %v1136 = vpop.f32.mrf.mxu0
          %v1137 = vadd.f32 0.0, %v1136
          %v1138 = vand.u32 %v1060, 4294901760
          %v1139 = vsub.f32 %v1060, %v1138
          %v1140 = vand.u32 %v1139, 4294901760
          %v1141 = vsub.f32 %v1139, %v1140
          %v1142 = vand.u32 %v1141, 4294901760
          %1143 = vmatmul.f32.gmra.mxu0 %v1142
          %v1144 = vpop.f32.mrf.mxu0
          %v1145 = vadd.f32 0.0, %v1144
          %1146 = vdwg.mxu0
          %1147 = vmatpush.msra.mxu0 0.0
          %1148 = vmatpush.msra.mxu0 0.0
          %1149 = vmatpush.msra.mxu0 0.0
          %1150 = vmatpush.msra.mxu0 0.0
          %1151 = vmatpush.msra.mxu0 0.0
          %1152 = vmatpush.msra.mxu0 0.0
          %1153 = vmatpush.msra.mxu0 0.0
          %1154 = vmatpush.msra.mxu0 0.0
          %1155 = vmatpush.msra.mxu0 0.0
          %1156 = vmatpush.msra.mxu0 0.0
          %1157 = vmatpush.msra.mxu0 0.0
          %1158 = vmatpush.msra.mxu0 0.0
          %v1159 = vand.u32 %v1036, 4294901760
          %v1160 = vsub.f32 %v1036, %v1159
          %v1161 = vand.u32 %v1160, 4294901760
          %v1162 = vsub.f32 %v1160, %v1161
          %v1163 = vand.u32 %v1162, 4294901760
          %1164 = vmatpush.msra.mxu0 %v1163
          %v1165 = vand.u32 %v1035, 4294901760
          %v1166 = vsub.f32 %v1035, %v1165
          %v1167 = vand.u32 %v1166, 4294901760
          %v1168 = vsub.f32 %v1166, %v1167
          %v1169 = vand.u32 %v1168, 4294901760
          %1170 = vmatpush.msra.mxu0 %v1169
          %v1171 = vand.u32 %v1034, 4294901760
          %v1172 = vsub.f32 %v1034, %v1171
          %v1173 = vand.u32 %v1172, 4294901760
          %v1174 = vsub.f32 %v1172, %v1173
          %v1175 = vand.u32 %v1174, 4294901760
          %1176 = vmatpush.msra.mxu0 %v1175
          %v1177 = vand.u32 %v1033, 4294901760
          %v1178 = vsub.f32 %v1033, %v1177
          %v1179 = vand.u32 %v1178, 4294901760
          %v1180 = vsub.f32 %v1178, %v1179
          %v1181 = vand.u32 %v1180, 4294901760
          %1182 = vmatpush.msra.mxu0 %v1181
          %v1183 = vand.u32 %v1039, 4294901760
          %1184 = vmatmul.f32.gmra.mxu0 %v1183
          %v1185 = vpop.f32.mrf.mxu0
          %v1186 = vadd.f32 %v1089, %v1185
          %v1187 = vand.u32 %v1042, 4294901760
          %1188 = vmatmul.f32.gmra.mxu0 %v1187
          %v1189 = vpop.f32.mrf.mxu0
          %v1190 = vadd.f32 %v1097, %v1189
          %v1191 = vand.u32 %v1045, 4294901760
          %1192 = vmatmul.f32.gmra.mxu0 %v1191
          %v1193 = vpop.f32.mrf.mxu0
          %v1194 = vadd.f32 %v1105, %v1193
          %v1195 = vand.u32 %v1048, 4294901760
          %1196 = vmatmul.f32.gmra.mxu0 %v1195
          %v1197 = vpop.f32.mrf.mxu0
          %v1198 = vadd.f32 %v1113, %v1197
          %v1199 = vand.u32 %v1051, 4294901760
          %1200 = vmatmul.f32.gmra.mxu0 %v1199
          %v1201 = vpop.f32.mrf.mxu0
          %v1202 = vadd.f32 %v1121, %v1201
          %v1203 = vand.u32 %v1054, 4294901760
          %1204 = vmatmul.f32.gmra.mxu0 %v1203
          %v1205 = vpop.f32.mrf.mxu0
          %v1206 = vadd.f32 %v1129, %v1205
          %v1207 = vand.u32 %v1057, 4294901760
          %1208 = vmatmul.f32.gmra.mxu0 %v1207
          %v1209 = vpop.f32.mrf.mxu0
          %v1210 = vadd.f32 %v1137, %v1209
          %v1211 = vand.u32 %v1060, 4294901760
          %1212 = vmatmul.f32.gmra.mxu0 %v1211
          %v1213 = vpop.f32.mrf.mxu0
          %v1214 = vadd.f32 %v1145, %v1213
          %1215 = vdwg.mxu0
          %1216 = vmatpush.msra.mxu0 0.0
          %1217 = vmatpush.msra.mxu0 0.0
          %1218 = vmatpush.msra.mxu0 0.0
          %1219 = vmatpush.msra.mxu0 0.0
          %1220 = vmatpush.msra.mxu0 0.0
          %1221 = vmatpush.msra.mxu0 0.0
          %1222 = vmatpush.msra.mxu0 0.0
          %1223 = vmatpush.msra.mxu0 0.0
          %1224 = vmatpush.msra.mxu0 0.0
          %1225 = vmatpush.msra.mxu0 0.0
          %1226 = vmatpush.msra.mxu0 0.0
          %1227 = vmatpush.msra.mxu0 0.0
          %v1228 = vand.u32 %v1036, 4294901760
          %v1229 = vsub.f32 %v1036, %v1228
          %1230 = vmatpush.msra.mxu0 %v1229
          %v1231 = vand.u32 %v1035, 4294901760
          %v1232 = vsub.f32 %v1035, %v1231
          %1233 = vmatpush.msra.mxu0 %v1232
          %v1234 = vand.u32 %v1034, 4294901760
          %v1235 = vsub.f32 %v1034, %v1234
          %1236 = vmatpush.msra.mxu0 %v1235
          %v1237 = vand.u32 %v1033, 4294901760
          %v1238 = vsub.f32 %v1033, %v1237
          %1239 = vmatpush.msra.mxu0 %v1238
          %v1240 = vand.u32 %v1039, 4294901760
          %v1241 = vsub.f32 %v1039, %v1240
          %1242 = vmatmul.f32.gmra.mxu0 %v1241
          %v1243 = vpop.f32.mrf.mxu0
          %v1244 = vadd.f32 %v1186, %v1243
          %v1245 = vand.u32 %v1042, 4294901760
          %v1246 = vsub.f32 %v1042, %v1245
          %1247 = vmatmul.f32.gmra.mxu0 %v1246
          %v1248 = vpop.f32.mrf.mxu0
          %v1249 = vadd.f32 %v1190, %v1248
          %v1250 = vand.u32 %v1045, 4294901760
          %v1251 = vsub.f32 %v1045, %v1250
          %1252 = vmatmul.f32.gmra.mxu0 %v1251
          %v1253 = vpop.f32.mrf.mxu0
          %v1254 = vadd.f32 %v1194, %v1253
          %v1255 = vand.u32 %v1048, 4294901760
          %v1256 = vsub.f32 %v1048, %v1255
          %1257 = vmatmul.f32.gmra.mxu0 %v1256
          %v1258 = vpop.f32.mrf.mxu0
          %v1259 = vadd.f32 %v1198, %v1258
          %v1260 = vand.u32 %v1051, 4294901760
          %v1261 = vsub.f32 %v1051, %v1260
          %1262 = vmatmul.f32.gmra.mxu0 %v1261
          %v1263 = vpop.f32.mrf.mxu0
          %v1264 = vadd.f32 %v1202, %v1263
          %v1265 = vand.u32 %v1054, 4294901760
          %v1266 = vsub.f32 %v1054, %v1265
          %1267 = vmatmul.f32.gmra.mxu0 %v1266
          %v1268 = vpop.f32.mrf.mxu0
          %v1269 = vadd.f32 %v1206, %v1268
          %v1270 = vand.u32 %v1057, 4294901760
          %v1271 = vsub.f32 %v1057, %v1270
          %1272 = vmatmul.f32.gmra.mxu0 %v1271
          %v1273 = vpop.f32.mrf.mxu0
          %v1274 = vadd.f32 %v1210, %v1273
          %v1275 = vand.u32 %v1060, 4294901760
          %v1276 = vsub.f32 %v1060, %v1275
          %1277 = vmatmul.f32.gmra.mxu0 %v1276
          %v1278 = vpop.f32.mrf.mxu0
          %v1279 = vadd.f32 %v1214, %v1278
          %1280 = vdwg.mxu0
          %1281 = vmatpush.msra.mxu0 0.0
          %1282 = vmatpush.msra.mxu0 0.0
          %1283 = vmatpush.msra.mxu0 0.0
          %1284 = vmatpush.msra.mxu0 0.0
          %1285 = vmatpush.msra.mxu0 0.0
          %1286 = vmatpush.msra.mxu0 0.0
          %1287 = vmatpush.msra.mxu0 0.0
          %1288 = vmatpush.msra.mxu0 0.0
          %1289 = vmatpush.msra.mxu0 0.0
          %1290 = vmatpush.msra.mxu0 0.0
          %1291 = vmatpush.msra.mxu0 0.0
          %1292 = vmatpush.msra.mxu0 0.0
          %v1293 = vand.u32 %v1036, 4294901760
          %1294 = vmatpush.msra.mxu0 %v1293
          %v1295 = vand.u32 %v1035, 4294901760
          %1296 = vmatpush.msra.mxu0 %v1295
          %v1297 = vand.u32 %v1034, 4294901760
          %1298 = vmatpush.msra.mxu0 %v1297
          %v1299 = vand.u32 %v1033, 4294901760
          %1300 = vmatpush.msra.mxu0 %v1299
          %v1301 = vand.u32 %v1039, 4294901760
          %v1302 = vsub.f32 %v1039, %v1301
          %v1303 = vand.u32 %v1302, 4294901760
          %1304 = vmatmul.f32.gmra.mxu0 %v1303
          %v1305 = vpop.f32.mrf.mxu0
          %v1306 = vadd.f32 %v1244, %v1305
          %v1307 = vand.u32 %v1042, 4294901760
          %v1308 = vsub.f32 %v1042, %v1307
          %v1309 = vand.u32 %v1308, 4294901760
          %1310 = vmatmul.f32.gmra.mxu0 %v1309
          %v1311 = vpop.f32.mrf.mxu0
          %v1312 = vadd.f32 %v1249, %v1311
          %v1313 = vand.u32 %v1045, 4294901760
          %v1314 = vsub.f32 %v1045, %v1313
          %v1315 = vand.u32 %v1314, 4294901760
          %1316 = vmatmul.f32.gmra.mxu0 %v1315
          %v1317 = vpop.f32.mrf.mxu0
          %v1318 = vadd.f32 %v1254, %v1317
          %v1319 = vand.u32 %v1048, 4294901760
          %v1320 = vsub.f32 %v1048, %v1319
          %v1321 = vand.u32 %v1320, 4294901760
          %1322 = vmatmul.f32.gmra.mxu0 %v1321
          %v1323 = vpop.f32.mrf.mxu0
          %v1324 = vadd.f32 %v1259, %v1323
          %v1325 = vand.u32 %v1051, 4294901760
          %v1326 = vsub.f32 %v1051, %v1325
          %v1327 = vand.u32 %v1326, 4294901760
          %1328 = vmatmul.f32.gmra.mxu0 %v1327
          %v1329 = vpop.f32.mrf.mxu0
          %v1330 = vadd.f32 %v1264, %v1329
          %v1331 = vand.u32 %v1054, 4294901760
          %v1332 = vsub.f32 %v1054, %v1331
          %v1333 = vand.u32 %v1332, 4294901760
          %1334 = vmatmul.f32.gmra.mxu0 %v1333
          %v1335 = vpop.f32.mrf.mxu0
          %v1336 = vadd.f32 %v1269, %v1335
          %v1337 = vand.u32 %v1057, 4294901760
          %v1338 = vsub.f32 %v1057, %v1337
          %v1339 = vand.u32 %v1338, 4294901760
          %1340 = vmatmul.f32.gmra.mxu0 %v1339
          %v1341 = vpop.f32.mrf.mxu0
          %v1342 = vadd.f32 %v1274, %v1341
          %v1343 = vand.u32 %v1060, 4294901760
          %v1344 = vsub.f32 %v1060, %v1343
          %v1345 = vand.u32 %v1344, 4294901760
          %1346 = vmatmul.f32.gmra.mxu0 %v1345
          %v1347 = vpop.f32.mrf.mxu0
          %v1348 = vadd.f32 %v1279, %v1347
          %1349 = vdwg.mxu0
          %1350 = vmatpush.msra.mxu0 0.0
          %1351 = vmatpush.msra.mxu0 0.0
          %1352 = vmatpush.msra.mxu0 0.0
          %1353 = vmatpush.msra.mxu0 0.0
          %1354 = vmatpush.msra.mxu0 0.0
          %1355 = vmatpush.msra.mxu0 0.0
          %1356 = vmatpush.msra.mxu0 0.0
          %1357 = vmatpush.msra.mxu0 0.0
          %1358 = vmatpush.msra.mxu0 0.0
          %1359 = vmatpush.msra.mxu0 0.0
          %1360 = vmatpush.msra.mxu0 0.0
          %1361 = vmatpush.msra.mxu0 0.0
          %v1362 = vand.u32 %v1036, 4294901760
          %v1363 = vsub.f32 %v1036, %v1362
          %v1364 = vand.u32 %v1363, 4294901760
          %1365 = vmatpush.msra.mxu0 %v1364
          %v1366 = vand.u32 %v1035, 4294901760
          %v1367 = vsub.f32 %v1035, %v1366
          %v1368 = vand.u32 %v1367, 4294901760
          %1369 = vmatpush.msra.mxu0 %v1368
          %v1370 = vand.u32 %v1034, 4294901760
          %v1371 = vsub.f32 %v1034, %v1370
          %v1372 = vand.u32 %v1371, 4294901760
          %1373 = vmatpush.msra.mxu0 %v1372
          %v1374 = vand.u32 %v1033, 4294901760
          %v1375 = vsub.f32 %v1033, %v1374
          %v1376 = vand.u32 %v1375, 4294901760
          %1377 = vmatpush.msra.mxu0 %v1376
          %v1378 = vand.u32 %v1039, 4294901760
          %1379 = vmatmul.f32.gmra.mxu0 %v1378
          %v1380 = vpop.f32.mrf.mxu0
          %v1381 = vadd.f32 %v1306, %v1380
          %v1382 = vand.u32 %v1042, 4294901760
          %1383 = vmatmul.f32.gmra.mxu0 %v1382
          %v1384 = vpop.f32.mrf.mxu0
          %v1385 = vadd.f32 %v1312, %v1384
          %v1386 = vand.u32 %v1045, 4294901760
          %1387 = vmatmul.f32.gmra.mxu0 %v1386
          %v1388 = vpop.f32.mrf.mxu0
          %v1389 = vadd.f32 %v1318, %v1388
          %v1390 = vand.u32 %v1048, 4294901760
          %1391 = vmatmul.f32.gmra.mxu0 %v1390
          %v1392 = vpop.f32.mrf.mxu0
          %v1393 = vadd.f32 %v1324, %v1392
          %v1394 = vand.u32 %v1051, 4294901760
          %1395 = vmatmul.f32.gmra.mxu0 %v1394
          %v1396 = vpop.f32.mrf.mxu0
          %v1397 = vadd.f32 %v1330, %v1396
          %v1398 = vand.u32 %v1054, 4294901760
          %1399 = vmatmul.f32.gmra.mxu0 %v1398
          %v1400 = vpop.f32.mrf.mxu0
          %v1401 = vadd.f32 %v1336, %v1400
          %v1402 = vand.u32 %v1057, 4294901760
          %1403 = vmatmul.f32.gmra.mxu0 %v1402
          %v1404 = vpop.f32.mrf.mxu0
          %v1405 = vadd.f32 %v1342, %v1404
          %v1406 = vand.u32 %v1060, 4294901760
          %1407 = vmatmul.f32.gmra.mxu0 %v1406
          %v1408 = vpop.f32.mrf.mxu0
          %v1409 = vadd.f32 %v1348, %v1408
          %1410 = vdwg.mxu0
          %1411 = vmatpush.msra.mxu0 0.0
          %1412 = vmatpush.msra.mxu0 0.0
          %1413 = vmatpush.msra.mxu0 0.0
          %1414 = vmatpush.msra.mxu0 0.0
          %1415 = vmatpush.msra.mxu0 0.0
          %1416 = vmatpush.msra.mxu0 0.0
          %1417 = vmatpush.msra.mxu0 0.0
          %1418 = vmatpush.msra.mxu0 0.0
          %1419 = vmatpush.msra.mxu0 0.0
          %1420 = vmatpush.msra.mxu0 0.0
          %1421 = vmatpush.msra.mxu0 0.0
          %1422 = vmatpush.msra.mxu0 0.0
          %v1423 = vand.u32 %v1036, 4294901760
          %1424 = vmatpush.msra.mxu0 %v1423
          %v1425 = vand.u32 %v1035, 4294901760
          %1426 = vmatpush.msra.mxu0 %v1425
          %v1427 = vand.u32 %v1034, 4294901760
          %1428 = vmatpush.msra.mxu0 %v1427
          %v1429 = vand.u32 %v1033, 4294901760
          %1430 = vmatpush.msra.mxu0 %v1429
          %v1431 = vand.u32 %v1039, 4294901760
          %1432 = vmatmul.f32.gmra.mxu0 %v1431
          %v1433 = vpop.f32.mrf.mxu0
          %v1434 = vadd.f32 %v1381, %v1433
          %v1435 = vand.u32 %v1042, 4294901760
          %1436 = vmatmul.f32.gmra.mxu0 %v1435
          %v1437 = vpop.f32.mrf.mxu0
          %v1438 = vadd.f32 %v1385, %v1437
          %v1439 = vand.u32 %v1045, 4294901760
          %1440 = vmatmul.f32.gmra.mxu0 %v1439
          %v1441 = vpop.f32.mrf.mxu0
          %v1442 = vadd.f32 %v1389, %v1441
          %v1443 = vand.u32 %v1048, 4294901760
          %1444 = vmatmul.f32.gmra.mxu0 %v1443
          %v1445 = vpop.f32.mrf.mxu0
          %v1446 = vadd.f32 %v1393, %v1445
          %v1447 = vand.u32 %v1051, 4294901760
          %1448 = vmatmul.f32.gmra.mxu0 %v1447
          %v1449 = vpop.f32.mrf.mxu0
          %v1450 = vadd.f32 %v1397, %v1449
          %v1451 = vand.u32 %v1054, 4294901760
          %1452 = vmatmul.f32.gmra.mxu0 %v1451
          %v1453 = vpop.f32.mrf.mxu0
          %v1454 = vadd.f32 %v1401, %v1453
          %v1455 = vand.u32 %v1057, 4294901760
          %1456 = vmatmul.f32.gmra.mxu0 %v1455
          %v1457 = vpop.f32.mrf.mxu0
          %v1458 = vadd.f32 %v1405, %v1457
          %v1459 = vand.u32 %v1060, 4294901760
          %1460 = vmatmul.f32.gmra.mxu0 %v1459
          %v1461 = vpop.f32.mrf.mxu0
          %v1462 = vadd.f32 %v1409, %v1461
          %1463 = vdwg.mxu0
          %1464 = vst.msk [vmem:[%s327] sm:$0xff] %vm1037, %v1434
          %1465 = vst.msk [vmem:[%s327 + $0x8] sm:$0xff] %vm1037, %v1438
          %1466 = vst.msk [vmem:[%s327 + $0x10] sm:$0xff] %vm1037, %v1442
          %1467 = vst.msk [vmem:[%s327 + $0x18] sm:$0xff] %vm1037, %v1446
          %1468 = vst.msk [vmem:[%s327 + $0x20] sm:$0xff] %vm1037, %v1450
          %1469 = vst.msk [vmem:[%s327 + $0x28] sm:$0xff] %vm1037, %v1454
          %1470 = vst.msk [vmem:[%s327 + $0x30] sm:$0xff] %vm1037, %v1458
          %1471 = vst.msk [vmem:[%s327 + $0x38] sm:$0xff] %vm1037, %v1462
        $region86: #{shglnn_forward.9} parent=73 // pred_fallthru
          _
        %s1472 = smul.u32 8, %s20
        %p1473 = scmp.lt.s32.totalorder %s1472, 31
        %s1474 = scalar_select %p1473, %s1472, 31
        %s1475 = smul.addr %s1474, 8
        %s1476 = scalar_lea.vmem %s5, %s1475
        // Predicated region
        $region87: #{shglnn_forward.9} parent=73 // pred_check
          %p1477 = pneg %p163
        $region88: #{shglnn_forward.9} parent=73 // pred_check_branch
          %1479 = sbr.rel (%p1477) target = $region90
        $region89: #{shglnn_forward.9} parent=73 // pred_region
          %s1480 = smul.u32 8, %s20
        $region90: #{shglnn_forward.9} parent=73 // pred_fallthru
          _
      $region74: #{shglnn_forward.9} parent=5 // pred_fallthru
        _
      %p1481 = scmp.le.s32.totalorder 2, %s11
      // Predicated region
      $region91: #{shglnn_forward.9} parent=5 // pred_check
        %p1482 = pneg %p1481
      $region92: #{shglnn_forward.9} parent=5 // pred_check_branch
        %1484 = sbr.rel (%p1482) target = $region94
      $region93: #{shglnn_forward.9} parent=5 // pred_region
        %s1485 = ssub.s32 %s11, 2
        // Predicated region
        $region95: #{shglnn_forward.9} parent=93 // pred_check
          %p1486 = pneg %p169
        $region96: #{shglnn_forward.9} parent=93 // pred_check_branch
          %1488 = sbr.rel (%p1486) target = $region98
        $region97: #{shglnn_forward.9} parent=93 // pred_region
          %s1489 = smul.u32 8, %s22
          %p1490 = scmp.lt.s32.totalorder %s1489, 31
          %s1491 = scalar_select %p1490, %s1489, 31
          %s1492 = smul.addr %s1491, 8
          %s1493 = scalar_lea.vmem %s5, %s1492
        $region98: #{shglnn_forward.9} parent=93 // pred_fallthru
          _
      $region94: #{shglnn_forward.9} parent=5 // pred_fallthru
        _
    $region6: #{shglnn_forward.9} parent=1 // loop_footer
      %s15 = sadd.s32 1, %s11
    $region7: #{shglnn_forward.9} parent=1 // loop_footer_branch
      %10 = sbr.rel target = $region3
    $region8: #{shglnn_forward.9} parent=1 // loop_exit
      _

// kernel: shglnn_forward.6
$region0: #{shglnn_forward.6}
  #allocation0 [shape = 'u32[]', space=smem, size = 0x4, offset = 0x4, fixed_abs, tag = 'smem constant byte address 0x4 - core index']
  #allocation1 [shape = 'u32[72,128]{1,0:T(1,128)}', space=vmem, size = 0x9000, scoped, tag = 'internal scratch']
  #allocation2 [shape = 'f32[64,4]{1,0:T(8,128)}', space=vmem, size = 0x8000, scoped, tag = 'scratch operand']
  #allocation3 [shape = 'f32[1,1]{1,0:T(1,128)S(1)}', space=vmem, size = 0x200, scoped, tag = 'scoped memory for shglnn_forward.6']
  %s0 = inlined_call_operand.hbm [shape: f32[256,256], index: 0, kind: input, shape index: {}]
  %s1 = inlined_call_operand.vmem [shape: f32[256,4], index: 1, kind: input, shape index: {}]
  %s2 = inlined_call_operand.hbm [shape: f32[4,32], index: 2, kind: input, shape index: {}]
  %s3 = inlined_call_operand.hbm [shape: f32[1,32], index: 3, kind: input, shape index: {}]
  %s4 = inlined_call_operand.vmem [shape: f32[32,1], index: 4, kind: input, shape index: {}]
  %s5 = inlined_call_operand.<no memory space> [shape: f32[1,1], index: 5, kind: input, shape index: {}]
  %s6 = inlined_call_operand.vmem [shape: f32[256,32], index: 6, kind: output, shape index: {0}]
  %s7 = inlined_call_operand.vmem [shape: f32[256,1], index: 7, kind: output, shape index: {1}]
  %8 = xla_tuple %s6, %s7
  %s9 = sld [smem:[#allocation0]]
  $region85: #{shglnn_forward.6} parent=0
    _
  %s11 = ssub.s32 1, %s9
  %s12 = scalar_select 0, %s11, %s9
  %v13 = vstv %s5
  %14 = vst [vmem:[#allocation3] sm:$0x1] %v13
  $region1: #{shglnn_forward.6} parent=0
    #allocation4 [shape = 'u8[65536]{0}', space=vmem, size = 0x10000, scoped, tag = 'input window, operand 0']
    #allocation5 [shape = 's32[2]{0}', space=sflag, size = 0x8, scoped, tag = 'scoped memory for shglnn_forward.6']
    #allocation6 [shape = 'u8[2048]{0}', space=vmem, size = 0x800, scoped, tag = 'input window, operand 2, single buffered']
    #allocation7 [shape = 's32[1]{0}', space=sflag, size = 0x4, scoped, tag = 'scoped memory for shglnn_forward.6']
    #allocation8 [shape = 'u8[512]{0}', space=vmem, size = 0x400, scoped, tag = 'input window, operand 3, single buffered']
    %15 = vsyncpa [#allocation5], 0
    %s16 = scalar_lea.sflag [#allocation5], 1
    %17 = vsyncpa %s16, 0
    %18 = vsyncpa [#allocation7], 0
    loop: start=0, step=1, limit=10
    $region2: #{shglnn_forward.6} parent=1 // loop_pre_header
      _
    $region3: #{shglnn_forward.6} parent=1 // loop_header
      %s20 = sphi 0, %s24
      %p21 = scmp.ge.s32.totalorder %s20, 10
      %s27 = sphi 0, %s39
      %s28 = sphi 0, %s35
      %s29 = sphi 0, %s27
      %s30 = sphi 0, %s28
      %s31 = sphi 0, %s29
      %s32 = sphi 0, %s30
      %s44 = sphi 0, %s46
      %s47 = sphi 0, %s44
      %s48 = sphi 0, %s47
      %s64 = sphi 0, %s48
      %s70 = sphi 0, %s72
      %s73 = sphi 0, %s70
      %s74 = sphi 0, %s73
      %s90 = sphi 0, %s74
      %s94 = sphi 0, %s94
      %s96 = sphi 0, %s94
      %s97 = sphi 0, %s96
      %s111 = sphi 0, %s97
      %s115 = sphi 0, %s115
      %s117 = sphi 0, %s115
      %s118 = sphi 0, %s117
      %s132 = sphi 0, %s118
      %s136 = sphi 0, %s136
      %s138 = sphi 0, %s136
      %s139 = sphi 0, %s138
      %s153 = sphi 0, %s139
      %s157 = sphi 0, %s157
      %s159 = sphi 0, %s157
      %s160 = sphi 0, %s159
      %s174 = sphi 0, %s160
      %s180 = sphi 0, %s182
      %s183 = sphi 0, %s180
      %s184 = sphi 0, %s183
      %s200 = sphi 0, %s184
      %s206 = sphi 0, %s208
      %s209 = sphi 0, %s206
      %s210 = sphi 0, %s209
      %s226 = sphi 0, %s210
    $region4: #{shglnn_forward.6} parent=1 // loop_header_branch
      %23 = sbr.rel (%p21) target = $region8
    $region5: #{shglnn_forward.6} parent=1 // loop_body
      %s25 = ssub.s32 %s20, 1
      %s26 = ssub.s32 %s20, 2
      %s33 = sadd.s32 1, %s28
      %p34 = scmp.ge.s32.totalorder %s33, 2
      %s35 = scalar_select %p34, 0, %s33
      %s36 = sadd.s32 1, %s27
      %s37 = scalar_select %p34, %s36, %s27
      %p38 = scmp.ge.s32.totalorder %s37, 4
      %s39 = scalar_select %p38, 0, %s37
      %s40 = ssub.s32 %s27, %s39
      %s41 = ssub.s32 %s28, %s35
      %s42 = sor.u32 %s40, %s41
      %p43 = scmp.eq.s32.totalorder %s42, 0
      %s45 = sadd.s32 %s44, 1
      %s46 = scalar_select %p43, %s44, %s45
      %p49 = pneg %p43
      %p50 = scmp.eq.s32.totalorder %s20, 7
      %p51 = por %p49, %p50
      %p52 = scmp.ne.s32.totalorder %s44, %s47
      %p53 = scmp.eq.s32.totalorder %s20, 0
      %p54 = por %p52, %p53
      %p55 = scmp.ne.s32.totalorder %s44, %s47
      %p56 = scmp.eq.s32.totalorder %s25, 7
      %p57 = por %p55, %p56
      %p58 = scmp.ne.s32.totalorder %s47, %s48
      %p59 = scmp.eq.s32.totalorder %s25, 0
      %p60 = por %p58, %p59
      %p61 = scmp.ne.s32.totalorder %s47, %s48
      %p62 = scmp.eq.s32.totalorder %s26, 7
      %p63 = por %p61, %p62
      %p65 = scmp.ne.s32.totalorder %s48, %s64
      %p66 = scmp.eq.s32.totalorder %s26, 0
      %p67 = por %p65, %p66
      %s68 = ssub.s32 %s28, %s35
      %p69 = scmp.eq.s32.totalorder %s68, 0
      %s71 = sadd.s32 %s70, 1
      %s72 = scalar_select %p69, %s70, %s71
      %p75 = pneg %p69
      %p76 = scmp.eq.s32.totalorder %s20, 7
      %p77 = por %p75, %p76
      %p78 = scmp.ne.s32.totalorder %s70, %s73
      %p79 = scmp.eq.s32.totalorder %s20, 0
      %p80 = por %p78, %p79
      %p81 = scmp.ne.s32.totalorder %s70, %s73
      %p82 = scmp.eq.s32.totalorder %s25, 7
      %p83 = por %p81, %p82
      %p84 = scmp.ne.s32.totalorder %s73, %s74
      %p85 = scmp.eq.s32.totalorder %s25, 0
      %p86 = por %p84, %p85
      %p87 = scmp.ne.s32.totalorder %s73, %s74
      %p88 = scmp.eq.s32.totalorder %s26, 7
      %p89 = por %p87, %p88
      %p91 = scmp.ne.s32.totalorder %s74, %s90
      %p92 = scmp.eq.s32.totalorder %s26, 0
      %p93 = por %p91, %p92
      %s95 = sadd.s32 %s94, 1
      %p98 = scmp.eq.s32.totalorder %s20, 7
      %p99 = scmp.ne.s32.totalorder %s94, %s96
      %p100 = scmp.eq.s32.totalorder %s20, 0
      %p101 = por %p99, %p100
      %p102 = scmp.ne.s32.totalorder %s94, %s96
      %p103 = scmp.eq.s32.totalorder %s25, 7
      %p104 = por %p102, %p103
      %p105 = scmp.ne.s32.totalorder %s96, %s97
      %p106 = scmp.eq.s32.totalorder %s25, 0
      %p107 = por %p105, %p106
      %p108 = scmp.ne.s32.totalorder %s96, %s97
      %p109 = scmp.eq.s32.totalorder %s26, 7
      %p110 = por %p108, %p109
      %p112 = scmp.ne.s32.totalorder %s97, %s111
      %p113 = scmp.eq.s32.totalorder %s26, 0
      %p114 = por %p112, %p113
      %s116 = sadd.s32 %s115, 1
      %p119 = scmp.eq.s32.totalorder %s20, 7
      %p120 = scmp.ne.s32.totalorder %s115, %s117
      %p121 = scmp.eq.s32.totalorder %s20, 0
      %p122 = por %p120, %p121
      %p123 = scmp.ne.s32.totalorder %s115, %s117
      %p124 = scmp.eq.s32.totalorder %s25, 7
      %p125 = por %p123, %p124
      %p126 = scmp.ne.s32.totalorder %s117, %s118
      %p127 = scmp.eq.s32.totalorder %s25, 0
      %p128 = por %p126, %p127
      %p129 = scmp.ne.s32.totalorder %s117, %s118
      %p130 = scmp.eq.s32.totalorder %s26, 7
      %p131 = por %p129, %p130
      %p133 = scmp.ne.s32.totalorder %s118, %s132
      %p134 = scmp.eq.s32.totalorder %s26, 0
      %p135 = por %p133, %p134
      %s137 = sadd.s32 %s136, 1
      %p140 = scmp.eq.s32.totalorder %s20, 7
      %p141 = scmp.ne.s32.totalorder %s136, %s138
      %p142 = scmp.eq.s32.totalorder %s20, 0
      %p143 = por %p141, %p142
      %p144 = scmp.ne.s32.totalorder %s136, %s138
      %p145 = scmp.eq.s32.totalorder %s25, 7
      %p146 = por %p144, %p145
      %p147 = scmp.ne.s32.totalorder %s138, %s139
      %p148 = scmp.eq.s32.totalorder %s25, 0
      %p149 = por %p147, %p148
      %p150 = scmp.ne.s32.totalorder %s138, %s139
      %p151 = scmp.eq.s32.totalorder %s26, 7
      %p152 = por %p150, %p151
      %p154 = scmp.ne.s32.totalorder %s139, %s153
      %p155 = scmp.eq.s32.totalorder %s26, 0
      %p156 = por %p154, %p155
      %s158 = sadd.s32 %s157, 1
      %p161 = scmp.eq.s32.totalorder %s20, 7
      %p162 = scmp.ne.s32.totalorder %s157, %s159
      %p163 = scmp.eq.s32.totalorder %s20, 0
      %p164 = por %p162, %p163
      %p165 = scmp.ne.s32.totalorder %s157, %s159
      %p166 = scmp.eq.s32.totalorder %s25, 7
      %p167 = por %p165, %p166
      %p168 = scmp.ne.s32.totalorder %s159, %s160
      %p169 = scmp.eq.s32.totalorder %s25, 0
      %p170 = por %p168, %p169
      %p171 = scmp.ne.s32.totalorder %s159, %s160
      %p172 = scmp.eq.s32.totalorder %s26, 7
      %p173 = por %p171, %p172
      %p175 = scmp.ne.s32.totalorder %s160, %s174
      %p176 = scmp.eq.s32.totalorder %s26, 0
      %p177 = por %p175, %p176
      %s178 = ssub.s32 %s27, %s39
      %p179 = scmp.eq.s32.totalorder %s178, 0
      %s181 = sadd.s32 %s180, 1
      %s182 = scalar_select %p179, %s180, %s181
      %p185 = pneg %p179
      %p186 = scmp.eq.s32.totalorder %s20, 7
      %p187 = por %p185, %p186
      %p188 = scmp.ne.s32.totalorder %s180, %s183
      %p189 = scmp.eq.s32.totalorder %s20, 0
      %p190 = por %p188, %p189
      %p191 = scmp.ne.s32.totalorder %s180, %s183
      %p192 = scmp.eq.s32.totalorder %s25, 7
      %p193 = por %p191, %p192
      %p194 = scmp.ne.s32.totalorder %s183, %s184
      %p195 = scmp.eq.s32.totalorder %s25, 0
      %p196 = por %p194, %p195
      %p197 = scmp.ne.s32.totalorder %s183, %s184
      %p198 = scmp.eq.s32.totalorder %s26, 7
      %p199 = por %p197, %p198
      %p201 = scmp.ne.s32.totalorder %s184, %s200
      %p202 = scmp.eq.s32.totalorder %s26, 0
      %p203 = por %p201, %p202
      %s204 = ssub.s32 %s27, %s39
      %p205 = scmp.eq.s32.totalorder %s204, 0
      %s207 = sadd.s32 %s206, 1
      %s208 = scalar_select %p205, %s206, %s207
      %p211 = pneg %p205
      %p212 = scmp.eq.s32.totalorder %s20, 7
      %p213 = por %p211, %p212
      %p214 = scmp.ne.s32.totalorder %s206, %s209
      %p215 = scmp.eq.s32.totalorder %s20, 0
      %p216 = por %p214, %p215
      %p217 = scmp.ne.s32.totalorder %s206, %s209
      %p218 = scmp.eq.s32.totalorder %s25, 7
      %p219 = por %p217, %p218
      %p220 = scmp.ne.s32.totalorder %s209, %s210
      %p221 = scmp.eq.s32.totalorder %s25, 0
      %p222 = por %p220, %p221
      %p223 = scmp.ne.s32.totalorder %s209, %s210
      %p224 = scmp.eq.s32.totalorder %s26, 7
      %p225 = por %p223, %p224
      %p227 = scmp.ne.s32.totalorder %s210, %s226
      %p228 = scmp.eq.s32.totalorder %s26, 0
      %p229 = por %p227, %p228
      %p230 = scmp.le.s32.totalorder 1, %s20
      %p231 = scmp.lt.s32.totalorder %s20, 9
      %p232 = pnand %p230, %p231
      %p233 = pneg %p232
      // Predicated region
      $region9: #{shglnn_forward.6} parent=5 // pred_check
        _
      $region10: #{shglnn_forward.6} parent=5 // pred_check_branch
        %235 = sbr.rel (%p232) target = $region12
      $region11: #{shglnn_forward.6} parent=5 // pred_region
        %s236 = ssub.s32 %s20, 1
        // Predicated region
        $region13: #{shglnn_forward.6} parent=11 // pred_check
          %p237 = pneg %p107
        $region14: #{shglnn_forward.6} parent=11 // pred_check_branch
          %239 = sbr.rel (%p237) target = $region16
        $region15: #{shglnn_forward.6} parent=11 // pred_region
          %241 = vsyncadd [#allocation7], 0
          %s243 = sshll.u32 %s2, 4
          %s244 = int_to_ptr.hbm [resolvable:$true] %s243
          %s245 = sshll.u32 [#allocation6], 4
          %s246 = int_to_ptr.vmem [resolvable:$true] %s245
          %248 = dma.hbm_to_vmem [thread:$0]  %s244, 64, %s246, [#allocation7]
        $region16: #{shglnn_forward.6} parent=11 // pred_fallthru
          _
        // Predicated region
        $region17: #{shglnn_forward.6} parent=11 // pred_check
          %p249 = pneg %p128
        $region18: #{shglnn_forward.6} parent=11 // pred_check_branch
          %251 = sbr.rel (%p249) target = $region20
        $region19: #{shglnn_forward.6} parent=11 // pred_region
          %253 = vsyncadd [#allocation7], 0
          %s255 = sshll.u32 %s3, 4
          %s256 = int_to_ptr.hbm [resolvable:$true] %s255
          %s257 = sshll.u32 [#allocation8], 4
          %s258 = int_to_ptr.vmem [resolvable:$true] %s257
          %260 = dma.hbm_to_vmem [thread:$0]  %s256, 16, %s258, [#allocation7]
        $region20: #{shglnn_forward.6} parent=11 // pred_fallthru
          _
        // Predicated region
        $region21: #{shglnn_forward.6} parent=11 // pred_check
          %p261 = pneg %p149
        $region22: #{shglnn_forward.6} parent=11 // pred_check_branch
          %263 = sbr.rel (%p261) target = $region24
        $region23: #{shglnn_forward.6} parent=11 // pred_region
          _
        $region24: #{shglnn_forward.6} parent=11 // pred_fallthru
          _
        // Predicated region
        $region25: #{shglnn_forward.6} parent=11 // pred_check
          %p264 = pneg %p170
        $region26: #{shglnn_forward.6} parent=11 // pred_check_branch
          %266 = sbr.rel (%p264) target = $region28
        $region27: #{shglnn_forward.6} parent=11 // pred_region
          _
        $region28: #{shglnn_forward.6} parent=11 // pred_fallthru
          _
      $region12: #{shglnn_forward.6} parent=5 // pred_fallthru
        _
      %p267 = scmp.lt.s32.totalorder %s20, 8
      // Predicated region
      $region29: #{shglnn_forward.6} parent=5 // pred_check
        %p268 = pneg %p267
      $region30: #{shglnn_forward.6} parent=5 // pred_check_branch
        %270 = sbr.rel (%p268) target = $region32
      $region31: #{shglnn_forward.6} parent=5 // pred_region
        // Predicated region
        $region33: #{shglnn_forward.6} parent=31 // pred_check
          %p271 = pneg %p54
        $region34: #{shglnn_forward.6} parent=31 // pred_check_branch
          %273 = sbr.rel (%p271) target = $region36
        $region35: #{shglnn_forward.6} parent=31 // pred_region
          %s274 = sand.u32 %s44, 1
          %s275 = scalar_lea.sflag [#allocation5], %s274
          %s276 = sand.u32 %s44, 1
          %s277 = smul.addr %s276, 64
          %s278 = scalar_lea.vmem [#allocation4], %s277
          %s279 = smul.u32 8, %s27
          %281 = vsyncadd %s275, 0
          %s282 = smul.addr %s279, 2
          %s283 = sadd.s32 %s28, %s282
          %s284 = smul.addr %s283, 8
          %s285 = scalar_lea.hbm %s0, %s284
          %s286 = sshll.u32 %s285, 4
          %s287 = int_to_ptr.hbm [resolvable:$true] %s286
          %s288 = sshll.u32 %s278, 4
          %s289 = int_to_ptr.vmem [resolvable:$true] %s288
          %294 = dma.hbm_to_vmem [thread:$0]  %s287, 1024, %s289, %s275, 256, 128, 8
        $region36: #{shglnn_forward.6} parent=31 // pred_fallthru
          _
        // Predicated region
        $region37: #{shglnn_forward.6} parent=31 // pred_check
          %p295 = pneg %p80
        $region38: #{shglnn_forward.6} parent=31 // pred_check_branch
          %297 = sbr.rel (%p295) target = $region40
        $region39: #{shglnn_forward.6} parent=31 // pred_region
          %s298 = smul.u32 16, %s28
          %p299 = scmp.lt.s32.totalorder %s298, 31
          %s300 = scalar_select %p299, %s298, 31
          %s301 = smul.addr %s300, 8
          %s302 = scalar_lea.vmem %s1, %s301
          %s303 = smul.u32 16, %s28
        $region40: #{shglnn_forward.6} parent=31 // pred_fallthru
          _
      $region32: #{shglnn_forward.6} parent=5 // pred_fallthru
        _
      %p304 = scmp.le.s32.totalorder 1, %s20
      %p305 = scmp.lt.s32.totalorder %s20, 9
      %p306 = pnand %p304, %p305
      %p307 = pneg %p306
      // Predicated region
      $region41: #{shglnn_forward.6} parent=5 // pred_check
        _
      $region42: #{shglnn_forward.6} parent=5 // pred_check_branch
        %309 = sbr.rel (%p306) target = $region44
      $region43: #{shglnn_forward.6} parent=5 // pred_region
        %s310 = ssub.s32 %s20, 1
        %s311 = sand.u32 %s47, 1
        %s312 = scalar_lea.sflag [#allocation5], %s311
        %s313 = sand.u32 %s47, 1
        %s314 = smul.addr %s313, 64
        %s315 = scalar_lea.vmem [#allocation4], %s314
        // Predicated region
        $region45: #{shglnn_forward.6} parent=43 // pred_check
          %p316 = pneg %p60
        $region46: #{shglnn_forward.6} parent=43 // pred_check_branch
          %318 = sbr.rel (%p316) target = $region48
        $region47: #{shglnn_forward.6} parent=43 // pred_region
          %320 = dma.done %s312, 1024
        $region48: #{shglnn_forward.6} parent=43 // pred_fallthru
          _
        // Predicated region
        $region49: #{shglnn_forward.6} parent=43 // pred_check
          %p321 = pneg %p107
        $region50: #{shglnn_forward.6} parent=43 // pred_check_branch
          %323 = sbr.rel (%p321) target = $region52
        $region51: #{shglnn_forward.6} parent=43 // pred_region
          %325 = dma.done [#allocation7], 64
        $region52: #{shglnn_forward.6} parent=43 // pred_fallthru
          _
        // Predicated region
        $region53: #{shglnn_forward.6} parent=43 // pred_check
          %p326 = pneg %p128
        $region54: #{shglnn_forward.6} parent=43 // pred_check_branch
          %328 = sbr.rel (%p326) target = $region56
        $region55: #{shglnn_forward.6} parent=43 // pred_region
          %330 = dma.done [#allocation7], 16
        $region56: #{shglnn_forward.6} parent=43 // pred_fallthru
          _
        %s331 = sand.u32 %s47, 1
        %s332 = scalar_lea.sflag [#allocation5], %s331
        %s333 = sand.u32 %s47, 1
        %s334 = smul.addr %s333, 64
        %s335 = scalar_lea.vmem [#allocation4], %s334
        %p336 = pneg %p60
        %p337 = pneg %p57
        %s338 = smul.u32 16, %s30
        %p339 = scmp.lt.s32.totalorder %s338, 31
        %s340 = scalar_select %p339, %s338, 31
        %s341 = smul.addr %s340, 8
        %s342 = scalar_lea.vmem %s1, %s341
        %p343 = pneg %p86
        %p344 = pneg %p83
        %p345 = pneg %p107
        %p346 = pneg %p104
        %p347 = pneg %p128
        %p348 = pneg %p125
        %p349 = pneg %p149
        %p350 = pneg %p146
        %p351 = pneg %p170
        %p352 = pneg %p167
        %p353 = pneg %p196
        %p354 = pneg %p193
        %s355 = smul.u32 8, %s29
        %p356 = scmp.lt.s32.totalorder %s355, 31
        %s357 = scalar_select %p356, %s355, 31
        %s358 = smul.addr %s357, 8
        %s359 = scalar_lea.vmem %s6, %s358
        %p360 = pneg %p222
        %p361 = pneg %p219
        %s362 = smul.u32 8, %s29
        %p363 = scmp.lt.s32.totalorder %s362, 31
        %s364 = scalar_select %p363, %s362, 31
        %s365 = smul.addr %s364, 8
        %s366 = scalar_lea.vmem %s7, %s365
        %s367 = smul.u32 8, %s29
        %s368 = smul.u32 16, %s30
        %p369 = scmp.lt.s32.totalorder %s368, 31
        %s370 = scalar_select %p369, %s368, 31
        %s371 = smul.addr %s370, 8
        %s372 = scalar_lea.vmem %s1, %s371
        %s373 = smul.u32 16, %s30
        %s374 = smul.u32 8, %s29
        %p375 = scmp.lt.s32.totalorder %s374, 31
        %s376 = scalar_select %p375, %s374, 31
        %s377 = smul.addr %s376, 8
        %s378 = scalar_lea.vmem %s6, %s377
        %s379 = smul.u32 8, %s29
        %s380 = smul.u32 8, %s29
        %p381 = scmp.lt.s32.totalorder %s380, 31
        %s382 = scalar_select %p381, %s380, 31
        %s383 = smul.addr %s382, 8
        %s384 = scalar_lea.vmem %s7, %s383
        %s385 = smul.u32 8, %s29
        %p386 = scmp.eq.s32.totalorder %s30, 0
        // Predicated region
        $region57: #{shglnn_forward.6} parent=43 // pred_check
          %p387 = pneg %p386
        $region58: #{shglnn_forward.6} parent=43 // pred_check_branch
          %389 = sbr.rel (%p387) target = $region60
        $region59: #{shglnn_forward.6} parent=43 // pred_region
          %vm390 = vcmask 31744
          %391 = vst.msk [vmem:[#allocation2] sm:$0xff] %vm390, 0.0
          %392 = vst.msk [vmem:[#allocation2 + $0x8] sm:$0xff] %vm390, 0.0
          %393 = vst.msk [vmem:[#allocation2 + $0x10] sm:$0xff] %vm390, 0.0
          %394 = vst.msk [vmem:[#allocation2 + $0x18] sm:$0xff] %vm390, 0.0
          %395 = vst.msk [vmem:[#allocation2 + $0x20] sm:$0xff] %vm390, 0.0
          %396 = vst.msk [vmem:[#allocation2 + $0x28] sm:$0xff] %vm390, 0.0
          %397 = vst.msk [vmem:[#allocation2 + $0x30] sm:$0xff] %vm390, 0.0
          %398 = vst.msk [vmem:[#allocation2 + $0x38] sm:$0xff] %vm390, 0.0
        $region60: #{shglnn_forward.6} parent=43 // pred_fallthru
          _
        %v399 = vld [vmem:[#allocation2] sm:$0xff]
        %v400 = vld [vmem:[#allocation2 + $0x8] sm:$0xff]
        %v401 = vld [vmem:[#allocation2 + $0x10] sm:$0xff]
        %v402 = vld [vmem:[#allocation2 + $0x18] sm:$0xff]
        %v403 = vld [vmem:[#allocation2 + $0x20] sm:$0xff]
        %v404 = vld [vmem:[#allocation2 + $0x28] sm:$0xff]
        %v405 = vld [vmem:[#allocation2 + $0x30] sm:$0xff]
        %v406 = vld [vmem:[#allocation2 + $0x38] sm:$0xff]
        %v407 = vld [vmem:[%s315] sm:$0xff]
        %v408 = vld [vmem:[%s315 + $0x8] sm:$0xff]
        %v409 = vld [vmem:[%s315 + $0x10] sm:$0xff]
        %v410 = vld [vmem:[%s315 + $0x18] sm:$0xff]
        %v411 = vld [vmem:[%s315 + $0x20] sm:$0xff]
        %v412 = vld [vmem:[%s315 + $0x28] sm:$0xff]
        %v413 = vld [vmem:[%s315 + $0x30] sm:$0xff]
        %v414 = vld [vmem:[%s315 + $0x38] sm:$0xff]
        %v415 = vld [vmem:[%s372] sm:$0xff]
        %v416 = vld [vmem:[%s372 + $0x8] sm:$0xff]
        %v417 = vld [vmem:[%s372 + $0x10] sm:$0xff]
        %v418 = vld [vmem:[%s372 + $0x18] sm:$0xff]
        %v419 = vld [vmem:[%s372 + $0x20] sm:$0xff]
        %v420 = vld [vmem:[%s372 + $0x28] sm:$0xff]
        %v421 = vld [vmem:[%s372 + $0x30] sm:$0xff]
        %v422 = vld [vmem:[%s372 + $0x38] sm:$0xff]
        %v423 = vld [vmem:[%s372 + $0x40] sm:$0xff]
        %v424 = vld [vmem:[%s372 + $0x48] sm:$0xff]
        %v425 = vld [vmem:[%s372 + $0x50] sm:$0xff]
        %v426 = vld [vmem:[%s372 + $0x58] sm:$0xff]
        %v427 = vld [vmem:[%s372 + $0x60] sm:$0xff]
        %v428 = vld [vmem:[%s372 + $0x68] sm:$0xff]
        %v429 = vld [vmem:[%s372 + $0x70] sm:$0xff]
        %v430 = vld [vmem:[%s372 + $0x78] sm:$0xff]
        %v431 = vand.u32 %v430, 4294901760
        %432 = vmatpush.msra.mxu0 %v431
        %v433 = vand.u32 %v429, 4294901760
        %434 = vmatpush.msra.mxu0 %v433
        %v435 = vand.u32 %v428, 4294901760
        %436 = vmatpush.msra.mxu0 %v435
        %v437 = vand.u32 %v427, 4294901760
        %438 = vmatpush.msra.mxu0 %v437
        %v439 = vand.u32 %v426, 4294901760
        %440 = vmatpush.msra.mxu0 %v439
        %v441 = vand.u32 %v425, 4294901760
        %442 = vmatpush.msra.mxu0 %v441
        %v443 = vand.u32 %v424, 4294901760
        %444 = vmatpush.msra.mxu0 %v443
        %v445 = vand.u32 %v423, 4294901760
        %446 = vmatpush.msra.mxu0 %v445
        %v447 = vand.u32 %v422, 4294901760
        %448 = vmatpush.msra.mxu0 %v447
        %v449 = vand.u32 %v421, 4294901760
        %450 = vmatpush.msra.mxu0 %v449
        %v451 = vand.u32 %v420, 4294901760
        %452 = vmatpush.msra.mxu0 %v451
        %v453 = vand.u32 %v419, 4294901760
        %454 = vmatpush.msra.mxu0 %v453
        %v455 = vand.u32 %v418, 4294901760
        %456 = vmatpush.msra.mxu0 %v455
        %v457 = vand.u32 %v417, 4294901760
        %458 = vmatpush.msra.mxu0 %v457
        %v459 = vand.u32 %v416, 4294901760
        %460 = vmatpush.msra.mxu0 %v459
        %v461 = vand.u32 %v415, 4294901760
        %462 = vmatpush.msra.mxu0 %v461
        %v463 = vand.u32 %v407, 4294901760
        %v464 = vsub.f32 %v407, %v463
        %v465 = vand.u32 %v464, 4294901760
        %v466 = vsub.f32 %v464, %v465
        %v467 = vand.u32 %v466, 4294901760
        %468 = vmatmul.f32.gmra.mxu0 %v467
        %v469 = vpop.f32.mrf.mxu0
        %v470 = vadd.f32 0.0, %v469
        %v471 = vand.u32 %v408, 4294901760
        %v472 = vsub.f32 %v408, %v471
        %v473 = vand.u32 %v472, 4294901760
        %v474 = vsub.f32 %v472, %v473
        %v475 = vand.u32 %v474, 4294901760
        %476 = vmatmul.f32.gmra.mxu0 %v475
        %v477 = vpop.f32.mrf.mxu0
        %v478 = vadd.f32 0.0, %v477
        %v479 = vand.u32 %v409, 4294901760
        %v480 = vsub.f32 %v409, %v479
        %v481 = vand.u32 %v480, 4294901760
        %v482 = vsub.f32 %v480, %v481
        %v483 = vand.u32 %v482, 4294901760
        %484 = vmatmul.f32.gmra.mxu0 %v483
        %v485 = vpop.f32.mrf.mxu0
        %v486 = vadd.f32 0.0, %v485
        %v487 = vand.u32 %v410, 4294901760
        %v488 = vsub.f32 %v410, %v487
        %v489 = vand.u32 %v488, 4294901760
        %v490 = vsub.f32 %v488, %v489
        %v491 = vand.u32 %v490, 4294901760
        %492 = vmatmul.f32.gmra.mxu0 %v491
        %v493 = vpop.f32.mrf.mxu0
        %v494 = vadd.f32 0.0, %v493
        %v495 = vand.u32 %v411, 4294901760
        %v496 = vsub.f32 %v411, %v495
        %v497 = vand.u32 %v496, 4294901760
        %v498 = vsub.f32 %v496, %v497
        %v499 = vand.u32 %v498, 4294901760
        %500 = vmatmul.f32.gmra.mxu0 %v499
        %v501 = vpop.f32.mrf.mxu0
        %v502 = vadd.f32 0.0, %v501
        %v503 = vand.u32 %v412, 4294901760
        %v504 = vsub.f32 %v412, %v503
        %v505 = vand.u32 %v504, 4294901760
        %v506 = vsub.f32 %v504, %v505
        %v507 = vand.u32 %v506, 4294901760
        %508 = vmatmul.f32.gmra.mxu0 %v507
        %v509 = vpop.f32.mrf.mxu0
        %v510 = vadd.f32 0.0, %v509
        %v511 = vand.u32 %v413, 4294901760
        %v512 = vsub.f32 %v413, %v511
        %v513 = vand.u32 %v512, 4294901760
        %v514 = vsub.f32 %v512, %v513
        %v515 = vand.u32 %v514, 4294901760
        %516 = vmatmul.f32.gmra.mxu0 %v515
        %v517 = vpop.f32.mrf.mxu0
        %v518 = vadd.f32 0.0, %v517
        %v519 = vand.u32 %v414, 4294901760
        %v520 = vsub.f32 %v414, %v519
        %v521 = vand.u32 %v520, 4294901760
        %v522 = vsub.f32 %v520, %v521
        %v523 = vand.u32 %v522, 4294901760
        %524 = vmatmul.f32.gmra.mxu0 %v523
        %v525 = vpop.f32.mrf.mxu0
        %v526 = vadd.f32 0.0, %v525
        %527 = vdwg.mxu0
        %v528 = vand.u32 %v430, 4294901760
        %v529 = vsub.f32 %v430, %v528
        %v530 = vand.u32 %v529, 4294901760
        %v531 = vsub.f32 %v529, %v530
        %v532 = vand.u32 %v531, 4294901760
        %533 = vmatpush.msra.mxu0 %v532
        %v534 = vand.u32 %v429, 4294901760
        %v535 = vsub.f32 %v429, %v534
        %v536 = vand.u32 %v535, 4294901760
        %v537 = vsub.f32 %v535, %v536
        %v538 = vand.u32 %v537, 4294901760
        %539 = vmatpush.msra.mxu0 %v538
        %v540 = vand.u32 %v428, 4294901760
        %v541 = vsub.f32 %v428, %v540
        %v542 = vand.u32 %v541, 4294901760
        %v543 = vsub.f32 %v541, %v542
        %v544 = vand.u32 %v543, 4294901760
        %545 = vmatpush.msra.mxu0 %v544
        %v546 = vand.u32 %v427, 4294901760
        %v547 = vsub.f32 %v427, %v546
        %v548 = vand.u32 %v547, 4294901760
        %v549 = vsub.f32 %v547, %v548
        %v550 = vand.u32 %v549, 4294901760
        %551 = vmatpush.msra.mxu0 %v550
        %v552 = vand.u32 %v426, 4294901760
        %v553 = vsub.f32 %v426, %v552
        %v554 = vand.u32 %v553, 4294901760
        %v555 = vsub.f32 %v553, %v554
        %v556 = vand.u32 %v555, 4294901760
        %557 = vmatpush.msra.mxu0 %v556
        %v558 = vand.u32 %v425, 4294901760
        %v559 = vsub.f32 %v425, %v558
        %v560 = vand.u32 %v559, 4294901760
        %v561 = vsub.f32 %v559, %v560
        %v562 = vand.u32 %v561, 4294901760
        %563 = vmatpush.msra.mxu0 %v562
        %v564 = vand.u32 %v424, 4294901760
        %v565 = vsub.f32 %v424, %v564
        %v566 = vand.u32 %v565, 4294901760
        %v567 = vsub.f32 %v565, %v566
        %v568 = vand.u32 %v567, 4294901760
        %569 = vmatpush.msra.mxu0 %v568
        %v570 = vand.u32 %v423, 4294901760
        %v571 = vsub.f32 %v423, %v570
        %v572 = vand.u32 %v571, 4294901760
        %v573 = vsub.f32 %v571, %v572
        %v574 = vand.u32 %v573, 4294901760
        %575 = vmatpush.msra.mxu0 %v574
        %v576 = vand.u32 %v422, 4294901760
        %v577 = vsub.f32 %v422, %v576
        %v578 = vand.u32 %v577, 4294901760
        %v579 = vsub.f32 %v577, %v578
        %v580 = vand.u32 %v579, 4294901760
        %581 = vmatpush.msra.mxu0 %v580
        %v582 = vand.u32 %v421, 4294901760
        %v583 = vsub.f32 %v421, %v582
        %v584 = vand.u32 %v583, 4294901760
        %v585 = vsub.f32 %v583, %v584
        %v586 = vand.u32 %v585, 4294901760
        %587 = vmatpush.msra.mxu0 %v586
        %v588 = vand.u32 %v420, 4294901760
        %v589 = vsub.f32 %v420, %v588
        %v590 = vand.u32 %v589, 4294901760
        %v591 = vsub.f32 %v589, %v590
        %v592 = vand.u32 %v591, 4294901760
        %593 = vmatpush.msra.mxu0 %v592
        %v594 = vand.u32 %v419, 4294901760
        %v595 = vsub.f32 %v419, %v594
        %v596 = vand.u32 %v595, 4294901760
        %v597 = vsub.f32 %v595, %v596
        %v598 = vand.u32 %v597, 4294901760
        %599 = vmatpush.msra.mxu0 %v598
        %v600 = vand.u32 %v418, 4294901760
        %v601 = vsub.f32 %v418, %v600
        %v602 = vand.u32 %v601, 4294901760
        %v603 = vsub.f32 %v601, %v602
        %v604 = vand.u32 %v603, 4294901760
        %605 = vmatpush.msra.mxu0 %v604
        %v606 = vand.u32 %v417, 4294901760
        %v607 = vsub.f32 %v417, %v606
        %v608 = vand.u32 %v607, 4294901760
        %v609 = vsub.f32 %v607, %v608
        %v610 = vand.u32 %v609, 4294901760
        %611 = vmatpush.msra.mxu0 %v610
        %v612 = vand.u32 %v416, 4294901760
        %v613 = vsub.f32 %v416, %v612
        %v614 = vand.u32 %v613, 4294901760
        %v615 = vsub.f32 %v613, %v614
        %v616 = vand.u32 %v615, 4294901760
        %617 = vmatpush.msra.mxu0 %v616
        %v618 = vand.u32 %v415, 4294901760
        %v619 = vsub.f32 %v415, %v618
        %v620 = vand.u32 %v619, 4294901760
        %v621 = vsub.f32 %v619, %v620
        %v622 = vand.u32 %v621, 4294901760
        %623 = vmatpush.msra.mxu0 %v622
        %v624 = vand.u32 %v407, 4294901760
        %625 = vmatmul.f32.gmra.mxu0 %v624
        %v626 = vpop.f32.mrf.mxu0
        %v627 = vadd.f32 %v470, %v626
        %v628 = vand.u32 %v408, 4294901760
        %629 = vmatmul.f32.gmra.mxu0 %v628
        %v630 = vpop.f32.mrf.mxu0
        %v631 = vadd.f32 %v478, %v630
        %v632 = vand.u32 %v409, 4294901760
        %633 = vmatmul.f32.gmra.mxu0 %v632
        %v634 = vpop.f32.mrf.mxu0
        %v635 = vadd.f32 %v486, %v634
        %v636 = vand.u32 %v410, 4294901760
        %637 = vmatmul.f32.gmra.mxu0 %v636
        %v638 = vpop.f32.mrf.mxu0
        %v639 = vadd.f32 %v494, %v638
        %v640 = vand.u32 %v411, 4294901760
        %641 = vmatmul.f32.gmra.mxu0 %v640
        %v642 = vpop.f32.mrf.mxu0
        %v643 = vadd.f32 %v502, %v642
        %v644 = vand.u32 %v412, 4294901760
        %645 = vmatmul.f32.gmra.mxu0 %v644
        %v646 = vpop.f32.mrf.mxu0
        %v647 = vadd.f32 %v510, %v646
        %v648 = vand.u32 %v413, 4294901760
        %649 = vmatmul.f32.gmra.mxu0 %v648
        %v650 = vpop.f32.mrf.mxu0
        %v651 = vadd.f32 %v518, %v650
        %v652 = vand.u32 %v414, 4294901760
        %653 = vmatmul.f32.gmra.mxu0 %v652
        %v654 = vpop.f32.mrf.mxu0
        %v655 = vadd.f32 %v526, %v654
        %656 = vdwg.mxu0
        %v657 = vand.u32 %v430, 4294901760
        %v658 = vsub.f32 %v430, %v657
        %659 = vmatpush.msra.mxu0 %v658
        %v660 = vand.u32 %v429, 4294901760
        %v661 = vsub.f32 %v429, %v660
        %662 = vmatpush.msra.mxu0 %v661
        %v663 = vand.u32 %v428, 4294901760
        %v664 = vsub.f32 %v428, %v663
        %665 = vmatpush.msra.mxu0 %v664
        %v666 = vand.u32 %v427, 4294901760
        %v667 = vsub.f32 %v427, %v666
        %668 = vmatpush.msra.mxu0 %v667
        %v669 = vand.u32 %v426, 4294901760
        %v670 = vsub.f32 %v426, %v669
        %671 = vmatpush.msra.mxu0 %v670
        %v672 = vand.u32 %v425, 4294901760
        %v673 = vsub.f32 %v425, %v672
        %674 = vmatpush.msra.mxu0 %v673
        %v675 = vand.u32 %v424, 4294901760
        %v676 = vsub.f32 %v424, %v675
        %677 = vmatpush.msra.mxu0 %v676
        %v678 = vand.u32 %v423, 4294901760
        %v679 = vsub.f32 %v423, %v678
        %680 = vmatpush.msra.mxu0 %v679
        %v681 = vand.u32 %v422, 4294901760
        %v682 = vsub.f32 %v422, %v681
        %683 = vmatpush.msra.mxu0 %v682
        %v684 = vand.u32 %v421, 4294901760
        %v685 = vsub.f32 %v421, %v684
        %686 = vmatpush.msra.mxu0 %v685
        %v687 = vand.u32 %v420, 4294901760
        %v688 = vsub.f32 %v420, %v687
        %689 = vmatpush.msra.mxu0 %v688
        %v690 = vand.u32 %v419, 4294901760
        %v691 = vsub.f32 %v419, %v690
        %692 = vmatpush.msra.mxu0 %v691
        %v693 = vand.u32 %v418, 4294901760
        %v694 = vsub.f32 %v418, %v693
        %695 = vmatpush.msra.mxu0 %v694
        %v696 = vand.u32 %v417, 4294901760
        %v697 = vsub.f32 %v417, %v696
        %698 = vmatpush.msra.mxu0 %v697
        %v699 = vand.u32 %v416, 4294901760
        %v700 = vsub.f32 %v416, %v699
        %701 = vmatpush.msra.mxu0 %v700
        %v702 = vand.u32 %v415, 4294901760
        %v703 = vsub.f32 %v415, %v702
        %704 = vmatpush.msra.mxu0 %v703
        %v705 = vand.u32 %v407, 4294901760
        %v706 = vsub.f32 %v407, %v705
        %707 = vmatmul.f32.gmra.mxu0 %v706
        %v708 = vpop.f32.mrf.mxu0
        %v709 = vadd.f32 %v627, %v708
        %v710 = vand.u32 %v408, 4294901760
        %v711 = vsub.f32 %v408, %v710
        %712 = vmatmul.f32.gmra.mxu0 %v711
        %v713 = vpop.f32.mrf.mxu0
        %v714 = vadd.f32 %v631, %v713
        %v715 = vand.u32 %v409, 4294901760
        %v716 = vsub.f32 %v409, %v715
        %717 = vmatmul.f32.gmra.mxu0 %v716
        %v718 = vpop.f32.mrf.mxu0
        %v719 = vadd.f32 %v635, %v718
        %v720 = vand.u32 %v410, 4294901760
        %v721 = vsub.f32 %v410, %v720
        %722 = vmatmul.f32.gmra.mxu0 %v721
        %v723 = vpop.f32.mrf.mxu0
        %v724 = vadd.f32 %v639, %v723
        %v725 = vand.u32 %v411, 4294901760
        %v726 = vsub.f32 %v411, %v725
        %727 = vmatmul.f32.gmra.mxu0 %v726
        %v728 = vpop.f32.mrf.mxu0
        %v729 = vadd.f32 %v643, %v728
        %v730 = vand.u32 %v412, 4294901760
        %v731 = vsub.f32 %v412, %v730
        %732 = vmatmul.f32.gmra.mxu0 %v731
        %v733 = vpop.f32.mrf.mxu0
        %v734 = vadd.f32 %v647, %v733
        %v735 = vand.u32 %v413, 4294901760
        %v736 = vsub.f32 %v413, %v735
        %737 = vmatmul.f32.gmra.mxu0 %v736
        %v738 = vpop.f32.mrf.mxu0
        %v739 = vadd.f32 %v651, %v738
        %v740 = vand.u32 %v414, 4294901760
        %v741 = vsub.f32 %v414, %v740
        %742 = vmatmul.f32.gmra.mxu0 %v741
        %v743 = vpop.f32.mrf.mxu0
        %v744 = vadd.f32 %v655, %v743
        %745 = vdwg.mxu0
        %v746 = vand.u32 %v430, 4294901760
        %747 = vmatpush.msra.mxu0 %v746
        %v748 = vand.u32 %v429, 4294901760
        %749 = vmatpush.msra.mxu0 %v748
        %v750 = vand.u32 %v428, 4294901760
        %751 = vmatpush.msra.mxu0 %v750
        %v752 = vand.u32 %v427, 4294901760
        %753 = vmatpush.msra.mxu0 %v752
        %v754 = vand.u32 %v426, 4294901760
        %755 = vmatpush.msra.mxu0 %v754
        %v756 = vand.u32 %v425, 4294901760
        %757 = vmatpush.msra.mxu0 %v756
        %v758 = vand.u32 %v424, 4294901760
        %759 = vmatpush.msra.mxu0 %v758
        %v760 = vand.u32 %v423, 4294901760
        %761 = vmatpush.msra.mxu0 %v760
        %v762 = vand.u32 %v422, 4294901760
        %763 = vmatpush.msra.mxu0 %v762
        %v764 = vand.u32 %v421, 4294901760
        %765 = vmatpush.msra.mxu0 %v764
        %v766 = vand.u32 %v420, 4294901760
        %767 = vmatpush.msra.mxu0 %v766
        %v768 = vand.u32 %v419, 4294901760
        %769 = vmatpush.msra.mxu0 %v768
        %v770 = vand.u32 %v418, 4294901760
        %771 = vmatpush.msra.mxu0 %v770
        %v772 = vand.u32 %v417, 4294901760
        %773 = vmatpush.msra.mxu0 %v772
        %v774 = vand.u32 %v416, 4294901760
        %775 = vmatpush.msra.mxu0 %v774
        %v776 = vand.u32 %v415, 4294901760
        %777 = vmatpush.msra.mxu0 %v776
        %v778 = vand.u32 %v407, 4294901760
        %v779 = vsub.f32 %v407, %v778
        %v780 = vand.u32 %v779, 4294901760
        %781 = vmatmul.f32.gmra.mxu0 %v780
        %v782 = vpop.f32.mrf.mxu0
        %v783 = vadd.f32 %v709, %v782
        %v784 = vand.u32 %v408, 4294901760
        %v785 = vsub.f32 %v408, %v784
        %v786 = vand.u32 %v785, 4294901760
        %787 = vmatmul.f32.gmra.mxu0 %v786
        %v788 = vpop.f32.mrf.mxu0
        %v789 = vadd.f32 %v714, %v788
        %v790 = vand.u32 %v409, 4294901760
        %v791 = vsub.f32 %v409, %v790
        %v792 = vand.u32 %v791, 4294901760
        %793 = vmatmul.f32.gmra.mxu0 %v792
        %v794 = vpop.f32.mrf.mxu0
        %v795 = vadd.f32 %v719, %v794
        %v796 = vand.u32 %v410, 4294901760
        %v797 = vsub.f32 %v410, %v796
        %v798 = vand.u32 %v797, 4294901760
        %799 = vmatmul.f32.gmra.mxu0 %v798
        %v800 = vpop.f32.mrf.mxu0
        %v801 = vadd.f32 %v724, %v800
        %v802 = vand.u32 %v411, 4294901760
        %v803 = vsub.f32 %v411, %v802
        %v804 = vand.u32 %v803, 4294901760
        %805 = vmatmul.f32.gmra.mxu0 %v804
        %v806 = vpop.f32.mrf.mxu0
        %v807 = vadd.f32 %v729, %v806
        %v808 = vand.u32 %v412, 4294901760
        %v809 = vsub.f32 %v412, %v808
        %v810 = vand.u32 %v809, 4294901760
        %811 = vmatmul.f32.gmra.mxu0 %v810
        %v812 = vpop.f32.mrf.mxu0
        %v813 = vadd.f32 %v734, %v812
        %v814 = vand.u32 %v413, 4294901760
        %v815 = vsub.f32 %v413, %v814
        %v816 = vand.u32 %v815, 4294901760
        %817 = vmatmul.f32.gmra.mxu0 %v816
        %v818 = vpop.f32.mrf.mxu0
        %v819 = vadd.f32 %v739, %v818
        %v820 = vand.u32 %v414, 4294901760
        %v821 = vsub.f32 %v414, %v820
        %v822 = vand.u32 %v821, 4294901760
        %823 = vmatmul.f32.gmra.mxu0 %v822
        %v824 = vpop.f32.mrf.mxu0
        %v825 = vadd.f32 %v744, %v824
        %826 = vdwg.mxu0
        %v827 = vand.u32 %v430, 4294901760
        %v828 = vsub.f32 %v430, %v827
        %v829 = vand.u32 %v828, 4294901760
        %830 = vmatpush.msra.mxu0 %v829
        %v831 = vand.u32 %v429, 4294901760
        %v832 = vsub.f32 %v429, %v831
        %v833 = vand.u32 %v832, 4294901760
        %834 = vmatpush.msra.mxu0 %v833
        %v835 = vand.u32 %v428, 4294901760
        %v836 = vsub.f32 %v428, %v835
        %v837 = vand.u32 %v836, 4294901760
        %838 = vmatpush.msra.mxu0 %v837
        %v839 = vand.u32 %v427, 4294901760
        %v840 = vsub.f32 %v427, %v839
        %v841 = vand.u32 %v840, 4294901760
        %842 = vmatpush.msra.mxu0 %v841
        %v843 = vand.u32 %v426, 4294901760
        %v844 = vsub.f32 %v426, %v843
        %v845 = vand.u32 %v844, 4294901760
        %846 = vmatpush.msra.mxu0 %v845
        %v847 = vand.u32 %v425, 4294901760
        %v848 = vsub.f32 %v425, %v847
        %v849 = vand.u32 %v848, 4294901760
        %850 = vmatpush.msra.mxu0 %v849
        %v851 = vand.u32 %v424, 4294901760
        %v852 = vsub.f32 %v424, %v851
        %v853 = vand.u32 %v852, 4294901760
        %854 = vmatpush.msra.mxu0 %v853
        %v855 = vand.u32 %v423, 4294901760
        %v856 = vsub.f32 %v423, %v855
        %v857 = vand.u32 %v856, 4294901760
        %858 = vmatpush.msra.mxu0 %v857
        %v859 = vand.u32 %v422, 4294901760
        %v860 = vsub.f32 %v422, %v859
        %v861 = vand.u32 %v860, 4294901760
        %862 = vmatpush.msra.mxu0 %v861
        %v863 = vand.u32 %v421, 4294901760
        %v864 = vsub.f32 %v421, %v863
        %v865 = vand.u32 %v864, 4294901760
        %866 = vmatpush.msra.mxu0 %v865
        %v867 = vand.u32 %v420, 4294901760
        %v868 = vsub.f32 %v420, %v867
        %v869 = vand.u32 %v868, 4294901760
        %870 = vmatpush.msra.mxu0 %v869
        %v871 = vand.u32 %v419, 4294901760
        %v872 = vsub.f32 %v419, %v871
        %v873 = vand.u32 %v872, 4294901760
        %874 = vmatpush.msra.mxu0 %v873
        %v875 = vand.u32 %v418, 4294901760
        %v876 = vsub.f32 %v418, %v875
        %v877 = vand.u32 %v876, 4294901760
        %878 = vmatpush.msra.mxu0 %v877
        %v879 = vand.u32 %v417, 4294901760
        %v880 = vsub.f32 %v417, %v879
        %v881 = vand.u32 %v880, 4294901760
        %882 = vmatpush.msra.mxu0 %v881
        %v883 = vand.u32 %v416, 4294901760
        %v884 = vsub.f32 %v416, %v883
        %v885 = vand.u32 %v884, 4294901760
        %886 = vmatpush.msra.mxu0 %v885
        %v887 = vand.u32 %v415, 4294901760
        %v888 = vsub.f32 %v415, %v887
        %v889 = vand.u32 %v888, 4294901760
        %890 = vmatpush.msra.mxu0 %v889
        %v891 = vand.u32 %v407, 4294901760
        %892 = vmatmul.f32.gmra.mxu0 %v891
        %v893 = vpop.f32.mrf.mxu0
        %v894 = vadd.f32 %v783, %v893
        %v895 = vand.u32 %v408, 4294901760
        %896 = vmatmul.f32.gmra.mxu0 %v895
        %v897 = vpop.f32.mrf.mxu0
        %v898 = vadd.f32 %v789, %v897
        %v899 = vand.u32 %v409, 4294901760
        %900 = vmatmul.f32.gmra.mxu0 %v899
        %v901 = vpop.f32.mrf.mxu0
        %v902 = vadd.f32 %v795, %v901
        %v903 = vand.u32 %v410, 4294901760
        %904 = vmatmul.f32.gmra.mxu0 %v903
        %v905 = vpop.f32.mrf.mxu0
        %v906 = vadd.f32 %v801, %v905
        %v907 = vand.u32 %v411, 4294901760
        %908 = vmatmul.f32.gmra.mxu0 %v907
        %v909 = vpop.f32.mrf.mxu0
        %v910 = vadd.f32 %v807, %v909
        %v911 = vand.u32 %v412, 4294901760
        %912 = vmatmul.f32.gmra.mxu0 %v911
        %v913 = vpop.f32.mrf.mxu0
        %v914 = vadd.f32 %v813, %v913
        %v915 = vand.u32 %v413, 4294901760
        %916 = vmatmul.f32.gmra.mxu0 %v915
        %v917 = vpop.f32.mrf.mxu0
        %v918 = vadd.f32 %v819, %v917
        %v919 = vand.u32 %v414, 4294901760
        %920 = vmatmul.f32.gmra.mxu0 %v919
        %v921 = vpop.f32.mrf.mxu0
        %v922 = vadd.f32 %v825, %v921
        %923 = vdwg.mxu0
        %v924 = vand.u32 %v430, 4294901760
        %925 = vmatpush.msra.mxu0 %v924
        %v926 = vand.u32 %v429, 4294901760
        %927 = vmatpush.msra.mxu0 %v926
        %v928 = vand.u32 %v428, 4294901760
        %929 = vmatpush.msra.mxu0 %v928
        %v930 = vand.u32 %v427, 4294901760
        %931 = vmatpush.msra.mxu0 %v930
        %v932 = vand.u32 %v426, 4294901760
        %933 = vmatpush.msra.mxu0 %v932
        %v934 = vand.u32 %v425, 4294901760
        %935 = vmatpush.msra.mxu0 %v934
        %v936 = vand.u32 %v424, 4294901760
        %937 = vmatpush.msra.mxu0 %v936
        %v938 = vand.u32 %v423, 4294901760
        %939 = vmatpush.msra.mxu0 %v938
        %v940 = vand.u32 %v422, 4294901760
        %941 = vmatpush.msra.mxu0 %v940
        %v942 = vand.u32 %v421, 4294901760
        %943 = vmatpush.msra.mxu0 %v942
        %v944 = vand.u32 %v420, 4294901760
        %945 = vmatpush.msra.mxu0 %v944
        %v946 = vand.u32 %v419, 4294901760
        %947 = vmatpush.msra.mxu0 %v946
        %v948 = vand.u32 %v418, 4294901760
        %949 = vmatpush.msra.mxu0 %v948
        %v950 = vand.u32 %v417, 4294901760
        %951 = vmatpush.msra.mxu0 %v950
        %v952 = vand.u32 %v416, 4294901760
        %953 = vmatpush.msra.mxu0 %v952
        %v954 = vand.u32 %v415, 4294901760
        %955 = vmatpush.msra.mxu0 %v954
        %v956 = vand.u32 %v407, 4294901760
        %957 = vmatmul.f32.gmra.mxu0 %v956
        %v958 = vpop.f32.mrf.mxu0
        %v959 = vadd.f32 %v894, %v958
        %v960 = vand.u32 %v408, 4294901760
        %961 = vmatmul.f32.gmra.mxu0 %v960
        %v962 = vpop.f32.mrf.mxu0
        %v963 = vadd.f32 %v898, %v962
        %v964 = vand.u32 %v409, 4294901760
        %965 = vmatmul.f32.gmra.mxu0 %v964
        %v966 = vpop.f32.mrf.mxu0
        %v967 = vadd.f32 %v902, %v966
        %v968 = vand.u32 %v410, 4294901760
        %969 = vmatmul.f32.gmra.mxu0 %v968
        %v970 = vpop.f32.mrf.mxu0
        %v971 = vadd.f32 %v906, %v970
        %v972 = vand.u32 %v411, 4294901760
        %973 = vmatmul.f32.gmra.mxu0 %v972
        %v974 = vpop.f32.mrf.mxu0
        %v975 = vadd.f32 %v910, %v974
        %v976 = vand.u32 %v412, 4294901760
        %977 = vmatmul.f32.gmra.mxu0 %v976
        %v978 = vpop.f32.mrf.mxu0
        %v979 = vadd.f32 %v914, %v978
        %v980 = vand.u32 %v413, 4294901760
        %981 = vmatmul.f32.gmra.mxu0 %v980
        %v982 = vpop.f32.mrf.mxu0
        %v983 = vadd.f32 %v918, %v982
        %v984 = vand.u32 %v414, 4294901760
        %985 = vmatmul.f32.gmra.mxu0 %v984
        %v986 = vpop.f32.mrf.mxu0
        %v987 = vadd.f32 %v922, %v986
        %988 = vdwg.mxu0
        %v989 = vadd.f32 %v399, %v959
        %v990 = vadd.f32 %v400, %v963
        %v991 = vadd.f32 %v401, %v967
        %v992 = vadd.f32 %v402, %v971
        %v993 = vadd.f32 %v403, %v975
        %v994 = vadd.f32 %v404, %v979
        %v995 = vadd.f32 %v405, %v983
        %v996 = vadd.f32 %v406, %v987
        %vm997 = vcmask 31744
        %998 = vst.msk [vmem:[#allocation2] sm:$0xff] %vm997, %v989
        %999 = vst.msk [vmem:[#allocation2 + $0x8] sm:$0xff] %vm997, %v990
        %1000 = vst.msk [vmem:[#allocation2 + $0x10] sm:$0xff] %vm997, %v991
        %1001 = vst.msk [vmem:[#allocation2 + $0x18] sm:$0xff] %vm997, %v992
        %1002 = vst.msk [vmem:[#allocation2 + $0x20] sm:$0xff] %vm997, %v993
        %1003 = vst.msk [vmem:[#allocation2 + $0x28] sm:$0xff] %vm997, %v994
        %1004 = vst.msk [vmem:[#allocation2 + $0x30] sm:$0xff] %vm997, %v995
        %1005 = vst.msk [vmem:[#allocation2 + $0x38] sm:$0xff] %vm997, %v996
        %p1006 = scmp.eq.s32.totalorder %s30, 1
        // Predicated region
        $region61: #{shglnn_forward.6} parent=43 // pred_check
          %p1007 = pneg %p1006
        $region62: #{shglnn_forward.6} parent=43 // pred_check_branch
          %1009 = sbr.rel (%p1007) target = $region64
        $region63: #{shglnn_forward.6} parent=43 // pred_region
          %v1010 = vld [vmem:[#allocation2] sm:$0xff]
          %v1011 = vld [vmem:[#allocation2 + $0x8] sm:$0xff]
          %v1012 = vld [vmem:[#allocation2 + $0x10] sm:$0xff]
          %v1013 = vld [vmem:[#allocation2 + $0x18] sm:$0xff]
          %v1014 = vld [vmem:[#allocation2 + $0x20] sm:$0xff]
          %v1015 = vld [vmem:[#allocation2 + $0x28] sm:$0xff]
          %v1016 = vld [vmem:[#allocation2 + $0x30] sm:$0xff]
          %v1017 = vld [vmem:[#allocation2 + $0x38] sm:$0xff]
          %v1018 = vld [vmem:[#allocation6] sm:$0xf]
          %v1019 = vld [vmem:[#allocation8] sm:$0x1]
          %v1021 = vperm.slane %v1019, 0
          %v1024 = vsel %vm997, %v1010, 0
          %v1027 = vsel %vm997, %v1011, 0
          %v1030 = vsel %vm997, %v1012, 0
          %v1033 = vsel %vm997, %v1013, 0
          %v1036 = vsel %vm997, %v1014, 0
          %v1039 = vsel %vm997, %v1015, 0
          %v1042 = vsel %vm997, %v1016, 0
          %v1045 = vsel %vm997, %v1017, 0
          %vm1047 = vcmask 1043456
          %v1049 = vsel %vm1047, %v1018, 0
          %1051 = vmatpush.msra.mxu0 0.0
          %1052 = vmatpush.msra.mxu0 0.0
          %1053 = vmatpush.msra.mxu0 0.0
          %1054 = vmatpush.msra.mxu0 0.0
          %1055 = vmatpush.msra.mxu0 0.0
          %1056 = vmatpush.msra.mxu0 0.0
          %1057 = vmatpush.msra.mxu0 0.0
          %1058 = vmatpush.msra.mxu0 0.0
          %1059 = vmatpush.msra.mxu0 0.0
          %1060 = vmatpush.msra.mxu0 0.0
          %1061 = vmatpush.msra.mxu0 0.0
          %1062 = vmatpush.msra.mxu0 0.0
          %1063 = vmatpush.msra.mxu0 0.0
          %1064 = vmatpush.msra.mxu0 0.0
          %1065 = vmatpush.msra.mxu0 0.0
          %v1066 = vand.u32 %v1049, 4294901760
          %1067 = vmatpush.msra.mxu0 %v1066
          %v1068 = vand.u32 %v1024, 4294901760
          %v1069 = vsub.f32 %v1024, %v1068
          %v1070 = vand.u32 %v1069, 4294901760
          %v1071 = vsub.f32 %v1069, %v1070
          %v1072 = vand.u32 %v1071, 4294901760
          %1073 = vmatmul.f32.gmra.mxu0 %v1072
          %v1074 = vpop.f32.mrf.mxu0
          %v1075 = vadd.f32 %v1021, %v1074
          %v1076 = vand.u32 %v1027, 4294901760
          %v1077 = vsub.f32 %v1027, %v1076
          %v1078 = vand.u32 %v1077, 4294901760
          %v1079 = vsub.f32 %v1077, %v1078
          %v1080 = vand.u32 %v1079, 4294901760
          %1081 = vmatmul.f32.gmra.mxu0 %v1080
          %v1082 = vpop.f32.mrf.mxu0
          %v1083 = vadd.f32 %v1021, %v1082
          %v1084 = vand.u32 %v1030, 4294901760
          %v1085 = vsub.f32 %v1030, %v1084
          %v1086 = vand.u32 %v1085, 4294901760
          %v1087 = vsub.f32 %v1085, %v1086
          %v1088 = vand.u32 %v1087, 4294901760
          %1089 = vmatmul.f32.gmra.mxu0 %v1088
          %v1090 = vpop.f32.mrf.mxu0
          %v1091 = vadd.f32 %v1021, %v1090
          %v1092 = vand.u32 %v1033, 4294901760
          %v1093 = vsub.f32 %v1033, %v1092
          %v1094 = vand.u32 %v1093, 4294901760
          %v1095 = vsub.f32 %v1093, %v1094
          %v1096 = vand.u32 %v1095, 4294901760
          %1097 = vmatmul.f32.gmra.mxu0 %v1096
          %v1098 = vpop.f32.mrf.mxu0
          %v1099 = vadd.f32 %v1021, %v1098
          %v1100 = vand.u32 %v1036, 4294901760
          %v1101 = vsub.f32 %v1036, %v1100
          %v1102 = vand.u32 %v1101, 4294901760
          %v1103 = vsub.f32 %v1101, %v1102
          %v1104 = vand.u32 %v1103, 4294901760
          %1105 = vmatmul.f32.gmra.mxu0 %v1104
          %v1106 = vpop.f32.mrf.mxu0
          %v1107 = vadd.f32 %v1021, %v1106
          %v1108 = vand.u32 %v1039, 4294901760
          %v1109 = vsub.f32 %v1039, %v1108
          %v1110 = vand.u32 %v1109, 4294901760
          %v1111 = vsub.f32 %v1109, %v1110
          %v1112 = vand.u32 %v1111, 4294901760
          %1113 = vmatmul.f32.gmra.mxu0 %v1112
          %v1114 = vpop.f32.mrf.mxu0
          %v1115 = vadd.f32 %v1021, %v1114
          %v1116 = vand.u32 %v1042, 4294901760
          %v1117 = vsub.f32 %v1042, %v1116
          %v1118 = vand.u32 %v1117, 4294901760
          %v1119 = vsub.f32 %v1117, %v1118
          %v1120 = vand.u32 %v1119, 4294901760
          %1121 = vmatmul.f32.gmra.mxu0 %v1120
          %v1122 = vpop.f32.mrf.mxu0
          %v1123 = vadd.f32 %v1021, %v1122
          %v1124 = vand.u32 %v1045, 4294901760
          %v1125 = vsub.f32 %v1045, %v1124
          %v1126 = vand.u32 %v1125, 4294901760
          %v1127 = vsub.f32 %v1125, %v1126
          %v1128 = vand.u32 %v1127, 4294901760
          %1129 = vmatmul.f32.gmra.mxu0 %v1128
          %v1130 = vpop.f32.mrf.mxu0
          %v1131 = vadd.f32 %v1021, %v1130
          %1132 = vdwg.mxu0
          %1133 = vmatpush.msra.mxu0 0.0
          %1134 = vmatpush.msra.mxu0 0.0
          %1135 = vmatpush.msra.mxu0 0.0
          %1136 = vmatpush.msra.mxu0 0.0
          %1137 = vmatpush.msra.mxu0 0.0
          %1138 = vmatpush.msra.mxu0 0.0
          %1139 = vmatpush.msra.mxu0 0.0
          %1140 = vmatpush.msra.mxu0 0.0
          %1141 = vmatpush.msra.mxu0 0.0
          %1142 = vmatpush.msra.mxu0 0.0
          %1143 = vmatpush.msra.mxu0 0.0
          %1144 = vmatpush.msra.mxu0 0.0
          %1145 = vmatpush.msra.mxu0 0.0
          %1146 = vmatpush.msra.mxu0 0.0
          %1147 = vmatpush.msra.mxu0 0.0
          %v1148 = vand.u32 %v1049, 4294901760
          %v1149 = vsub.f32 %v1049, %v1148
          %v1150 = vand.u32 %v1149, 4294901760
          %v1151 = vsub.f32 %v1149, %v1150
          %v1152 = vand.u32 %v1151, 4294901760
          %1153 = vmatpush.msra.mxu0 %v1152
          %v1154 = vand.u32 %v1024, 4294901760
          %1155 = vmatmul.f32.gmra.mxu0 %v1154
          %v1156 = vpop.f32.mrf.mxu0
          %v1157 = vadd.f32 %v1075, %v1156
          %v1158 = vand.u32 %v1027, 4294901760
          %1159 = vmatmul.f32.gmra.mxu0 %v1158
          %v1160 = vpop.f32.mrf.mxu0
          %v1161 = vadd.f32 %v1083, %v1160
          %v1162 = vand.u32 %v1030, 4294901760
          %1163 = vmatmul.f32.gmra.mxu0 %v1162
          %v1164 = vpop.f32.mrf.mxu0
          %v1165 = vadd.f32 %v1091, %v1164
          %v1166 = vand.u32 %v1033, 4294901760
          %1167 = vmatmul.f32.gmra.mxu0 %v1166
          %v1168 = vpop.f32.mrf.mxu0
          %v1169 = vadd.f32 %v1099, %v1168
          %v1170 = vand.u32 %v1036, 4294901760
          %1171 = vmatmul.f32.gmra.mxu0 %v1170
          %v1172 = vpop.f32.mrf.mxu0
          %v1173 = vadd.f32 %v1107, %v1172
          %v1174 = vand.u32 %v1039, 4294901760
          %1175 = vmatmul.f32.gmra.mxu0 %v1174
          %v1176 = vpop.f32.mrf.mxu0
          %v1177 = vadd.f32 %v1115, %v1176
          %v1178 = vand.u32 %v1042, 4294901760
          %1179 = vmatmul.f32.gmra.mxu0 %v1178
          %v1180 = vpop.f32.mrf.mxu0
          %v1181 = vadd.f32 %v1123, %v1180
          %v1182 = vand.u32 %v1045, 4294901760
          %1183 = vmatmul.f32.gmra.mxu0 %v1182
          %v1184 = vpop.f32.mrf.mxu0
          %v1185 = vadd.f32 %v1131, %v1184
          %1186 = vdwg.mxu0
          %1187 = vmatpush.msra.mxu0 0.0
          %1188 = vmatpush.msra.mxu0 0.0
          %1189 = vmatpush.msra.mxu0 0.0
          %1190 = vmatpush.msra.mxu0 0.0
          %1191 = vmatpush.msra.mxu0 0.0
          %1192 = vmatpush.msra.mxu0 0.0
          %1193 = vmatpush.msra.mxu0 0.0
          %1194 = vmatpush.msra.mxu0 0.0
          %1195 = vmatpush.msra.mxu0 0.0
          %1196 = vmatpush.msra.mxu0 0.0
          %1197 = vmatpush.msra.mxu0 0.0
          %1198 = vmatpush.msra.mxu0 0.0
          %1199 = vmatpush.msra.mxu0 0.0
          %1200 = vmatpush.msra.mxu0 0.0
          %1201 = vmatpush.msra.mxu0 0.0
          %v1202 = vand.u32 %v1049, 4294901760
          %v1203 = vsub.f32 %v1049, %v1202
          %1204 = vmatpush.msra.mxu0 %v1203
          %v1205 = vand.u32 %v1024, 4294901760
          %v1206 = vsub.f32 %v1024, %v1205
          %1207 = vmatmul.f32.gmra.mxu0 %v1206
          %v1208 = vpop.f32.mrf.mxu0
          %v1209 = vadd.f32 %v1157, %v1208
          %v1210 = vand.u32 %v1027, 4294901760
          %v1211 = vsub.f32 %v1027, %v1210
          %1212 = vmatmul.f32.gmra.mxu0 %v1211
          %v1213 = vpop.f32.mrf.mxu0
          %v1214 = vadd.f32 %v1161, %v1213
          %v1215 = vand.u32 %v1030, 4294901760
          %v1216 = vsub.f32 %v1030, %v1215
          %1217 = vmatmul.f32.gmra.mxu0 %v1216
          %v1218 = vpop.f32.mrf.mxu0
          %v1219 = vadd.f32 %v1165, %v1218
          %v1220 = vand.u32 %v1033, 4294901760
          %v1221 = vsub.f32 %v1033, %v1220
          %1222 = vmatmul.f32.gmra.mxu0 %v1221
          %v1223 = vpop.f32.mrf.mxu0
          %v1224 = vadd.f32 %v1169, %v1223
          %v1225 = vand.u32 %v1036, 4294901760
          %v1226 = vsub.f32 %v1036, %v1225
          %1227 = vmatmul.f32.gmra.mxu0 %v1226
          %v1228 = vpop.f32.mrf.mxu0
          %v1229 = vadd.f32 %v1173, %v1228
          %v1230 = vand.u32 %v1039, 4294901760
          %v1231 = vsub.f32 %v1039, %v1230
          %1232 = vmatmul.f32.gmra.mxu0 %v1231
          %v1233 = vpop.f32.mrf.mxu0
          %v1234 = vadd.f32 %v1177, %v1233
          %v1235 = vand.u32 %v1042, 4294901760
          %v1236 = vsub.f32 %v1042, %v1235
          %1237 = vmatmul.f32.gmra.mxu0 %v1236
          %v1238 = vpop.f32.mrf.mxu0
          %v1239 = vadd.f32 %v1181, %v1238
          %v1240 = vand.u32 %v1045, 4294901760
          %v1241 = vsub.f32 %v1045, %v1240
          %1242 = vmatmul.f32.gmra.mxu0 %v1241
          %v1243 = vpop.f32.mrf.mxu0
          %v1244 = vadd.f32 %v1185, %v1243
          %1245 = vdwg.mxu0
          %1246 = vmatpush.msra.mxu0 0.0
          %1247 = vmatpush.msra.mxu0 0.0
          %1248 = vmatpush.msra.mxu0 0.0
          %1249 = vmatpush.msra.mxu0 0.0
          %1250 = vmatpush.msra.mxu0 0.0
          %1251 = vmatpush.msra.mxu0 0.0
          %1252 = vmatpush.msra.mxu0 0.0
          %1253 = vmatpush.msra.mxu0 0.0
          %1254 = vmatpush.msra.mxu0 0.0
          %1255 = vmatpush.msra.mxu0 0.0
          %1256 = vmatpush.msra.mxu0 0.0
          %1257 = vmatpush.msra.mxu0 0.0
          %1258 = vmatpush.msra.mxu0 0.0
          %1259 = vmatpush.msra.mxu0 0.0
          %1260 = vmatpush.msra.mxu0 0.0
          %v1261 = vand.u32 %v1049, 4294901760
          %1262 = vmatpush.msra.mxu0 %v1261
          %v1263 = vand.u32 %v1024, 4294901760
          %v1264 = vsub.f32 %v1024, %v1263
          %v1265 = vand.u32 %v1264, 4294901760
          %1266 = vmatmul.f32.gmra.mxu0 %v1265
          %v1267 = vpop.f32.mrf.mxu0
          %v1268 = vadd.f32 %v1209, %v1267
          %v1269 = vand.u32 %v1027, 4294901760
          %v1270 = vsub.f32 %v1027, %v1269
          %v1271 = vand.u32 %v1270, 4294901760
          %1272 = vmatmul.f32.gmra.mxu0 %v1271
          %v1273 = vpop.f32.mrf.mxu0
          %v1274 = vadd.f32 %v1214, %v1273
          %v1275 = vand.u32 %v1030, 4294901760
          %v1276 = vsub.f32 %v1030, %v1275
          %v1277 = vand.u32 %v1276, 4294901760
          %1278 = vmatmul.f32.gmra.mxu0 %v1277
          %v1279 = vpop.f32.mrf.mxu0
          %v1280 = vadd.f32 %v1219, %v1279
          %v1281 = vand.u32 %v1033, 4294901760
          %v1282 = vsub.f32 %v1033, %v1281
          %v1283 = vand.u32 %v1282, 4294901760
          %1284 = vmatmul.f32.gmra.mxu0 %v1283
          %v1285 = vpop.f32.mrf.mxu0
          %v1286 = vadd.f32 %v1224, %v1285
          %v1287 = vand.u32 %v1036, 4294901760
          %v1288 = vsub.f32 %v1036, %v1287
          %v1289 = vand.u32 %v1288, 4294901760
          %1290 = vmatmul.f32.gmra.mxu0 %v1289
          %v1291 = vpop.f32.mrf.mxu0
          %v1292 = vadd.f32 %v1229, %v1291
          %v1293 = vand.u32 %v1039, 4294901760
          %v1294 = vsub.f32 %v1039, %v1293
          %v1295 = vand.u32 %v1294, 4294901760
          %1296 = vmatmul.f32.gmra.mxu0 %v1295
          %v1297 = vpop.f32.mrf.mxu0
          %v1298 = vadd.f32 %v1234, %v1297
          %v1299 = vand.u32 %v1042, 4294901760
          %v1300 = vsub.f32 %v1042, %v1299
          %v1301 = vand.u32 %v1300, 4294901760
          %1302 = vmatmul.f32.gmra.mxu0 %v1301
          %v1303 = vpop.f32.mrf.mxu0
          %v1304 = vadd.f32 %v1239, %v1303
          %v1305 = vand.u32 %v1045, 4294901760
          %v1306 = vsub.f32 %v1045, %v1305
          %v1307 = vand.u32 %v1306, 4294901760
          %1308 = vmatmul.f32.gmra.mxu0 %v1307
          %v1309 = vpop.f32.mrf.mxu0
          %v1310 = vadd.f32 %v1244, %v1309
          %1311 = vdwg.mxu0
          %1312 = vmatpush.msra.mxu0 0.0
          %1313 = vmatpush.msra.mxu0 0.0
          %1314 = vmatpush.msra.mxu0 0.0
          %1315 = vmatpush.msra.mxu0 0.0
          %1316 = vmatpush.msra.mxu0 0.0
          %1317 = vmatpush.msra.mxu0 0.0
          %1318 = vmatpush.msra.mxu0 0.0
          %1319 = vmatpush.msra.mxu0 0.0
          %1320 = vmatpush.msra.mxu0 0.0
          %1321 = vmatpush.msra.mxu0 0.0
          %1322 = vmatpush.msra.mxu0 0.0
          %1323 = vmatpush.msra.mxu0 0.0
          %1324 = vmatpush.msra.mxu0 0.0
          %1325 = vmatpush.msra.mxu0 0.0
          %1326 = vmatpush.msra.mxu0 0.0
          %v1327 = vand.u32 %v1049, 4294901760
          %v1328 = vsub.f32 %v1049, %v1327
          %v1329 = vand.u32 %v1328, 4294901760
          %1330 = vmatpush.msra.mxu0 %v1329
          %v1331 = vand.u32 %v1024, 4294901760
          %1332 = vmatmul.f32.gmra.mxu0 %v1331
          %v1333 = vpop.f32.mrf.mxu0
          %v1334 = vadd.f32 %v1268, %v1333
          %v1335 = vand.u32 %v1027, 4294901760
          %1336 = vmatmul.f32.gmra.mxu0 %v1335
          %v1337 = vpop.f32.mrf.mxu0
          %v1338 = vadd.f32 %v1274, %v1337
          %v1339 = vand.u32 %v1030, 4294901760
          %1340 = vmatmul.f32.gmra.mxu0 %v1339
          %v1341 = vpop.f32.mrf.mxu0
          %v1342 = vadd.f32 %v1280, %v1341
          %v1343 = vand.u32 %v1033, 4294901760
          %1344 = vmatmul.f32.gmra.mxu0 %v1343
          %v1345 = vpop.f32.mrf.mxu0
          %v1346 = vadd.f32 %v1286, %v1345
          %v1347 = vand.u32 %v1036, 4294901760
          %1348 = vmatmul.f32.gmra.mxu0 %v1347
          %v1349 = vpop.f32.mrf.mxu0
          %v1350 = vadd.f32 %v1292, %v1349
          %v1351 = vand.u32 %v1039, 4294901760
          %1352 = vmatmul.f32.gmra.mxu0 %v1351
          %v1353 = vpop.f32.mrf.mxu0
          %v1354 = vadd.f32 %v1298, %v1353
          %v1355 = vand.u32 %v1042, 4294901760
          %1356 = vmatmul.f32.gmra.mxu0 %v1355
          %v1357 = vpop.f32.mrf.mxu0
          %v1358 = vadd.f32 %v1304, %v1357
          %v1359 = vand.u32 %v1045, 4294901760
          %1360 = vmatmul.f32.gmra.mxu0 %v1359
          %v1361 = vpop.f32.mrf.mxu0
          %v1362 = vadd.f32 %v1310, %v1361
          %1363 = vdwg.mxu0
          %1364 = vmatpush.msra.mxu0 0.0
          %1365 = vmatpush.msra.mxu0 0.0
          %1366 = vmatpush.msra.mxu0 0.0
          %1367 = vmatpush.msra.mxu0 0.0
          %1368 = vmatpush.msra.mxu0 0.0
          %1369 = vmatpush.msra.mxu0 0.0
          %1370 = vmatpush.msra.mxu0 0.0
          %1371 = vmatpush.msra.mxu0 0.0
          %1372 = vmatpush.msra.mxu0 0.0
          %1373 = vmatpush.msra.mxu0 0.0
          %1374 = vmatpush.msra.mxu0 0.0
          %1375 = vmatpush.msra.mxu0 0.0
          %1376 = vmatpush.msra.mxu0 0.0
          %1377 = vmatpush.msra.mxu0 0.0
          %1378 = vmatpush.msra.mxu0 0.0
          %v1379 = vand.u32 %v1049, 4294901760
          %1380 = vmatpush.msra.mxu0 %v1379
          %v1381 = vand.u32 %v1024, 4294901760
          %1382 = vmatmul.f32.gmra.mxu0 %v1381
          %v1383 = vpop.f32.mrf.mxu0
          %v1384 = vadd.f32 %v1334, %v1383
          %v1385 = vand.u32 %v1027, 4294901760
          %1386 = vmatmul.f32.gmra.mxu0 %v1385
          %v1387 = vpop.f32.mrf.mxu0
          %v1388 = vadd.f32 %v1338, %v1387
          %v1389 = vand.u32 %v1030, 4294901760
          %1390 = vmatmul.f32.gmra.mxu0 %v1389
          %v1391 = vpop.f32.mrf.mxu0
          %v1392 = vadd.f32 %v1342, %v1391
          %v1393 = vand.u32 %v1033, 4294901760
          %1394 = vmatmul.f32.gmra.mxu0 %v1393
          %v1395 = vpop.f32.mrf.mxu0
          %v1396 = vadd.f32 %v1346, %v1395
          %v1397 = vand.u32 %v1036, 4294901760
          %1398 = vmatmul.f32.gmra.mxu0 %v1397
          %v1399 = vpop.f32.mrf.mxu0
          %v1400 = vadd.f32 %v1350, %v1399
          %v1401 = vand.u32 %v1039, 4294901760
          %1402 = vmatmul.f32.gmra.mxu0 %v1401
          %v1403 = vpop.f32.mrf.mxu0
          %v1404 = vadd.f32 %v1354, %v1403
          %v1405 = vand.u32 %v1042, 4294901760
          %1406 = vmatmul.f32.gmra.mxu0 %v1405
          %v1407 = vpop.f32.mrf.mxu0
          %v1408 = vadd.f32 %v1358, %v1407
          %v1409 = vand.u32 %v1045, 4294901760
          %1410 = vmatmul.f32.gmra.mxu0 %v1409
          %v1411 = vpop.f32.mrf.mxu0
          %v1412 = vadd.f32 %v1362, %v1411
          %1413 = vdwg.mxu0
          %v1414 = vmax.f32 %v1384, 0.0
          %v1415 = vmax.f32 %v1388, 0.0
          %v1416 = vmax.f32 %v1392, 0.0
          %v1417 = vmax.f32 %v1396, 0.0
          %v1418 = vmax.f32 %v1400, 0.0
          %v1419 = vmax.f32 %v1404, 0.0
          %v1420 = vmax.f32 %v1408, 0.0
          %v1421 = vmax.f32 %v1412, 0.0
          %vm1422 = vcmask 261120
          %1423 = vst.msk [vmem:[%s378] sm:$0xff] %vm1422, %v1414
          %1424 = vst.msk [vmem:[%s378 + $0x8] sm:$0xff] %vm1422, %v1415
          %1425 = vst.msk [vmem:[%s378 + $0x10] sm:$0xff] %vm1422, %v1416
          %1426 = vst.msk [vmem:[%s378 + $0x18] sm:$0xff] %vm1422, %v1417
          %1427 = vst.msk [vmem:[%s378 + $0x20] sm:$0xff] %vm1422, %v1418
          %1428 = vst.msk [vmem:[%s378 + $0x28] sm:$0xff] %vm1422, %v1419
          %1429 = vst.msk [vmem:[%s378 + $0x30] sm:$0xff] %vm1422, %v1420
          %1430 = vst.msk [vmem:[%s378 + $0x38] sm:$0xff] %vm1422, %v1421
          %v1431 = vld [vmem:[%s4] sm:$0xff]
          %v1432 = vld [vmem:[%s4 + $0x8] sm:$0xff]
          %v1433 = vld [vmem:[%s4 + $0x10] sm:$0xff]
          %v1434 = vld [vmem:[%s4 + $0x18] sm:$0xff]
          %v1435 = vld [vmem:[#allocation3] sm:$0x1]
          %v1437 = vperm.slane %v1435, 0
          %v1440 = vsel %vm1422, %v1414, 0
          %v1443 = vsel %vm1422, %v1415, 0
          %v1446 = vsel %vm1422, %v1416, 0
          %v1449 = vsel %vm1422, %v1417, 0
          %v1452 = vsel %vm1422, %v1418, 0
          %v1455 = vsel %vm1422, %v1419, 0
          %v1458 = vsel %vm1422, %v1420, 0
          %v1461 = vsel %vm1422, %v1421, 0
          %1463 = vmatpush.msra.mxu0 0.0
          %1464 = vmatpush.msra.mxu0 0.0
          %1465 = vmatpush.msra.mxu0 0.0
          %1466 = vmatpush.msra.mxu0 0.0
          %1467 = vmatpush.msra.mxu0 0.0
          %1468 = vmatpush.msra.mxu0 0.0
          %1469 = vmatpush.msra.mxu0 0.0
          %1470 = vmatpush.msra.mxu0 0.0
          %1471 = vmatpush.msra.mxu0 0.0
          %1472 = vmatpush.msra.mxu0 0.0
          %1473 = vmatpush.msra.mxu0 0.0
          %1474 = vmatpush.msra.mxu0 0.0
          %v1475 = vand.u32 %v1434, 4294901760
          %1476 = vmatpush.msra.mxu0 %v1475
          %v1477 = vand.u32 %v1433, 4294901760
          %1478 = vmatpush.msra.mxu0 %v1477
          %v1479 = vand.u32 %v1432, 4294901760
          %1480 = vmatpush.msra.mxu0 %v1479
          %v1481 = vand.u32 %v1431, 4294901760
          %1482 = vmatpush.msra.mxu0 %v1481
          %v1483 = vand.u32 %v1440, 4294901760
          %v1484 = vsub.f32 %v1440, %v1483
          %v1485 = vand.u32 %v1484, 4294901760
          %v1486 = vsub.f32 %v1484, %v1485
          %v1487 = vand.u32 %v1486, 4294901760
          %1488 = vmatmul.f32.gmra.mxu0 %v1487
          %v1489 = vpop.f32.mrf.mxu0
          %v1490 = vadd.f32 %v1437, %v1489
          %v1491 = vand.u32 %v1443, 4294901760
          %v1492 = vsub.f32 %v1443, %v1491
          %v1493 = vand.u32 %v1492, 4294901760
          %v1494 = vsub.f32 %v1492, %v1493
          %v1495 = vand.u32 %v1494, 4294901760
          %1496 = vmatmul.f32.gmra.mxu0 %v1495
          %v1497 = vpop.f32.mrf.mxu0
          %v1498 = vadd.f32 %v1437, %v1497
          %v1499 = vand.u32 %v1446, 4294901760
          %v1500 = vsub.f32 %v1446, %v1499
          %v1501 = vand.u32 %v1500, 4294901760
          %v1502 = vsub.f32 %v1500, %v1501
          %v1503 = vand.u32 %v1502, 4294901760
          %1504 = vmatmul.f32.gmra.mxu0 %v1503
          %v1505 = vpop.f32.mrf.mxu0
          %v1506 = vadd.f32 %v1437, %v1505
          %v1507 = vand.u32 %v1449, 4294901760
          %v1508 = vsub.f32 %v1449, %v1507
          %v1509 = vand.u32 %v1508, 4294901760
          %v1510 = vsub.f32 %v1508, %v1509
          %v1511 = vand.u32 %v1510, 4294901760
          %1512 = vmatmul.f32.gmra.mxu0 %v1511
          %v1513 = vpop.f32.mrf.mxu0
          %v1514 = vadd.f32 %v1437, %v1513
          %v1515 = vand.u32 %v1452, 4294901760
          %v1516 = vsub.f32 %v1452, %v1515
          %v1517 = vand.u32 %v1516, 4294901760
          %v1518 = vsub.f32 %v1516, %v1517
          %v1519 = vand.u32 %v1518, 4294901760
          %1520 = vmatmul.f32.gmra.mxu0 %v1519
          %v1521 = vpop.f32.mrf.mxu0
          %v1522 = vadd.f32 %v1437, %v1521
          %v1523 = vand.u32 %v1455, 4294901760
          %v1524 = vsub.f32 %v1455, %v1523
          %v1525 = vand.u32 %v1524, 4294901760
          %v1526 = vsub.f32 %v1524, %v1525
          %v1527 = vand.u32 %v1526, 4294901760
          %1528 = vmatmul.f32.gmra.mxu0 %v1527
          %v1529 = vpop.f32.mrf.mxu0
          %v1530 = vadd.f32 %v1437, %v1529
          %v1531 = vand.u32 %v1458, 4294901760
          %v1532 = vsub.f32 %v1458, %v1531
          %v1533 = vand.u32 %v1532, 4294901760
          %v1534 = vsub.f32 %v1532, %v1533
          %v1535 = vand.u32 %v1534, 4294901760
          %1536 = vmatmul.f32.gmra.mxu0 %v1535
          %v1537 = vpop.f32.mrf.mxu0
          %v1538 = vadd.f32 %v1437, %v1537
          %v1539 = vand.u32 %v1461, 4294901760
          %v1540 = vsub.f32 %v1461, %v1539
          %v1541 = vand.u32 %v1540, 4294901760
          %v1542 = vsub.f32 %v1540, %v1541
          %v1543 = vand.u32 %v1542, 4294901760
          %1544 = vmatmul.f32.gmra.mxu0 %v1543
          %v1545 = vpop.f32.mrf.mxu0
          %v1546 = vadd.f32 %v1437, %v1545
          %1547 = vdwg.mxu0
          %1548 = vmatpush.msra.mxu0 0.0
          %1549 = vmatpush.msra.mxu0 0.0
          %1550 = vmatpush.msra.mxu0 0.0
          %1551 = vmatpush.msra.mxu0 0.0
          %1552 = vmatpush.msra.mxu0 0.0
          %1553 = vmatpush.msra.mxu0 0.0
          %1554 = vmatpush.msra.mxu0 0.0
          %1555 = vmatpush.msra.mxu0 0.0
          %1556 = vmatpush.msra.mxu0 0.0
          %1557 = vmatpush.msra.mxu0 0.0
          %1558 = vmatpush.msra.mxu0 0.0
          %1559 = vmatpush.msra.mxu0 0.0
          %v1560 = vand.u32 %v1434, 4294901760
          %v1561 = vsub.f32 %v1434, %v1560
          %v1562 = vand.u32 %v1561, 4294901760
          %v1563 = vsub.f32 %v1561, %v1562
          %v1564 = vand.u32 %v1563, 4294901760
          %1565 = vmatpush.msra.mxu0 %v1564
          %v1566 = vand.u32 %v1433, 4294901760
          %v1567 = vsub.f32 %v1433, %v1566
          %v1568 = vand.u32 %v1567, 4294901760
          %v1569 = vsub.f32 %v1567, %v1568
          %v1570 = vand.u32 %v1569, 4294901760
          %1571 = vmatpush.msra.mxu0 %v1570
          %v1572 = vand.u32 %v1432, 4294901760
          %v1573 = vsub.f32 %v1432, %v1572
          %v1574 = vand.u32 %v1573, 4294901760
          %v1575 = vsub.f32 %v1573, %v1574
          %v1576 = vand.u32 %v1575, 4294901760
          %1577 = vmatpush.msra.mxu0 %v1576
          %v1578 = vand.u32 %v1431, 4294901760
          %v1579 = vsub.f32 %v1431, %v1578
          %v1580 = vand.u32 %v1579, 4294901760
          %v1581 = vsub.f32 %v1579, %v1580
          %v1582 = vand.u32 %v1581, 4294901760
          %1583 = vmatpush.msra.mxu0 %v1582
          %v1584 = vand.u32 %v1440, 4294901760
          %1585 = vmatmul.f32.gmra.mxu0 %v1584
          %v1586 = vpop.f32.mrf.mxu0
          %v1587 = vadd.f32 %v1490, %v1586
          %v1588 = vand.u32 %v1443, 4294901760
          %1589 = vmatmul.f32.gmra.mxu0 %v1588
          %v1590 = vpop.f32.mrf.mxu0
          %v1591 = vadd.f32 %v1498, %v1590
          %v1592 = vand.u32 %v1446, 4294901760
          %1593 = vmatmul.f32.gmra.mxu0 %v1592
          %v1594 = vpop.f32.mrf.mxu0
          %v1595 = vadd.f32 %v1506, %v1594
          %v1596 = vand.u32 %v1449, 4294901760
          %1597 = vmatmul.f32.gmra.mxu0 %v1596
          %v1598 = vpop.f32.mrf.mxu0
          %v1599 = vadd.f32 %v1514, %v1598
          %v1600 = vand.u32 %v1452, 4294901760
          %1601 = vmatmul.f32.gmra.mxu0 %v1600
          %v1602 = vpop.f32.mrf.mxu0
          %v1603 = vadd.f32 %v1522, %v1602
          %v1604 = vand.u32 %v1455, 4294901760
          %1605 = vmatmul.f32.gmra.mxu0 %v1604
          %v1606 = vpop.f32.mrf.mxu0
          %v1607 = vadd.f32 %v1530, %v1606
          %v1608 = vand.u32 %v1458, 4294901760
          %1609 = vmatmul.f32.gmra.mxu0 %v1608
          %v1610 = vpop.f32.mrf.mxu0
          %v1611 = vadd.f32 %v1538, %v1610
          %v1612 = vand.u32 %v1461, 4294901760
          %1613 = vmatmul.f32.gmra.mxu0 %v1612
          %v1614 = vpop.f32.mrf.mxu0
          %v1615 = vadd.f32 %v1546, %v1614
          %1616 = vdwg.mxu0
          %1617 = vmatpush.msra.mxu0 0.0
          %1618 = vmatpush.msra.mxu0 0.0
          %1619 = vmatpush.msra.mxu0 0.0
          %1620 = vmatpush.msra.mxu0 0.0
          %1621 = vmatpush.msra.mxu0 0.0
          %1622 = vmatpush.msra.mxu0 0.0
          %1623 = vmatpush.msra.mxu0 0.0
          %1624 = vmatpush.msra.mxu0 0.0
          %1625 = vmatpush.msra.mxu0 0.0
          %1626 = vmatpush.msra.mxu0 0.0
          %1627 = vmatpush.msra.mxu0 0.0
          %1628 = vmatpush.msra.mxu0 0.0
          %v1629 = vand.u32 %v1434, 4294901760
          %v1630 = vsub.f32 %v1434, %v1629
          %1631 = vmatpush.msra.mxu0 %v1630
          %v1632 = vand.u32 %v1433, 4294901760
          %v1633 = vsub.f32 %v1433, %v1632
          %1634 = vmatpush.msra.mxu0 %v1633
          %v1635 = vand.u32 %v1432, 4294901760
          %v1636 = vsub.f32 %v1432, %v1635
          %1637 = vmatpush.msra.mxu0 %v1636
          %v1638 = vand.u32 %v1431, 4294901760
          %v1639 = vsub.f32 %v1431, %v1638
          %1640 = vmatpush.msra.mxu0 %v1639
          %v1641 = vand.u32 %v1440, 4294901760
          %v1642 = vsub.f32 %v1440, %v1641
          %1643 = vmatmul.f32.gmra.mxu0 %v1642
          %v1644 = vpop.f32.mrf.mxu0
          %v1645 = vadd.f32 %v1587, %v1644
          %v1646 = vand.u32 %v1443, 4294901760
          %v1647 = vsub.f32 %v1443, %v1646
          %1648 = vmatmul.f32.gmra.mxu0 %v1647
          %v1649 = vpop.f32.mrf.mxu0
          %v1650 = vadd.f32 %v1591, %v1649
          %v1651 = vand.u32 %v1446, 4294901760
          %v1652 = vsub.f32 %v1446, %v1651
          %1653 = vmatmul.f32.gmra.mxu0 %v1652
          %v1654 = vpop.f32.mrf.mxu0
          %v1655 = vadd.f32 %v1595, %v1654
          %v1656 = vand.u32 %v1449, 4294901760
          %v1657 = vsub.f32 %v1449, %v1656
          %1658 = vmatmul.f32.gmra.mxu0 %v1657
          %v1659 = vpop.f32.mrf.mxu0
          %v1660 = vadd.f32 %v1599, %v1659
          %v1661 = vand.u32 %v1452, 4294901760
          %v1662 = vsub.f32 %v1452, %v1661
          %1663 = vmatmul.f32.gmra.mxu0 %v1662
          %v1664 = vpop.f32.mrf.mxu0
          %v1665 = vadd.f32 %v1603, %v1664
          %v1666 = vand.u32 %v1455, 4294901760
          %v1667 = vsub.f32 %v1455, %v1666
          %1668 = vmatmul.f32.gmra.mxu0 %v1667
          %v1669 = vpop.f32.mrf.mxu0
          %v1670 = vadd.f32 %v1607, %v1669
          %v1671 = vand.u32 %v1458, 4294901760
          %v1672 = vsub.f32 %v1458, %v1671
          %1673 = vmatmul.f32.gmra.mxu0 %v1672
          %v1674 = vpop.f32.mrf.mxu0
          %v1675 = vadd.f32 %v1611, %v1674
          %v1676 = vand.u32 %v1461, 4294901760
          %v1677 = vsub.f32 %v1461, %v1676
          %1678 = vmatmul.f32.gmra.mxu0 %v1677
          %v1679 = vpop.f32.mrf.mxu0
          %v1680 = vadd.f32 %v1615, %v1679
          %1681 = vdwg.mxu0
          %1682 = vmatpush.msra.mxu0 0.0
          %1683 = vmatpush.msra.mxu0 0.0
          %1684 = vmatpush.msra.mxu0 0.0
          %1685 = vmatpush.msra.mxu0 0.0
          %1686 = vmatpush.msra.mxu0 0.0
          %1687 = vmatpush.msra.mxu0 0.0
          %1688 = vmatpush.msra.mxu0 0.0
          %1689 = vmatpush.msra.mxu0 0.0
          %1690 = vmatpush.msra.mxu0 0.0
          %1691 = vmatpush.msra.mxu0 0.0
          %1692 = vmatpush.msra.mxu0 0.0
          %1693 = vmatpush.msra.mxu0 0.0
          %v1694 = vand.u32 %v1434, 4294901760
          %1695 = vmatpush.msra.mxu0 %v1694
          %v1696 = vand.u32 %v1433, 4294901760
          %1697 = vmatpush.msra.mxu0 %v1696
          %v1698 = vand.u32 %v1432, 4294901760
          %1699 = vmatpush.msra.mxu0 %v1698
          %v1700 = vand.u32 %v1431, 4294901760
          %1701 = vmatpush.msra.mxu0 %v1700
          %v1702 = vand.u32 %v1440, 4294901760
          %v1703 = vsub.f32 %v1440, %v1702
          %v1704 = vand.u32 %v1703, 4294901760
          %1705 = vmatmul.f32.gmra.mxu0 %v1704
          %v1706 = vpop.f32.mrf.mxu0
          %v1707 = vadd.f32 %v1645, %v1706
          %v1708 = vand.u32 %v1443, 4294901760
          %v1709 = vsub.f32 %v1443, %v1708
          %v1710 = vand.u32 %v1709, 4294901760
          %1711 = vmatmul.f32.gmra.mxu0 %v1710
          %v1712 = vpop.f32.mrf.mxu0
          %v1713 = vadd.f32 %v1650, %v1712
          %v1714 = vand.u32 %v1446, 4294901760
          %v1715 = vsub.f32 %v1446, %v1714
          %v1716 = vand.u32 %v1715, 4294901760
          %1717 = vmatmul.f32.gmra.mxu0 %v1716
          %v1718 = vpop.f32.mrf.mxu0
          %v1719 = vadd.f32 %v1655, %v1718
          %v1720 = vand.u32 %v1449, 4294901760
          %v1721 = vsub.f32 %v1449, %v1720
          %v1722 = vand.u32 %v1721, 4294901760
          %1723 = vmatmul.f32.gmra.mxu0 %v1722
          %v1724 = vpop.f32.mrf.mxu0
          %v1725 = vadd.f32 %v1660, %v1724
          %v1726 = vand.u32 %v1452, 4294901760
          %v1727 = vsub.f32 %v1452, %v1726
          %v1728 = vand.u32 %v1727, 4294901760
          %1729 = vmatmul.f32.gmra.mxu0 %v1728
          %v1730 = vpop.f32.mrf.mxu0
          %v1731 = vadd.f32 %v1665, %v1730
          %v1732 = vand.u32 %v1455, 4294901760
          %v1733 = vsub.f32 %v1455, %v1732
          %v1734 = vand.u32 %v1733, 4294901760
          %1735 = vmatmul.f32.gmra.mxu0 %v1734
          %v1736 = vpop.f32.mrf.mxu0
          %v1737 = vadd.f32 %v1670, %v1736
          %v1738 = vand.u32 %v1458, 4294901760
          %v1739 = vsub.f32 %v1458, %v1738
          %v1740 = vand.u32 %v1739, 4294901760
          %1741 = vmatmul.f32.gmra.mxu0 %v1740
          %v1742 = vpop.f32.mrf.mxu0
          %v1743 = vadd.f32 %v1675, %v1742
          %v1744 = vand.u32 %v1461, 4294901760
          %v1745 = vsub.f32 %v1461, %v1744
          %v1746 = vand.u32 %v1745, 4294901760
          %1747 = vmatmul.f32.gmra.mxu0 %v1746
          %v1748 = vpop.f32.mrf.mxu0
          %v1749 = vadd.f32 %v1680, %v1748
          %1750 = vdwg.mxu0
          %1751 = vmatpush.msra.mxu0 0.0
          %1752 = vmatpush.msra.mxu0 0.0
          %1753 = vmatpush.msra.mxu0 0.0
          %1754 = vmatpush.msra.mxu0 0.0
          %1755 = vmatpush.msra.mxu0 0.0
          %1756 = vmatpush.msra.mxu0 0.0
          %1757 = vmatpush.msra.mxu0 0.0
          %1758 = vmatpush.msra.mxu0 0.0
          %1759 = vmatpush.msra.mxu0 0.0
          %1760 = vmatpush.msra.mxu0 0.0
          %1761 = vmatpush.msra.mxu0 0.0
          %1762 = vmatpush.msra.mxu0 0.0
          %v1763 = vand.u32 %v1434, 4294901760
          %v1764 = vsub.f32 %v1434, %v1763
          %v1765 = vand.u32 %v1764, 4294901760
          %1766 = vmatpush.msra.mxu0 %v1765
          %v1767 = vand.u32 %v1433, 4294901760
          %v1768 = vsub.f32 %v1433, %v1767
          %v1769 = vand.u32 %v1768, 4294901760
          %1770 = vmatpush.msra.mxu0 %v1769
          %v1771 = vand.u32 %v1432, 4294901760
          %v1772 = vsub.f32 %v1432, %v1771
          %v1773 = vand.u32 %v1772, 4294901760
          %1774 = vmatpush.msra.mxu0 %v1773
          %v1775 = vand.u32 %v1431, 4294901760
          %v1776 = vsub.f32 %v1431, %v1775
          %v1777 = vand.u32 %v1776, 4294901760
          %1778 = vmatpush.msra.mxu0 %v1777
          %v1779 = vand.u32 %v1440, 4294901760
          %1780 = vmatmul.f32.gmra.mxu0 %v1779
          %v1781 = vpop.f32.mrf.mxu0
          %v1782 = vadd.f32 %v1707, %v1781
          %v1783 = vand.u32 %v1443, 4294901760
          %1784 = vmatmul.f32.gmra.mxu0 %v1783
          %v1785 = vpop.f32.mrf.mxu0
          %v1786 = vadd.f32 %v1713, %v1785
          %v1787 = vand.u32 %v1446, 4294901760
          %1788 = vmatmul.f32.gmra.mxu0 %v1787
          %v1789 = vpop.f32.mrf.mxu0
          %v1790 = vadd.f32 %v1719, %v1789
          %v1791 = vand.u32 %v1449, 4294901760
          %1792 = vmatmul.f32.gmra.mxu0 %v1791
          %v1793 = vpop.f32.mrf.mxu0
          %v1794 = vadd.f32 %v1725, %v1793
          %v1795 = vand.u32 %v1452, 4294901760
          %1796 = vmatmul.f32.gmra.mxu0 %v1795
          %v1797 = vpop.f32.mrf.mxu0
          %v1798 = vadd.f32 %v1731, %v1797
          %v1799 = vand.u32 %v1455, 4294901760
          %1800 = vmatmul.f32.gmra.mxu0 %v1799
          %v1801 = vpop.f32.mrf.mxu0
          %v1802 = vadd.f32 %v1737, %v1801
          %v1803 = vand.u32 %v1458, 4294901760
          %1804 = vmatmul.f32.gmra.mxu0 %v1803
          %v1805 = vpop.f32.mrf.mxu0
          %v1806 = vadd.f32 %v1743, %v1805
          %v1807 = vand.u32 %v1461, 4294901760
          %1808 = vmatmul.f32.gmra.mxu0 %v1807
          %v1809 = vpop.f32.mrf.mxu0
          %v1810 = vadd.f32 %v1749, %v1809
          %1811 = vdwg.mxu0
          %1812 = vmatpush.msra.mxu0 0.0
          %1813 = vmatpush.msra.mxu0 0.0
          %1814 = vmatpush.msra.mxu0 0.0
          %1815 = vmatpush.msra.mxu0 0.0
          %1816 = vmatpush.msra.mxu0 0.0
          %1817 = vmatpush.msra.mxu0 0.0
          %1818 = vmatpush.msra.mxu0 0.0
          %1819 = vmatpush.msra.mxu0 0.0
          %1820 = vmatpush.msra.mxu0 0.0
          %1821 = vmatpush.msra.mxu0 0.0
          %1822 = vmatpush.msra.mxu0 0.0
          %1823 = vmatpush.msra.mxu0 0.0
          %v1824 = vand.u32 %v1434, 4294901760
          %1825 = vmatpush.msra.mxu0 %v1824
          %v1826 = vand.u32 %v1433, 4294901760
          %1827 = vmatpush.msra.mxu0 %v1826
          %v1828 = vand.u32 %v1432, 4294901760
          %1829 = vmatpush.msra.mxu0 %v1828
          %v1830 = vand.u32 %v1431, 4294901760
          %1831 = vmatpush.msra.mxu0 %v1830
          %v1832 = vand.u32 %v1440, 4294901760
          %1833 = vmatmul.f32.gmra.mxu0 %v1832
          %v1834 = vpop.f32.mrf.mxu0
          %v1835 = vadd.f32 %v1782, %v1834
          %v1836 = vand.u32 %v1443, 4294901760
          %1837 = vmatmul.f32.gmra.mxu0 %v1836
          %v1838 = vpop.f32.mrf.mxu0
          %v1839 = vadd.f32 %v1786, %v1838
          %v1840 = vand.u32 %v1446, 4294901760
          %1841 = vmatmul.f32.gmra.mxu0 %v1840
          %v1842 = vpop.f32.mrf.mxu0
          %v1843 = vadd.f32 %v1790, %v1842
          %v1844 = vand.u32 %v1449, 4294901760
          %1845 = vmatmul.f32.gmra.mxu0 %v1844
          %v1846 = vpop.f32.mrf.mxu0
          %v1847 = vadd.f32 %v1794, %v1846
          %v1848 = vand.u32 %v1452, 4294901760
          %1849 = vmatmul.f32.gmra.mxu0 %v1848
          %v1850 = vpop.f32.mrf.mxu0
          %v1851 = vadd.f32 %v1798, %v1850
          %v1852 = vand.u32 %v1455, 4294901760
          %1853 = vmatmul.f32.gmra.mxu0 %v1852
          %v1854 = vpop.f32.mrf.mxu0
          %v1855 = vadd.f32 %v1802, %v1854
          %v1856 = vand.u32 %v1458, 4294901760
          %1857 = vmatmul.f32.gmra.mxu0 %v1856
          %v1858 = vpop.f32.mrf.mxu0
          %v1859 = vadd.f32 %v1806, %v1858
          %v1860 = vand.u32 %v1461, 4294901760
          %1861 = vmatmul.f32.gmra.mxu0 %v1860
          %v1862 = vpop.f32.mrf.mxu0
          %v1863 = vadd.f32 %v1810, %v1862
          %1864 = vdwg.mxu0
          %vm1865 = vcmask 7168
          %1866 = vst.msk [vmem:[%s384] sm:$0xff] %vm1865, %v1835
          %1867 = vst.msk [vmem:[%s384 + $0x8] sm:$0xff] %vm1865, %v1839
          %1868 = vst.msk [vmem:[%s384 + $0x10] sm:$0xff] %vm1865, %v1843
          %1869 = vst.msk [vmem:[%s384 + $0x18] sm:$0xff] %vm1865, %v1847
          %1870 = vst.msk [vmem:[%s384 + $0x20] sm:$0xff] %vm1865, %v1851
          %1871 = vst.msk [vmem:[%s384 + $0x28] sm:$0xff] %vm1865, %v1855
          %1872 = vst.msk [vmem:[%s384 + $0x30] sm:$0xff] %vm1865, %v1859
          %1873 = vst.msk [vmem:[%s384 + $0x38] sm:$0xff] %vm1865, %v1863
        $region64: #{shglnn_forward.6} parent=43 // pred_fallthru
          _
        %s1874 = smul.u32 8, %s29
        %p1875 = scmp.lt.s32.totalorder %s1874, 31
        %s1876 = scalar_select %p1875, %s1874, 31
        %s1877 = smul.addr %s1876, 8
        %s1878 = scalar_lea.vmem %s6, %s1877
        %s1879 = smul.u32 8, %s29
        %p1880 = scmp.lt.s32.totalorder %s1879, 31
        %s1881 = scalar_select %p1880, %s1879, 31
        %s1882 = smul.addr %s1881, 8
        %s1883 = scalar_lea.vmem %s7, %s1882
        // Predicated region
        $region65: #{shglnn_forward.6} parent=43 // pred_check
          %p1884 = pneg %p193
        $region66: #{shglnn_forward.6} parent=43 // pred_check_branch
          %1886 = sbr.rel (%p1884) target = $region68
        $region67: #{shglnn_forward.6} parent=43 // pred_region
          %s1887 = smul.u32 8, %s29
        $region68: #{shglnn_forward.6} parent=43 // pred_fallthru
          _
        // Predicated region
        $region69: #{shglnn_forward.6} parent=43 // pred_check
          %p1888 = pneg %p219
        $region70: #{shglnn_forward.6} parent=43 // pred_check_branch
          %1890 = sbr.rel (%p1888) target = $region72
        $region71: #{shglnn_forward.6} parent=43 // pred_region
          %s1891 = smul.u32 8, %s29
        $region72: #{shglnn_forward.6} parent=43 // pred_fallthru
          _
      $region44: #{shglnn_forward.6} parent=5 // pred_fallthru
        _
      %p1892 = scmp.le.s32.totalorder 2, %s20
      // Predicated region
      $region73: #{shglnn_forward.6} parent=5 // pred_check
        %p1893 = pneg %p1892
      $region74: #{shglnn_forward.6} parent=5 // pred_check_branch
        %1895 = sbr.rel (%p1893) target = $region76
      $region75: #{shglnn_forward.6} parent=5 // pred_region
        %s1896 = ssub.s32 %s20, 2
        // Predicated region
        $region77: #{shglnn_forward.6} parent=75 // pred_check
          %p1897 = pneg %p199
        $region78: #{shglnn_forward.6} parent=75 // pred_check_branch
          %1899 = sbr.rel (%p1897) target = $region80
        $region79: #{shglnn_forward.6} parent=75 // pred_region
          %s1900 = smul.u32 8, %s31
          %p1901 = scmp.lt.s32.totalorder %s1900, 31
          %s1902 = scalar_select %p1901, %s1900, 31
          %s1903 = smul.addr %s1902, 8
          %s1904 = scalar_lea.vmem %s6, %s1903
        $region80: #{shglnn_forward.6} parent=75 // pred_fallthru
          _
        // Predicated region
        $region81: #{shglnn_forward.6} parent=75 // pred_check
          %p1905 = pneg %p225
        $region82: #{shglnn_forward.6} parent=75 // pred_check_branch
          %1907 = sbr.rel (%p1905) target = $region84
        $region83: #{shglnn_forward.6} parent=75 // pred_region
          %s1908 = smul.u32 8, %s31
          %p1909 = scmp.lt.s32.totalorder %s1908, 31
          %s1910 = scalar_select %p1909, %s1908, 31
          %s1911 = smul.addr %s1910, 8
          %s1912 = scalar_lea.vmem %s7, %s1911
        $region84: #{shglnn_forward.6} parent=75 // pred_fallthru
          _
      $region76: #{shglnn_forward.6} parent=5 // pred_fallthru
        _
    $region6: #{shglnn_forward.6} parent=1 // loop_footer
      %s24 = sadd.s32 1, %s20
    $region7: #{shglnn_forward.6} parent=1 // loop_footer_branch
      %19 = sbr.rel target = $region3
    $region8: #{shglnn_forward.6} parent=1 // loop_exit
      _
    %1913 = vsyncpa [#allocation5], 1
    %s1914 = scalar_lea.sflag [#allocation5], 1
    %1915 = vsyncpa %s1914, 1
    %1916 = vsyncpa [#allocation7], 1

// kernel: shglnn_forward.10
$region0: #{shglnn_forward.10}
  #allocation0 [shape = 'u32[]', space=smem, size = 0x4, offset = 0x4, fixed_abs, tag = 'smem constant byte address 0x4 - core index']
  #allocation1 [shape = 'u32[72,128]{1,0:T(1,128)}', space=vmem, size = 0x9000, scoped, tag = 'internal scratch']
  #allocation2 [shape = 'f32[64,32]{1,0:T(8,128)}', space=vmem, size = 0x8000, scoped, tag = 'scratch operand']
  %s0 = inlined_call_operand.vmem [shape: f32[256,256], index: 0, kind: input, shape index: {}]
  %s1 = inlined_call_operand.vmem [shape: f32[256,32], index: 1, kind: input, shape index: {}]
  %s2 = inlined_call_operand.vmem [shape: f32[1,32], index: 2, kind: input, shape index: {}]
  %s3 = inlined_call_operand.vmem [shape: f32[256,32], index: 3, kind: output, shape index: {}]
  %s4 = sld [smem:[#allocation0]]
  $region91: #{shglnn_forward.10} parent=0
    _
  %s6 = ssub.s32 1, %s4
  %s7 = scalar_select 0, %s6, %s4
  $region1: #{shglnn_forward.10} parent=0
    #allocation3 [shape = 'u8[65536]{0}', space=vmem, size = 0x10000, scoped, tag = 'input window, operand 0']
    loop: start=0, step=1, limit=10
    $region2: #{shglnn_forward.10} parent=1 // loop_pre_header
      _
    $region3: #{shglnn_forward.10} parent=1 // loop_header
      %s9 = sphi 0, %s13
      %p10 = scmp.ge.s32.totalorder %s9, 10
      %s16 = sphi 0, %s28
      %s17 = sphi 0, %s24
      %s18 = sphi 0, %s16
      %s19 = sphi 0, %s17
      %s20 = sphi 0, %s18
      %s21 = sphi 0, %s19
      %s33 = sphi 0, %s35
      %s36 = sphi 0, %s33
      %s37 = sphi 0, %s36
      %s53 = sphi 0, %s37
      %s59 = sphi 0, %s61
      %s62 = sphi 0, %s59
      %s63 = sphi 0, %s62
      %s79 = sphi 0, %s63
      %s83 = sphi 0, %s83
      %s85 = sphi 0, %s83
      %s86 = sphi 0, %s85
      %s100 = sphi 0, %s86
      %s106 = sphi 0, %s108
      %s109 = sphi 0, %s106
      %s110 = sphi 0, %s109
      %s126 = sphi 0, %s110
    $region4: #{shglnn_forward.10} parent=1 // loop_header_branch
      %12 = sbr.rel (%p10) target = $region8
    $region5: #{shglnn_forward.10} parent=1 // loop_body
      %s14 = ssub.s32 %s9, 1
      %s15 = ssub.s32 %s9, 2
      %s22 = sadd.s32 1, %s17
      %p23 = scmp.ge.s32.totalorder %s22, 2
      %s24 = scalar_select %p23, 0, %s22
      %s25 = sadd.s32 1, %s16
      %s26 = scalar_select %p23, %s25, %s16
      %p27 = scmp.ge.s32.totalorder %s26, 4
      %s28 = scalar_select %p27, 0, %s26
      %s29 = ssub.s32 %s16, %s28
      %s30 = ssub.s32 %s17, %s24
      %s31 = sor.u32 %s29, %s30
      %p32 = scmp.eq.s32.totalorder %s31, 0
      %s34 = sadd.s32 %s33, 1
      %s35 = scalar_select %p32, %s33, %s34
      %p38 = pneg %p32
      %p39 = scmp.eq.s32.totalorder %s9, 7
      %p40 = por %p38, %p39
      %p41 = scmp.ne.s32.totalorder %s33, %s36
      %p42 = scmp.eq.s32.totalorder %s9, 0
      %p43 = por %p41, %p42
      %p44 = scmp.ne.s32.totalorder %s33, %s36
      %p45 = scmp.eq.s32.totalorder %s14, 7
      %p46 = por %p44, %p45
      %p47 = scmp.ne.s32.totalorder %s36, %s37
      %p48 = scmp.eq.s32.totalorder %s14, 0
      %p49 = por %p47, %p48
      %p50 = scmp.ne.s32.totalorder %s36, %s37
      %p51 = scmp.eq.s32.totalorder %s15, 7
      %p52 = por %p50, %p51
      %p54 = scmp.ne.s32.totalorder %s37, %s53
      %p55 = scmp.eq.s32.totalorder %s15, 0
      %p56 = por %p54, %p55
      %s57 = ssub.s32 %s17, %s24
      %p58 = scmp.eq.s32.totalorder %s57, 0
      %s60 = sadd.s32 %s59, 1
      %s61 = scalar_select %p58, %s59, %s60
      %p64 = pneg %p58
      %p65 = scmp.eq.s32.totalorder %s9, 7
      %p66 = por %p64, %p65
      %p67 = scmp.ne.s32.totalorder %s59, %s62
      %p68 = scmp.eq.s32.totalorder %s9, 0
      %p69 = por %p67, %p68
      %p70 = scmp.ne.s32.totalorder %s59, %s62
      %p71 = scmp.eq.s32.totalorder %s14, 7
      %p72 = por %p70, %p71
      %p73 = scmp.ne.s32.totalorder %s62, %s63
      %p74 = scmp.eq.s32.totalorder %s14, 0
      %p75 = por %p73, %p74
      %p76 = scmp.ne.s32.totalorder %s62, %s63
      %p77 = scmp.eq.s32.totalorder %s15, 7
      %p78 = por %p76, %p77
      %p80 = scmp.ne.s32.totalorder %s63, %s79
      %p81 = scmp.eq.s32.totalorder %s15, 0
      %p82 = por %p80, %p81
      %s84 = sadd.s32 %s83, 1
      %p87 = scmp.eq.s32.totalorder %s9, 7
      %p88 = scmp.ne.s32.totalorder %s83, %s85
      %p89 = scmp.eq.s32.totalorder %s9, 0
      %p90 = por %p88, %p89
      %p91 = scmp.ne.s32.totalorder %s83, %s85
      %p92 = scmp.eq.s32.totalorder %s14, 7
      %p93 = por %p91, %p92
      %p94 = scmp.ne.s32.totalorder %s85, %s86
      %p95 = scmp.eq.s32.totalorder %s14, 0
      %p96 = por %p94, %p95
      %p97 = scmp.ne.s32.totalorder %s85, %s86
      %p98 = scmp.eq.s32.totalorder %s15, 7
      %p99 = por %p97, %p98
      %p101 = scmp.ne.s32.totalorder %s86, %s100
      %p102 = scmp.eq.s32.totalorder %s15, 0
      %p103 = por %p101, %p102
      %s104 = ssub.s32 %s16, %s28
      %p105 = scmp.eq.s32.totalorder %s104, 0
      %s107 = sadd.s32 %s106, 1
      %s108 = scalar_select %p105, %s106, %s107
      %p111 = pneg %p105
      %p112 = scmp.eq.s32.totalorder %s9, 7
      %p113 = por %p111, %p112
      %p114 = scmp.ne.s32.totalorder %s106, %s109
      %p115 = scmp.eq.s32.totalorder %s9, 0
      %p116 = por %p114, %p115
      %p117 = scmp.ne.s32.totalorder %s106, %s109
      %p118 = scmp.eq.s32.totalorder %s14, 7
      %p119 = por %p117, %p118
      %p120 = scmp.ne.s32.totalorder %s109, %s110
      %p121 = scmp.eq.s32.totalorder %s14, 0
      %p122 = por %p120, %p121
      %p123 = scmp.ne.s32.totalorder %s109, %s110
      %p124 = scmp.eq.s32.totalorder %s15, 7
      %p125 = por %p123, %p124
      %p127 = scmp.ne.s32.totalorder %s110, %s126
      %p128 = scmp.eq.s32.totalorder %s15, 0
      %p129 = por %p127, %p128
      %p130 = scmp.le.s32.totalorder 1, %s9
      %p131 = scmp.lt.s32.totalorder %s9, 9
      %p132 = pnand %p130, %p131
      %p133 = pneg %p132
      // Predicated region
      $region9: #{shglnn_forward.10} parent=5 // pred_check
        _
      $region10: #{shglnn_forward.10} parent=5 // pred_check_branch
        %135 = sbr.rel (%p132) target = $region12
      $region11: #{shglnn_forward.10} parent=5 // pred_region
        %s136 = ssub.s32 %s9, 1
        // Predicated region
        $region13: #{shglnn_forward.10} parent=11 // pred_check
          %p137 = pneg %p96
        $region14: #{shglnn_forward.10} parent=11 // pred_check_branch
          %139 = sbr.rel (%p137) target = $region16
        $region15: #{shglnn_forward.10} parent=11 // pred_region
          _
        $region16: #{shglnn_forward.10} parent=11 // pred_fallthru
          _
      $region12: #{shglnn_forward.10} parent=5 // pred_fallthru
        _
      %p140 = scmp.lt.s32.totalorder %s9, 8
      // Predicated region
      $region17: #{shglnn_forward.10} parent=5 // pred_check
        %p141 = pneg %p140
      $region18: #{shglnn_forward.10} parent=5 // pred_check_branch
        %143 = sbr.rel (%p141) target = $region20
      $region19: #{shglnn_forward.10} parent=5 // pred_region
        // Predicated region
        $region21: #{shglnn_forward.10} parent=19 // pred_check
          %p144 = pneg %p43
        $region22: #{shglnn_forward.10} parent=19 // pred_check_branch
          %146 = sbr.rel (%p144) target = $region24
        $region23: #{shglnn_forward.10} parent=19 // pred_region
          %s147 = sand.u32 %s33, 1
          %s148 = sand.u32 %s33, 1
          %s149 = smul.addr %s148, 64
          %s150 = scalar_lea.vmem [#allocation3], %s149
          %s151 = smul.u32 8, %s16
          %s152 = smul.addr %s151, 2
          %s153 = sadd.s32 %s17, %s152
          %s154 = smul.addr %s153, 8
          %s155 = scalar_lea.vmem %s0, %s154
          // Predicated region
          $region25: #{shglnn_forward.10} parent=23 // pred_check
            _
          $region26: #{shglnn_forward.10} parent=23 // pred_check_branch
            %157 = sbr.rel (0) target = $region28
          $region27: #{shglnn_forward.10} parent=23 // pred_region
            // Predicated region
            $region29: #{shglnn_forward.10} parent=27 // pred_check
              _
            $region30: #{shglnn_forward.10} parent=27 // pred_check_branch
              %159 = sbr.rel (0) target = $region32
            $region31: #{shglnn_forward.10} parent=27 // pred_region
              // Predicated region
              $region44: #{shglnn_forward.10} parent=31 // pred_check
                _
              $region45: #{shglnn_forward.10} parent=31 // pred_check_branch
                %189 = sbr.rel (0) target = $region47
              $region46: #{shglnn_forward.10} parent=31 // pred_region
                loop: start=0, step=1, limit=1
                $region48: #{shglnn_forward.10} parent=46 // loop_pre_header
                  _
                $region49: #{shglnn_forward.10} parent=46 // loop_header
                  %s191 = sphi 0, %s195
                  %p192 = scmp.ge.s32.totalorder %s191, 1
                  %s196 = sphi %s155, %s155
                  %s197 = sphi %s150, %s150
                $region50: #{shglnn_forward.10} parent=46 // loop_header_branch
                  %194 = sbr.rel (%p192) target = $region54
                $region51: #{shglnn_forward.10} parent=46 // loop_body
                  %v198 = vld [vmem:[%s196] sm:$0xff]
                  %199 = vst [vmem:[%s197] sm:$0xff] %v198
                  %v200 = vld [vmem:[%s196 + $0x10] sm:$0xff]
                  %201 = vst [vmem:[%s197 + $0x8] sm:$0xff] %v200
                  %v202 = vld [vmem:[%s196 + $0x20] sm:$0xff]
                  %203 = vst [vmem:[%s197 + $0x10] sm:$0xff] %v202
                  %v204 = vld [vmem:[%s196 + $0x30] sm:$0xff]
                  %205 = vst [vmem:[%s197 + $0x18] sm:$0xff] %v204
                  %v206 = vld [vmem:[%s196 + $0x40] sm:$0xff]
                  %207 = vst [vmem:[%s197 + $0x20] sm:$0xff] %v206
                  %v208 = vld [vmem:[%s196 + $0x50] sm:$0xff]
                  %209 = vst [vmem:[%s197 + $0x28] sm:$0xff] %v208
                  %v210 = vld [vmem:[%s196 + $0x60] sm:$0xff]
                  %211 = vst [vmem:[%s197 + $0x30] sm:$0xff] %v210
                  %v212 = vld [vmem:[%s196 + $0x70] sm:$0xff]
                  %213 = vst [vmem:[%s197 + $0x38] sm:$0xff] %v212
                $region52: #{shglnn_forward.10} parent=46 // loop_footer
                  %s195 = sadd.s32 1, %s191
                $region53: #{shglnn_forward.10} parent=46 // loop_footer_branch
                  %190 = sbr.rel target = $region49
                $region54: #{shglnn_forward.10} parent=46 // loop_exit
                  _
              $region47: #{shglnn_forward.10} parent=31 // pred_fallthru
                _
              // Predicated region
              $region55: #{shglnn_forward.10} parent=31 // pred_check
                _
              $region56: #{shglnn_forward.10} parent=31 // pred_check_branch
                %215 = sbr.rel target = $region58
              $region57: #{shglnn_forward.10} parent=31 // pred_region
                _
              $region58: #{shglnn_forward.10} parent=31 // pred_fallthru
                _
            $region32: #{shglnn_forward.10} parent=27 // pred_fallthru
              _
            // Predicated region
            $region33: #{shglnn_forward.10} parent=27 // pred_check
              _
            $region34: #{shglnn_forward.10} parent=27 // pred_check_branch
              %161 = sbr.rel target = $region36
            $region35: #{shglnn_forward.10} parent=27 // pred_region
              %s163 = ssub.s32 256, 1
              loop: start=0, step=1, limit=1
              $region37: #{shglnn_forward.10} parent=35 // loop_pre_header
                _
              $region38: #{shglnn_forward.10} parent=35 // loop_header
                %s165 = sphi 0, %s169
                %p166 = scmp.ge.s32.totalorder %s165, 1
                %s170 = sphi %s155, %s155
                %s171 = sphi %s150, %s150
              $region39: #{shglnn_forward.10} parent=35 // loop_header_branch
                %168 = sbr.rel (%p166) target = $region43
              $region40: #{shglnn_forward.10} parent=35 // loop_body
                %v172 = vld [vmem:[%s170] sm:%s163]
                %173 = vst [vmem:[%s171] sm:%s163] %v172
                %v174 = vld [vmem:[%s170 + $0x10] sm:%s163]
                %175 = vst [vmem:[%s171 + $0x8] sm:%s163] %v174
                %v176 = vld [vmem:[%s170 + $0x20] sm:%s163]
                %177 = vst [vmem:[%s171 + $0x10] sm:%s163] %v176
                %v178 = vld [vmem:[%s170 + $0x30] sm:%s163]
                %179 = vst [vmem:[%s171 + $0x18] sm:%s163] %v178
                %v180 = vld [vmem:[%s170 + $0x40] sm:%s163]
                %181 = vst [vmem:[%s171 + $0x20] sm:%s163] %v180
                %v182 = vld [vmem:[%s170 + $0x50] sm:%s163]
                %183 = vst [vmem:[%s171 + $0x28] sm:%s163] %v182
                %v184 = vld [vmem:[%s170 + $0x60] sm:%s163]
                %185 = vst [vmem:[%s171 + $0x30] sm:%s163] %v184
                %v186 = vld [vmem:[%s170 + $0x70] sm:%s163]
                %187 = vst [vmem:[%s171 + $0x38] sm:%s163] %v186
              $region41: #{shglnn_forward.10} parent=35 // loop_footer
                %s169 = sadd.s32 1, %s165
              $region42: #{shglnn_forward.10} parent=35 // loop_footer_branch
                %164 = sbr.rel target = $region38
              $region43: #{shglnn_forward.10} parent=35 // loop_exit
                _
            $region36: #{shglnn_forward.10} parent=27 // pred_fallthru
              _
          $region28: #{shglnn_forward.10} parent=23 // pred_fallthru
            _
          %216 = vnop
        $region24: #{shglnn_forward.10} parent=19 // pred_fallthru
          _
        // Predicated region
        $region59: #{shglnn_forward.10} parent=19 // pred_check
          %p217 = pneg %p69
        $region60: #{shglnn_forward.10} parent=19 // pred_check_branch
          %219 = sbr.rel (%p217) target = $region62
        $region61: #{shglnn_forward.10} parent=19 // pred_region
          %s220 = smul.u32 16, %s17
          %p221 = scmp.lt.s32.totalorder %s220, 31
          %s222 = scalar_select %p221, %s220, 31
          %s223 = smul.addr %s222, 8
          %s224 = scalar_lea.vmem %s1, %s223
          %s225 = smul.u32 16, %s17
        $region62: #{shglnn_forward.10} parent=19 // pred_fallthru
          _
      $region20: #{shglnn_forward.10} parent=5 // pred_fallthru
        _
      %p226 = scmp.le.s32.totalorder 1, %s9
      %p227 = scmp.lt.s32.totalorder %s9, 9
      %p228 = pnand %p226, %p227
      %p229 = pneg %p228
      // Predicated region
      $region63: #{shglnn_forward.10} parent=5 // pred_check
        _
      $region64: #{shglnn_forward.10} parent=5 // pred_check_branch
        %231 = sbr.rel (%p228) target = $region66
      $region65: #{shglnn_forward.10} parent=5 // pred_region
        %s232 = ssub.s32 %s9, 1
        %s233 = sand.u32 %s36, 1
        %s234 = sand.u32 %s36, 1
        %s235 = smul.addr %s234, 64
        %s236 = scalar_lea.vmem [#allocation3], %s235
        // Predicated region
        $region67: #{shglnn_forward.10} parent=65 // pred_check
          %p237 = pneg %p49
        $region68: #{shglnn_forward.10} parent=65 // pred_check_branch
          %239 = sbr.rel (%p237) target = $region70
        $region69: #{shglnn_forward.10} parent=65 // pred_region
          _
        $region70: #{shglnn_forward.10} parent=65 // pred_fallthru
          _
        %s240 = sand.u32 %s36, 1
        %s241 = sand.u32 %s36, 1
        %s242 = smul.addr %s241, 64
        %s243 = scalar_lea.vmem [#allocation3], %s242
        %p244 = pneg %p49
        %p245 = pneg %p46
        %s246 = smul.u32 16, %s19
        %p247 = scmp.lt.s32.totalorder %s246, 31
        %s248 = scalar_select %p247, %s246, 31
        %s249 = smul.addr %s248, 8
        %s250 = scalar_lea.vmem %s1, %s249
        %p251 = pneg %p75
        %p252 = pneg %p72
        %p253 = pneg %p96
        %p254 = pneg %p93
        %p255 = pneg %p122
        %p256 = pneg %p119
        %s257 = smul.u32 8, %s18
        %p258 = scmp.lt.s32.totalorder %s257, 31
        %s259 = scalar_select %p258, %s257, 31
        %s260 = smul.addr %s259, 8
        %s261 = scalar_lea.vmem %s3, %s260
        %s262 = smul.u32 8, %s18
        %s263 = smul.u32 16, %s19
        %p264 = scmp.lt.s32.totalorder %s263, 31
        %s265 = scalar_select %p264, %s263, 31
        %s266 = smul.addr %s265, 8
        %s267 = scalar_lea.vmem %s1, %s266
        %s268 = smul.u32 16, %s19
        %s269 = smul.u32 8, %s18
        %p270 = scmp.lt.s32.totalorder %s269, 31
        %s271 = scalar_select %p270, %s269, 31
        %s272 = smul.addr %s271, 8
        %s273 = scalar_lea.vmem %s3, %s272
        %s274 = smul.u32 8, %s18
        %p275 = scmp.eq.s32.totalorder %s19, 0
        // Predicated region
        $region71: #{shglnn_forward.10} parent=65 // pred_check
          %p276 = pneg %p275
        $region72: #{shglnn_forward.10} parent=65 // pred_check_branch
          %278 = sbr.rel (%p276) target = $region74
        $region73: #{shglnn_forward.10} parent=65 // pred_region
          %vm279 = vcmask 261120
          %280 = vst.msk [vmem:[#allocation2] sm:$0xff] %vm279, 0.0
          %281 = vst.msk [vmem:[#allocation2 + $0x8] sm:$0xff] %vm279, 0.0
          %282 = vst.msk [vmem:[#allocation2 + $0x10] sm:$0xff] %vm279, 0.0
          %283 = vst.msk [vmem:[#allocation2 + $0x18] sm:$0xff] %vm279, 0.0
          %284 = vst.msk [vmem:[#allocation2 + $0x20] sm:$0xff] %vm279, 0.0
          %285 = vst.msk [vmem:[#allocation2 + $0x28] sm:$0xff] %vm279, 0.0
          %286 = vst.msk [vmem:[#allocation2 + $0x30] sm:$0xff] %vm279, 0.0
          %287 = vst.msk [vmem:[#allocation2 + $0x38] sm:$0xff] %vm279, 0.0
        $region74: #{shglnn_forward.10} parent=65 // pred_fallthru
          _
        %v288 = vld [vmem:[#allocation2] sm:$0xff]
        %v289 = vld [vmem:[#allocation2 + $0x8] sm:$0xff]
        %v290 = vld [vmem:[#allocation2 + $0x10] sm:$0xff]
        %v291 = vld [vmem:[#allocation2 + $0x18] sm:$0xff]
        %v292 = vld [vmem:[#allocation2 + $0x20] sm:$0xff]
        %v293 = vld [vmem:[#allocation2 + $0x28] sm:$0xff]
        %v294 = vld [vmem:[#allocation2 + $0x30] sm:$0xff]
        %v295 = vld [vmem:[#allocation2 + $0x38] sm:$0xff]
        %v296 = vld [vmem:[%s236] sm:$0xff]
        %v297 = vld [vmem:[%s236 + $0x8] sm:$0xff]
        %v298 = vld [vmem:[%s236 + $0x10] sm:$0xff]
        %v299 = vld [vmem:[%s236 + $0x18] sm:$0xff]
        %v300 = vld [vmem:[%s236 + $0x20] sm:$0xff]
        %v301 = vld [vmem:[%s236 + $0x28] sm:$0xff]
        %v302 = vld [vmem:[%s236 + $0x30] sm:$0xff]
        %v303 = vld [vmem:[%s236 + $0x38] sm:$0xff]
        %v304 = vld [vmem:[%s267] sm:$0xff]
        %v305 = vld [vmem:[%s267 + $0x8] sm:$0xff]
        %v306 = vld [vmem:[%s267 + $0x10] sm:$0xff]
        %v307 = vld [vmem:[%s267 + $0x18] sm:$0xff]
        %v308 = vld [vmem:[%s267 + $0x20] sm:$0xff]
        %v309 = vld [vmem:[%s267 + $0x28] sm:$0xff]
        %v310 = vld [vmem:[%s267 + $0x30] sm:$0xff]
        %v311 = vld [vmem:[%s267 + $0x38] sm:$0xff]
        %v312 = vld [vmem:[%s267 + $0x40] sm:$0xff]
        %v313 = vld [vmem:[%s267 + $0x48] sm:$0xff]
        %v314 = vld [vmem:[%s267 + $0x50] sm:$0xff]
        %v315 = vld [vmem:[%s267 + $0x58] sm:$0xff]
        %v316 = vld [vmem:[%s267 + $0x60] sm:$0xff]
        %v317 = vld [vmem:[%s267 + $0x68] sm:$0xff]
        %v318 = vld [vmem:[%s267 + $0x70] sm:$0xff]
        %v319 = vld [vmem:[%s267 + $0x78] sm:$0xff]
        %v320 = vand.u32 %v319, 4294901760
        %321 = vmatpush.msra.mxu0 %v320
        %v322 = vand.u32 %v318, 4294901760
        %323 = vmatpush.msra.mxu0 %v322
        %v324 = vand.u32 %v317, 4294901760
        %325 = vmatpush.msra.mxu0 %v324
        %v326 = vand.u32 %v316, 4294901760
        %327 = vmatpush.msra.mxu0 %v326
        %v328 = vand.u32 %v315, 4294901760
        %329 = vmatpush.msra.mxu0 %v328
        %v330 = vand.u32 %v314, 4294901760
        %331 = vmatpush.msra.mxu0 %v330
        %v332 = vand.u32 %v313, 4294901760
        %333 = vmatpush.msra.mxu0 %v332
        %v334 = vand.u32 %v312, 4294901760
        %335 = vmatpush.msra.mxu0 %v334
        %v336 = vand.u32 %v311, 4294901760
        %337 = vmatpush.msra.mxu0 %v336
        %v338 = vand.u32 %v310, 4294901760
        %339 = vmatpush.msra.mxu0 %v338
        %v340 = vand.u32 %v309, 4294901760
        %341 = vmatpush.msra.mxu0 %v340
        %v342 = vand.u32 %v308, 4294901760
        %343 = vmatpush.msra.mxu0 %v342
        %v344 = vand.u32 %v307, 4294901760
        %345 = vmatpush.msra.mxu0 %v344
        %v346 = vand.u32 %v306, 4294901760
        %347 = vmatpush.msra.mxu0 %v346
        %v348 = vand.u32 %v305, 4294901760
        %349 = vmatpush.msra.mxu0 %v348
        %v350 = vand.u32 %v304, 4294901760
        %351 = vmatpush.msra.mxu0 %v350
        %v352 = vand.u32 %v296, 4294901760
        %v353 = vsub.f32 %v296, %v352
        %v354 = vand.u32 %v353, 4294901760
        %v355 = vsub.f32 %v353, %v354
        %v356 = vand.u32 %v355, 4294901760
        %357 = vmatmul.f32.gmra.mxu0 %v356
        %v358 = vpop.f32.mrf.mxu0
        %v359 = vadd.f32 0.0, %v358
        %v360 = vand.u32 %v297, 4294901760
        %v361 = vsub.f32 %v297, %v360
        %v362 = vand.u32 %v361, 4294901760
        %v363 = vsub.f32 %v361, %v362
        %v364 = vand.u32 %v363, 4294901760
        %365 = vmatmul.f32.gmra.mxu0 %v364
        %v366 = vpop.f32.mrf.mxu0
        %v367 = vadd.f32 0.0, %v366
        %v368 = vand.u32 %v298, 4294901760
        %v369 = vsub.f32 %v298, %v368
        %v370 = vand.u32 %v369, 4294901760
        %v371 = vsub.f32 %v369, %v370
        %v372 = vand.u32 %v371, 4294901760
        %373 = vmatmul.f32.gmra.mxu0 %v372
        %v374 = vpop.f32.mrf.mxu0
        %v375 = vadd.f32 0.0, %v374
        %v376 = vand.u32 %v299, 4294901760
        %v377 = vsub.f32 %v299, %v376
        %v378 = vand.u32 %v377, 4294901760
        %v379 = vsub.f32 %v377, %v378
        %v380 = vand.u32 %v379, 4294901760
        %381 = vmatmul.f32.gmra.mxu0 %v380
        %v382 = vpop.f32.mrf.mxu0
        %v383 = vadd.f32 0.0, %v382
        %v384 = vand.u32 %v300, 4294901760
        %v385 = vsub.f32 %v300, %v384
        %v386 = vand.u32 %v385, 4294901760
        %v387 = vsub.f32 %v385, %v386
        %v388 = vand.u32 %v387, 4294901760
        %389 = vmatmul.f32.gmra.mxu0 %v388
        %v390 = vpop.f32.mrf.mxu0
        %v391 = vadd.f32 0.0, %v390
        %v392 = vand.u32 %v301, 4294901760
        %v393 = vsub.f32 %v301, %v392
        %v394 = vand.u32 %v393, 4294901760
        %v395 = vsub.f32 %v393, %v394
        %v396 = vand.u32 %v395, 4294901760
        %397 = vmatmul.f32.gmra.mxu0 %v396
        %v398 = vpop.f32.mrf.mxu0
        %v399 = vadd.f32 0.0, %v398
        %v400 = vand.u32 %v302, 4294901760
        %v401 = vsub.f32 %v302, %v400
        %v402 = vand.u32 %v401, 4294901760
        %v403 = vsub.f32 %v401, %v402
        %v404 = vand.u32 %v403, 4294901760
        %405 = vmatmul.f32.gmra.mxu0 %v404
        %v406 = vpop.f32.mrf.mxu0
        %v407 = vadd.f32 0.0, %v406
        %v408 = vand.u32 %v303, 4294901760
        %v409 = vsub.f32 %v303, %v408
        %v410 = vand.u32 %v409, 4294901760
        %v411 = vsub.f32 %v409, %v410
        %v412 = vand.u32 %v411, 4294901760
        %413 = vmatmul.f32.gmra.mxu0 %v412
        %v414 = vpop.f32.mrf.mxu0
        %v415 = vadd.f32 0.0, %v414
        %416 = vdwg.mxu0
        %v417 = vand.u32 %v319, 4294901760
        %v418 = vsub.f32 %v319, %v417
        %v419 = vand.u32 %v418, 4294901760
        %v420 = vsub.f32 %v418, %v419
        %v421 = vand.u32 %v420, 4294901760
        %422 = vmatpush.msra.mxu0 %v421
        %v423 = vand.u32 %v318, 4294901760
        %v424 = vsub.f32 %v318, %v423
        %v425 = vand.u32 %v424, 4294901760
        %v426 = vsub.f32 %v424, %v425
        %v427 = vand.u32 %v426, 4294901760
        %428 = vmatpush.msra.mxu0 %v427
        %v429 = vand.u32 %v317, 4294901760
        %v430 = vsub.f32 %v317, %v429
        %v431 = vand.u32 %v430, 4294901760
        %v432 = vsub.f32 %v430, %v431
        %v433 = vand.u32 %v432, 4294901760
        %434 = vmatpush.msra.mxu0 %v433
        %v435 = vand.u32 %v316, 4294901760
        %v436 = vsub.f32 %v316, %v435
        %v437 = vand.u32 %v436, 4294901760
        %v438 = vsub.f32 %v436, %v437
        %v439 = vand.u32 %v438, 4294901760
        %440 = vmatpush.msra.mxu0 %v439
        %v441 = vand.u32 %v315, 4294901760
        %v442 = vsub.f32 %v315, %v441
        %v443 = vand.u32 %v442, 4294901760
        %v444 = vsub.f32 %v442, %v443
        %v445 = vand.u32 %v444, 4294901760
        %446 = vmatpush.msra.mxu0 %v445
        %v447 = vand.u32 %v314, 4294901760
        %v448 = vsub.f32 %v314, %v447
        %v449 = vand.u32 %v448, 4294901760
        %v450 = vsub.f32 %v448, %v449
        %v451 = vand.u32 %v450, 4294901760
        %452 = vmatpush.msra.mxu0 %v451
        %v453 = vand.u32 %v313, 4294901760
        %v454 = vsub.f32 %v313, %v453
        %v455 = vand.u32 %v454, 4294901760
        %v456 = vsub.f32 %v454, %v455
        %v457 = vand.u32 %v456, 4294901760
        %458 = vmatpush.msra.mxu0 %v457
        %v459 = vand.u32 %v312, 4294901760
        %v460 = vsub.f32 %v312, %v459
        %v461 = vand.u32 %v460, 4294901760
        %v462 = vsub.f32 %v460, %v461
        %v463 = vand.u32 %v462, 4294901760
        %464 = vmatpush.msra.mxu0 %v463
        %v465 = vand.u32 %v311, 4294901760
        %v466 = vsub.f32 %v311, %v465
        %v467 = vand.u32 %v466, 4294901760
        %v468 = vsub.f32 %v466, %v467
        %v469 = vand.u32 %v468, 4294901760
        %470 = vmatpush.msra.mxu0 %v469
        %v471 = vand.u32 %v310, 4294901760
        %v472 = vsub.f32 %v310, %v471
        %v473 = vand.u32 %v472, 4294901760
        %v474 = vsub.f32 %v472, %v473
        %v475 = vand.u32 %v474, 4294901760
        %476 = vmatpush.msra.mxu0 %v475
        %v477 = vand.u32 %v309, 4294901760
        %v478 = vsub.f32 %v309, %v477
        %v479 = vand.u32 %v478, 4294901760
        %v480 = vsub.f32 %v478, %v479
        %v481 = vand.u32 %v480, 4294901760
        %482 = vmatpush.msra.mxu0 %v481
        %v483 = vand.u32 %v308, 4294901760
        %v484 = vsub.f32 %v308, %v483
        %v485 = vand.u32 %v484, 4294901760
        %v486 = vsub.f32 %v484, %v485
        %v487 = vand.u32 %v486, 4294901760
        %488 = vmatpush.msra.mxu0 %v487
        %v489 = vand.u32 %v307, 4294901760
        %v490 = vsub.f32 %v307, %v489
        %v491 = vand.u32 %v490, 4294901760
        %v492 = vsub.f32 %v490, %v491
        %v493 = vand.u32 %v492, 4294901760
        %494 = vmatpush.msra.mxu0 %v493
        %v495 = vand.u32 %v306, 4294901760
        %v496 = vsub.f32 %v306, %v495
        %v497 = vand.u32 %v496, 4294901760
        %v498 = vsub.f32 %v496, %v497
        %v499 = vand.u32 %v498, 4294901760
        %500 = vmatpush.msra.mxu0 %v499
        %v501 = vand.u32 %v305, 4294901760
        %v502 = vsub.f32 %v305, %v501
        %v503 = vand.u32 %v502, 4294901760
        %v504 = vsub.f32 %v502, %v503
        %v505 = vand.u32 %v504, 4294901760
        %506 = vmatpush.msra.mxu0 %v505
        %v507 = vand.u32 %v304, 4294901760
        %v508 = vsub.f32 %v304, %v507
        %v509 = vand.u32 %v508, 4294901760
        %v510 = vsub.f32 %v508, %v509
        %v511 = vand.u32 %v510, 4294901760
        %512 = vmatpush.msra.mxu0 %v511
        %v513 = vand.u32 %v296, 4294901760
        %514 = vmatmul.f32.gmra.mxu0 %v513
        %v515 = vpop.f32.mrf.mxu0
        %v516 = vadd.f32 %v359, %v515
        %v517 = vand.u32 %v297, 4294901760
        %518 = vmatmul.f32.gmra.mxu0 %v517
        %v519 = vpop.f32.mrf.mxu0
        %v520 = vadd.f32 %v367, %v519
        %v521 = vand.u32 %v298, 4294901760
        %522 = vmatmul.f32.gmra.mxu0 %v521
        %v523 = vpop.f32.mrf.mxu0
        %v524 = vadd.f32 %v375, %v523
        %v525 = vand.u32 %v299, 4294901760
        %526 = vmatmul.f32.gmra.mxu0 %v525
        %v527 = vpop.f32.mrf.mxu0
        %v528 = vadd.f32 %v383, %v527
        %v529 = vand.u32 %v300, 4294901760
        %530 = vmatmul.f32.gmra.mxu0 %v529
        %v531 = vpop.f32.mrf.mxu0
        %v532 = vadd.f32 %v391, %v531
        %v533 = vand.u32 %v301, 4294901760
        %534 = vmatmul.f32.gmra.mxu0 %v533
        %v535 = vpop.f32.mrf.mxu0
        %v536 = vadd.f32 %v399, %v535
        %v537 = vand.u32 %v302, 4294901760
        %538 = vmatmul.f32.gmra.mxu0 %v537
        %v539 = vpop.f32.mrf.mxu0
        %v540 = vadd.f32 %v407, %v539
        %v541 = vand.u32 %v303, 4294901760
        %542 = vmatmul.f32.gmra.mxu0 %v541
        %v543 = vpop.f32.mrf.mxu0
        %v544 = vadd.f32 %v415, %v543
        %545 = vdwg.mxu0
        %v546 = vand.u32 %v319, 4294901760
        %v547 = vsub.f32 %v319, %v546
        %548 = vmatpush.msra.mxu0 %v547
        %v549 = vand.u32 %v318, 4294901760
        %v550 = vsub.f32 %v318, %v549
        %551 = vmatpush.msra.mxu0 %v550
        %v552 = vand.u32 %v317, 4294901760
        %v553 = vsub.f32 %v317, %v552
        %554 = vmatpush.msra.mxu0 %v553
        %v555 = vand.u32 %v316, 4294901760
        %v556 = vsub.f32 %v316, %v555
        %557 = vmatpush.msra.mxu0 %v556
        %v558 = vand.u32 %v315, 4294901760
        %v559 = vsub.f32 %v315, %v558
        %560 = vmatpush.msra.mxu0 %v559
        %v561 = vand.u32 %v314, 4294901760
        %v562 = vsub.f32 %v314, %v561
        %563 = vmatpush.msra.mxu0 %v562
        %v564 = vand.u32 %v313, 4294901760
        %v565 = vsub.f32 %v313, %v564
        %566 = vmatpush.msra.mxu0 %v565
        %v567 = vand.u32 %v312, 4294901760
        %v568 = vsub.f32 %v312, %v567
        %569 = vmatpush.msra.mxu0 %v568
        %v570 = vand.u32 %v311, 4294901760
        %v571 = vsub.f32 %v311, %v570
        %572 = vmatpush.msra.mxu0 %v571
        %v573 = vand.u32 %v310, 4294901760
        %v574 = vsub.f32 %v310, %v573
        %575 = vmatpush.msra.mxu0 %v574
        %v576 = vand.u32 %v309, 4294901760
        %v577 = vsub.f32 %v309, %v576
        %578 = vmatpush.msra.mxu0 %v577
        %v579 = vand.u32 %v308, 4294901760
        %v580 = vsub.f32 %v308, %v579
        %581 = vmatpush.msra.mxu0 %v580
        %v582 = vand.u32 %v307, 4294901760
        %v583 = vsub.f32 %v307, %v582
        %584 = vmatpush.msra.mxu0 %v583
        %v585 = vand.u32 %v306, 4294901760
        %v586 = vsub.f32 %v306, %v585
        %587 = vmatpush.msra.mxu0 %v586
        %v588 = vand.u32 %v305, 4294901760
        %v589 = vsub.f32 %v305, %v588
        %590 = vmatpush.msra.mxu0 %v589
        %v591 = vand.u32 %v304, 4294901760
        %v592 = vsub.f32 %v304, %v591
        %593 = vmatpush.msra.mxu0 %v592
        %v594 = vand.u32 %v296, 4294901760
        %v595 = vsub.f32 %v296, %v594
        %596 = vmatmul.f32.gmra.mxu0 %v595
        %v597 = vpop.f32.mrf.mxu0
        %v598 = vadd.f32 %v516, %v597
        %v599 = vand.u32 %v297, 4294901760
        %v600 = vsub.f32 %v297, %v599
        %601 = vmatmul.f32.gmra.mxu0 %v600
        %v602 = vpop.f32.mrf.mxu0
        %v603 = vadd.f32 %v520, %v602
        %v604 = vand.u32 %v298, 4294901760
        %v605 = vsub.f32 %v298, %v604
        %606 = vmatmul.f32.gmra.mxu0 %v605
        %v607 = vpop.f32.mrf.mxu0
        %v608 = vadd.f32 %v524, %v607
        %v609 = vand.u32 %v299, 4294901760
        %v610 = vsub.f32 %v299, %v609
        %611 = vmatmul.f32.gmra.mxu0 %v610
        %v612 = vpop.f32.mrf.mxu0
        %v613 = vadd.f32 %v528, %v612
        %v614 = vand.u32 %v300, 4294901760
        %v615 = vsub.f32 %v300, %v614
        %616 = vmatmul.f32.gmra.mxu0 %v615
        %v617 = vpop.f32.mrf.mxu0
        %v618 = vadd.f32 %v532, %v617
        %v619 = vand.u32 %v301, 4294901760
        %v620 = vsub.f32 %v301, %v619
        %621 = vmatmul.f32.gmra.mxu0 %v620
        %v622 = vpop.f32.mrf.mxu0
        %v623 = vadd.f32 %v536, %v622
        %v624 = vand.u32 %v302, 4294901760
        %v625 = vsub.f32 %v302, %v624
        %626 = vmatmul.f32.gmra.mxu0 %v625
        %v627 = vpop.f32.mrf.mxu0
        %v628 = vadd.f32 %v540, %v627
        %v629 = vand.u32 %v303, 4294901760
        %v630 = vsub.f32 %v303, %v629
        %631 = vmatmul.f32.gmra.mxu0 %v630
        %v632 = vpop.f32.mrf.mxu0
        %v633 = vadd.f32 %v544, %v632
        %634 = vdwg.mxu0
        %v635 = vand.u32 %v319, 4294901760
        %636 = vmatpush.msra.mxu0 %v635
        %v637 = vand.u32 %v318, 4294901760
        %638 = vmatpush.msra.mxu0 %v637
        %v639 = vand.u32 %v317, 4294901760
        %640 = vmatpush.msra.mxu0 %v639
        %v641 = vand.u32 %v316, 4294901760
        %642 = vmatpush.msra.mxu0 %v641
        %v643 = vand.u32 %v315, 4294901760
        %644 = vmatpush.msra.mxu0 %v643
        %v645 = vand.u32 %v314, 4294901760
        %646 = vmatpush.msra.mxu0 %v645
        %v647 = vand.u32 %v313, 4294901760
        %648 = vmatpush.msra.mxu0 %v647
        %v649 = vand.u32 %v312, 4294901760
        %650 = vmatpush.msra.mxu0 %v649
        %v651 = vand.u32 %v311, 4294901760
        %652 = vmatpush.msra.mxu0 %v651
        %v653 = vand.u32 %v310, 4294901760
        %654 = vmatpush.msra.mxu0 %v653
        %v655 = vand.u32 %v309, 4294901760
        %656 = vmatpush.msra.mxu0 %v655
        %v657 = vand.u32 %v308, 4294901760
        %658 = vmatpush.msra.mxu0 %v657
        %v659 = vand.u32 %v307, 4294901760
        %660 = vmatpush.msra.mxu0 %v659
        %v661 = vand.u32 %v306, 4294901760
        %662 = vmatpush.msra.mxu0 %v661
        %v663 = vand.u32 %v305, 4294901760
        %664 = vmatpush.msra.mxu0 %v663
        %v665 = vand.u32 %v304, 4294901760
        %666 = vmatpush.msra.mxu0 %v665
        %v667 = vand.u32 %v296, 4294901760
        %v668 = vsub.f32 %v296, %v667
        %v669 = vand.u32 %v668, 4294901760
        %670 = vmatmul.f32.gmra.mxu0 %v669
        %v671 = vpop.f32.mrf.mxu0
        %v672 = vadd.f32 %v598, %v671
        %v673 = vand.u32 %v297, 4294901760
        %v674 = vsub.f32 %v297, %v673
        %v675 = vand.u32 %v674, 4294901760
        %676 = vmatmul.f32.gmra.mxu0 %v675
        %v677 = vpop.f32.mrf.mxu0
        %v678 = vadd.f32 %v603, %v677
        %v679 = vand.u32 %v298, 4294901760
        %v680 = vsub.f32 %v298, %v679
        %v681 = vand.u32 %v680, 4294901760
        %682 = vmatmul.f32.gmra.mxu0 %v681
        %v683 = vpop.f32.mrf.mxu0
        %v684 = vadd.f32 %v608, %v683
        %v685 = vand.u32 %v299, 4294901760
        %v686 = vsub.f32 %v299, %v685
        %v687 = vand.u32 %v686, 4294901760
        %688 = vmatmul.f32.gmra.mxu0 %v687
        %v689 = vpop.f32.mrf.mxu0
        %v690 = vadd.f32 %v613, %v689
        %v691 = vand.u32 %v300, 4294901760
        %v692 = vsub.f32 %v300, %v691
        %v693 = vand.u32 %v692, 4294901760
        %694 = vmatmul.f32.gmra.mxu0 %v693
        %v695 = vpop.f32.mrf.mxu0
        %v696 = vadd.f32 %v618, %v695
        %v697 = vand.u32 %v301, 4294901760
        %v698 = vsub.f32 %v301, %v697
        %v699 = vand.u32 %v698, 4294901760
        %700 = vmatmul.f32.gmra.mxu0 %v699
        %v701 = vpop.f32.mrf.mxu0
        %v702 = vadd.f32 %v623, %v701
        %v703 = vand.u32 %v302, 4294901760
        %v704 = vsub.f32 %v302, %v703
        %v705 = vand.u32 %v704, 4294901760
        %706 = vmatmul.f32.gmra.mxu0 %v705
        %v707 = vpop.f32.mrf.mxu0
        %v708 = vadd.f32 %v628, %v707
        %v709 = vand.u32 %v303, 4294901760
        %v710 = vsub.f32 %v303, %v709
        %v711 = vand.u32 %v710, 4294901760
        %712 = vmatmul.f32.gmra.mxu0 %v711
        %v713 = vpop.f32.mrf.mxu0
        %v714 = vadd.f32 %v633, %v713
        %715 = vdwg.mxu0
        %v716 = vand.u32 %v319, 4294901760
        %v717 = vsub.f32 %v319, %v716
        %v718 = vand.u32 %v717, 4294901760
        %719 = vmatpush.msra.mxu0 %v718
        %v720 = vand.u32 %v318, 4294901760
        %v721 = vsub.f32 %v318, %v720
        %v722 = vand.u32 %v721, 4294901760
        %723 = vmatpush.msra.mxu0 %v722
        %v724 = vand.u32 %v317, 4294901760
        %v725 = vsub.f32 %v317, %v724
        %v726 = vand.u32 %v725, 4294901760
        %727 = vmatpush.msra.mxu0 %v726
        %v728 = vand.u32 %v316, 4294901760
        %v729 = vsub.f32 %v316, %v728
        %v730 = vand.u32 %v729, 4294901760
        %731 = vmatpush.msra.mxu0 %v730
        %v732 = vand.u32 %v315, 4294901760
        %v733 = vsub.f32 %v315, %v732
        %v734 = vand.u32 %v733, 4294901760
        %735 = vmatpush.msra.mxu0 %v734
        %v736 = vand.u32 %v314, 4294901760
        %v737 = vsub.f32 %v314, %v736
        %v738 = vand.u32 %v737, 4294901760
        %739 = vmatpush.msra.mxu0 %v738
        %v740 = vand.u32 %v313, 4294901760
        %v741 = vsub.f32 %v313, %v740
        %v742 = vand.u32 %v741, 4294901760
        %743 = vmatpush.msra.mxu0 %v742
        %v744 = vand.u32 %v312, 4294901760
        %v745 = vsub.f32 %v312, %v744
        %v746 = vand.u32 %v745, 4294901760
        %747 = vmatpush.msra.mxu0 %v746
        %v748 = vand.u32 %v311, 4294901760
        %v749 = vsub.f32 %v311, %v748
        %v750 = vand.u32 %v749, 4294901760
        %751 = vmatpush.msra.mxu0 %v750
        %v752 = vand.u32 %v310, 4294901760
        %v753 = vsub.f32 %v310, %v752
        %v754 = vand.u32 %v753, 4294901760
        %755 = vmatpush.msra.mxu0 %v754
        %v756 = vand.u32 %v309, 4294901760
        %v757 = vsub.f32 %v309, %v756
        %v758 = vand.u32 %v757, 4294901760
        %759 = vmatpush.msra.mxu0 %v758
        %v760 = vand.u32 %v308, 4294901760
        %v761 = vsub.f32 %v308, %v760
        %v762 = vand.u32 %v761, 4294901760
        %763 = vmatpush.msra.mxu0 %v762
        %v764 = vand.u32 %v307, 4294901760
        %v765 = vsub.f32 %v307, %v764
        %v766 = vand.u32 %v765, 4294901760
        %767 = vmatpush.msra.mxu0 %v766
        %v768 = vand.u32 %v306, 4294901760
        %v769 = vsub.f32 %v306, %v768
        %v770 = vand.u32 %v769, 4294901760
        %771 = vmatpush.msra.mxu0 %v770
        %v772 = vand.u32 %v305, 4294901760
        %v773 = vsub.f32 %v305, %v772
        %v774 = vand.u32 %v773, 4294901760
        %775 = vmatpush.msra.mxu0 %v774
        %v776 = vand.u32 %v304, 4294901760
        %v777 = vsub.f32 %v304, %v776
        %v778 = vand.u32 %v777, 4294901760
        %779 = vmatpush.msra.mxu0 %v778
        %v780 = vand.u32 %v296, 4294901760
        %781 = vmatmul.f32.gmra.mxu0 %v780
        %v782 = vpop.f32.mrf.mxu0
        %v783 = vadd.f32 %v672, %v782
        %v784 = vand.u32 %v297, 4294901760
        %785 = vmatmul.f32.gmra.mxu0 %v784
        %v786 = vpop.f32.mrf.mxu0
        %v787 = vadd.f32 %v678, %v786
        %v788 = vand.u32 %v298, 4294901760
        %789 = vmatmul.f32.gmra.mxu0 %v788
        %v790 = vpop.f32.mrf.mxu0
        %v791 = vadd.f32 %v684, %v790
        %v792 = vand.u32 %v299, 4294901760
        %793 = vmatmul.f32.gmra.mxu0 %v792
        %v794 = vpop.f32.mrf.mxu0
        %v795 = vadd.f32 %v690, %v794
        %v796 = vand.u32 %v300, 4294901760
        %797 = vmatmul.f32.gmra.mxu0 %v796
        %v798 = vpop.f32.mrf.mxu0
        %v799 = vadd.f32 %v696, %v798
        %v800 = vand.u32 %v301, 4294901760
        %801 = vmatmul.f32.gmra.mxu0 %v800
        %v802 = vpop.f32.mrf.mxu0
        %v803 = vadd.f32 %v702, %v802
        %v804 = vand.u32 %v302, 4294901760
        %805 = vmatmul.f32.gmra.mxu0 %v804
        %v806 = vpop.f32.mrf.mxu0
        %v807 = vadd.f32 %v708, %v806
        %v808 = vand.u32 %v303, 4294901760
        %809 = vmatmul.f32.gmra.mxu0 %v808
        %v810 = vpop.f32.mrf.mxu0
        %v811 = vadd.f32 %v714, %v810
        %812 = vdwg.mxu0
        %v813 = vand.u32 %v319, 4294901760
        %814 = vmatpush.msra.mxu0 %v813
        %v815 = vand.u32 %v318, 4294901760
        %816 = vmatpush.msra.mxu0 %v815
        %v817 = vand.u32 %v317, 4294901760
        %818 = vmatpush.msra.mxu0 %v817
        %v819 = vand.u32 %v316, 4294901760
        %820 = vmatpush.msra.mxu0 %v819
        %v821 = vand.u32 %v315, 4294901760
        %822 = vmatpush.msra.mxu0 %v821
        %v823 = vand.u32 %v314, 4294901760
        %824 = vmatpush.msra.mxu0 %v823
        %v825 = vand.u32 %v313, 4294901760
        %826 = vmatpush.msra.mxu0 %v825
        %v827 = vand.u32 %v312, 4294901760
        %828 = vmatpush.msra.mxu0 %v827
        %v829 = vand.u32 %v311, 4294901760
        %830 = vmatpush.msra.mxu0 %v829
        %v831 = vand.u32 %v310, 4294901760
        %832 = vmatpush.msra.mxu0 %v831
        %v833 = vand.u32 %v309, 4294901760
        %834 = vmatpush.msra.mxu0 %v833
        %v835 = vand.u32 %v308, 4294901760
        %836 = vmatpush.msra.mxu0 %v835
        %v837 = vand.u32 %v307, 4294901760
        %838 = vmatpush.msra.mxu0 %v837
        %v839 = vand.u32 %v306, 4294901760
        %840 = vmatpush.msra.mxu0 %v839
        %v841 = vand.u32 %v305, 4294901760
        %842 = vmatpush.msra.mxu0 %v841
        %v843 = vand.u32 %v304, 4294901760
        %844 = vmatpush.msra.mxu0 %v843
        %v845 = vand.u32 %v296, 4294901760
        %846 = vmatmul.f32.gmra.mxu0 %v845
        %v847 = vpop.f32.mrf.mxu0
        %v848 = vadd.f32 %v783, %v847
        %v849 = vand.u32 %v297, 4294901760
        %850 = vmatmul.f32.gmra.mxu0 %v849
        %v851 = vpop.f32.mrf.mxu0
        %v852 = vadd.f32 %v787, %v851
        %v853 = vand.u32 %v298, 4294901760
        %854 = vmatmul.f32.gmra.mxu0 %v853
        %v855 = vpop.f32.mrf.mxu0
        %v856 = vadd.f32 %v791, %v855
        %v857 = vand.u32 %v299, 4294901760
        %858 = vmatmul.f32.gmra.mxu0 %v857
        %v859 = vpop.f32.mrf.mxu0
        %v860 = vadd.f32 %v795, %v859
        %v861 = vand.u32 %v300, 4294901760
        %862 = vmatmul.f32.gmra.mxu0 %v861
        %v863 = vpop.f32.mrf.mxu0
        %v864 = vadd.f32 %v799, %v863
        %v865 = vand.u32 %v301, 4294901760
        %866 = vmatmul.f32.gmra.mxu0 %v865
        %v867 = vpop.f32.mrf.mxu0
        %v868 = vadd.f32 %v803, %v867
        %v869 = vand.u32 %v302, 4294901760
        %870 = vmatmul.f32.gmra.mxu0 %v869
        %v871 = vpop.f32.mrf.mxu0
        %v872 = vadd.f32 %v807, %v871
        %v873 = vand.u32 %v303, 4294901760
        %874 = vmatmul.f32.gmra.mxu0 %v873
        %v875 = vpop.f32.mrf.mxu0
        %v876 = vadd.f32 %v811, %v875
        %877 = vdwg.mxu0
        %v878 = vadd.f32 %v288, %v848
        %v879 = vadd.f32 %v289, %v852
        %v880 = vadd.f32 %v290, %v856
        %v881 = vadd.f32 %v291, %v860
        %v882 = vadd.f32 %v292, %v864
        %v883 = vadd.f32 %v293, %v868
        %v884 = vadd.f32 %v294, %v872
        %v885 = vadd.f32 %v295, %v876
        %vm886 = vcmask 261120
        %887 = vst.msk [vmem:[#allocation2] sm:$0xff] %vm886, %v878
        %888 = vst.msk [vmem:[#allocation2 + $0x8] sm:$0xff] %vm886, %v879
        %889 = vst.msk [vmem:[#allocation2 + $0x10] sm:$0xff] %vm886, %v880
        %890 = vst.msk [vmem:[#allocation2 + $0x18] sm:$0xff] %vm886, %v881
        %891 = vst.msk [vmem:[#allocation2 + $0x20] sm:$0xff] %vm886, %v882
        %892 = vst.msk [vmem:[#allocation2 + $0x28] sm:$0xff] %vm886, %v883
        %893 = vst.msk [vmem:[#allocation2 + $0x30] sm:$0xff] %vm886, %v884
        %894 = vst.msk [vmem:[#allocation2 + $0x38] sm:$0xff] %vm886, %v885
        %p895 = scmp.eq.s32.totalorder %s19, 1
        // Predicated region
        $region75: #{shglnn_forward.10} parent=65 // pred_check
          %p896 = pneg %p895
        $region76: #{shglnn_forward.10} parent=65 // pred_check_branch
          %898 = sbr.rel (%p896) target = $region78
        $region77: #{shglnn_forward.10} parent=65 // pred_region
          %v899 = vld [vmem:[#allocation2] sm:$0xff]
          %v900 = vld [vmem:[#allocation2 + $0x8] sm:$0xff]
          %v901 = vld [vmem:[#allocation2 + $0x10] sm:$0xff]
          %v902 = vld [vmem:[#allocation2 + $0x18] sm:$0xff]
          %v903 = vld [vmem:[#allocation2 + $0x20] sm:$0xff]
          %v904 = vld [vmem:[#allocation2 + $0x28] sm:$0xff]
          %v905 = vld [vmem:[#allocation2 + $0x30] sm:$0xff]
          %v906 = vld [vmem:[#allocation2 + $0x38] sm:$0xff]
          %v907 = vld [vmem:[%s2] sm:$0x1]
          %v909 = vperm.slane %v907, 0
          %v911 = vadd.f32 %v899, %v909
          %v912 = vadd.f32 %v900, %v909
          %v913 = vadd.f32 %v901, %v909
          %v914 = vadd.f32 %v902, %v909
          %v915 = vadd.f32 %v903, %v909
          %v916 = vadd.f32 %v904, %v909
          %v917 = vadd.f32 %v905, %v909
          %v918 = vadd.f32 %v906, %v909
          %v919 = vmax.f32 %v911, 0.0
          %v920 = vmax.f32 %v912, 0.0
          %v921 = vmax.f32 %v913, 0.0
          %v922 = vmax.f32 %v914, 0.0
          %v923 = vmax.f32 %v915, 0.0
          %v924 = vmax.f32 %v916, 0.0
          %v925 = vmax.f32 %v917, 0.0
          %v926 = vmax.f32 %v918, 0.0
          %927 = vst.msk [vmem:[%s273] sm:$0xff] %vm886, %v919
          %928 = vst.msk [vmem:[%s273 + $0x8] sm:$0xff] %vm886, %v920
          %929 = vst.msk [vmem:[%s273 + $0x10] sm:$0xff] %vm886, %v921
          %930 = vst.msk [vmem:[%s273 + $0x18] sm:$0xff] %vm886, %v922
          %931 = vst.msk [vmem:[%s273 + $0x20] sm:$0xff] %vm886, %v923
          %932 = vst.msk [vmem:[%s273 + $0x28] sm:$0xff] %vm886, %v924
          %933 = vst.msk [vmem:[%s273 + $0x30] sm:$0xff] %vm886, %v925
          %934 = vst.msk [vmem:[%s273 + $0x38] sm:$0xff] %vm886, %v926
        $region78: #{shglnn_forward.10} parent=65 // pred_fallthru
          _
        %s935 = smul.u32 8, %s18
        %p936 = scmp.lt.s32.totalorder %s935, 31
        %s937 = scalar_select %p936, %s935, 31
        %s938 = smul.addr %s937, 8
        %s939 = scalar_lea.vmem %s3, %s938
        // Predicated region
        $region79: #{shglnn_forward.10} parent=65 // pred_check
          %p940 = pneg %p119
        $region80: #{shglnn_forward.10} parent=65 // pred_check_branch
          %942 = sbr.rel (%p940) target = $region82
        $region81: #{shglnn_forward.10} parent=65 // pred_region
          %s943 = smul.u32 8, %s18
        $region82: #{shglnn_forward.10} parent=65 // pred_fallthru
          _
      $region66: #{shglnn_forward.10} parent=5 // pred_fallthru
        _
      %p944 = scmp.le.s32.totalorder 2, %s9
      // Predicated region
      $region83: #{shglnn_forward.10} parent=5 // pred_check
        %p945 = pneg %p944
      $region84: #{shglnn_forward.10} parent=5 // pred_check_branch
        %947 = sbr.rel (%p945) target = $region86
      $region85: #{shglnn_forward.10} parent=5 // pred_region
        %s948 = ssub.s32 %s9, 2
        // Predicated region
        $region87: #{shglnn_forward.10} parent=85 // pred_check
          %p949 = pneg %p125
        $region88: #{shglnn_forward.10} parent=85 // pred_check_branch
          %951 = sbr.rel (%p949) target = $region90
        $region89: #{shglnn_forward.10} parent=85 // pred_region
          %s952 = smul.u32 8, %s20
          %p953 = scmp.lt.s32.totalorder %s952, 31
          %s954 = scalar_select %p953, %s952, 31
          %s955 = smul.addr %s954, 8
          %s956 = scalar_lea.vmem %s3, %s955
        $region90: #{shglnn_forward.10} parent=85 // pred_fallthru
          _
      $region86: #{shglnn_forward.10} parent=5 // pred_fallthru
        _
    $region6: #{shglnn_forward.10} parent=1 // loop_footer
      %s13 = sadd.s32 1, %s9
    $region7: #{shglnn_forward.10} parent=1 // loop_footer_branch
      %8 = sbr.rel target = $region3
    $region8: #{shglnn_forward.10} parent=1 // loop_exit
      _

// kernel: shglnn_forward.11
$region0: #{shglnn_forward.11}
  #allocation0 [shape = 'u32[]', space=smem, size = 0x4, offset = 0x4, fixed_abs, tag = 'smem constant byte address 0x4 - core index']
  #allocation1 [shape = 'u32[72,128]{1,0:T(1,128)}', space=vmem, size = 0x9000, scoped, tag = 'internal scratch']
  %s0 = inlined_call_operand.vmem [shape: f32[2,256], index: 0, kind: input, shape index: {}]
  %s1 = inlined_call_operand.vmem [shape: f32[256,32], index: 1, kind: input, shape index: {}]
  %s2 = inlined_call_operand.vmem [shape: f32[32,4], index: 2, kind: input, shape index: {}]
  %s3 = inlined_call_operand.vmem [shape: f32[1,4], index: 3, kind: input, shape index: {}]
  %s4 = inlined_call_operand.hbm [shape: f32[2,4], index: 4, kind: output, shape index: {}]
  %s5 = sld [smem:[#allocation0]]
  $region26: #{shglnn_forward.11} parent=0
    _
  %s7 = ssub.s32 1, %s5
  %s8 = scalar_select 0, %s7, %s5
  $region1: #{shglnn_forward.11} parent=0
    #allocation2 [shape = 'u8[1024]{0}', space=vmem, size = 0x400, scoped, tag = 'output window, operand 0, single buffered']
    #allocation3 [shape = 's32[1]{0}', space=sflag, size = 0x4, scoped, tag = 'scoped memory for shglnn_forward.11']
    %9 = vsyncpa [#allocation3], 0
    // Predicated region
    $region2: #{shglnn_forward.11} parent=1 // pred_check
      _
    $region3: #{shglnn_forward.11} parent=1 // pred_check_branch
      %11 = sbr.rel (0) target = $region5
    $region4: #{shglnn_forward.11} parent=1 // pred_region
      _
    $region5: #{shglnn_forward.11} parent=1 // pred_fallthru
      _
    // Predicated region
    $region6: #{shglnn_forward.11} parent=1 // pred_check
      _
    $region7: #{shglnn_forward.11} parent=1 // pred_check_branch
      %13 = sbr.rel (0) target = $region9
    $region8: #{shglnn_forward.11} parent=1 // pred_region
      _
    $region9: #{shglnn_forward.11} parent=1 // pred_fallthru
      _
    // Predicated region
    $region10: #{shglnn_forward.11} parent=1 // pred_check
      _
    $region11: #{shglnn_forward.11} parent=1 // pred_check_branch
      %15 = sbr.rel (0) target = $region13
    $region12: #{shglnn_forward.11} parent=1 // pred_region
      _
    $region13: #{shglnn_forward.11} parent=1 // pred_fallthru
      _
    // Predicated region
    $region14: #{shglnn_forward.11} parent=1 // pred_check
      _
    $region15: #{shglnn_forward.11} parent=1 // pred_check_branch
      %17 = sbr.rel (0) target = $region17
    $region16: #{shglnn_forward.11} parent=1 // pred_region
      _
    $region17: #{shglnn_forward.11} parent=1 // pred_fallthru
      _
    %v18 = vld [vmem:[%s0] sm:$0xf]
    %v19 = vld [vmem:[%s1] sm:$0xff]
    %v20 = vld [vmem:[%s1 + $0x8] sm:$0xff]
    %v21 = vld [vmem:[%s1 + $0x10] sm:$0xff]
    %v22 = vld [vmem:[%s1 + $0x18] sm:$0xff]
    %v23 = vld [vmem:[%s1 + $0x20] sm:$0xff]
    %v24 = vld [vmem:[%s1 + $0x28] sm:$0xff]
    %v25 = vld [vmem:[%s1 + $0x30] sm:$0xff]
    %v26 = vld [vmem:[%s1 + $0x38] sm:$0xff]
    %v27 = vld [vmem:[%s1 + $0x40] sm:$0xff]
    %v28 = vld [vmem:[%s1 + $0x48] sm:$0xff]
    %v29 = vld [vmem:[%s1 + $0x50] sm:$0xff]
    %v30 = vld [vmem:[%s1 + $0x58] sm:$0xff]
    %v31 = vld [vmem:[%s1 + $0x60] sm:$0xff]
    %v32 = vld [vmem:[%s1 + $0x68] sm:$0xff]
    %v33 = vld [vmem:[%s1 + $0x70] sm:$0xff]
    %v34 = vld [vmem:[%s1 + $0x78] sm:$0xff]
    %v35 = vld [vmem:[%s1 + $0x80] sm:$0xff]
    %v36 = vld [vmem:[%s1 + $0x88] sm:$0xff]
    %v37 = vld [vmem:[%s1 + $0x90] sm:$0xff]
    %v38 = vld [vmem:[%s1 + $0x98] sm:$0xff]
    %v39 = vld [vmem:[%s1 + $0xa0] sm:$0xff]
    %v40 = vld [vmem:[%s1 + $0xa8] sm:$0xff]
    %v41 = vld [vmem:[%s1 + $0xb0] sm:$0xff]
    %v42 = vld [vmem:[%s1 + $0xb8] sm:$0xff]
    %v43 = vld [vmem:[%s1 + $0xc0] sm:$0xff]
    %v44 = vld [vmem:[%s1 + $0xc8] sm:$0xff]
    %v45 = vld [vmem:[%s1 + $0xd0] sm:$0xff]
    %v46 = vld [vmem:[%s1 + $0xd8] sm:$0xff]
    %v47 = vld [vmem:[%s1 + $0xe0] sm:$0xff]
    %v48 = vld [vmem:[%s1 + $0xe8] sm:$0xff]
    %v49 = vld [vmem:[%s1 + $0xf0] sm:$0xff]
    %v50 = vld [vmem:[%s1 + $0xf8] sm:$0xff]
    %52 = vst [vmem:[#allocation1] ss:$4 sm:$0xff] %v18
    %v53 = vld.sshfl [vmem:[#allocation1] sm:$0xff pattern:$0x73625140]
    %v54 = vld.sshfl [vmem:[#allocation1 + $0x8] sm:$0xff pattern:$0x73625140]
    %v57 = vand.u32 %v34, 4294901760
    %58 = vmatpush.msra.mxu0 %v57
    %v59 = vand.u32 %v33, 4294901760
    %60 = vmatpush.msra.mxu0 %v59
    %v61 = vand.u32 %v32, 4294901760
    %62 = vmatpush.msra.mxu0 %v61
    %v63 = vand.u32 %v31, 4294901760
    %64 = vmatpush.msra.mxu0 %v63
    %v65 = vand.u32 %v30, 4294901760
    %66 = vmatpush.msra.mxu0 %v65
    %v67 = vand.u32 %v29, 4294901760
    %68 = vmatpush.msra.mxu0 %v67
    %v69 = vand.u32 %v28, 4294901760
    %70 = vmatpush.msra.mxu0 %v69
    %v71 = vand.u32 %v27, 4294901760
    %72 = vmatpush.msra.mxu0 %v71
    %v73 = vand.u32 %v26, 4294901760
    %74 = vmatpush.msra.mxu0 %v73
    %v75 = vand.u32 %v25, 4294901760
    %76 = vmatpush.msra.mxu0 %v75
    %v77 = vand.u32 %v24, 4294901760
    %78 = vmatpush.msra.mxu0 %v77
    %v79 = vand.u32 %v23, 4294901760
    %80 = vmatpush.msra.mxu0 %v79
    %v81 = vand.u32 %v22, 4294901760
    %82 = vmatpush.msra.mxu0 %v81
    %v83 = vand.u32 %v21, 4294901760
    %84 = vmatpush.msra.mxu0 %v83
    %v85 = vand.u32 %v20, 4294901760
    %86 = vmatpush.msra.mxu0 %v85
    %v87 = vand.u32 %v19, 4294901760
    %88 = vmatpush.msra.mxu0 %v87
    %v89 = vand.u32 %v53, 4294901760
    %v90 = vsub.f32 %v53, %v89
    %v91 = vand.u32 %v90, 4294901760
    %v92 = vsub.f32 %v90, %v91
    %v93 = vand.u32 %v92, 4294901760
    %94 = vmatmul.f32.gmra.mxu0 %v93
    %v95 = vpop.f32.mrf.mxu0
    %v96 = vadd.f32 0.0, %v95
    %97 = vdwg.mxu0
    %v98 = vand.u32 %v34, 4294901760
    %v99 = vsub.f32 %v34, %v98
    %v100 = vand.u32 %v99, 4294901760
    %v101 = vsub.f32 %v99, %v100
    %v102 = vand.u32 %v101, 4294901760
    %103 = vmatpush.msra.mxu0 %v102
    %v104 = vand.u32 %v33, 4294901760
    %v105 = vsub.f32 %v33, %v104
    %v106 = vand.u32 %v105, 4294901760
    %v107 = vsub.f32 %v105, %v106
    %v108 = vand.u32 %v107, 4294901760
    %109 = vmatpush.msra.mxu0 %v108
    %v110 = vand.u32 %v32, 4294901760
    %v111 = vsub.f32 %v32, %v110
    %v112 = vand.u32 %v111, 4294901760
    %v113 = vsub.f32 %v111, %v112
    %v114 = vand.u32 %v113, 4294901760
    %115 = vmatpush.msra.mxu0 %v114
    %v116 = vand.u32 %v31, 4294901760
    %v117 = vsub.f32 %v31, %v116
    %v118 = vand.u32 %v117, 4294901760
    %v119 = vsub.f32 %v117, %v118
    %v120 = vand.u32 %v119, 4294901760
    %121 = vmatpush.msra.mxu0 %v120
    %v122 = vand.u32 %v30, 4294901760
    %v123 = vsub.f32 %v30, %v122
    %v124 = vand.u32 %v123, 4294901760
    %v125 = vsub.f32 %v123, %v124
    %v126 = vand.u32 %v125, 4294901760
    %127 = vmatpush.msra.mxu0 %v126
    %v128 = vand.u32 %v29, 4294901760
    %v129 = vsub.f32 %v29, %v128
    %v130 = vand.u32 %v129, 4294901760
    %v131 = vsub.f32 %v129, %v130
    %v132 = vand.u32 %v131, 4294901760
    %133 = vmatpush.msra.mxu0 %v132
    %v134 = vand.u32 %v28, 4294901760
    %v135 = vsub.f32 %v28, %v134
    %v136 = vand.u32 %v135, 4294901760
    %v137 = vsub.f32 %v135, %v136
    %v138 = vand.u32 %v137, 4294901760
    %139 = vmatpush.msra.mxu0 %v138
    %v140 = vand.u32 %v27, 4294901760
    %v141 = vsub.f32 %v27, %v140
    %v142 = vand.u32 %v141, 4294901760
    %v143 = vsub.f32 %v141, %v142
    %v144 = vand.u32 %v143, 4294901760
    %145 = vmatpush.msra.mxu0 %v144
    %v146 = vand.u32 %v26, 4294901760
    %v147 = vsub.f32 %v26, %v146
    %v148 = vand.u32 %v147, 4294901760
    %v149 = vsub.f32 %v147, %v148
    %v150 = vand.u32 %v149, 4294901760
    %151 = vmatpush.msra.mxu0 %v150
    %v152 = vand.u32 %v25, 4294901760
    %v153 = vsub.f32 %v25, %v152
    %v154 = vand.u32 %v153, 4294901760
    %v155 = vsub.f32 %v153, %v154
    %v156 = vand.u32 %v155, 4294901760
    %157 = vmatpush.msra.mxu0 %v156
    %v158 = vand.u32 %v24, 4294901760
    %v159 = vsub.f32 %v24, %v158
    %v160 = vand.u32 %v159, 4294901760
    %v161 = vsub.f32 %v159, %v160
    %v162 = vand.u32 %v161, 4294901760
    %163 = vmatpush.msra.mxu0 %v162
    %v164 = vand.u32 %v23, 4294901760
    %v165 = vsub.f32 %v23, %v164
    %v166 = vand.u32 %v165, 4294901760
    %v167 = vsub.f32 %v165, %v166
    %v168 = vand.u32 %v167, 4294901760
    %169 = vmatpush.msra.mxu0 %v168
    %v170 = vand.u32 %v22, 4294901760
    %v171 = vsub.f32 %v22, %v170
    %v172 = vand.u32 %v171, 4294901760
    %v173 = vsub.f32 %v171, %v172
    %v174 = vand.u32 %v173, 4294901760
    %175 = vmatpush.msra.mxu0 %v174
    %v176 = vand.u32 %v21, 4294901760
    %v177 = vsub.f32 %v21, %v176
    %v178 = vand.u32 %v177, 4294901760
    %v179 = vsub.f32 %v177, %v178
    %v180 = vand.u32 %v179, 4294901760
    %181 = vmatpush.msra.mxu0 %v180
    %v182 = vand.u32 %v20, 4294901760
    %v183 = vsub.f32 %v20, %v182
    %v184 = vand.u32 %v183, 4294901760
    %v185 = vsub.f32 %v183, %v184
    %v186 = vand.u32 %v185, 4294901760
    %187 = vmatpush.msra.mxu0 %v186
    %v188 = vand.u32 %v19, 4294901760
    %v189 = vsub.f32 %v19, %v188
    %v190 = vand.u32 %v189, 4294901760
    %v191 = vsub.f32 %v189, %v190
    %v192 = vand.u32 %v191, 4294901760
    %193 = vmatpush.msra.mxu0 %v192
    %v194 = vand.u32 %v53, 4294901760
    %195 = vmatmul.f32.gmra.mxu0 %v194
    %v196 = vpop.f32.mrf.mxu0
    %v197 = vadd.f32 %v96, %v196
    %198 = vdwg.mxu0
    %v199 = vand.u32 %v34, 4294901760
    %v200 = vsub.f32 %v34, %v199
    %201 = vmatpush.msra.mxu0 %v200
    %v202 = vand.u32 %v33, 4294901760
    %v203 = vsub.f32 %v33, %v202
    %204 = vmatpush.msra.mxu0 %v203
    %v205 = vand.u32 %v32, 4294901760
    %v206 = vsub.f32 %v32, %v205
    %207 = vmatpush.msra.mxu0 %v206
    %v208 = vand.u32 %v31, 4294901760
    %v209 = vsub.f32 %v31, %v208
    %210 = vmatpush.msra.mxu0 %v209
    %v211 = vand.u32 %v30, 4294901760
    %v212 = vsub.f32 %v30, %v211
    %213 = vmatpush.msra.mxu0 %v212
    %v214 = vand.u32 %v29, 4294901760
    %v215 = vsub.f32 %v29, %v214
    %216 = vmatpush.msra.mxu0 %v215
    %v217 = vand.u32 %v28, 4294901760
    %v218 = vsub.f32 %v28, %v217
    %219 = vmatpush.msra.mxu0 %v218
    %v220 = vand.u32 %v27, 4294901760
    %v221 = vsub.f32 %v27, %v220
    %222 = vmatpush.msra.mxu0 %v221
    %v223 = vand.u32 %v26, 4294901760
    %v224 = vsub.f32 %v26, %v223
    %225 = vmatpush.msra.mxu0 %v224
    %v226 = vand.u32 %v25, 4294901760
    %v227 = vsub.f32 %v25, %v226
    %228 = vmatpush.msra.mxu0 %v227
    %v229 = vand.u32 %v24, 4294901760
    %v230 = vsub.f32 %v24, %v229
    %231 = vmatpush.msra.mxu0 %v230
    %v232 = vand.u32 %v23, 4294901760
    %v233 = vsub.f32 %v23, %v232
    %234 = vmatpush.msra.mxu0 %v233
    %v235 = vand.u32 %v22, 4294901760
    %v236 = vsub.f32 %v22, %v235
    %237 = vmatpush.msra.mxu0 %v236
    %v238 = vand.u32 %v21, 4294901760
    %v239 = vsub.f32 %v21, %v238
    %240 = vmatpush.msra.mxu0 %v239
    %v241 = vand.u32 %v20, 4294901760
    %v242 = vsub.f32 %v20, %v241
    %243 = vmatpush.msra.mxu0 %v242
    %v244 = vand.u32 %v19, 4294901760
    %v245 = vsub.f32 %v19, %v244
    %246 = vmatpush.msra.mxu0 %v245
    %v247 = vand.u32 %v53, 4294901760
    %v248 = vsub.f32 %v53, %v247
    %249 = vmatmul.f32.gmra.mxu0 %v248
    %v250 = vpop.f32.mrf.mxu0
    %v251 = vadd.f32 %v197, %v250
    %252 = vdwg.mxu0
    %v253 = vand.u32 %v34, 4294901760
    %254 = vmatpush.msra.mxu0 %v253
    %v255 = vand.u32 %v33, 4294901760
    %256 = vmatpush.msra.mxu0 %v255
    %v257 = vand.u32 %v32, 4294901760
    %258 = vmatpush.msra.mxu0 %v257
    %v259 = vand.u32 %v31, 4294901760
    %260 = vmatpush.msra.mxu0 %v259
    %v261 = vand.u32 %v30, 4294901760
    %262 = vmatpush.msra.mxu0 %v261
    %v263 = vand.u32 %v29, 4294901760
    %264 = vmatpush.msra.mxu0 %v263
    %v265 = vand.u32 %v28, 4294901760
    %266 = vmatpush.msra.mxu0 %v265
    %v267 = vand.u32 %v27, 4294901760
    %268 = vmatpush.msra.mxu0 %v267
    %v269 = vand.u32 %v26, 4294901760
    %270 = vmatpush.msra.mxu0 %v269
    %v271 = vand.u32 %v25, 4294901760
    %272 = vmatpush.msra.mxu0 %v271
    %v273 = vand.u32 %v24, 4294901760
    %274 = vmatpush.msra.mxu0 %v273
    %v275 = vand.u32 %v23, 4294901760
    %276 = vmatpush.msra.mxu0 %v275
    %v277 = vand.u32 %v22, 4294901760
    %278 = vmatpush.msra.mxu0 %v277
    %v279 = vand.u32 %v21, 4294901760
    %280 = vmatpush.msra.mxu0 %v279
    %v281 = vand.u32 %v20, 4294901760
    %282 = vmatpush.msra.mxu0 %v281
    %v283 = vand.u32 %v19, 4294901760
    %284 = vmatpush.msra.mxu0 %v283
    %v285 = vand.u32 %v53, 4294901760
    %v286 = vsub.f32 %v53, %v285
    %v287 = vand.u32 %v286, 4294901760
    %288 = vmatmul.f32.gmra.mxu0 %v287
    %v289 = vpop.f32.mrf.mxu0
    %v290 = vadd.f32 %v251, %v289
    %291 = vdwg.mxu0
    %v292 = vand.u32 %v34, 4294901760
    %v293 = vsub.f32 %v34, %v292
    %v294 = vand.u32 %v293, 4294901760
    %295 = vmatpush.msra.mxu0 %v294
    %v296 = vand.u32 %v33, 4294901760
    %v297 = vsub.f32 %v33, %v296
    %v298 = vand.u32 %v297, 4294901760
    %299 = vmatpush.msra.mxu0 %v298
    %v300 = vand.u32 %v32, 4294901760
    %v301 = vsub.f32 %v32, %v300
    %v302 = vand.u32 %v301, 4294901760
    %303 = vmatpush.msra.mxu0 %v302
    %v304 = vand.u32 %v31, 4294901760
    %v305 = vsub.f32 %v31, %v304
    %v306 = vand.u32 %v305, 4294901760
    %307 = vmatpush.msra.mxu0 %v306
    %v308 = vand.u32 %v30, 4294901760
    %v309 = vsub.f32 %v30, %v308
    %v310 = vand.u32 %v309, 4294901760
    %311 = vmatpush.msra.mxu0 %v310
    %v312 = vand.u32 %v29, 4294901760
    %v313 = vsub.f32 %v29, %v312
    %v314 = vand.u32 %v313, 4294901760
    %315 = vmatpush.msra.mxu0 %v314
    %v316 = vand.u32 %v28, 4294901760
    %v317 = vsub.f32 %v28, %v316
    %v318 = vand.u32 %v317, 4294901760
    %319 = vmatpush.msra.mxu0 %v318
    %v320 = vand.u32 %v27, 4294901760
    %v321 = vsub.f32 %v27, %v320
    %v322 = vand.u32 %v321, 4294901760
    %323 = vmatpush.msra.mxu0 %v322
    %v324 = vand.u32 %v26, 4294901760
    %v325 = vsub.f32 %v26, %v324
    %v326 = vand.u32 %v325, 4294901760
    %327 = vmatpush.msra.mxu0 %v326
    %v328 = vand.u32 %v25, 4294901760
    %v329 = vsub.f32 %v25, %v328
    %v330 = vand.u32 %v329, 4294901760
    %331 = vmatpush.msra.mxu0 %v330
    %v332 = vand.u32 %v24, 4294901760
    %v333 = vsub.f32 %v24, %v332
    %v334 = vand.u32 %v333, 4294901760
    %335 = vmatpush.msra.mxu0 %v334
    %v336 = vand.u32 %v23, 4294901760
    %v337 = vsub.f32 %v23, %v336
    %v338 = vand.u32 %v337, 4294901760
    %339 = vmatpush.msra.mxu0 %v338
    %v340 = vand.u32 %v22, 4294901760
    %v341 = vsub.f32 %v22, %v340
    %v342 = vand.u32 %v341, 4294901760
    %343 = vmatpush.msra.mxu0 %v342
    %v344 = vand.u32 %v21, 4294901760
    %v345 = vsub.f32 %v21, %v344
    %v346 = vand.u32 %v345, 4294901760
    %347 = vmatpush.msra.mxu0 %v346
    %v348 = vand.u32 %v20, 4294901760
    %v349 = vsub.f32 %v20, %v348
    %v350 = vand.u32 %v349, 4294901760
    %351 = vmatpush.msra.mxu0 %v350
    %v352 = vand.u32 %v19, 4294901760
    %v353 = vsub.f32 %v19, %v352
    %v354 = vand.u32 %v353, 4294901760
    %355 = vmatpush.msra.mxu0 %v354
    %v356 = vand.u32 %v53, 4294901760
    %357 = vmatmul.f32.gmra.mxu0 %v356
    %v358 = vpop.f32.mrf.mxu0
    %v359 = vadd.f32 %v290, %v358
    %360 = vdwg.mxu0
    %v361 = vand.u32 %v34, 4294901760
    %362 = vmatpush.msra.mxu0 %v361
    %v363 = vand.u32 %v33, 4294901760
    %364 = vmatpush.msra.mxu0 %v363
    %v365 = vand.u32 %v32, 4294901760
    %366 = vmatpush.msra.mxu0 %v365
    %v367 = vand.u32 %v31, 4294901760
    %368 = vmatpush.msra.mxu0 %v367
    %v369 = vand.u32 %v30, 4294901760
    %370 = vmatpush.msra.mxu0 %v369
    %v371 = vand.u32 %v29, 4294901760
    %372 = vmatpush.msra.mxu0 %v371
    %v373 = vand.u32 %v28, 4294901760
    %374 = vmatpush.msra.mxu0 %v373
    %v375 = vand.u32 %v27, 4294901760
    %376 = vmatpush.msra.mxu0 %v375
    %v377 = vand.u32 %v26, 4294901760
    %378 = vmatpush.msra.mxu0 %v377
    %v379 = vand.u32 %v25, 4294901760
    %380 = vmatpush.msra.mxu0 %v379
    %v381 = vand.u32 %v24, 4294901760
    %382 = vmatpush.msra.mxu0 %v381
    %v383 = vand.u32 %v23, 4294901760
    %384 = vmatpush.msra.mxu0 %v383
    %v385 = vand.u32 %v22, 4294901760
    %386 = vmatpush.msra.mxu0 %v385
    %v387 = vand.u32 %v21, 4294901760
    %388 = vmatpush.msra.mxu0 %v387
    %v389 = vand.u32 %v20, 4294901760
    %390 = vmatpush.msra.mxu0 %v389
    %v391 = vand.u32 %v19, 4294901760
    %392 = vmatpush.msra.mxu0 %v391
    %v393 = vand.u32 %v53, 4294901760
    %394 = vmatmul.f32.gmra.mxu0 %v393
    %v395 = vpop.f32.mrf.mxu0
    %v396 = vadd.f32 %v359, %v395
    %397 = vdwg.mxu0
    %v398 = vand.u32 %v50, 4294901760
    %399 = vmatpush.msra.mxu0 %v398
    %v400 = vand.u32 %v49, 4294901760
    %401 = vmatpush.msra.mxu0 %v400
    %v402 = vand.u32 %v48, 4294901760
    %403 = vmatpush.msra.mxu0 %v402
    %v404 = vand.u32 %v47, 4294901760
    %405 = vmatpush.msra.mxu0 %v404
    %v406 = vand.u32 %v46, 4294901760
    %407 = vmatpush.msra.mxu0 %v406
    %v408 = vand.u32 %v45, 4294901760
    %409 = vmatpush.msra.mxu0 %v408
    %v410 = vand.u32 %v44, 4294901760
    %411 = vmatpush.msra.mxu0 %v410
    %v412 = vand.u32 %v43, 4294901760
    %413 = vmatpush.msra.mxu0 %v412
    %v414 = vand.u32 %v42, 4294901760
    %415 = vmatpush.msra.mxu0 %v414
    %v416 = vand.u32 %v41, 4294901760
    %417 = vmatpush.msra.mxu0 %v416
    %v418 = vand.u32 %v40, 4294901760
    %419 = vmatpush.msra.mxu0 %v418
    %v420 = vand.u32 %v39, 4294901760
    %421 = vmatpush.msra.mxu0 %v420
    %v422 = vand.u32 %v38, 4294901760
    %423 = vmatpush.msra.mxu0 %v422
    %v424 = vand.u32 %v37, 4294901760
    %425 = vmatpush.msra.mxu0 %v424
    %v426 = vand.u32 %v36, 4294901760
    %427 = vmatpush.msra.mxu0 %v426
    %v428 = vand.u32 %v35, 4294901760
    %429 = vmatpush.msra.mxu0 %v428
    %v430 = vand.u32 %v54, 4294901760
    %v431 = vsub.f32 %v54, %v430
    %v432 = vand.u32 %v431, 4294901760
    %v433 = vsub.f32 %v431, %v432
    %v434 = vand.u32 %v433, 4294901760
    %435 = vmatmul.f32.gmra.mxu0 %v434
    %v436 = vpop.f32.mrf.mxu0
    %v437 = vadd.f32 %v396, %v436
    %438 = vdwg.mxu0
    %v439 = vand.u32 %v50, 4294901760
    %v440 = vsub.f32 %v50, %v439
    %v441 = vand.u32 %v440, 4294901760
    %v442 = vsub.f32 %v440, %v441
    %v443 = vand.u32 %v442, 4294901760
    %444 = vmatpush.msra.mxu0 %v443
    %v445 = vand.u32 %v49, 4294901760
    %v446 = vsub.f32 %v49, %v445
    %v447 = vand.u32 %v446, 4294901760
    %v448 = vsub.f32 %v446, %v447
    %v449 = vand.u32 %v448, 4294901760
    %450 = vmatpush.msra.mxu0 %v449
    %v451 = vand.u32 %v48, 4294901760
    %v452 = vsub.f32 %v48, %v451
    %v453 = vand.u32 %v452, 4294901760
    %v454 = vsub.f32 %v452, %v453
    %v455 = vand.u32 %v454, 4294901760
    %456 = vmatpush.msra.mxu0 %v455
    %v457 = vand.u32 %v47, 4294901760
    %v458 = vsub.f32 %v47, %v457
    %v459 = vand.u32 %v458, 4294901760
    %v460 = vsub.f32 %v458, %v459
    %v461 = vand.u32 %v460, 4294901760
    %462 = vmatpush.msra.mxu0 %v461
    %v463 = vand.u32 %v46, 4294901760
    %v464 = vsub.f32 %v46, %v463
    %v465 = vand.u32 %v464, 4294901760
    %v466 = vsub.f32 %v464, %v465
    %v467 = vand.u32 %v466, 4294901760
    %468 = vmatpush.msra.mxu0 %v467
    %v469 = vand.u32 %v45, 4294901760
    %v470 = vsub.f32 %v45, %v469
    %v471 = vand.u32 %v470, 4294901760
    %v472 = vsub.f32 %v470, %v471
    %v473 = vand.u32 %v472, 4294901760
    %474 = vmatpush.msra.mxu0 %v473
    %v475 = vand.u32 %v44, 4294901760
    %v476 = vsub.f32 %v44, %v475
    %v477 = vand.u32 %v476, 4294901760
    %v478 = vsub.f32 %v476, %v477
    %v479 = vand.u32 %v478, 4294901760
    %480 = vmatpush.msra.mxu0 %v479
    %v481 = vand.u32 %v43, 4294901760
    %v482 = vsub.f32 %v43, %v481
    %v483 = vand.u32 %v482, 4294901760
    %v484 = vsub.f32 %v482, %v483
    %v485 = vand.u32 %v484, 4294901760
    %486 = vmatpush.msra.mxu0 %v485
    %v487 = vand.u32 %v42, 4294901760
    %v488 = vsub.f32 %v42, %v487
    %v489 = vand.u32 %v488, 4294901760
    %v490 = vsub.f32 %v488, %v489
    %v491 = vand.u32 %v490, 4294901760
    %492 = vmatpush.msra.mxu0 %v491
    %v493 = vand.u32 %v41, 4294901760
    %v494 = vsub.f32 %v41, %v493
    %v495 = vand.u32 %v494, 4294901760
    %v496 = vsub.f32 %v494, %v495
    %v497 = vand.u32 %v496, 4294901760
    %498 = vmatpush.msra.mxu0 %v497
    %v499 = vand.u32 %v40, 4294901760
    %v500 = vsub.f32 %v40, %v499
    %v501 = vand.u32 %v500, 4294901760
    %v502 = vsub.f32 %v500, %v501
    %v503 = vand.u32 %v502, 4294901760
    %504 = vmatpush.msra.mxu0 %v503
    %v505 = vand.u32 %v39, 4294901760
    %v506 = vsub.f32 %v39, %v505
    %v507 = vand.u32 %v506, 4294901760
    %v508 = vsub.f32 %v506, %v507
    %v509 = vand.u32 %v508, 4294901760
    %510 = vmatpush.msra.mxu0 %v509
    %v511 = vand.u32 %v38, 4294901760
    %v512 = vsub.f32 %v38, %v511
    %v513 = vand.u32 %v512, 4294901760
    %v514 = vsub.f32 %v512, %v513
    %v515 = vand.u32 %v514, 4294901760
    %516 = vmatpush.msra.mxu0 %v515
    %v517 = vand.u32 %v37, 4294901760
    %v518 = vsub.f32 %v37, %v517
    %v519 = vand.u32 %v518, 4294901760
    %v520 = vsub.f32 %v518, %v519
    %v521 = vand.u32 %v520, 4294901760
    %522 = vmatpush.msra.mxu0 %v521
    %v523 = vand.u32 %v36, 4294901760
    %v524 = vsub.f32 %v36, %v523
    %v525 = vand.u32 %v524, 4294901760
    %v526 = vsub.f32 %v524, %v525
    %v527 = vand.u32 %v526, 4294901760
    %528 = vmatpush.msra.mxu0 %v527
    %v529 = vand.u32 %v35, 4294901760
    %v530 = vsub.f32 %v35, %v529
    %v531 = vand.u32 %v530, 4294901760
    %v532 = vsub.f32 %v530, %v531
    %v533 = vand.u32 %v532, 4294901760
    %534 = vmatpush.msra.mxu0 %v533
    %v535 = vand.u32 %v54, 4294901760
    %536 = vmatmul.f32.gmra.mxu0 %v535
    %v537 = vpop.f32.mrf.mxu0
    %v538 = vadd.f32 %v437, %v537
    %539 = vdwg.mxu0
    %v540 = vand.u32 %v50, 4294901760
    %v541 = vsub.f32 %v50, %v540
    %542 = vmatpush.msra.mxu0 %v541
    %v543 = vand.u32 %v49, 4294901760
    %v544 = vsub.f32 %v49, %v543
    %545 = vmatpush.msra.mxu0 %v544
    %v546 = vand.u32 %v48, 4294901760
    %v547 = vsub.f32 %v48, %v546
    %548 = vmatpush.msra.mxu0 %v547
    %v549 = vand.u32 %v47, 4294901760
    %v550 = vsub.f32 %v47, %v549
    %551 = vmatpush.msra.mxu0 %v550
    %v552 = vand.u32 %v46, 4294901760
    %v553 = vsub.f32 %v46, %v552
    %554 = vmatpush.msra.mxu0 %v553
    %v555 = vand.u32 %v45, 4294901760
    %v556 = vsub.f32 %v45, %v555
    %557 = vmatpush.msra.mxu0 %v556
    %v558 = vand.u32 %v44, 4294901760
    %v559 = vsub.f32 %v44, %v558
    %560 = vmatpush.msra.mxu0 %v559
    %v561 = vand.u32 %v43, 4294901760
    %v562 = vsub.f32 %v43, %v561
    %563 = vmatpush.msra.mxu0 %v562
    %v564 = vand.u32 %v42, 4294901760
    %v565 = vsub.f32 %v42, %v564
    %566 = vmatpush.msra.mxu0 %v565
    %v567 = vand.u32 %v41, 4294901760
    %v568 = vsub.f32 %v41, %v567
    %569 = vmatpush.msra.mxu0 %v568
    %v570 = vand.u32 %v40, 4294901760
    %v571 = vsub.f32 %v40, %v570
    %572 = vmatpush.msra.mxu0 %v571
    %v573 = vand.u32 %v39, 4294901760
    %v574 = vsub.f32 %v39, %v573
    %575 = vmatpush.msra.mxu0 %v574
    %v576 = vand.u32 %v38, 4294901760
    %v577 = vsub.f32 %v38, %v576
    %578 = vmatpush.msra.mxu0 %v577
    %v579 = vand.u32 %v37, 4294901760
    %v580 = vsub.f32 %v37, %v579
    %581 = vmatpush.msra.mxu0 %v580
    %v582 = vand.u32 %v36, 4294901760
    %v583 = vsub.f32 %v36, %v582
    %584 = vmatpush.msra.mxu0 %v583
    %v585 = vand.u32 %v35, 4294901760
    %v586 = vsub.f32 %v35, %v585
    %587 = vmatpush.msra.mxu0 %v586
    %v588 = vand.u32 %v54, 4294901760
    %v589 = vsub.f32 %v54, %v588
    %590 = vmatmul.f32.gmra.mxu0 %v589
    %v591 = vpop.f32.mrf.mxu0
    %v592 = vadd.f32 %v538, %v591
    %593 = vdwg.mxu0
    %v594 = vand.u32 %v50, 4294901760
    %595 = vmatpush.msra.mxu0 %v594
    %v596 = vand.u32 %v49, 4294901760
    %597 = vmatpush.msra.mxu0 %v596
    %v598 = vand.u32 %v48, 4294901760
    %599 = vmatpush.msra.mxu0 %v598
    %v600 = vand.u32 %v47, 4294901760
    %601 = vmatpush.msra.mxu0 %v600
    %v602 = vand.u32 %v46, 4294901760
    %603 = vmatpush.msra.mxu0 %v602
    %v604 = vand.u32 %v45, 4294901760
    %605 = vmatpush.msra.mxu0 %v604
    %v606 = vand.u32 %v44, 4294901760
    %607 = vmatpush.msra.mxu0 %v606
    %v608 = vand.u32 %v43, 4294901760
    %609 = vmatpush.msra.mxu0 %v608
    %v610 = vand.u32 %v42, 4294901760
    %611 = vmatpush.msra.mxu0 %v610
    %v612 = vand.u32 %v41, 4294901760
    %613 = vmatpush.msra.mxu0 %v612
    %v614 = vand.u32 %v40, 4294901760
    %615 = vmatpush.msra.mxu0 %v614
    %v616 = vand.u32 %v39, 4294901760
    %617 = vmatpush.msra.mxu0 %v616
    %v618 = vand.u32 %v38, 4294901760
    %619 = vmatpush.msra.mxu0 %v618
    %v620 = vand.u32 %v37, 4294901760
    %621 = vmatpush.msra.mxu0 %v620
    %v622 = vand.u32 %v36, 4294901760
    %623 = vmatpush.msra.mxu0 %v622
    %v624 = vand.u32 %v35, 4294901760
    %625 = vmatpush.msra.mxu0 %v624
    %v626 = vand.u32 %v54, 4294901760
    %v627 = vsub.f32 %v54, %v626
    %v628 = vand.u32 %v627, 4294901760
    %629 = vmatmul.f32.gmra.mxu0 %v628
    %v630 = vpop.f32.mrf.mxu0
    %v631 = vadd.f32 %v592, %v630
    %632 = vdwg.mxu0
    %v633 = vand.u32 %v50, 4294901760
    %v634 = vsub.f32 %v50, %v633
    %v635 = vand.u32 %v634, 4294901760
    %636 = vmatpush.msra.mxu0 %v635
    %v637 = vand.u32 %v49, 4294901760
    %v638 = vsub.f32 %v49, %v637
    %v639 = vand.u32 %v638, 4294901760
    %640 = vmatpush.msra.mxu0 %v639
    %v641 = vand.u32 %v48, 4294901760
    %v642 = vsub.f32 %v48, %v641
    %v643 = vand.u32 %v642, 4294901760
    %644 = vmatpush.msra.mxu0 %v643
    %v645 = vand.u32 %v47, 4294901760
    %v646 = vsub.f32 %v47, %v645
    %v647 = vand.u32 %v646, 4294901760
    %648 = vmatpush.msra.mxu0 %v647
    %v649 = vand.u32 %v46, 4294901760
    %v650 = vsub.f32 %v46, %v649
    %v651 = vand.u32 %v650, 4294901760
    %652 = vmatpush.msra.mxu0 %v651
    %v653 = vand.u32 %v45, 4294901760
    %v654 = vsub.f32 %v45, %v653
    %v655 = vand.u32 %v654, 4294901760
    %656 = vmatpush.msra.mxu0 %v655
    %v657 = vand.u32 %v44, 4294901760
    %v658 = vsub.f32 %v44, %v657
    %v659 = vand.u32 %v658, 4294901760
    %660 = vmatpush.msra.mxu0 %v659
    %v661 = vand.u32 %v43, 4294901760
    %v662 = vsub.f32 %v43, %v661
    %v663 = vand.u32 %v662, 4294901760
    %664 = vmatpush.msra.mxu0 %v663
    %v665 = vand.u32 %v42, 4294901760
    %v666 = vsub.f32 %v42, %v665
    %v667 = vand.u32 %v666, 4294901760
    %668 = vmatpush.msra.mxu0 %v667
    %v669 = vand.u32 %v41, 4294901760
    %v670 = vsub.f32 %v41, %v669
    %v671 = vand.u32 %v670, 4294901760
    %672 = vmatpush.msra.mxu0 %v671
    %v673 = vand.u32 %v40, 4294901760
    %v674 = vsub.f32 %v40, %v673
    %v675 = vand.u32 %v674, 4294901760
    %676 = vmatpush.msra.mxu0 %v675
    %v677 = vand.u32 %v39, 4294901760
    %v678 = vsub.f32 %v39, %v677
    %v679 = vand.u32 %v678, 4294901760
    %680 = vmatpush.msra.mxu0 %v679
    %v681 = vand.u32 %v38, 4294901760
    %v682 = vsub.f32 %v38, %v681
    %v683 = vand.u32 %v682, 4294901760
    %684 = vmatpush.msra.mxu0 %v683
    %v685 = vand.u32 %v37, 4294901760
    %v686 = vsub.f32 %v37, %v685
    %v687 = vand.u32 %v686, 4294901760
    %688 = vmatpush.msra.mxu0 %v687
    %v689 = vand.u32 %v36, 4294901760
    %v690 = vsub.f32 %v36, %v689
    %v691 = vand.u32 %v690, 4294901760
    %692 = vmatpush.msra.mxu0 %v691
    %v693 = vand.u32 %v35, 4294901760
    %v694 = vsub.f32 %v35, %v693
    %v695 = vand.u32 %v694, 4294901760
    %696 = vmatpush.msra.mxu0 %v695
    %v697 = vand.u32 %v54, 4294901760
    %698 = vmatmul.f32.gmra.mxu0 %v697
    %v699 = vpop.f32.mrf.mxu0
    %v700 = vadd.f32 %v631, %v699
    %701 = vdwg.mxu0
    %v702 = vand.u32 %v50, 4294901760
    %703 = vmatpush.msra.mxu0 %v702
    %v704 = vand.u32 %v49, 4294901760
    %705 = vmatpush.msra.mxu0 %v704
    %v706 = vand.u32 %v48, 4294901760
    %707 = vmatpush.msra.mxu0 %v706
    %v708 = vand.u32 %v47, 4294901760
    %709 = vmatpush.msra.mxu0 %v708
    %v710 = vand.u32 %v46, 4294901760
    %711 = vmatpush.msra.mxu0 %v710
    %v712 = vand.u32 %v45, 4294901760
    %713 = vmatpush.msra.mxu0 %v712
    %v714 = vand.u32 %v44, 4294901760
    %715 = vmatpush.msra.mxu0 %v714
    %v716 = vand.u32 %v43, 4294901760
    %717 = vmatpush.msra.mxu0 %v716
    %v718 = vand.u32 %v42, 4294901760
    %719 = vmatpush.msra.mxu0 %v718
    %v720 = vand.u32 %v41, 4294901760
    %721 = vmatpush.msra.mxu0 %v720
    %v722 = vand.u32 %v40, 4294901760
    %723 = vmatpush.msra.mxu0 %v722
    %v724 = vand.u32 %v39, 4294901760
    %725 = vmatpush.msra.mxu0 %v724
    %v726 = vand.u32 %v38, 4294901760
    %727 = vmatpush.msra.mxu0 %v726
    %v728 = vand.u32 %v37, 4294901760
    %729 = vmatpush.msra.mxu0 %v728
    %v730 = vand.u32 %v36, 4294901760
    %731 = vmatpush.msra.mxu0 %v730
    %v732 = vand.u32 %v35, 4294901760
    %733 = vmatpush.msra.mxu0 %v732
    %v734 = vand.u32 %v54, 4294901760
    %735 = vmatmul.f32.gmra.mxu0 %v734
    %v736 = vpop.f32.mrf.mxu0
    %v737 = vadd.f32 %v700, %v736
    %738 = vdwg.mxu0
    %v739 = vld [vmem:[%s2] sm:$0xff]
    %v740 = vld [vmem:[%s2 + $0x8] sm:$0xff]
    %v741 = vld [vmem:[%s2 + $0x10] sm:$0xff]
    %v742 = vld [vmem:[%s2 + $0x18] sm:$0xff]
    %v743 = vld [vmem:[%s3] sm:$0x1]
    %v745 = vperm.slane %v743, 0
    %vm747 = vcmask 261120
    %v749 = vsel %vm747, %v737, 0
    %751 = vmatpush.msra.mxu0 0.0
    %752 = vmatpush.msra.mxu0 0.0
    %753 = vmatpush.msra.mxu0 0.0
    %754 = vmatpush.msra.mxu0 0.0
    %755 = vmatpush.msra.mxu0 0.0
    %756 = vmatpush.msra.mxu0 0.0
    %757 = vmatpush.msra.mxu0 0.0
    %758 = vmatpush.msra.mxu0 0.0
    %759 = vmatpush.msra.mxu0 0.0
    %760 = vmatpush.msra.mxu0 0.0
    %761 = vmatpush.msra.mxu0 0.0
    %762 = vmatpush.msra.mxu0 0.0
    %v763 = vand.u32 %v742, 4294901760
    %764 = vmatpush.msra.mxu0 %v763
    %v765 = vand.u32 %v741, 4294901760
    %766 = vmatpush.msra.mxu0 %v765
    %v767 = vand.u32 %v740, 4294901760
    %768 = vmatpush.msra.mxu0 %v767
    %v769 = vand.u32 %v739, 4294901760
    %770 = vmatpush.msra.mxu0 %v769
    %v771 = vand.u32 %v749, 4294901760
    %v772 = vsub.f32 %v749, %v771
    %v773 = vand.u32 %v772, 4294901760
    %v774 = vsub.f32 %v772, %v773
    %v775 = vand.u32 %v774, 4294901760
    %776 = vmatmul.f32.gmra.mxu0 %v775
    %v777 = vpop.f32.mrf.mxu0
    %v778 = vadd.f32 %v745, %v777
    %779 = vdwg.mxu0
    %780 = vmatpush.msra.mxu0 0.0
    %781 = vmatpush.msra.mxu0 0.0
    %782 = vmatpush.msra.mxu0 0.0
    %783 = vmatpush.msra.mxu0 0.0
    %784 = vmatpush.msra.mxu0 0.0
    %785 = vmatpush.msra.mxu0 0.0
    %786 = vmatpush.msra.mxu0 0.0
    %787 = vmatpush.msra.mxu0 0.0
    %788 = vmatpush.msra.mxu0 0.0
    %789 = vmatpush.msra.mxu0 0.0
    %790 = vmatpush.msra.mxu0 0.0
    %791 = vmatpush.msra.mxu0 0.0
    %v792 = vand.u32 %v742, 4294901760
    %v793 = vsub.f32 %v742, %v792
    %v794 = vand.u32 %v793, 4294901760
    %v795 = vsub.f32 %v793, %v794
    %v796 = vand.u32 %v795, 4294901760
    %797 = vmatpush.msra.mxu0 %v796
    %v798 = vand.u32 %v741, 4294901760
    %v799 = vsub.f32 %v741, %v798
    %v800 = vand.u32 %v799, 4294901760
    %v801 = vsub.f32 %v799, %v800
    %v802 = vand.u32 %v801, 4294901760
    %803 = vmatpush.msra.mxu0 %v802
    %v804 = vand.u32 %v740, 4294901760
    %v805 = vsub.f32 %v740, %v804
    %v806 = vand.u32 %v805, 4294901760
    %v807 = vsub.f32 %v805, %v806
    %v808 = vand.u32 %v807, 4294901760
    %809 = vmatpush.msra.mxu0 %v808
    %v810 = vand.u32 %v739, 4294901760
    %v811 = vsub.f32 %v739, %v810
    %v812 = vand.u32 %v811, 4294901760
    %v813 = vsub.f32 %v811, %v812
    %v814 = vand.u32 %v813, 4294901760
    %815 = vmatpush.msra.mxu0 %v814
    %v816 = vand.u32 %v749, 4294901760
    %817 = vmatmul.f32.gmra.mxu0 %v816
    %v818 = vpop.f32.mrf.mxu0
    %v819 = vadd.f32 %v778, %v818
    %820 = vdwg.mxu0
    %821 = vmatpush.msra.mxu0 0.0
    %822 = vmatpush.msra.mxu0 0.0
    %823 = vmatpush.msra.mxu0 0.0
    %824 = vmatpush.msra.mxu0 0.0
    %825 = vmatpush.msra.mxu0 0.0
    %826 = vmatpush.msra.mxu0 0.0
    %827 = vmatpush.msra.mxu0 0.0
    %828 = vmatpush.msra.mxu0 0.0
    %829 = vmatpush.msra.mxu0 0.0
    %830 = vmatpush.msra.mxu0 0.0
    %831 = vmatpush.msra.mxu0 0.0
    %832 = vmatpush.msra.mxu0 0.0
    %v833 = vand.u32 %v742, 4294901760
    %v834 = vsub.f32 %v742, %v833
    %835 = vmatpush.msra.mxu0 %v834
    %v836 = vand.u32 %v741, 4294901760
    %v837 = vsub.f32 %v741, %v836
    %838 = vmatpush.msra.mxu0 %v837
    %v839 = vand.u32 %v740, 4294901760
    %v840 = vsub.f32 %v740, %v839
    %841 = vmatpush.msra.mxu0 %v840
    %v842 = vand.u32 %v739, 4294901760
    %v843 = vsub.f32 %v739, %v842
    %844 = vmatpush.msra.mxu0 %v843
    %v845 = vand.u32 %v749, 4294901760
    %v846 = vsub.f32 %v749, %v845
    %847 = vmatmul.f32.gmra.mxu0 %v846
    %v848 = vpop.f32.mrf.mxu0
    %v849 = vadd.f32 %v819, %v848
    %850 = vdwg.mxu0
    %851 = vmatpush.msra.mxu0 0.0
    %852 = vmatpush.msra.mxu0 0.0
    %853 = vmatpush.msra.mxu0 0.0
    %854 = vmatpush.msra.mxu0 0.0
    %855 = vmatpush.msra.mxu0 0.0
    %856 = vmatpush.msra.mxu0 0.0
    %857 = vmatpush.msra.mxu0 0.0
    %858 = vmatpush.msra.mxu0 0.0
    %859 = vmatpush.msra.mxu0 0.0
    %860 = vmatpush.msra.mxu0 0.0
    %861 = vmatpush.msra.mxu0 0.0
    %862 = vmatpush.msra.mxu0 0.0
    %v863 = vand.u32 %v742, 4294901760
    %864 = vmatpush.msra.mxu0 %v863
    %v865 = vand.u32 %v741, 4294901760
    %866 = vmatpush.msra.mxu0 %v865
    %v867 = vand.u32 %v740, 4294901760
    %868 = vmatpush.msra.mxu0 %v867
    %v869 = vand.u32 %v739, 4294901760
    %870 = vmatpush.msra.mxu0 %v869
    %v871 = vand.u32 %v749, 4294901760
    %v872 = vsub.f32 %v749, %v871
    %v873 = vand.u32 %v872, 4294901760
    %874 = vmatmul.f32.gmra.mxu0 %v873
    %v875 = vpop.f32.mrf.mxu0
    %v876 = vadd.f32 %v849, %v875
    %877 = vdwg.mxu0
    %878 = vmatpush.msra.mxu0 0.0
    %879 = vmatpush.msra.mxu0 0.0
    %880 = vmatpush.msra.mxu0 0.0
    %881 = vmatpush.msra.mxu0 0.0
    %882 = vmatpush.msra.mxu0 0.0
    %883 = vmatpush.msra.mxu0 0.0
    %884 = vmatpush.msra.mxu0 0.0
    %885 = vmatpush.msra.mxu0 0.0
    %886 = vmatpush.msra.mxu0 0.0
    %887 = vmatpush.msra.mxu0 0.0
    %888 = vmatpush.msra.mxu0 0.0
    %889 = vmatpush.msra.mxu0 0.0
    %v890 = vand.u32 %v742, 4294901760
    %v891 = vsub.f32 %v742, %v890
    %v892 = vand.u32 %v891, 4294901760
    %893 = vmatpush.msra.mxu0 %v892
    %v894 = vand.u32 %v741, 4294901760
    %v895 = vsub.f32 %v741, %v894
    %v896 = vand.u32 %v895, 4294901760
    %897 = vmatpush.msra.mxu0 %v896
    %v898 = vand.u32 %v740, 4294901760
    %v899 = vsub.f32 %v740, %v898
    %v900 = vand.u32 %v899, 4294901760
    %901 = vmatpush.msra.mxu0 %v900
    %v902 = vand.u32 %v739, 4294901760
    %v903 = vsub.f32 %v739, %v902
    %v904 = vand.u32 %v903, 4294901760
    %905 = vmatpush.msra.mxu0 %v904
    %v906 = vand.u32 %v749, 4294901760
    %907 = vmatmul.f32.gmra.mxu0 %v906
    %v908 = vpop.f32.mrf.mxu0
    %v909 = vadd.f32 %v876, %v908
    %910 = vdwg.mxu0
    %911 = vmatpush.msra.mxu0 0.0
    %912 = vmatpush.msra.mxu0 0.0
    %913 = vmatpush.msra.mxu0 0.0
    %914 = vmatpush.msra.mxu0 0.0
    %915 = vmatpush.msra.mxu0 0.0
    %916 = vmatpush.msra.mxu0 0.0
    %917 = vmatpush.msra.mxu0 0.0
    %918 = vmatpush.msra.mxu0 0.0
    %919 = vmatpush.msra.mxu0 0.0
    %920 = vmatpush.msra.mxu0 0.0
    %921 = vmatpush.msra.mxu0 0.0
    %922 = vmatpush.msra.mxu0 0.0
    %v923 = vand.u32 %v742, 4294901760
    %924 = vmatpush.msra.mxu0 %v923
    %v925 = vand.u32 %v741, 4294901760
    %926 = vmatpush.msra.mxu0 %v925
    %v927 = vand.u32 %v740, 4294901760
    %928 = vmatpush.msra.mxu0 %v927
    %v929 = vand.u32 %v739, 4294901760
    %930 = vmatpush.msra.mxu0 %v929
    %v931 = vand.u32 %v749, 4294901760
    %932 = vmatmul.f32.gmra.mxu0 %v931
    %v933 = vpop.f32.mrf.mxu0
    %v934 = vadd.f32 %v909, %v933
    %935 = vdwg.mxu0
    %vm936 = vcmask 25600
    %v937 = vsel %vm936, %v934, -inf
    %938 = vmax.xlane.f32.xlu0 %v937
    %v939 = vpop.xlane.xlu0 %938
    %v940 = vsub.f32 %v934, %v939
    %v941 = vmul.f32 %v940, 1.442695
    %v942 = vpow.pop %v941
    %v943 = vsel %vm936, %v942, 0.0
    %944 = vadd.xlane.f32.xlu0 %v943
    %v945 = vpop.xlane.xlu0 %944
    %v946 = vlog2.pop %v945
    %v947 = vmul.f32 %v946, 0.6931472
    %v948 = vadd.f32 %v947, %v939
    %v949 = vsub.f32 %v934, %v948
    %950 = vst.msk [vmem:[#allocation2] sm:$0x3] %vm936, %v949
    // Predicated region
    $region18: #{shglnn_forward.11} parent=1 // pred_check
      _
    $region19: #{shglnn_forward.11} parent=1 // pred_check_branch
      %952 = sbr.rel (0) target = $region21
    $region20: #{shglnn_forward.11} parent=1 // pred_region
      %954 = vsyncadd [#allocation3], 0
      %s956 = sshll.u32 [#allocation2], 4
      %s957 = int_to_ptr.vmem [resolvable:$true] %s956
      %s958 = sshll.u32 %s4, 4
      %s959 = int_to_ptr.hbm [resolvable:$true] %s958
      %961 = dma.vmem_to_hbm [thread:$0]  %s957, 32, %s959, [#allocation3]
    $region21: #{shglnn_forward.11} parent=1 // pred_fallthru
      _
    // Predicated region
    $region22: #{shglnn_forward.11} parent=1 // pred_check
      _
    $region23: #{shglnn_forward.11} parent=1 // pred_check_branch
      %963 = sbr.rel (0) target = $region25
    $region24: #{shglnn_forward.11} parent=1 // pred_region
      %965 = dma.done [#allocation3], 32
    $region25: #{shglnn_forward.11} parent=1 // pred_fallthru
      _
    %966 = vsyncpa [#allocation3], 1

</llo_original>
